<compile_context>
chip_gen: v5e
topology: v5e:2x2
jax: 0.10.0
libtpu: 0.0.40
codegen_flags: <defaults>
</compile_context>

<pallas_src>
import functools

import jax
import jax.numpy as jnp
from jax import lax
from jax.experimental import pallas as pl
from jax.experimental.pallas import tpu as pltpu

# Geometry: 28x28x1 -> conv5 -> 24x24x16 -> conv5 -> 20x20x32 -> pool2 ->
# 10x10x32 -> conv5 -> 6x6x64 -> pool2 -> 3x3x64 -> fc 576->100 -> fc 100->10
IMG = 28
IMG2 = IMG * IMG          # 784
K = 5
C1, C2, C3 = 16, 32, 64
FC1_PAD = 128             # fc1 width 100 zero-padded to a full 128-lane slab
OUT_PAD = 128             # logits (10) zero-padded to 128 lanes (dense store)
OFF2 = 4                  # leading row pad of the conv2 operand slab
B2_TAIL = (K - 1) * IMG   # 112: extra readable rows past M for the di shifts
B3_TAIL = (K - 1) * 10    # 40:  extra readable rows past M3


def fused_cnn_kernel(x_ref, w1_ref, b1_ref, w2_ref, b2_ref, w3_ref, b3_ref,
                     wf1_ref, bf1_ref, wf2_ref, bf2_ref, out_ref,
                     b2s, h2s, a3s, b3s, h3s, *, tile_n):
    T = tile_n
    M = T * IMG2            # rows of the 28-stride activation slab
    M3 = T * 100            # rows of the 10-stride (post-pool1) slab
    f32, bf16 = jnp.float32, jnp.bfloat16

    # Zero the read-but-never-written tail of the conv2 operand slab so junk
    # rows stay finite/deterministic (they only ever feed invalid outputs).
    b2s[OFF2 + M - (K - 1):OFF2 + M + B2_TAIL, :] = jnp.zeros(
        (B2_TAIL + K - 1, K * C1), bf16)

    # ---- conv1 1->16 as ONE MXU matmul per image + dj-expanded store --------
    # x_ref row r = n*784 + h*28 + w holds the 25-tap patch at (h, w).
    # w1 is lane-replicated x5 so each dj block of the output is already in the
    # lanes it must occupy inside the 80-wide conv2 operand slab (no rotates).
    for n in range(T):
        r0 = n * IMG2
        h1 = jnp.dot(x_ref[r0:r0 + IMG2, :], w1_ref[...],
                     preferred_element_type=f32) + b1_ref[...]
        h1 = jnp.maximum(h1, 0.0).astype(bf16)              # (784, 80)
        for dj in range(K):
            lo = dj * C1
            b2s[OFF2 + r0 - dj:OFF2 + r0 - dj + IMG2, lo:lo + C1] = \
                h1[:, lo:lo + C1]

    # ---- conv2 16->32: 5 matmuls with K = 5*16 = 80 (dj folded into lanes) --
    for n in range(T):
        r0 = n * IMG2
        acc = jnp.dot(b2s[OFF2 + r0:OFF2 + r0 + IMG2, :], w2_ref[0],
                      preferred_element_type=f32)
        for di in range(1, K):
            s = OFF2 + r0 + di * IMG
            acc = acc + jnp.dot(b2s[s:s + IMG2, :], w2_ref[di],
                                preferred_element_type=f32)
        h2s[r0:r0 + IMG2, :] = jnp.maximum(acc + b2_ref[...], 0.0)

    # ---- maxpool1 (2x2/2): strided-row gather + 4-way max -> compact slab ---
    for n in range(T):
        for hp in range(10):
            b = n * IMG2 + 2 * hp * IMG
            p00 = h2s[pl.ds(b, 10, stride=2), :]
            p01 = h2s[pl.ds(b + 1, 10, stride=2), :]
            p10 = h2s[pl.ds(b + IMG, 10, stride=2), :]
            p11 = h2s[pl.ds(b + IMG + 1, 10, stride=2), :]
            pooled = jnp.maximum(jnp.maximum(p00, p01), jnp.maximum(p10, p11))
            a3s[n * 100 + hp * 10:n * 100 + (hp + 1) * 10, :] = \
                pooled.astype(bf16)

    # ---- build conv3 operand slab (dj folded: 5*32 = 160 lanes) -------------
    b3s[M3 - (K - 1):M3 + B3_TAIL, :] = jnp.zeros(
        (B3_TAIL + K - 1, K * C2), bf16)
    for dj in range(K):
        lo = dj * C2
        b3s[0:M3 - dj, lo:lo + C2] = a3s[dj:M3, :]

    # ---- conv3 32->64: 5 matmuls with K = 5*32 = 160 ------------------------
    acc3 = jnp.dot(b3s[0:M3, :], w3_ref[0], preferred_element_type=f32)
    for di in range(1, K):
        acc3 = acc3 + jnp.dot(b3s[di * 10:di * 10 + M3, :], w3_ref[di],
                              preferred_element_type=f32)
    h3s[...] = jnp.maximum(acc3 + b3_ref[...], 0.0)

    # ---- maxpool2 + flatten + fc1 fused: 9 strided tap-gathers + matmuls ----
    # The torch NCHW flatten permutation is folded into wf1 (shape (9,64,128)).
    z = jnp.zeros((T, FC1_PAD), f32)
    for hp in range(3):
        for wp in range(3):
            base = 2 * hp * 10 + 2 * wp
            q00 = h3s[pl.ds(base, T, stride=100), :]
            q01 = h3s[pl.ds(base + 1, T, stride=100), :]
            q10 = h3s[pl.ds(base + 10, T, stride=100), :]
            q11 = h3s[pl.ds(base + 11, T, stride=100), :]
            v = jnp.maximum(jnp.maximum(q00, q01), jnp.maximum(q10, q11))
            z = z + jnp.dot(v.astype(bf16), wf1_ref[hp * 3 + wp],
                            preferred_element_type=f32)
    z = jnp.maximum(z + bf1_ref[...], 0.0)                   # fc1 + relu
    logits = jnp.dot(z.astype(bf16), wf2_ref[...],
                     preferred_element_type=f32) + bf2_ref[...]
    out_ref[0, :, :] = logits                                # lane-dense store


# ------------------------------- parameters ---------------------------------

def init_params(key):
    """torch-layout params, torch-style uniform(-1/sqrt(fan_in), +) init."""
    def uniform(k, shape, fan_in):
        bound = 1.0 / (fan_in ** 0.5)
        return jax.random.uniform(k, shape, jnp.float32, -bound, bound)

    ks = jax.random.split(key, 10)
    return {
        "w1": uniform(ks[0], (C1, 1, K, K), 1 * 25),  "b1": uniform(ks[1], (C1,), 1 * 25),
        "w2": uniform(ks[2], (C2, C1, K, K), C1 * 25), "b2": uniform(ks[3], (C2,), C1 * 25),
        "w3": uniform(ks[4], (C3, C2, K, K), C2 * 25), "b3": uniform(ks[5], (C3,), C2 * 25),
        "wf1": uniform(ks[6], (100, C3 * 9), C3 * 9),  "bf1": uniform(ks[7], (100,), C3 * 9),
        "wf2": uniform(ks[8], (10, 100), 100),         "bf2": uniform(ks[9], (10,), 100),
    }


def prepare_params(p):
    """Convert torch-layout params to the kernel layout once (bf16 MXU weights)."""
    f32, bf16 = jnp.float32, jnp.bfloat16
    # conv1: (25, 16) replicated x5 along lanes -> (25, 80)
    w1 = jnp.transpose(p["w1"], (2, 3, 1, 0)).reshape(K * K, C1)
    w1rep = jnp.tile(w1, (1, K)).astype(bf16)
    b1rep = jnp.tile(p["b1"].reshape(1, C1), (1, K)).astype(f32)
    # conv2/conv3: (di, dj*Cin + ci, Cout) so dj+ci sit in the contraction dim.
    w2d = jnp.transpose(p["w2"], (2, 3, 1, 0)).reshape(K, K * C1, C2).astype(bf16)
    w3d = jnp.transpose(p["w3"], (2, 3, 1, 0)).reshape(K, K * C2, C3).astype(bf16)
    # fc1: torch flattens NCHW (flat = c*9 + hp*3 + wp); the kernel gathers per
    # (hp,wp) tap with 64 channels in lanes -> reshape wf1 to (9, 64, 100).
    wf1 = jnp.transpose(p["wf1"].reshape(100, C3, 9), (2, 1, 0))
    wf1 = jnp.pad(wf1, ((0, 0), (0, 0), (0, FC1_PAD - 100))).astype(bf16)
    wf2 = jnp.pad(p["wf2"].T, ((0, FC1_PAD - 100), (0, OUT_PAD - 10))).astype(bf16)
    return {
        "w1": w1rep, "b1": b1rep,
        "w2": w2d, "b2": p["b2"].reshape(1, C2).astype(f32),
        "w3": w3d, "b3": p["b3"].reshape(1, C3).astype(f32),
        "wf1": wf1,
        "bf1": jnp.pad(p["bf1"], (0, FC1_PAD - 100)).reshape(1, FC1_PAD).astype(f32),
        "wf2": wf2,
        "bf2": jnp.pad(p["bf2"], (0, OUT_PAD - 10)).reshape(1, OUT_PAD).astype(f32),
    }


def _build_im2col(x_nchw, n_pad):
    """(N,1,28,28) -> (n_pad*784, 25) bf16 patch slab, row = n*784 + h*28 + w."""
    n = x_nchw.shape[0]
    xf = x_nchw.reshape(n, IMG2).astype(jnp.float32)
    if n_pad != n:
        xf = jnp.pad(xf, ((0, n_pad - n), (0, 0)))
    xf = jnp.pad(xf, ((0, 0), (0, (K - 1) * IMG + K - 1)))      # (n_pad, 900)
    cols = [xf[:, di * IMG + dj:di * IMG + dj + IMG2]
            for di in range(K) for dj in range(K)]
    xim = jnp.stack(cols, axis=-1)                              # (n_pad, 784, 25)
    return xim.reshape(n_pad * IMG2, K * K).astype(jnp.bfloat16)


# --------------------------------- forward ----------------------------------

def _const_spec(shape):
    zeros = (0,) * len(shape)
    return pl.BlockSpec(shape, lambda i, _z=zeros: _z)


@functools.partial(jax.jit, static_argnames=("tile_n",))
def cnn_forward(x_nchw, kp, *, tile_n=8):
    """x_nchw: (N, 1, 28, 28) f32 -> logits (N, 10)."""
    n = x_nchw.shape[0]
    # Keep >= 2 grid steps whenever N >= 2 so ("parallel",) can split the grid
    # across both TensorCores on v7x; cap the per-step tile at tile_n images.
    t = max(1, min(tile_n, -(-n // 2)))
    n_tiles = -(-n // t)
    n_pad = n_tiles * t

    xim = _build_im2col(x_nchw, n_pad)
    m = t * IMG2
    m3 = t * 100
    kernel = functools.partial(fused_cnn_kernel, tile_n=t)

    out = pl.pallas_call(
        kernel,
        out_shape=jax.ShapeDtypeStruct((n_tiles, t, OUT_PAD), jnp.float32),
        grid_spec=pltpu.PrefetchScalarGridSpec(
            num_scalar_prefetch=0,
            grid=(n_tiles,),
            in_specs=[
                pl.BlockSpec((m, K * K), lambda i: (i, 0)),     # im2col tile
                _const_spec((K * K, K * C1)), _const_spec((1, K * C1)),   # conv1
                _const_spec((K, K * C1, C2)), _const_spec((1, C2)),       # conv2
                _const_spec((K, K * C2, C3)), _const_spec((1, C3)),       # conv3
                _const_spec((9, C3, FC1_PAD)), _const_spec((1, FC1_PAD)), # fc1
                _const_spec((FC1_PAD, OUT_PAD)), _const_spec((1, OUT_PAD)),  # fc2
            ],
            out_specs=pl.BlockSpec((1, t, OUT_PAD), lambda i: (i, 0, 0)),
            scratch_shapes=[
                pltpu.VMEM((OFF2 + m + B2_TAIL, K * C1), jnp.bfloat16),  # conv2 operand
                pltpu.VMEM((m, C2), jnp.float32),                        # conv2 output
                pltpu.VMEM((m3, C2), jnp.bfloat16),                      # pool1 output
                pltpu.VMEM((m3 + B3_TAIL, K * C2), jnp.bfloat16),        # conv3 operand
                pltpu.VMEM((m3, C3), jnp.float32),                       # conv3 output
            ],
        ),
        compiler_params=pltpu.CompilerParams(
            dimension_semantics=("parallel",),          # dual-TC on v7x
            vmem_limit_bytes=32 * 1024 * 1024,          # ~11MB used at tile_n=8
        ),
    )(xim, kp["w1"], kp["b1"], kp["w2"], kp["b2"], kp["w3"], kp["b3"],
      kp["wf1"], kp["bf1"], kp["wf2"], kp["bf2"])

    return out.reshape(n_pad, OUT_PAD)[:n, :10]


# ------------------------- pure-JAX reference (check) -----------------------

@jax.jit
def reference_forward(x_nchw, p):
    """XLA reference with the same bf16 rounding of matmul inputs as the kernel."""
    f32, bf16 = jnp.float32, jnp.bfloat16
    hi = lax.Precision.HIGHEST
    q = lambda a: a.astype(bf16).astype(f32)

    def conv(x, w, b):
        wk = jnp.transpose(w, (2, 3, 1, 0)).astype(f32)        # HWIO
        y = lax.conv_general_dilated(q(x), q(wk), (1, 1), "VALID",
                                     dimension_numbers=("NHWC", "HWIO", "NHWC"),
                                     precision=hi)
        return jnp.maximum(y + b, 0.0)

    def pool(x):
        return lax.reduce_window(x, -jnp.inf, lax.max,
                                 (1, 2, 2, 1), (1, 2, 2, 1), "VALID")

    x = jnp.transpose(x_nchw, (0, 2, 3, 1)).astype(f32)
    x = conv(x, p["w1"], p["b1"])
    x = pool(conv(x, p["w2"], p["b2"]))
    x = pool(conv(x, p["w3"], p["b3"]))
    n = x.shape[0]
    x = jnp.transpose(x, (0, 3, 1, 2)).reshape(n, -1)          # torch NCHW flatten
    h = jnp.maximum(jnp.dot(q(x), q(p["wf1"].T), precision=hi) + p["bf1"], 0.0)
    return jnp.dot(q(h), q(p["wf2"].T), precision=hi) + p["bf2"]


if __name__ == "__main__":
    key = jax.random.PRNGKey(0)
    kx, kparam = jax.random.split(key)
    # fc1 = Linear(64*3*3, 100) pins the input to 1x28x28 (Fashion-MNIST).
    x = jax.random.normal(kx, (2, 1, 28, 28), jnp.float32)
    params = init_params(kparam)
    kparams = prepare_params(params)

    logits = jax.block_until_ready(cnn_forward(x, kparams))

    assert logits.shape == (2, 10), logits.shape
    assert bool(jnp.all(jnp.isfinite(logits)))

    ref = jax.block_until_ready(reference_forward(x, params))
    assert bool(jnp.allclose(logits, ref, atol=5e-2, rtol=5e-2)), (
        float(jnp.max(jnp.abs(logits - ref))))

    print("KERNEL_OK")
</pallas_src>

<mosaic_0001>
module attributes {stable_mosaic.version = 11 : i64} {
  func.func @fused_cnn_kernel(%arg0: i32, %arg1: memref<784x25xbf16, #tpu.memory_space<vmem>>, %arg2: memref<25x80xbf16, #tpu.memory_space<vmem>>, %arg3: memref<1x80xf32, #tpu.memory_space<vmem>>, %arg4: memref<5x80x32xbf16, #tpu.memory_space<vmem>>, %arg5: memref<1x32xf32, #tpu.memory_space<vmem>>, %arg6: memref<5x160x64xbf16, #tpu.memory_space<vmem>>, %arg7: memref<1x64xf32, #tpu.memory_space<vmem>>, %arg8: memref<9x64x128xbf16, #tpu.memory_space<vmem>>, %arg9: memref<1x128xf32, #tpu.memory_space<vmem>>, %arg10: memref<128x128xbf16, #tpu.memory_space<vmem>>, %arg11: memref<1x128xf32, #tpu.memory_space<vmem>>, %arg12: memref<1x1x128xf32, #tpu.memory_space<vmem>>, %arg13: memref<900x80xbf16, #tpu.memory_space<vmem>>, %arg14: memref<784x32xf32, #tpu.memory_space<vmem>>, %arg15: memref<100x32xbf16, #tpu.memory_space<vmem>>, %arg16: memref<140x160xbf16, #tpu.memory_space<vmem>>, %arg17: memref<100x64xf32, #tpu.memory_space<vmem>>) attributes {dimension_semantics = [#tpu.dimension_semantics<parallel>], iteration_bounds = array<i64: 2>, scalar_prefetch = 0 : i64, scratch_operands = 5 : i64, tpu.core_type = #tpu.core_type<tc>, window_params = [{transform_indices = @transform_0, window_bounds = array<i64: 784, 25>}, {pipeline_mode = #tpu.pipeline_mode<synchronous>, transform_indices = @transform_1, window_bounds = array<i64: 25, 80>}, {pipeline_mode = #tpu.pipeline_mode<synchronous>, transform_indices = @transform_2, window_bounds = array<i64: 1, 80>}, {pipeline_mode = #tpu.pipeline_mode<synchronous>, transform_indices = @transform_3, window_bounds = array<i64: 5, 80, 32>}, {pipeline_mode = #tpu.pipeline_mode<synchronous>, transform_indices = @transform_4, window_bounds = array<i64: 1, 32>}, {pipeline_mode = #tpu.pipeline_mode<synchronous>, transform_indices = @transform_5, window_bounds = array<i64: 5, 160, 64>}, {pipeline_mode = #tpu.pipeline_mode<synchronous>, transform_indices = @transform_6, window_bounds = array<i64: 1, 64>}, {pipeline_mode = #tpu.pipeline_mode<synchronous>, transform_indices = @transform_7, window_bounds = array<i64: 9, 64, 128>}, {pipeline_mode = #tpu.pipeline_mode<synchronous>, transform_indices = @transform_8, window_bounds = array<i64: 1, 128>}, {pipeline_mode = #tpu.pipeline_mode<synchronous>, transform_indices = @transform_9, window_bounds = array<i64: 128, 128>}, {pipeline_mode = #tpu.pipeline_mode<synchronous>, transform_indices = @transform_10, window_bounds = array<i64: 1, 128>}, {transform_indices = @transform_11, window_bounds = array<i64: 1, 1, 128>}]} {
    %cst = arith.constant 0.000000e+00 : bf16
    %0 = vector.broadcast %cst : bf16 to vector<116x80xbf16>
    %c784 = arith.constant 784 : index
    %c0 = arith.constant 0 : index
    %1 = vector.load %arg13[%c784, %c0] : memref<900x80xbf16, #tpu.memory_space<vmem>>, vector<116x80xbf16>
    tpu.vector_store %arg13[%c784, %c0], %0 {strides = array<i32>} : memref<900x80xbf16, #tpu.memory_space<vmem>>, vector<116x80xbf16>,
    %c0_0 = arith.constant 0 : index
    %c0_1 = arith.constant 0 : index
    %2 = vector.load %arg1[%c0_0, %c0_1] : memref<784x25xbf16, #tpu.memory_space<vmem>>, vector<784x25xbf16>
    %c0_2 = arith.constant 0 : index
    %c0_3 = arith.constant 0 : index
    %3 = vector.load %arg2[%c0_2, %c0_3] : memref<25x80xbf16, #tpu.memory_space<vmem>>, vector<25x80xbf16>
    %cst_4 = arith.constant dense<0.000000e+00> : vector<784x80xf32>
    %4 = tpu.matmul %2, %3, %cst_4 {dimension_numbers = #tpu.dot_dimension_numbers<[1], [0], [0], [1], [0, 0, 1, 1], [], []>} : vector<784x25xbf16>, vector<25x80xbf16>, vector<784x80xf32> -> vector<784x80xf32>
    %c0_5 = arith.constant 0 : index
    %c0_6 = arith.constant 0 : index
    %5 = vector.load %arg3[%c0_5, %c0_6] : memref<1x80xf32, #tpu.memory_space<vmem>>, vector<1x80xf32>
    %6 = vector.broadcast %5 : vector<1x80xf32> to vector<784x80xf32>
    %7 = arith.addf %4, %6 : vector<784x80xf32>
    %cst_7 = arith.constant 0.000000e+00 : f32
    %8 = vector.broadcast %cst_7 : f32 to vector<784x80xf32>
    %9 = arith.maximumf %7, %8 : vector<784x80xf32>
    %10 = arith.truncf %9 : vector<784x80xf32> to vector<784x80xbf16>
    %11 = vector.extract_strided_slice %10 {offsets = [0, 0], sizes = [784, 16], strides = [1, 1]} : vector<784x80xbf16> to vector<784x16xbf16>
    %c4 = arith.constant 4 : index
    %c0_8 = arith.constant 0 : index
    %12 = vector.load %arg13[%c4, %c0_8] : memref<900x80xbf16, #tpu.memory_space<vmem>>, vector<784x16xbf16>
    tpu.vector_store %arg13[%c4, %c0_8], %11 {strides = array<i32>} : memref<900x80xbf16, #tpu.memory_space<vmem>>, vector<784x16xbf16>,
    %13 = vector.extract_strided_slice %10 {offsets = [0, 16], sizes = [784, 16], strides = [1, 1]} : vector<784x80xbf16> to vector<784x16xbf16>
    %c3 = arith.constant 3 : index
    %c16 = arith.constant 16 : index
    %14 = vector.load %arg13[%c3, %c16] : memref<900x80xbf16, #tpu.memory_space<vmem>>, vector<784x16xbf16>
    tpu.vector_store %arg13[%c3, %c16], %13 {strides = array<i32>} : memref<900x80xbf16, #tpu.memory_space<vmem>>, vector<784x16xbf16>,
    %15 = vector.extract_strided_slice %10 {offsets = [0, 32], sizes = [784, 16], strides = [1, 1]} : vector<784x80xbf16> to vector<784x16xbf16>
    %c2 = arith.constant 2 : index
    %c32 = arith.constant 32 : index
    %16 = vector.load %arg13[%c2, %c32] : memref<900x80xbf16, #tpu.memory_space<vmem>>, vector<784x16xbf16>
    tpu.vector_store %arg13[%c2, %c32], %15 {strides = array<i32>} : memref<900x80xbf16, #tpu.memory_space<vmem>>, vector<784x16xbf16>,
    %17 = vector.extract_strided_slice %10 {offsets = [0, 48], sizes = [784, 16], strides = [1, 1]} : vector<784x80xbf16> to vector<784x16xbf16>
    %c1 = arith.constant 1 : index
    %c48 = arith.constant 48 : index
    %18 = vector.load %arg13[%c1, %c48] : memref<900x80xbf16, #tpu.memory_space<vmem>>, vector<784x16xbf16>
    tpu.vector_store %arg13[%c1, %c48], %17 {strides = array<i32>} : memref<900x80xbf16, #tpu.memory_space<vmem>>, vector<784x16xbf16>,
    %19 = vector.extract_strided_slice %10 {offsets = [0, 64], sizes = [784, 16], strides = [1, 1]} : vector<784x80xbf16> to vector<784x16xbf16>
    %c0_9 = arith.constant 0 : index
    %c64 = arith.constant 64 : index
    %20 = vector.load %arg13[%c0_9, %c64] : memref<900x80xbf16, #tpu.memory_space<vmem>>, vector<784x16xbf16>
    tpu.vector_store %arg13[%c0_9, %c64], %19 {strides = array<i32>} : memref<900x80xbf16, #tpu.memory_space<vmem>>, vector<784x16xbf16>,
    %c4_10 = arith.constant 4 : index
    %c0_11 = arith.constant 0 : index
    %21 = vector.load %arg13[%c4_10, %c0_11] : memref<900x80xbf16, #tpu.memory_space<vmem>>, vector<784x80xbf16>
    %c0_12 = arith.constant 0 : index
    %c0_13 = arith.constant 0 : index
    %c0_14 = arith.constant 0 : index
    %22 = vector.load %arg4[%c0_12, %c0_13, %c0_14] : memref<5x80x32xbf16, #tpu.memory_space<vmem>>, vector<1x80x32xbf16>
    %23 = vector.shape_cast %22 : vector<1x80x32xbf16> to vector<80x32xbf16>
    %cst_15 = arith.constant dense<0.000000e+00> : vector<784x32xf32>
    %24 = tpu.matmul %21, %23, %cst_15 {dimension_numbers = #tpu.dot_dimension_numbers<[1], [0], [0], [1], [0, 0, 1, 1], [], []>} : vector<784x80xbf16>, vector<80x32xbf16>, vector<784x32xf32> -> vector<784x32xf32>
    %c32_16 = arith.constant 32 : index
    %c0_17 = arith.constant 0 : index
    %25 = vector.load %arg13[%c32_16, %c0_17] : memref<900x80xbf16, #tpu.memory_space<vmem>>, vector<784x80xbf16>
    %c1_18 = arith.constant 1 : index
    %c0_19 = arith.constant 0 : index
    %c0_20 = arith.constant 0 : index
    %26 = vector.load %arg4[%c1_18, %c0_19, %c0_20] : memref<5x80x32xbf16, #tpu.memory_space<vmem>>, vector<1x80x32xbf16>
    %27 = vector.shape_cast %26 : vector<1x80x32xbf16> to vector<80x32xbf16>
    %cst_21 = arith.constant dense<0.000000e+00> : vector<784x32xf32>
    %28 = tpu.matmul %25, %27, %cst_21 {dimension_numbers = #tpu.dot_dimension_numbers<[1], [0], [0], [1], [0, 0, 1, 1], [], []>} : vector<784x80xbf16>, vector<80x32xbf16>, vector<784x32xf32> -> vector<784x32xf32>
    %29 = arith.addf %24, %28 : vector<784x32xf32>
    %c60 = arith.constant 60 : index
    %c0_22 = arith.constant 0 : index
    %30 = vector.load %arg13[%c60, %c0_22] : memref<900x80xbf16, #tpu.memory_space<vmem>>, vector<784x80xbf16>
    %c2_23 = arith.constant 2 : index
    %c0_24 = arith.constant 0 : index
    %c0_25 = arith.constant 0 : index
    %31 = vector.load %arg4[%c2_23, %c0_24, %c0_25] : memref<5x80x32xbf16, #tpu.memory_space<vmem>>, vector<1x80x32xbf16>
    %32 = vector.shape_cast %31 : vector<1x80x32xbf16> to vector<80x32xbf16>
    %cst_26 = arith.constant dense<0.000000e+00> : vector<784x32xf32>
    %33 = tpu.matmul %30, %32, %cst_26 {dimension_numbers = #tpu.dot_dimension_numbers<[1], [0], [0], [1], [0, 0, 1, 1], [], []>} : vector<784x80xbf16>, vector<80x32xbf16>, vector<784x32xf32> -> vector<784x32xf32>
    %34 = arith.addf %29, %33 : vector<784x32xf32>
    %c88 = arith.constant 88 : index
    %c0_27 = arith.constant 0 : index
    %35 = vector.load %arg13[%c88, %c0_27] : memref<900x80xbf16, #tpu.memory_space<vmem>>, vector<784x80xbf16>
    %c3_28 = arith.constant 3 : index
    %c0_29 = arith.constant 0 : index
    %c0_30 = arith.constant 0 : index
    %36 = vector.load %arg4[%c3_28, %c0_29, %c0_30] : memref<5x80x32xbf16, #tpu.memory_space<vmem>>, vector<1x80x32xbf16>
    %37 = vector.shape_cast %36 : vector<1x80x32xbf16> to vector<80x32xbf16>
    %cst_31 = arith.constant dense<0.000000e+00> : vector<784x32xf32>
    %38 = tpu.matmul %35, %37, %cst_31 {dimension_numbers = #tpu.dot_dimension_numbers<[1], [0], [0], [1], [0, 0, 1, 1], [], []>} : vector<784x80xbf16>, vector<80x32xbf16>, vector<784x32xf32> -> vector<784x32xf32>
    %39 = arith.addf %34, %38 : vector<784x32xf32>
    %c116 = arith.constant 116 : index
    %c0_32 = arith.constant 0 : index
    %40 = vector.load %arg13[%c116, %c0_32] : memref<900x80xbf16, #tpu.memory_space<vmem>>, vector<784x80xbf16>
    %c4_33 = arith.constant 4 : index
    %c0_34 = arith.constant 0 : index
    %c0_35 = arith.constant 0 : index
    %41 = vector.load %arg4[%c4_33, %c0_34, %c0_35] : memref<5x80x32xbf16, #tpu.memory_space<vmem>>, vector<1x80x32xbf16>
    %42 = vector.shape_cast %41 : vector<1x80x32xbf16> to vector<80x32xbf16>
    %cst_36 = arith.constant dense<0.000000e+00> : vector<784x32xf32>
    %43 = tpu.matmul %40, %42, %cst_36 {dimension_numbers = #tpu.dot_dimension_numbers<[1], [0], [0], [1], [0, 0, 1, 1], [], []>} : vector<784x80xbf16>, vector<80x32xbf16>, vector<784x32xf32> -> vector<784x32xf32>
    %44 = arith.addf %39, %43 : vector<784x32xf32>
    %c0_37 = arith.constant 0 : index
    %c0_38 = arith.constant 0 : index
    %45 = vector.load %arg5[%c0_37, %c0_38] : memref<1x32xf32, #tpu.memory_space<vmem>>, vector<1x32xf32>
    %46 = vector.broadcast %45 : vector<1x32xf32> to vector<784x32xf32>
    %47 = arith.addf %44, %46 : vector<784x32xf32>
    %cst_39 = arith.constant 0.000000e+00 : f32
    %48 = vector.broadcast %cst_39 : f32 to vector<784x32xf32>
    %49 = arith.maximumf %47, %48 : vector<784x32xf32>
    %c0_40 = arith.constant 0 : index
    %c0_41 = arith.constant 0 : index
    %50 = vector.load %arg14[%c0_40, %c0_41] : memref<784x32xf32, #tpu.memory_space<vmem>>, vector<784x32xf32>
    tpu.vector_store %arg14[%c0_40, %c0_41], %49 {strides = array<i32>} : memref<784x32xf32, #tpu.memory_space<vmem>>, vector<784x32xf32>,
    %c0_42 = arith.constant 0 : index
    %c0_43 = arith.constant 0 : index
    %51 = tpu.strided_load %arg14[%c0_42, %c0_43] {strides = array<i32: 2, 1>} : memref<784x32xf32, #tpu.memory_space<vmem>>, vector<10x32xf32>
    %c1_44 = arith.constant 1 : index
    %c0_45 = arith.constant 0 : index
    %52 = tpu.strided_load %arg14[%c1_44, %c0_45] {strides = array<i32: 2, 1>} : memref<784x32xf32, #tpu.memory_space<vmem>>, vector<10x32xf32>
    %c28 = arith.constant 28 : index
    %c0_46 = arith.constant 0 : index
    %53 = tpu.strided_load %arg14[%c28, %c0_46] {strides = array<i32: 2, 1>} : memref<784x32xf32, #tpu.memory_space<vmem>>, vector<10x32xf32>
    %c29 = arith.constant 29 : index
    %c0_47 = arith.constant 0 : index
    %54 = tpu.strided_load %arg14[%c29, %c0_47] {strides = array<i32: 2, 1>} : memref<784x32xf32, #tpu.memory_space<vmem>>, vector<10x32xf32>
    %55 = arith.maximumf %51, %52 : vector<10x32xf32>
    %56 = arith.maximumf %53, %54 : vector<10x32xf32>
    %57 = arith.maximumf %55, %56 : vector<10x32xf32>
    %58 = arith.truncf %57 : vector<10x32xf32> to vector<10x32xbf16>
    %c0_48 = arith.constant 0 : index
    %c0_49 = arith.constant 0 : index
    %59 = vector.load %arg15[%c0_48, %c0_49] : memref<100x32xbf16, #tpu.memory_space<vmem>>, vector<10x32xbf16>
    tpu.vector_store %arg15[%c0_48, %c0_49], %58 {strides = array<i32>} : memref<100x32xbf16, #tpu.memory_space<vmem>>, vector<10x32xbf16>,
    %c56 = arith.constant 56 : index
    %c0_50 = arith.constant 0 : index
    %60 = tpu.strided_load %arg14[%c56, %c0_50] {strides = array<i32: 2, 1>} : memref<784x32xf32, #tpu.memory_space<vmem>>, vector<10x32xf32>
    %c57 = arith.constant 57 : index
    %c0_51 = arith.constant 0 : index
    %61 = tpu.strided_load %arg14[%c57, %c0_51] {strides = array<i32: 2, 1>} : memref<784x32xf32, #tpu.memory_space<vmem>>, vector<10x32xf32>
    %c84 = arith.constant 84 : index
    %c0_52 = arith.constant 0 : index
    %62 = tpu.strided_load %arg14[%c84, %c0_52] {strides = array<i32: 2, 1>} : memref<784x32xf32, #tpu.memory_space<vmem>>, vector<10x32xf32>
    %c85 = arith.constant 85 : index
    %c0_53 = arith.constant 0 : index
    %63 = tpu.strided_load %arg14[%c85, %c0_53] {strides = array<i32: 2, 1>} : memref<784x32xf32, #tpu.memory_space<vmem>>, vector<10x32xf32>
    %64 = arith.maximumf %60, %61 : vector<10x32xf32>
    %65 = arith.maximumf %62, %63 : vector<10x32xf32>
    %66 = arith.maximumf %64, %65 : vector<10x32xf32>
    %67 = arith.truncf %66 : vector<10x32xf32> to vector<10x32xbf16>
    %c10 = arith.constant 10 : index
    %c0_54 = arith.constant 0 : index
    %68 = vector.load %arg15[%c10, %c0_54] : memref<100x32xbf16, #tpu.memory_space<vmem>>, vector<10x32xbf16>
    tpu.vector_store %arg15[%c10, %c0_54], %67 {strides = array<i32>} : memref<100x32xbf16, #tpu.memory_space<vmem>>, vector<10x32xbf16>,
    %c112 = arith.constant 112 : index
    %c0_55 = arith.constant 0 : index
    %69 = tpu.strided_load %arg14[%c112, %c0_55] {strides = array<i32: 2, 1>} : memref<784x32xf32, #tpu.memory_space<vmem>>, vector<10x32xf32>
    %c113 = arith.constant 113 : index
    %c0_56 = arith.constant 0 : index
    %70 = tpu.strided_load %arg14[%c113, %c0_56] {strides = array<i32: 2, 1>} : memref<784x32xf32, #tpu.memory_space<vmem>>, vector<10x32xf32>
    %c140 = arith.constant 140 : index
    %c0_57 = arith.constant 0 : index
    %71 = tpu.strided_load %arg14[%c140, %c0_57] {strides = array<i32: 2, 1>} : memref<784x32xf32, #tpu.memory_space<vmem>>, vector<10x32xf32>
    %c141 = arith.constant 141 : index
    %c0_58 = arith.constant 0 : index
    %72 = tpu.strided_load %arg14[%c141, %c0_58] {strides = array<i32: 2, 1>} : memref<784x32xf32, #tpu.memory_space<vmem>>, vector<10x32xf32>
    %73 = arith.maximumf %69, %70 : vector<10x32xf32>
    %74 = arith.maximumf %71, %72 : vector<10x32xf32>
    %75 = arith.maximumf %73, %74 : vector<10x32xf32>
    %76 = arith.truncf %75 : vector<10x32xf32> to vector<10x32xbf16>
    %c20 = arith.constant 20 : index
    %c0_59 = arith.constant 0 : index
    %77 = vector.load %arg15[%c20, %c0_59] : memref<100x32xbf16, #tpu.memory_space<vmem>>, vector<10x32xbf16>
    tpu.vector_store %arg15[%c20, %c0_59], %76 {strides = array<i32>} : memref<100x32xbf16, #tpu.memory_space<vmem>>, vector<10x32xbf16>,
    %c168 = arith.constant 168 : index
    %c0_60 = arith.constant 0 : index
    %78 = tpu.strided_load %arg14[%c168, %c0_60] {strides = array<i32: 2, 1>} : memref<784x32xf32, #tpu.memory_space<vmem>>, vector<10x32xf32>
    %c169 = arith.constant 169 : index
    %c0_61 = arith.constant 0 : index
    %79 = tpu.strided_load %arg14[%c169, %c0_61] {strides = array<i32: 2, 1>} : memref<784x32xf32, #tpu.memory_space<vmem>>, vector<10x32xf32>
    %c196 = arith.constant 196 : index
    %c0_62 = arith.constant 0 : index
    %80 = tpu.strided_load %arg14[%c196, %c0_62] {strides = array<i32: 2, 1>} : memref<784x32xf32, #tpu.memory_space<vmem>>, vector<10x32xf32>
    %c197 = arith.constant 197 : index
    %c0_63 = arith.constant 0 : index
    %81 = tpu.strided_load %arg14[%c197, %c0_63] {strides = array<i32: 2, 1>} : memref<784x32xf32, #tpu.memory_space<vmem>>, vector<10x32xf32>
    %82 = arith.maximumf %78, %79 : vector<10x32xf32>
    %83 = arith.maximumf %80, %81 : vector<10x32xf32>
    %84 = arith.maximumf %82, %83 : vector<10x32xf32>
    %85 = arith.truncf %84 : vector<10x32xf32> to vector<10x32xbf16>
    %c30 = arith.constant 30 : index
    %c0_64 = arith.constant 0 : index
    %86 = vector.load %arg15[%c30, %c0_64] : memref<100x32xbf16, #tpu.memory_space<vmem>>, vector<10x32xbf16>
    tpu.vector_store %arg15[%c30, %c0_64], %85 {strides = array<i32>} : memref<100x32xbf16, #tpu.memory_space<vmem>>, vector<10x32xbf16>,
    %c224 = arith.constant 224 : index
    %c0_65 = arith.constant 0 : index
    %87 = tpu.strided_load %arg14[%c224, %c0_65] {strides = array<i32: 2, 1>} : memref<784x32xf32, #tpu.memory_space<vmem>>, vector<10x32xf32>
    %c225 = arith.constant 225 : index
    %c0_66 = arith.constant 0 : index
    %88 = tpu.strided_load %arg14[%c225, %c0_66] {strides = array<i32: 2, 1>} : memref<784x32xf32, #tpu.memory_space<vmem>>, vector<10x32xf32>
    %c252 = arith.constant 252 : index
    %c0_67 = arith.constant 0 : index
    %89 = tpu.strided_load %arg14[%c252, %c0_67] {strides = array<i32: 2, 1>} : memref<784x32xf32, #tpu.memory_space<vmem>>, vector<10x32xf32>
    %c253 = arith.constant 253 : index
    %c0_68 = arith.constant 0 : index
    %90 = tpu.strided_load %arg14[%c253, %c0_68] {strides = array<i32: 2, 1>} : memref<784x32xf32, #tpu.memory_space<vmem>>, vector<10x32xf32>
    %91 = arith.maximumf %87, %88 : vector<10x32xf32>
    %92 = arith.maximumf %89, %90 : vector<10x32xf32>
    %93 = arith.maximumf %91, %92 : vector<10x32xf32>
    %94 = arith.truncf %93 : vector<10x32xf32> to vector<10x32xbf16>
    %c40 = arith.constant 40 : index
    %c0_69 = arith.constant 0 : index
    %95 = vector.load %arg15[%c40, %c0_69] : memref<100x32xbf16, #tpu.memory_space<vmem>>, vector<10x32xbf16>
    tpu.vector_store %arg15[%c40, %c0_69], %94 {strides = array<i32>} : memref<100x32xbf16, #tpu.memory_space<vmem>>, vector<10x32xbf16>,
    %c280 = arith.constant 280 : index
    %c0_70 = arith.constant 0 : index
    %96 = tpu.strided_load %arg14[%c280, %c0_70] {strides = array<i32: 2, 1>} : memref<784x32xf32, #tpu.memory_space<vmem>>, vector<10x32xf32>
    %c281 = arith.constant 281 : index
    %c0_71 = arith.constant 0 : index
    %97 = tpu.strided_load %arg14[%c281, %c0_71] {strides = array<i32: 2, 1>} : memref<784x32xf32, #tpu.memory_space<vmem>>, vector<10x32xf32>
    %c308 = arith.constant 308 : index
    %c0_72 = arith.constant 0 : index
    %98 = tpu.strided_load %arg14[%c308, %c0_72] {strides = array<i32: 2, 1>} : memref<784x32xf32, #tpu.memory_space<vmem>>, vector<10x32xf32>
    %c309 = arith.constant 309 : index
    %c0_73 = arith.constant 0 : index
    %99 = tpu.strided_load %arg14[%c309, %c0_73] {strides = array<i32: 2, 1>} : memref<784x32xf32, #tpu.memory_space<vmem>>, vector<10x32xf32>
    %100 = arith.maximumf %96, %97 : vector<10x32xf32>
    %101 = arith.maximumf %98, %99 : vector<10x32xf32>
    %102 = arith.maximumf %100, %101 : vector<10x32xf32>
    %103 = arith.truncf %102 : vector<10x32xf32> to vector<10x32xbf16>
    %c50 = arith.constant 50 : index
    %c0_74 = arith.constant 0 : index
    %104 = vector.load %arg15[%c50, %c0_74] : memref<100x32xbf16, #tpu.memory_space<vmem>>, vector<10x32xbf16>
    tpu.vector_store %arg15[%c50, %c0_74], %103 {strides = array<i32>} : memref<100x32xbf16, #tpu.memory_space<vmem>>, vector<10x32xbf16>,
    %c336 = arith.constant 336 : index
    %c0_75 = arith.constant 0 : index
    %105 = tpu.strided_load %arg14[%c336, %c0_75] {strides = array<i32: 2, 1>} : memref<784x32xf32, #tpu.memory_space<vmem>>, vector<10x32xf32>
    %c337 = arith.constant 337 : index
    %c0_76 = arith.constant 0 : index
    %106 = tpu.strided_load %arg14[%c337, %c0_76] {strides = array<i32: 2, 1>} : memref<784x32xf32, #tpu.memory_space<vmem>>, vector<10x32xf32>
    %c364 = arith.constant 364 : index
    %c0_77 = arith.constant 0 : index
    %107 = tpu.strided_load %arg14[%c364, %c0_77] {strides = array<i32: 2, 1>} : memref<784x32xf32, #tpu.memory_space<vmem>>, vector<10x32xf32>
    %c365 = arith.constant 365 : index
    %c0_78 = arith.constant 0 : index
    %108 = tpu.strided_load %arg14[%c365, %c0_78] {strides = array<i32: 2, 1>} : memref<784x32xf32, #tpu.memory_space<vmem>>, vector<10x32xf32>
    %109 = arith.maximumf %105, %106 : vector<10x32xf32>
    %110 = arith.maximumf %107, %108 : vector<10x32xf32>
    %111 = arith.maximumf %109, %110 : vector<10x32xf32>
    %112 = arith.truncf %111 : vector<10x32xf32> to vector<10x32xbf16>
    %c60_79 = arith.constant 60 : index
    %c0_80 = arith.constant 0 : index
    %113 = vector.load %arg15[%c60_79, %c0_80] : memref<100x32xbf16, #tpu.memory_space<vmem>>, vector<10x32xbf16>
    tpu.vector_store %arg15[%c60_79, %c0_80], %112 {strides = array<i32>} : memref<100x32xbf16, #tpu.memory_space<vmem>>, vector<10x32xbf16>,
    %c392 = arith.constant 392 : index
    %c0_81 = arith.constant 0 : index
    %114 = tpu.strided_load %arg14[%c392, %c0_81] {strides = array<i32: 2, 1>} : memref<784x32xf32, #tpu.memory_space<vmem>>, vector<10x32xf32>
    %c393 = arith.constant 393 : index
    %c0_82 = arith.constant 0 : index
    %115 = tpu.strided_load %arg14[%c393, %c0_82] {strides = array<i32: 2, 1>} : memref<784x32xf32, #tpu.memory_space<vmem>>, vector<10x32xf32>
    %c420 = arith.constant 420 : index
    %c0_83 = arith.constant 0 : index
    %116 = tpu.strided_load %arg14[%c420, %c0_83] {strides = array<i32: 2, 1>} : memref<784x32xf32, #tpu.memory_space<vmem>>, vector<10x32xf32>
    %c421 = arith.constant 421 : index
    %c0_84 = arith.constant 0 : index
    %117 = tpu.strided_load %arg14[%c421, %c0_84] {strides = array<i32: 2, 1>} : memref<784x32xf32, #tpu.memory_space<vmem>>, vector<10x32xf32>
    %118 = arith.maximumf %114, %115 : vector<10x32xf32>
    %119 = arith.maximumf %116, %117 : vector<10x32xf32>
    %120 = arith.maximumf %118, %119 : vector<10x32xf32>
    %121 = arith.truncf %120 : vector<10x32xf32> to vector<10x32xbf16>
    %c70 = arith.constant 70 : index
    %c0_85 = arith.constant 0 : index
    %122 = vector.load %arg15[%c70, %c0_85] : memref<100x32xbf16, #tpu.memory_space<vmem>>, vector<10x32xbf16>
    tpu.vector_store %arg15[%c70, %c0_85], %121 {strides = array<i32>} : memref<100x32xbf16, #tpu.memory_space<vmem>>, vector<10x32xbf16>,
    %c448 = arith.constant 448 : index
    %c0_86 = arith.constant 0 : index
    %123 = tpu.strided_load %arg14[%c448, %c0_86] {strides = array<i32: 2, 1>} : memref<784x32xf32, #tpu.memory_space<vmem>>, vector<10x32xf32>
    %c449 = arith.constant 449 : index
    %c0_87 = arith.constant 0 : index
    %124 = tpu.strided_load %arg14[%c449, %c0_87] {strides = array<i32: 2, 1>} : memref<784x32xf32, #tpu.memory_space<vmem>>, vector<10x32xf32>
    %c476 = arith.constant 476 : index
    %c0_88 = arith.constant 0 : index
    %125 = tpu.strided_load %arg14[%c476, %c0_88] {strides = array<i32: 2, 1>} : memref<784x32xf32, #tpu.memory_space<vmem>>, vector<10x32xf32>
    %c477 = arith.constant 477 : index
    %c0_89 = arith.constant 0 : index
    %126 = tpu.strided_load %arg14[%c477, %c0_89] {strides = array<i32: 2, 1>} : memref<784x32xf32, #tpu.memory_space<vmem>>, vector<10x32xf32>
    %127 = arith.maximumf %123, %124 : vector<10x32xf32>
    %128 = arith.maximumf %125, %126 : vector<10x32xf32>
    %129 = arith.maximumf %127, %128 : vector<10x32xf32>
    %130 = arith.truncf %129 : vector<10x32xf32> to vector<10x32xbf16>
    %c80 = arith.constant 80 : index
    %c0_90 = arith.constant 0 : index
    %131 = vector.load %arg15[%c80, %c0_90] : memref<100x32xbf16, #tpu.memory_space<vmem>>, vector<10x32xbf16>
    tpu.vector_store %arg15[%c80, %c0_90], %130 {strides = array<i32>} : memref<100x32xbf16, #tpu.memory_space<vmem>>, vector<10x32xbf16>,
    %c504 = arith.constant 504 : index
    %c0_91 = arith.constant 0 : index
    %132 = tpu.strided_load %arg14[%c504, %c0_91] {strides = array<i32: 2, 1>} : memref<784x32xf32, #tpu.memory_space<vmem>>, vector<10x32xf32>
    %c505 = arith.constant 505 : index
    %c0_92 = arith.constant 0 : index
    %133 = tpu.strided_load %arg14[%c505, %c0_92] {strides = array<i32: 2, 1>} : memref<784x32xf32, #tpu.memory_space<vmem>>, vector<10x32xf32>
    %c532 = arith.constant 532 : index
    %c0_93 = arith.constant 0 : index
    %134 = tpu.strided_load %arg14[%c532, %c0_93] {strides = array<i32: 2, 1>} : memref<784x32xf32, #tpu.memory_space<vmem>>, vector<10x32xf32>
    %c533 = arith.constant 533 : index
    %c0_94 = arith.constant 0 : index
    %135 = tpu.strided_load %arg14[%c533, %c0_94] {strides = array<i32: 2, 1>} : memref<784x32xf32, #tpu.memory_space<vmem>>, vector<10x32xf32>
    %136 = arith.maximumf %132, %133 : vector<10x32xf32>
    %137 = arith.maximumf %134, %135 : vector<10x32xf32>
    %138 = arith.maximumf %136, %137 : vector<10x32xf32>
    %139 = arith.truncf %138 : vector<10x32xf32> to vector<10x32xbf16>
    %c90 = arith.constant 90 : index
    %c0_95 = arith.constant 0 : index
    %140 = vector.load %arg15[%c90, %c0_95] : memref<100x32xbf16, #tpu.memory_space<vmem>>, vector<10x32xbf16>
    tpu.vector_store %arg15[%c90, %c0_95], %139 {strides = array<i32>} : memref<100x32xbf16, #tpu.memory_space<vmem>>, vector<10x32xbf16>,
    %cst_96 = arith.constant 0.000000e+00 : bf16
    %141 = vector.broadcast %cst_96 : bf16 to vector<44x160xbf16>
    %c96 = arith.constant 96 : index
    %c0_97 = arith.constant 0 : index
    %142 = vector.load %arg16[%c96, %c0_97] : memref<140x160xbf16, #tpu.memory_space<vmem>>, vector<44x160xbf16>
    tpu.vector_store %arg16[%c96, %c0_97], %141 {strides = array<i32>} : memref<140x160xbf16, #tpu.memory_space<vmem>>, vector<44x160xbf16>,
    %c0_98 = arith.constant 0 : index
    %c0_99 = arith.constant 0 : index
    %143 = vector.load %arg15[%c0_98, %c0_99] : memref<100x32xbf16, #tpu.memory_space<vmem>>, vector<100x32xbf16>
    %c0_100 = arith.constant 0 : index
    %c0_101 = arith.constant 0 : index
    %144 = vector.load %arg16[%c0_100, %c0_101] : memref<140x160xbf16, #tpu.memory_space<vmem>>, vector<100x32xbf16>
    tpu.vector_store %arg16[%c0_100, %c0_101], %143 {strides = array<i32>} : memref<140x160xbf16, #tpu.memory_space<vmem>>, vector<100x32xbf16>,
    %c1_102 = arith.constant 1 : index
    %c0_103 = arith.constant 0 : index
    %145 = vector.load %arg15[%c1_102, %c0_103] : memref<100x32xbf16, #tpu.memory_space<vmem>>, vector<99x32xbf16>
    %c0_104 = arith.constant 0 : index
    %c32_105 = arith.constant 32 : index
    %146 = vector.load %arg16[%c0_104, %c32_105] : memref<140x160xbf16, #tpu.memory_space<vmem>>, vector<99x32xbf16>
    tpu.vector_store %arg16[%c0_104, %c32_105], %145 {strides = array<i32>} : memref<140x160xbf16, #tpu.memory_space<vmem>>, vector<99x32xbf16>,
    %c2_106 = arith.constant 2 : index
    %c0_107 = arith.constant 0 : index
    %147 = vector.load %arg15[%c2_106, %c0_107] : memref<100x32xbf16, #tpu.memory_space<vmem>>, vector<98x32xbf16>
    %c0_108 = arith.constant 0 : index
    %c64_109 = arith.constant 64 : index
    %148 = vector.load %arg16[%c0_108, %c64_109] : memref<140x160xbf16, #tpu.memory_space<vmem>>, vector<98x32xbf16>
    tpu.vector_store %arg16[%c0_108, %c64_109], %147 {strides = array<i32>} : memref<140x160xbf16, #tpu.memory_space<vmem>>, vector<98x32xbf16>,
    %c3_110 = arith.constant 3 : index
    %c0_111 = arith.constant 0 : index
    %149 = vector.load %arg15[%c3_110, %c0_111] : memref<100x32xbf16, #tpu.memory_space<vmem>>, vector<97x32xbf16>
    %c0_112 = arith.constant 0 : index
    %c96_113 = arith.constant 96 : index
    %150 = vector.load %arg16[%c0_112, %c96_113] : memref<140x160xbf16, #tpu.memory_space<vmem>>, vector<97x32xbf16>
    tpu.vector_store %arg16[%c0_112, %c96_113], %149 {strides = array<i32>} : memref<140x160xbf16, #tpu.memory_space<vmem>>, vector<97x32xbf16>,
    %c4_114 = arith.constant 4 : index
    %c0_115 = arith.constant 0 : index
    %151 = vector.load %arg15[%c4_114, %c0_115] : memref<100x32xbf16, #tpu.memory_space<vmem>>, vector<96x32xbf16>
    %c0_116 = arith.constant 0 : index
    %c128 = arith.constant 128 : index
    %152 = vector.load %arg16[%c0_116, %c128] : memref<140x160xbf16, #tpu.memory_space<vmem>>, vector<96x32xbf16>
    tpu.vector_store %arg16[%c0_116, %c128], %151 {strides = array<i32>} : memref<140x160xbf16, #tpu.memory_space<vmem>>, vector<96x32xbf16>,
    %c0_117 = arith.constant 0 : index
    %c0_118 = arith.constant 0 : index
    %153 = vector.load %arg16[%c0_117, %c0_118] : memref<140x160xbf16, #tpu.memory_space<vmem>>, vector<100x160xbf16>
    %c0_119 = arith.constant 0 : index
    %c0_120 = arith.constant 0 : index
    %c0_121 = arith.constant 0 : index
    %154 = vector.load %arg6[%c0_119, %c0_120, %c0_121] : memref<5x160x64xbf16, #tpu.memory_space<vmem>>, vector<1x160x64xbf16>
    %155 = vector.shape_cast %154 : vector<1x160x64xbf16> to vector<160x64xbf16>
    %cst_122 = arith.constant dense<0.000000e+00> : vector<100x64xf32>
    %156 = tpu.matmul %153, %155, %cst_122 {dimension_numbers = #tpu.dot_dimension_numbers<[1], [0], [0], [1], [0, 0, 1, 1], [], []>} : vector<100x160xbf16>, vector<160x64xbf16>, vector<100x64xf32> -> vector<100x64xf32>
    %c10_123 = arith.constant 10 : index
    %c0_124 = arith.constant 0 : index
    %157 = vector.load %arg16[%c10_123, %c0_124] : memref<140x160xbf16, #tpu.memory_space<vmem>>, vector<100x160xbf16>
    %c1_125 = arith.constant 1 : index
    %c0_126 = arith.constant 0 : index
    %c0_127 = arith.constant 0 : index
    %158 = vector.load %arg6[%c1_125, %c0_126, %c0_127] : memref<5x160x64xbf16, #tpu.memory_space<vmem>>, vector<1x160x64xbf16>
    %159 = vector.shape_cast %158 : vector<1x160x64xbf16> to vector<160x64xbf16>
    %cst_128 = arith.constant dense<0.000000e+00> : vector<100x64xf32>
    %160 = tpu.matmul %157, %159, %cst_128 {dimension_numbers = #tpu.dot_dimension_numbers<[1], [0], [0], [1], [0, 0, 1, 1], [], []>} : vector<100x160xbf16>, vector<160x64xbf16>, vector<100x64xf32> -> vector<100x64xf32>
    %161 = arith.addf %156, %160 : vector<100x64xf32>
    %c20_129 = arith.constant 20 : index
    %c0_130 = arith.constant 0 : index
    %162 = vector.load %arg16[%c20_129, %c0_130] : memref<140x160xbf16, #tpu.memory_space<vmem>>, vector<100x160xbf16>
    %c2_131 = arith.constant 2 : index
    %c0_132 = arith.constant 0 : index
    %c0_133 = arith.constant 0 : index
    %163 = vector.load %arg6[%c2_131, %c0_132, %c0_133] : memref<5x160x64xbf16, #tpu.memory_space<vmem>>, vector<1x160x64xbf16>
    %164 = vector.shape_cast %163 : vector<1x160x64xbf16> to vector<160x64xbf16>
    %cst_134 = arith.constant dense<0.000000e+00> : vector<100x64xf32>
    %165 = tpu.matmul %162, %164, %cst_134 {dimension_numbers = #tpu.dot_dimension_numbers<[1], [0], [0], [1], [0, 0, 1, 1], [], []>} : vector<100x160xbf16>, vector<160x64xbf16>, vector<100x64xf32> -> vector<100x64xf32>
    %166 = arith.addf %161, %165 : vector<100x64xf32>
    %c30_135 = arith.constant 30 : index
    %c0_136 = arith.constant 0 : index
    %167 = vector.load %arg16[%c30_135, %c0_136] : memref<140x160xbf16, #tpu.memory_space<vmem>>, vector<100x160xbf16>
    %c3_137 = arith.constant 3 : index
    %c0_138 = arith.constant 0 : index
    %c0_139 = arith.constant 0 : index
    %168 = vector.load %arg6[%c3_137, %c0_138, %c0_139] : memref<5x160x64xbf16, #tpu.memory_space<vmem>>, vector<1x160x64xbf16>
    %169 = vector.shape_cast %168 : vector<1x160x64xbf16> to vector<160x64xbf16>
    %cst_140 = arith.constant dense<0.000000e+00> : vector<100x64xf32>
    %170 = tpu.matmul %167, %169, %cst_140 {dimension_numbers = #tpu.dot_dimension_numbers<[1], [0], [0], [1], [0, 0, 1, 1], [], []>} : vector<100x160xbf16>, vector<160x64xbf16>, vector<100x64xf32> -> vector<100x64xf32>
    %171 = arith.addf %166, %170 : vector<100x64xf32>
    %c40_141 = arith.constant 40 : index
    %c0_142 = arith.constant 0 : index
    %172 = vector.load %arg16[%c40_141, %c0_142] : memref<140x160xbf16, #tpu.memory_space<vmem>>, vector<100x160xbf16>
    %c4_143 = arith.constant 4 : index
    %c0_144 = arith.constant 0 : index
    %c0_145 = arith.constant 0 : index
    %173 = vector.load %arg6[%c4_143, %c0_144, %c0_145] : memref<5x160x64xbf16, #tpu.memory_space<vmem>>, vector<1x160x64xbf16>
    %174 = vector.shape_cast %173 : vector<1x160x64xbf16> to vector<160x64xbf16>
    %cst_146 = arith.constant dense<0.000000e+00> : vector<100x64xf32>
    %175 = tpu.matmul %172, %174, %cst_146 {dimension_numbers = #tpu.dot_dimension_numbers<[1], [0], [0], [1], [0, 0, 1, 1], [], []>} : vector<100x160xbf16>, vector<160x64xbf16>, vector<100x64xf32> -> vector<100x64xf32>
    %176 = arith.addf %171, %175 : vector<100x64xf32>
    %c0_147 = arith.constant 0 : index
    %c0_148 = arith.constant 0 : index
    %177 = vector.load %arg7[%c0_147, %c0_148] : memref<1x64xf32, #tpu.memory_space<vmem>>, vector<1x64xf32>
    %178 = vector.broadcast %177 : vector<1x64xf32> to vector<100x64xf32>
    %179 = arith.addf %176, %178 : vector<100x64xf32>
    %cst_149 = arith.constant 0.000000e+00 : f32
    %180 = vector.broadcast %cst_149 : f32 to vector<100x64xf32>
    %181 = arith.maximumf %179, %180 : vector<100x64xf32>
    %c0_150 = arith.constant 0 : index
    %c0_151 = arith.constant 0 : index
    %182 = vector.load %arg17[%c0_150, %c0_151] : memref<100x64xf32, #tpu.memory_space<vmem>>, vector<100x64xf32>
    tpu.vector_store %arg17[%c0_150, %c0_151], %181 {strides = array<i32>} : memref<100x64xf32, #tpu.memory_space<vmem>>, vector<100x64xf32>,
    %cst_152 = arith.constant 0.000000e+00 : f32
    %183 = vector.broadcast %cst_152 : f32 to vector<1x128xf32>
    %c0_153 = arith.constant 0 : index
    %c0_154 = arith.constant 0 : index
    %184 = tpu.strided_load %arg17[%c0_153, %c0_154] {strides = array<i32: 100, 1>} : memref<100x64xf32, #tpu.memory_space<vmem>>, vector<1x64xf32>
    %c1_155 = arith.constant 1 : index
    %c0_156 = arith.constant 0 : index
    %185 = tpu.strided_load %arg17[%c1_155, %c0_156] {strides = array<i32: 100, 1>} : memref<100x64xf32, #tpu.memory_space<vmem>>, vector<1x64xf32>
    %c10_157 = arith.constant 10 : index
    %c0_158 = arith.constant 0 : index
    %186 = tpu.strided_load %arg17[%c10_157, %c0_158] {strides = array<i32: 100, 1>} : memref<100x64xf32, #tpu.memory_space<vmem>>, vector<1x64xf32>
    %c11 = arith.constant 11 : index
    %c0_159 = arith.constant 0 : index
    %187 = tpu.strided_load %arg17[%c11, %c0_159] {strides = array<i32: 100, 1>} : memref<100x64xf32, #tpu.memory_space<vmem>>, vector<1x64xf32>
    %188 = arith.maximumf %184, %185 : vector<1x64xf32>
    %189 = arith.maximumf %186, %187 : vector<1x64xf32>
    %190 = arith.maximumf %188, %189 : vector<1x64xf32>
    %191 = arith.truncf %190 : vector<1x64xf32> to vector<1x64xbf16>
    %c0_160 = arith.constant 0 : index
    %c0_161 = arith.constant 0 : index
    %c0_162 = arith.constant 0 : index
    %192 = vector.load %arg8[%c0_160, %c0_161, %c0_162] : memref<9x64x128xbf16, #tpu.memory_space<vmem>>, vector<1x64x128xbf16>
    %193 = vector.shape_cast %192 : vector<1x64x128xbf16> to vector<64x128xbf16>
    %cst_163 = arith.constant dense<0.000000e+00> : vector<1x128xf32>
    %194 = tpu.matmul %191, %193, %cst_163 {dimension_numbers = #tpu.dot_dimension_numbers<[1], [0], [0], [1], [0, 0, 1, 1], [], []>} : vector<1x64xbf16>, vector<64x128xbf16>, vector<1x128xf32> -> vector<1x128xf32>
    %195 = arith.addf %183, %194 : vector<1x128xf32>
    %c2_164 = arith.constant 2 : index
    %c0_165 = arith.constant 0 : index
    %196 = tpu.strided_load %arg17[%c2_164, %c0_165] {strides = array<i32: 100, 1>} : memref<100x64xf32, #tpu.memory_space<vmem>>, vector<1x64xf32>
    %c3_166 = arith.constant 3 : index
    %c0_167 = arith.constant 0 : index
    %197 = tpu.strided_load %arg17[%c3_166, %c0_167] {strides = array<i32: 100, 1>} : memref<100x64xf32, #tpu.memory_space<vmem>>, vector<1x64xf32>
    %c12 = arith.constant 12 : index
    %c0_168 = arith.constant 0 : index
    %198 = tpu.strided_load %arg17[%c12, %c0_168] {strides = array<i32: 100, 1>} : memref<100x64xf32, #tpu.memory_space<vmem>>, vector<1x64xf32>
    %c13 = arith.constant 13 : index
    %c0_169 = arith.constant 0 : index
    %199 = tpu.strided_load %arg17[%c13, %c0_169] {strides = array<i32: 100, 1>} : memref<100x64xf32, #tpu.memory_space<vmem>>, vector<1x64xf32>
    %200 = arith.maximumf %196, %197 : vector<1x64xf32>
    %201 = arith.maximumf %198, %199 : vector<1x64xf32>
    %202 = arith.maximumf %200, %201 : vector<1x64xf32>
    %203 = arith.truncf %202 : vector<1x64xf32> to vector<1x64xbf16>
    %c1_170 = arith.constant 1 : index
    %c0_171 = arith.constant 0 : index
    %c0_172 = arith.constant 0 : index
    %204 = vector.load %arg8[%c1_170, %c0_171, %c0_172] : memref<9x64x128xbf16, #tpu.memory_space<vmem>>, vector<1x64x128xbf16>
    %205 = vector.shape_cast %204 : vector<1x64x128xbf16> to vector<64x128xbf16>
    %cst_173 = arith.constant dense<0.000000e+00> : vector<1x128xf32>
    %206 = tpu.matmul %203, %205, %cst_173 {dimension_numbers = #tpu.dot_dimension_numbers<[1], [0], [0], [1], [0, 0, 1, 1], [], []>} : vector<1x64xbf16>, vector<64x128xbf16>, vector<1x128xf32> -> vector<1x128xf32>
    %207 = arith.addf %195, %206 : vector<1x128xf32>
    %c4_174 = arith.constant 4 : index
    %c0_175 = arith.constant 0 : index
    %208 = tpu.strided_load %arg17[%c4_174, %c0_175] {strides = array<i32: 100, 1>} : memref<100x64xf32, #tpu.memory_space<vmem>>, vector<1x64xf32>
    %c5 = arith.constant 5 : index
    %c0_176 = arith.constant 0 : index
    %209 = tpu.strided_load %arg17[%c5, %c0_176] {strides = array<i32: 100, 1>} : memref<100x64xf32, #tpu.memory_space<vmem>>, vector<1x64xf32>
    %c14 = arith.constant 14 : index
    %c0_177 = arith.constant 0 : index
    %210 = tpu.strided_load %arg17[%c14, %c0_177] {strides = array<i32: 100, 1>} : memref<100x64xf32, #tpu.memory_space<vmem>>, vector<1x64xf32>
    %c15 = arith.constant 15 : index
    %c0_178 = arith.constant 0 : index
    %211 = tpu.strided_load %arg17[%c15, %c0_178] {strides = array<i32: 100, 1>} : memref<100x64xf32, #tpu.memory_space<vmem>>, vector<1x64xf32>
    %212 = arith.maximumf %208, %209 : vector<1x64xf32>
    %213 = arith.maximumf %210, %211 : vector<1x64xf32>
    %214 = arith.maximumf %212, %213 : vector<1x64xf32>
    %215 = arith.truncf %214 : vector<1x64xf32> to vector<1x64xbf16>
    %c2_179 = arith.constant 2 : index
    %c0_180 = arith.constant 0 : index
    %c0_181 = arith.constant 0 : index
    %216 = vector.load %arg8[%c2_179, %c0_180, %c0_181] : memref<9x64x128xbf16, #tpu.memory_space<vmem>>, vector<1x64x128xbf16>
    %217 = vector.shape_cast %216 : vector<1x64x128xbf16> to vector<64x128xbf16>
    %cst_182 = arith.constant dense<0.000000e+00> : vector<1x128xf32>
    %218 = tpu.matmul %215, %217, %cst_182 {dimension_numbers = #tpu.dot_dimension_numbers<[1], [0], [0], [1], [0, 0, 1, 1], [], []>} : vector<1x64xbf16>, vector<64x128xbf16>, vector<1x128xf32> -> vector<1x128xf32>
    %219 = arith.addf %207, %218 : vector<1x128xf32>
    %c20_183 = arith.constant 20 : index
    %c0_184 = arith.constant 0 : index
    %220 = tpu.strided_load %arg17[%c20_183, %c0_184] {strides = array<i32: 100, 1>} : memref<100x64xf32, #tpu.memory_space<vmem>>, vector<1x64xf32>
    %c21 = arith.constant 21 : index
    %c0_185 = arith.constant 0 : index
    %221 = tpu.strided_load %arg17[%c21, %c0_185] {strides = array<i32: 100, 1>} : memref<100x64xf32, #tpu.memory_space<vmem>>, vector<1x64xf32>
    %c30_186 = arith.constant 30 : index
    %c0_187 = arith.constant 0 : index
    %222 = tpu.strided_load %arg17[%c30_186, %c0_187] {strides = array<i32: 100, 1>} : memref<100x64xf32, #tpu.memory_space<vmem>>, vector<1x64xf32>
    %c31 = arith.constant 31 : index
    %c0_188 = arith.constant 0 : index
    %223 = tpu.strided_load %arg17[%c31, %c0_188] {strides = array<i32: 100, 1>} : memref<100x64xf32, #tpu.memory_space<vmem>>, vector<1x64xf32>
    %224 = arith.maximumf %220, %221 : vector<1x64xf32>
    %225 = arith.maximumf %222, %223 : vector<1x64xf32>
    %226 = arith.maximumf %224, %225 : vector<1x64xf32>
    %227 = arith.truncf %226 : vector<1x64xf32> to vector<1x64xbf16>
    %c3_189 = arith.constant 3 : index
    %c0_190 = arith.constant 0 : index
    %c0_191 = arith.constant 0 : index
    %228 = vector.load %arg8[%c3_189, %c0_190, %c0_191] : memref<9x64x128xbf16, #tpu.memory_space<vmem>>, vector<1x64x128xbf16>
    %229 = vector.shape_cast %228 : vector<1x64x128xbf16> to vector<64x128xbf16>
    %cst_192 = arith.constant dense<0.000000e+00> : vector<1x128xf32>
    %230 = tpu.matmul %227, %229, %cst_192 {dimension_numbers = #tpu.dot_dimension_numbers<[1], [0], [0], [1], [0, 0, 1, 1], [], []>} : vector<1x64xbf16>, vector<64x128xbf16>, vector<1x128xf32> -> vector<1x128xf32>
    %231 = arith.addf %219, %230 : vector<1x128xf32>
    %c22 = arith.constant 22 : index
    %c0_193 = arith.constant 0 : index
    %232 = tpu.strided_load %arg17[%c22, %c0_193] {strides = array<i32: 100, 1>} : memref<100x64xf32, #tpu.memory_space<vmem>>, vector<1x64xf32>
    %c23 = arith.constant 23 : index
    %c0_194 = arith.constant 0 : index
    %233 = tpu.strided_load %arg17[%c23, %c0_194] {strides = array<i32: 100, 1>} : memref<100x64xf32, #tpu.memory_space<vmem>>, vector<1x64xf32>
    %c32_195 = arith.constant 32 : index
    %c0_196 = arith.constant 0 : index
    %234 = tpu.strided_load %arg17[%c32_195, %c0_196] {strides = array<i32: 100, 1>} : memref<100x64xf32, #tpu.memory_space<vmem>>, vector<1x64xf32>
    %c33 = arith.constant 33 : index
    %c0_197 = arith.constant 0 : index
    %235 = tpu.strided_load %arg17[%c33, %c0_197] {strides = array<i32: 100, 1>} : memref<100x64xf32, #tpu.memory_space<vmem>>, vector<1x64xf32>
    %236 = arith.maximumf %232, %233 : vector<1x64xf32>
    %237 = arith.maximumf %234, %235 : vector<1x64xf32>
    %238 = arith.maximumf %236, %237 : vector<1x64xf32>
    %239 = arith.truncf %238 : vector<1x64xf32> to vector<1x64xbf16>
    %c4_198 = arith.constant 4 : index
    %c0_199 = arith.constant 0 : index
    %c0_200 = arith.constant 0 : index
    %240 = vector.load %arg8[%c4_198, %c0_199, %c0_200] : memref<9x64x128xbf16, #tpu.memory_space<vmem>>, vector<1x64x128xbf16>
    %241 = vector.shape_cast %240 : vector<1x64x128xbf16> to vector<64x128xbf16>
    %cst_201 = arith.constant dense<0.000000e+00> : vector<1x128xf32>
    %242 = tpu.matmul %239, %241, %cst_201 {dimension_numbers = #tpu.dot_dimension_numbers<[1], [0], [0], [1], [0, 0, 1, 1], [], []>} : vector<1x64xbf16>, vector<64x128xbf16>, vector<1x128xf32> -> vector<1x128xf32>
    %243 = arith.addf %231, %242 : vector<1x128xf32>
    %c24 = arith.constant 24 : index
    %c0_202 = arith.constant 0 : index
    %244 = tpu.strided_load %arg17[%c24, %c0_202] {strides = array<i32: 100, 1>} : memref<100x64xf32, #tpu.memory_space<vmem>>, vector<1x64xf32>
    %c25 = arith.constant 25 : index
    %c0_203 = arith.constant 0 : index
    %245 = tpu.strided_load %arg17[%c25, %c0_203] {strides = array<i32: 100, 1>} : memref<100x64xf32, #tpu.memory_space<vmem>>, vector<1x64xf32>
    %c34 = arith.constant 34 : index
    %c0_204 = arith.constant 0 : index
    %246 = tpu.strided_load %arg17[%c34, %c0_204] {strides = array<i32: 100, 1>} : memref<100x64xf32, #tpu.memory_space<vmem>>, vector<1x64xf32>
    %c35 = arith.constant 35 : index
    %c0_205 = arith.constant 0 : index
    %247 = tpu.strided_load %arg17[%c35, %c0_205] {strides = array<i32: 100, 1>} : memref<100x64xf32, #tpu.memory_space<vmem>>, vector<1x64xf32>
    %248 = arith.maximumf %244, %245 : vector<1x64xf32>
    %249 = arith.maximumf %246, %247 : vector<1x64xf32>
    %250 = arith.maximumf %248, %249 : vector<1x64xf32>
    %251 = arith.truncf %250 : vector<1x64xf32> to vector<1x64xbf16>
    %c5_206 = arith.constant 5 : index
    %c0_207 = arith.constant 0 : index
    %c0_208 = arith.constant 0 : index
    %252 = vector.load %arg8[%c5_206, %c0_207, %c0_208] : memref<9x64x128xbf16, #tpu.memory_space<vmem>>, vector<1x64x128xbf16>
    %253 = vector.shape_cast %252 : vector<1x64x128xbf16> to vector<64x128xbf16>
    %cst_209 = arith.constant dense<0.000000e+00> : vector<1x128xf32>
    %254 = tpu.matmul %251, %253, %cst_209 {dimension_numbers = #tpu.dot_dimension_numbers<[1], [0], [0], [1], [0, 0, 1, 1], [], []>} : vector<1x64xbf16>, vector<64x128xbf16>, vector<1x128xf32> -> vector<1x128xf32>
    %255 = arith.addf %243, %254 : vector<1x128xf32>
    %c40_210 = arith.constant 40 : index
    %c0_211 = arith.constant 0 : index
    %256 = tpu.strided_load %arg17[%c40_210, %c0_211] {strides = array<i32: 100, 1>} : memref<100x64xf32, #tpu.memory_space<vmem>>, vector<1x64xf32>
    %c41 = arith.constant 41 : index
    %c0_212 = arith.constant 0 : index
    %257 = tpu.strided_load %arg17[%c41, %c0_212] {strides = array<i32: 100, 1>} : memref<100x64xf32, #tpu.memory_space<vmem>>, vector<1x64xf32>
    %c50_213 = arith.constant 50 : index
    %c0_214 = arith.constant 0 : index
    %258 = tpu.strided_load %arg17[%c50_213, %c0_214] {strides = array<i32: 100, 1>} : memref<100x64xf32, #tpu.memory_space<vmem>>, vector<1x64xf32>
    %c51 = arith.constant 51 : index
    %c0_215 = arith.constant 0 : index
    %259 = tpu.strided_load %arg17[%c51, %c0_215] {strides = array<i32: 100, 1>} : memref<100x64xf32, #tpu.memory_space<vmem>>, vector<1x64xf32>
    %260 = arith.maximumf %256, %257 : vector<1x64xf32>
    %261 = arith.maximumf %258, %259 : vector<1x64xf32>
    %262 = arith.maximumf %260, %261 : vector<1x64xf32>
    %263 = arith.truncf %262 : vector<1x64xf32> to vector<1x64xbf16>
    %c6 = arith.constant 6 : index
    %c0_216 = arith.constant 0 : index
    %c0_217 = arith.constant 0 : index
    %264 = vector.load %arg8[%c6, %c0_216, %c0_217] : memref<9x64x128xbf16, #tpu.memory_space<vmem>>, vector<1x64x128xbf16>
    %265 = vector.shape_cast %264 : vector<1x64x128xbf16> to vector<64x128xbf16>
    %cst_218 = arith.constant dense<0.000000e+00> : vector<1x128xf32>
    %266 = tpu.matmul %263, %265, %cst_218 {dimension_numbers = #tpu.dot_dimension_numbers<[1], [0], [0], [1], [0, 0, 1, 1], [], []>} : vector<1x64xbf16>, vector<64x128xbf16>, vector<1x128xf32> -> vector<1x128xf32>
    %267 = arith.addf %255, %266 : vector<1x128xf32>
    %c42 = arith.constant 42 : index
    %c0_219 = arith.constant 0 : index
    %268 = tpu.strided_load %arg17[%c42, %c0_219] {strides = array<i32: 100, 1>} : memref<100x64xf32, #tpu.memory_space<vmem>>, vector<1x64xf32>
    %c43 = arith.constant 43 : index
    %c0_220 = arith.constant 0 : index
    %269 = tpu.strided_load %arg17[%c43, %c0_220] {strides = array<i32: 100, 1>} : memref<100x64xf32, #tpu.memory_space<vmem>>, vector<1x64xf32>
    %c52 = arith.constant 52 : index
    %c0_221 = arith.constant 0 : index
    %270 = tpu.strided_load %arg17[%c52, %c0_221] {strides = array<i32: 100, 1>} : memref<100x64xf32, #tpu.memory_space<vmem>>, vector<1x64xf32>
    %c53 = arith.constant 53 : index
    %c0_222 = arith.constant 0 : index
    %271 = tpu.strided_load %arg17[%c53, %c0_222] {strides = array<i32: 100, 1>} : memref<100x64xf32, #tpu.memory_space<vmem>>, vector<1x64xf32>
    %272 = arith.maximumf %268, %269 : vector<1x64xf32>
    %273 = arith.maximumf %270, %271 : vector<1x64xf32>
    %274 = arith.maximumf %272, %273 : vector<1x64xf32>
    %275 = arith.truncf %274 : vector<1x64xf32> to vector<1x64xbf16>
    %c7 = arith.constant 7 : index
    %c0_223 = arith.constant 0 : index
    %c0_224 = arith.constant 0 : index
    %276 = vector.load %arg8[%c7, %c0_223, %c0_224] : memref<9x64x128xbf16, #tpu.memory_space<vmem>>, vector<1x64x128xbf16>
    %277 = vector.shape_cast %276 : vector<1x64x128xbf16> to vector<64x128xbf16>
    %cst_225 = arith.constant dense<0.000000e+00> : vector<1x128xf32>
    %278 = tpu.matmul %275, %277, %cst_225 {dimension_numbers = #tpu.dot_dimension_numbers<[1], [0], [0], [1], [0, 0, 1, 1], [], []>} : vector<1x64xbf16>, vector<64x128xbf16>, vector<1x128xf32> -> vector<1x128xf32>
    %279 = arith.addf %267, %278 : vector<1x128xf32>
    %c44 = arith.constant 44 : index
    %c0_226 = arith.constant 0 : index
    %280 = tpu.strided_load %arg17[%c44, %c0_226] {strides = array<i32: 100, 1>} : memref<100x64xf32, #tpu.memory_space<vmem>>, vector<1x64xf32>
    %c45 = arith.constant 45 : index
    %c0_227 = arith.constant 0 : index
    %281 = tpu.strided_load %arg17[%c45, %c0_227] {strides = array<i32: 100, 1>} : memref<100x64xf32, #tpu.memory_space<vmem>>, vector<1x64xf32>
    %c54 = arith.constant 54 : index
    %c0_228 = arith.constant 0 : index
    %282 = tpu.strided_load %arg17[%c54, %c0_228] {strides = array<i32: 100, 1>} : memref<100x64xf32, #tpu.memory_space<vmem>>, vector<1x64xf32>
    %c55 = arith.constant 55 : index
    %c0_229 = arith.constant 0 : index
    %283 = tpu.strided_load %arg17[%c55, %c0_229] {strides = array<i32: 100, 1>} : memref<100x64xf32, #tpu.memory_space<vmem>>, vector<1x64xf32>
    %284 = arith.maximumf %280, %281 : vector<1x64xf32>
    %285 = arith.maximumf %282, %283 : vector<1x64xf32>
    %286 = arith.maximumf %284, %285 : vector<1x64xf32>
    %287 = arith.truncf %286 : vector<1x64xf32> to vector<1x64xbf16>
    %c8 = arith.constant 8 : index
    %c0_230 = arith.constant 0 : index
    %c0_231 = arith.constant 0 : index
    %288 = vector.load %arg8[%c8, %c0_230, %c0_231] : memref<9x64x128xbf16, #tpu.memory_space<vmem>>, vector<1x64x128xbf16>
    %289 = vector.shape_cast %288 : vector<1x64x128xbf16> to vector<64x128xbf16>
    %cst_232 = arith.constant dense<0.000000e+00> : vector<1x128xf32>
    %290 = tpu.matmul %287, %289, %cst_232 {dimension_numbers = #tpu.dot_dimension_numbers<[1], [0], [0], [1], [0, 0, 1, 1], [], []>} : vector<1x64xbf16>, vector<64x128xbf16>, vector<1x128xf32> -> vector<1x128xf32>
    %291 = arith.addf %279, %290 : vector<1x128xf32>
    %c0_233 = arith.constant 0 : index
    %c0_234 = arith.constant 0 : index
    %292 = vector.load %arg9[%c0_233, %c0_234] : memref<1x128xf32, #tpu.memory_space<vmem>>, vector<1x128xf32>
    %293 = arith.addf %291, %292 : vector<1x128xf32>
    %cst_235 = arith.constant 0.000000e+00 : f32
    %294 = vector.broadcast %cst_235 : f32 to vector<1x128xf32>
    %295 = arith.maximumf %293, %294 : vector<1x128xf32>
    %296 = arith.truncf %295 : vector<1x128xf32> to vector<1x128xbf16>
    %c0_236 = arith.constant 0 : index
    %c0_237 = arith.constant 0 : index
    %297 = vector.load %arg10[%c0_236, %c0_237] : memref<128x128xbf16, #tpu.memory_space<vmem>>, vector<128x128xbf16>
    %cst_238 = arith.constant dense<0.000000e+00> : vector<1x128xf32>
    %298 = tpu.matmul %296, %297, %cst_238 {dimension_numbers = #tpu.dot_dimension_numbers<[1], [0], [0], [1], [0, 0, 1, 1], [], []>} : vector<1x128xbf16>, vector<128x128xbf16>, vector<1x128xf32> -> vector<1x128xf32>
    %c0_239 = arith.constant 0 : index
    %c0_240 = arith.constant 0 : index
    %299 = vector.load %arg11[%c0_239, %c0_240] : memref<1x128xf32, #tpu.memory_space<vmem>>, vector<1x128xf32>
    %300 = arith.addf %298, %299 : vector<1x128xf32>
    %c0_241 = arith.constant 0 : index
    %c0_242 = arith.constant 0 : index
    %c0_243 = arith.constant 0 : index
    %301 = vector.load %arg12[%c0_241, %c0_242, %c0_243] : memref<1x1x128xf32, #tpu.memory_space<vmem>>, vector<1x1x128xf32>
    %302 = vector.shape_cast %301 : vector<1x1x128xf32> to vector<1x128xf32>
    %303 = vector.shape_cast %300 : vector<1x128xf32> to vector<1x1x128xf32>
    tpu.vector_store %arg12[%c0_241, %c0_242, %c0_243], %303 {strides = array<i32>} : memref<1x1x128xf32, #tpu.memory_space<vmem>>, vector<1x1x128xf32>,
    return
  }
  func.func @transform_0(%arg0: i32) -> (i32, i32) {
    %c0_i32 = arith.constant 0 : i32
    %c0_i32_0 = arith.constant 0 : i32
    return %arg0, %c0_i32 : i32, i32
  }
  func.func @transform_1(%arg0: i32) -> (i32, i32) {
    %c0_i32 = arith.constant 0 : i32
    %c0_i32_0 = arith.constant 0 : i32
    %c0_i32_1 = arith.constant 0 : i32
    return %c0_i32, %c0_i32_0 : i32, i32
  }
  func.func @transform_2(%arg0: i32) -> (i32, i32) {
    %c0_i32 = arith.constant 0 : i32
    %c0_i32_0 = arith.constant 0 : i32
    %c0_i32_1 = arith.constant 0 : i32
    return %c0_i32, %c0_i32_0 : i32, i32
  }
  func.func @transform_3(%arg0: i32) -> (i32, i32, i32) {
    %c0_i32 = arith.constant 0 : i32
    %c0_i32_0 = arith.constant 0 : i32
    %c0_i32_1 = arith.constant 0 : i32
    %c0_i32_2 = arith.constant 0 : i32
    return %c0_i32, %c0_i32_0, %c0_i32_1 : i32, i32, i32
  }
  func.func @transform_4(%arg0: i32) -> (i32, i32) {
    %c0_i32 = arith.constant 0 : i32
    %c0_i32_0 = arith.constant 0 : i32
    %c0_i32_1 = arith.constant 0 : i32
    return %c0_i32, %c0_i32_0 : i32, i32
  }
  func.func @transform_5(%arg0: i32) -> (i32, i32, i32) {
    %c0_i32 = arith.constant 0 : i32
    %c0_i32_0 = arith.constant 0 : i32
    %c0_i32_1 = arith.constant 0 : i32
    %c0_i32_2 = arith.constant 0 : i32
    return %c0_i32, %c0_i32_0, %c0_i32_1 : i32, i32, i32
  }
  func.func @transform_6(%arg0: i32) -> (i32, i32) {
    %c0_i32 = arith.constant 0 : i32
    %c0_i32_0 = arith.constant 0 : i32
    %c0_i32_1 = arith.constant 0 : i32
    return %c0_i32, %c0_i32_0 : i32, i32
  }
  func.func @transform_7(%arg0: i32) -> (i32, i32, i32) {
    %c0_i32 = arith.constant 0 : i32
    %c0_i32_0 = arith.constant 0 : i32
    %c0_i32_1 = arith.constant 0 : i32
    %c0_i32_2 = arith.constant 0 : i32
    return %c0_i32, %c0_i32_0, %c0_i32_1 : i32, i32, i32
  }
  func.func @transform_8(%arg0: i32) -> (i32, i32) {
    %c0_i32 = arith.constant 0 : i32
    %c0_i32_0 = arith.constant 0 : i32
    %c0_i32_1 = arith.constant 0 : i32
    return %c0_i32, %c0_i32_0 : i32, i32
  }
  func.func @transform_9(%arg0: i32) -> (i32, i32) {
    %c0_i32 = arith.constant 0 : i32
    %c0_i32_0 = arith.constant 0 : i32
    %c0_i32_1 = arith.constant 0 : i32
    return %c0_i32, %c0_i32_0 : i32, i32
  }
  func.func @transform_10(%arg0: i32) -> (i32, i32) {
    %c0_i32 = arith.constant 0 : i32
    %c0_i32_0 = arith.constant 0 : i32
    %c0_i32_1 = arith.constant 0 : i32
    return %c0_i32, %c0_i32_0 : i32, i32
  }
  func.func @transform_11(%arg0: i32) -> (i32, i32, i32) {
    %c0_i32 = arith.constant 0 : i32
    %c0_i32_0 = arith.constant 0 : i32
    %c0_i32_1 = arith.constant 0 : i32
    return %arg0, %c0_i32, %c0_i32_0 : i32, i32, i32
  }
}

</mosaic_0001>

<llo_original>
// kernel: cnn_forward.1
$region0: #{cnn_forward.1}
  #allocation0 [shape = 'u32[]', space=smem, size = 0x4, offset = 0x4, fixed_abs, tag = 'smem constant byte address 0x4 - core index']
  #allocation1 [shape = 'u32[72,128]{1,0:T(1,128)}', space=vmem, size = 0x9000, scoped, tag = 'internal scratch']
  #allocation2 [shape = 'bf16[900,80]{1,0:T(8,128)(2,1)}', space=vmem, size = 0x38800, scoped, tag = 'scratch operand']
  #allocation3 [shape = 'f32[784,32]{1,0:T(8,128)}', space=vmem, size = 0x62000, scoped, tag = 'scratch operand']
  #allocation4 [shape = 'bf16[100,32]{1,0:T(8,128)(2,1)}', space=vmem, size = 0x6800, scoped, tag = 'scratch operand']
  #allocation5 [shape = 'bf16[140,160]{1,0:T(8,128)(2,1)}', space=vmem, size = 0x12000, scoped, tag = 'scratch operand']
  #allocation6 [shape = 'f32[100,64]{1,0:T(8,128)}', space=vmem, size = 0xd000, scoped, tag = 'scratch operand']
  %s0 = inlined_call_operand.vmem [shape: bf16[1568,25], index: 0, kind: input, shape index: {}]
  %s1 = inlined_call_operand.vmem [shape: bf16[25,80], index: 1, kind: input, shape index: {}]
  %s2 = inlined_call_operand.vmem [shape: f32[1,80], index: 2, kind: input, shape index: {}]
  %s3 = inlined_call_operand.vmem [shape: bf16[5,80,32], index: 3, kind: input, shape index: {}]
  %s4 = inlined_call_operand.vmem [shape: f32[1,32], index: 4, kind: input, shape index: {}]
  %s5 = inlined_call_operand.vmem [shape: bf16[5,160,64], index: 5, kind: input, shape index: {}]
  %s6 = inlined_call_operand.vmem [shape: f32[1,64], index: 6, kind: input, shape index: {}]
  %s7 = inlined_call_operand.vmem [shape: bf16[9,64,128], index: 7, kind: input, shape index: {}]
  %s8 = inlined_call_operand.vmem [shape: f32[1,128], index: 8, kind: input, shape index: {}]
  %s9 = inlined_call_operand.vmem [shape: bf16[128,128], index: 9, kind: input, shape index: {}]
  %s10 = inlined_call_operand.vmem [shape: f32[1,128], index: 10, kind: input, shape index: {}]
  %s11 = inlined_call_operand.hbm [shape: f32[2,1,128], index: 11, kind: output, shape index: {}]
  %s12 = sld [smem:[#allocation0]]
  $region77: #{cnn_forward.1} parent=0
    _
  %s14 = ssub.s32 1, %s12
  %s15 = scalar_select 0, %s14, %s12
  $region1: #{cnn_forward.1} parent=0
    #allocation7 [shape = 'u8[1024]{0}', space=vmem, size = 0x400, scoped, tag = 'output window, operand 0']
    #allocation8 [shape = 's32[2]{0}', space=sflag, size = 0x8, scoped, tag = 'scoped memory for cnn_forward.1']
    %16 = vsyncpa [#allocation8], 0
    %s17 = scalar_lea.sflag [#allocation8], 1
    %18 = vsyncpa %s17, 0
    loop: start=0, step=1, limit=4
    $region2: #{cnn_forward.1} parent=1 // loop_pre_header
      _
    $region3: #{cnn_forward.1} parent=1 // loop_header
      %s20 = sphi 0, %s24
      %p21 = scmp.ge.s32.totalorder %s20, 4
      %s30 = sphi 0, %s32
      %s33 = sphi 0, %s30
      %s34 = sphi 0, %s33
      %s50 = sphi 0, %s34
      %s54 = sphi 0, %s54
      %s56 = sphi 0, %s54
      %s57 = sphi 0, %s56
      %s71 = sphi 0, %s57
      %s75 = sphi 0, %s75
      %s77 = sphi 0, %s75
      %s78 = sphi 0, %s77
      %s92 = sphi 0, %s78
      %s96 = sphi 0, %s96
      %s98 = sphi 0, %s96
      %s99 = sphi 0, %s98
      %s113 = sphi 0, %s99
      %s117 = sphi 0, %s117
      %s119 = sphi 0, %s117
      %s120 = sphi 0, %s119
      %s134 = sphi 0, %s120
      %s138 = sphi 0, %s138
      %s140 = sphi 0, %s138
      %s141 = sphi 0, %s140
      %s155 = sphi 0, %s141
      %s159 = sphi 0, %s159
      %s161 = sphi 0, %s159
      %s162 = sphi 0, %s161
      %s176 = sphi 0, %s162
      %s180 = sphi 0, %s180
      %s182 = sphi 0, %s180
      %s183 = sphi 0, %s182
      %s197 = sphi 0, %s183
      %s201 = sphi 0, %s201
      %s203 = sphi 0, %s201
      %s204 = sphi 0, %s203
      %s218 = sphi 0, %s204
      %s222 = sphi 0, %s222
      %s224 = sphi 0, %s222
      %s225 = sphi 0, %s224
      %s239 = sphi 0, %s225
      %s243 = sphi 0, %s243
      %s245 = sphi 0, %s243
      %s246 = sphi 0, %s245
      %s260 = sphi 0, %s246
      %s266 = sphi 0, %s268
      %s269 = sphi 0, %s266
      %s270 = sphi 0, %s269
      %s286 = sphi 0, %s270
    $region4: #{cnn_forward.1} parent=1 // loop_header_branch
      %23 = sbr.rel (%p21) target = $region8
    $region5: #{cnn_forward.1} parent=1 // loop_body
      %s25 = ssub.s32 %s20, 1
      %s26 = ssub.s32 %s20, 2
      %s27 = sadd.s32 %s20, 1
      %s28 = ssub.s32 %s20, %s27
      %p29 = scmp.eq.s32.totalorder %s28, 0
      %s31 = sadd.s32 %s30, 1
      %s32 = scalar_select %p29, %s30, %s31
      %p35 = pneg %p29
      %p36 = scmp.eq.s32.totalorder %s20, 1
      %p37 = por %p35, %p36
      %p38 = scmp.ne.s32.totalorder %s30, %s33
      %p39 = scmp.eq.s32.totalorder %s20, 0
      %p40 = por %p38, %p39
      %p41 = scmp.ne.s32.totalorder %s30, %s33
      %p42 = scmp.eq.s32.totalorder %s25, 1
      %p43 = por %p41, %p42
      %p44 = scmp.ne.s32.totalorder %s33, %s34
      %p45 = scmp.eq.s32.totalorder %s25, 0
      %p46 = por %p44, %p45
      %p47 = scmp.ne.s32.totalorder %s33, %s34
      %p48 = scmp.eq.s32.totalorder %s26, 1
      %p49 = por %p47, %p48
      %p51 = scmp.ne.s32.totalorder %s34, %s50
      %p52 = scmp.eq.s32.totalorder %s26, 0
      %p53 = por %p51, %p52
      %s55 = sadd.s32 %s54, 1
      %p58 = scmp.eq.s32.totalorder %s20, 1
      %p59 = scmp.ne.s32.totalorder %s54, %s56
      %p60 = scmp.eq.s32.totalorder %s20, 0
      %p61 = por %p59, %p60
      %p62 = scmp.ne.s32.totalorder %s54, %s56
      %p63 = scmp.eq.s32.totalorder %s25, 1
      %p64 = por %p62, %p63
      %p65 = scmp.ne.s32.totalorder %s56, %s57
      %p66 = scmp.eq.s32.totalorder %s25, 0
      %p67 = por %p65, %p66
      %p68 = scmp.ne.s32.totalorder %s56, %s57
      %p69 = scmp.eq.s32.totalorder %s26, 1
      %p70 = por %p68, %p69
      %p72 = scmp.ne.s32.totalorder %s57, %s71
      %p73 = scmp.eq.s32.totalorder %s26, 0
      %p74 = por %p72, %p73
      %s76 = sadd.s32 %s75, 1
      %p79 = scmp.eq.s32.totalorder %s20, 1
      %p80 = scmp.ne.s32.totalorder %s75, %s77
      %p81 = scmp.eq.s32.totalorder %s20, 0
      %p82 = por %p80, %p81
      %p83 = scmp.ne.s32.totalorder %s75, %s77
      %p84 = scmp.eq.s32.totalorder %s25, 1
      %p85 = por %p83, %p84
      %p86 = scmp.ne.s32.totalorder %s77, %s78
      %p87 = scmp.eq.s32.totalorder %s25, 0
      %p88 = por %p86, %p87
      %p89 = scmp.ne.s32.totalorder %s77, %s78
      %p90 = scmp.eq.s32.totalorder %s26, 1
      %p91 = por %p89, %p90
      %p93 = scmp.ne.s32.totalorder %s78, %s92
      %p94 = scmp.eq.s32.totalorder %s26, 0
      %p95 = por %p93, %p94
      %s97 = sadd.s32 %s96, 1
      %p100 = scmp.eq.s32.totalorder %s20, 1
      %p101 = scmp.ne.s32.totalorder %s96, %s98
      %p102 = scmp.eq.s32.totalorder %s20, 0
      %p103 = por %p101, %p102
      %p104 = scmp.ne.s32.totalorder %s96, %s98
      %p105 = scmp.eq.s32.totalorder %s25, 1
      %p106 = por %p104, %p105
      %p107 = scmp.ne.s32.totalorder %s98, %s99
      %p108 = scmp.eq.s32.totalorder %s25, 0
      %p109 = por %p107, %p108
      %p110 = scmp.ne.s32.totalorder %s98, %s99
      %p111 = scmp.eq.s32.totalorder %s26, 1
      %p112 = por %p110, %p111
      %p114 = scmp.ne.s32.totalorder %s99, %s113
      %p115 = scmp.eq.s32.totalorder %s26, 0
      %p116 = por %p114, %p115
      %s118 = sadd.s32 %s117, 1
      %p121 = scmp.eq.s32.totalorder %s20, 1
      %p122 = scmp.ne.s32.totalorder %s117, %s119
      %p123 = scmp.eq.s32.totalorder %s20, 0
      %p124 = por %p122, %p123
      %p125 = scmp.ne.s32.totalorder %s117, %s119
      %p126 = scmp.eq.s32.totalorder %s25, 1
      %p127 = por %p125, %p126
      %p128 = scmp.ne.s32.totalorder %s119, %s120
      %p129 = scmp.eq.s32.totalorder %s25, 0
      %p130 = por %p128, %p129
      %p131 = scmp.ne.s32.totalorder %s119, %s120
      %p132 = scmp.eq.s32.totalorder %s26, 1
      %p133 = por %p131, %p132
      %p135 = scmp.ne.s32.totalorder %s120, %s134
      %p136 = scmp.eq.s32.totalorder %s26, 0
      %p137 = por %p135, %p136
      %s139 = sadd.s32 %s138, 1
      %p142 = scmp.eq.s32.totalorder %s20, 1
      %p143 = scmp.ne.s32.totalorder %s138, %s140
      %p144 = scmp.eq.s32.totalorder %s20, 0
      %p145 = por %p143, %p144
      %p146 = scmp.ne.s32.totalorder %s138, %s140
      %p147 = scmp.eq.s32.totalorder %s25, 1
      %p148 = por %p146, %p147
      %p149 = scmp.ne.s32.totalorder %s140, %s141
      %p150 = scmp.eq.s32.totalorder %s25, 0
      %p151 = por %p149, %p150
      %p152 = scmp.ne.s32.totalorder %s140, %s141
      %p153 = scmp.eq.s32.totalorder %s26, 1
      %p154 = por %p152, %p153
      %p156 = scmp.ne.s32.totalorder %s141, %s155
      %p157 = scmp.eq.s32.totalorder %s26, 0
      %p158 = por %p156, %p157
      %s160 = sadd.s32 %s159, 1
      %p163 = scmp.eq.s32.totalorder %s20, 1
      %p164 = scmp.ne.s32.totalorder %s159, %s161
      %p165 = scmp.eq.s32.totalorder %s20, 0
      %p166 = por %p164, %p165
      %p167 = scmp.ne.s32.totalorder %s159, %s161
      %p168 = scmp.eq.s32.totalorder %s25, 1
      %p169 = por %p167, %p168
      %p170 = scmp.ne.s32.totalorder %s161, %s162
      %p171 = scmp.eq.s32.totalorder %s25, 0
      %p172 = por %p170, %p171
      %p173 = scmp.ne.s32.totalorder %s161, %s162
      %p174 = scmp.eq.s32.totalorder %s26, 1
      %p175 = por %p173, %p174
      %p177 = scmp.ne.s32.totalorder %s162, %s176
      %p178 = scmp.eq.s32.totalorder %s26, 0
      %p179 = por %p177, %p178
      %s181 = sadd.s32 %s180, 1
      %p184 = scmp.eq.s32.totalorder %s20, 1
      %p185 = scmp.ne.s32.totalorder %s180, %s182
      %p186 = scmp.eq.s32.totalorder %s20, 0
      %p187 = por %p185, %p186
      %p188 = scmp.ne.s32.totalorder %s180, %s182
      %p189 = scmp.eq.s32.totalorder %s25, 1
      %p190 = por %p188, %p189
      %p191 = scmp.ne.s32.totalorder %s182, %s183
      %p192 = scmp.eq.s32.totalorder %s25, 0
      %p193 = por %p191, %p192
      %p194 = scmp.ne.s32.totalorder %s182, %s183
      %p195 = scmp.eq.s32.totalorder %s26, 1
      %p196 = por %p194, %p195
      %p198 = scmp.ne.s32.totalorder %s183, %s197
      %p199 = scmp.eq.s32.totalorder %s26, 0
      %p200 = por %p198, %p199
      %s202 = sadd.s32 %s201, 1
      %p205 = scmp.eq.s32.totalorder %s20, 1
      %p206 = scmp.ne.s32.totalorder %s201, %s203
      %p207 = scmp.eq.s32.totalorder %s20, 0
      %p208 = por %p206, %p207
      %p209 = scmp.ne.s32.totalorder %s201, %s203
      %p210 = scmp.eq.s32.totalorder %s25, 1
      %p211 = por %p209, %p210
      %p212 = scmp.ne.s32.totalorder %s203, %s204
      %p213 = scmp.eq.s32.totalorder %s25, 0
      %p214 = por %p212, %p213
      %p215 = scmp.ne.s32.totalorder %s203, %s204
      %p216 = scmp.eq.s32.totalorder %s26, 1
      %p217 = por %p215, %p216
      %p219 = scmp.ne.s32.totalorder %s204, %s218
      %p220 = scmp.eq.s32.totalorder %s26, 0
      %p221 = por %p219, %p220
      %s223 = sadd.s32 %s222, 1
      %p226 = scmp.eq.s32.totalorder %s20, 1
      %p227 = scmp.ne.s32.totalorder %s222, %s224
      %p228 = scmp.eq.s32.totalorder %s20, 0
      %p229 = por %p227, %p228
      %p230 = scmp.ne.s32.totalorder %s222, %s224
      %p231 = scmp.eq.s32.totalorder %s25, 1
      %p232 = por %p230, %p231
      %p233 = scmp.ne.s32.totalorder %s224, %s225
      %p234 = scmp.eq.s32.totalorder %s25, 0
      %p235 = por %p233, %p234
      %p236 = scmp.ne.s32.totalorder %s224, %s225
      %p237 = scmp.eq.s32.totalorder %s26, 1
      %p238 = por %p236, %p237
      %p240 = scmp.ne.s32.totalorder %s225, %s239
      %p241 = scmp.eq.s32.totalorder %s26, 0
      %p242 = por %p240, %p241
      %s244 = sadd.s32 %s243, 1
      %p247 = scmp.eq.s32.totalorder %s20, 1
      %p248 = scmp.ne.s32.totalorder %s243, %s245
      %p249 = scmp.eq.s32.totalorder %s20, 0
      %p250 = por %p248, %p249
      %p251 = scmp.ne.s32.totalorder %s243, %s245
      %p252 = scmp.eq.s32.totalorder %s25, 1
      %p253 = por %p251, %p252
      %p254 = scmp.ne.s32.totalorder %s245, %s246
      %p255 = scmp.eq.s32.totalorder %s25, 0
      %p256 = por %p254, %p255
      %p257 = scmp.ne.s32.totalorder %s245, %s246
      %p258 = scmp.eq.s32.totalorder %s26, 1
      %p259 = por %p257, %p258
      %p261 = scmp.ne.s32.totalorder %s246, %s260
      %p262 = scmp.eq.s32.totalorder %s26, 0
      %p263 = por %p261, %p262
      %s264 = ssub.s32 %s20, %s27
      %p265 = scmp.eq.s32.totalorder %s264, 0
      %s267 = sadd.s32 %s266, 1
      %s268 = scalar_select %p265, %s266, %s267
      %p271 = pneg %p265
      %p272 = scmp.eq.s32.totalorder %s20, 1
      %p273 = por %p271, %p272
      %p274 = scmp.ne.s32.totalorder %s266, %s269
      %p275 = scmp.eq.s32.totalorder %s20, 0
      %p276 = por %p274, %p275
      %p277 = scmp.ne.s32.totalorder %s266, %s269
      %p278 = scmp.eq.s32.totalorder %s25, 1
      %p279 = por %p277, %p278
      %p280 = scmp.ne.s32.totalorder %s269, %s270
      %p281 = scmp.eq.s32.totalorder %s25, 0
      %p282 = por %p280, %p281
      %p283 = scmp.ne.s32.totalorder %s269, %s270
      %p284 = scmp.eq.s32.totalorder %s26, 1
      %p285 = por %p283, %p284
      %p287 = scmp.ne.s32.totalorder %s270, %s286
      %p288 = scmp.eq.s32.totalorder %s26, 0
      %p289 = por %p287, %p288
      %p290 = scmp.le.s32.totalorder 1, %s20
      %p291 = scmp.lt.s32.totalorder %s20, 3
      %p292 = pnand %p290, %p291
      %p293 = pneg %p292
      // Predicated region
      $region9: #{cnn_forward.1} parent=5 // pred_check
        _
      $region10: #{cnn_forward.1} parent=5 // pred_check_branch
        %295 = sbr.rel (%p292) target = $region12
      $region11: #{cnn_forward.1} parent=5 // pred_region
        %s296 = ssub.s32 %s20, 1
        // Predicated region
        $region13: #{cnn_forward.1} parent=11 // pred_check
          %p297 = pneg %p67
        $region14: #{cnn_forward.1} parent=11 // pred_check_branch
          %299 = sbr.rel (%p297) target = $region16
        $region15: #{cnn_forward.1} parent=11 // pred_region
          _
        $region16: #{cnn_forward.1} parent=11 // pred_fallthru
          _
        // Predicated region
        $region17: #{cnn_forward.1} parent=11 // pred_check
          %p300 = pneg %p88
        $region18: #{cnn_forward.1} parent=11 // pred_check_branch
          %302 = sbr.rel (%p300) target = $region20
        $region19: #{cnn_forward.1} parent=11 // pred_region
          _
        $region20: #{cnn_forward.1} parent=11 // pred_fallthru
          _
        // Predicated region
        $region21: #{cnn_forward.1} parent=11 // pred_check
          %p303 = pneg %p109
        $region22: #{cnn_forward.1} parent=11 // pred_check_branch
          %305 = sbr.rel (%p303) target = $region24
        $region23: #{cnn_forward.1} parent=11 // pred_region
          _
        $region24: #{cnn_forward.1} parent=11 // pred_fallthru
          _
        // Predicated region
        $region25: #{cnn_forward.1} parent=11 // pred_check
          %p306 = pneg %p130
        $region26: #{cnn_forward.1} parent=11 // pred_check_branch
          %308 = sbr.rel (%p306) target = $region28
        $region27: #{cnn_forward.1} parent=11 // pred_region
          _
        $region28: #{cnn_forward.1} parent=11 // pred_fallthru
          _
        // Predicated region
        $region29: #{cnn_forward.1} parent=11 // pred_check
          %p309 = pneg %p151
        $region30: #{cnn_forward.1} parent=11 // pred_check_branch
          %311 = sbr.rel (%p309) target = $region32
        $region31: #{cnn_forward.1} parent=11 // pred_region
          _
        $region32: #{cnn_forward.1} parent=11 // pred_fallthru
          _
        // Predicated region
        $region33: #{cnn_forward.1} parent=11 // pred_check
          %p312 = pneg %p172
        $region34: #{cnn_forward.1} parent=11 // pred_check_branch
          %314 = sbr.rel (%p312) target = $region36
        $region35: #{cnn_forward.1} parent=11 // pred_region
          _
        $region36: #{cnn_forward.1} parent=11 // pred_fallthru
          _
        // Predicated region
        $region37: #{cnn_forward.1} parent=11 // pred_check
          %p315 = pneg %p193
        $region38: #{cnn_forward.1} parent=11 // pred_check_branch
          %317 = sbr.rel (%p315) target = $region40
        $region39: #{cnn_forward.1} parent=11 // pred_region
          _
        $region40: #{cnn_forward.1} parent=11 // pred_fallthru
          _
        // Predicated region
        $region41: #{cnn_forward.1} parent=11 // pred_check
          %p318 = pneg %p214
        $region42: #{cnn_forward.1} parent=11 // pred_check_branch
          %320 = sbr.rel (%p318) target = $region44
        $region43: #{cnn_forward.1} parent=11 // pred_region
          _
        $region44: #{cnn_forward.1} parent=11 // pred_fallthru
          _
        // Predicated region
        $region45: #{cnn_forward.1} parent=11 // pred_check
          %p321 = pneg %p235
        $region46: #{cnn_forward.1} parent=11 // pred_check_branch
          %323 = sbr.rel (%p321) target = $region48
        $region47: #{cnn_forward.1} parent=11 // pred_region
          _
        $region48: #{cnn_forward.1} parent=11 // pred_fallthru
          _
        // Predicated region
        $region49: #{cnn_forward.1} parent=11 // pred_check
          %p324 = pneg %p256
        $region50: #{cnn_forward.1} parent=11 // pred_check_branch
          %326 = sbr.rel (%p324) target = $region52
        $region51: #{cnn_forward.1} parent=11 // pred_region
          _
        $region52: #{cnn_forward.1} parent=11 // pred_fallthru
          _
      $region12: #{cnn_forward.1} parent=5 // pred_fallthru
        _
      %p327 = scmp.lt.s32.totalorder %s20, 2
      // Predicated region
      $region53: #{cnn_forward.1} parent=5 // pred_check
        %p328 = pneg %p327
      $region54: #{cnn_forward.1} parent=5 // pred_check_branch
        %330 = sbr.rel (%p328) target = $region56
      $region55: #{cnn_forward.1} parent=5 // pred_region
        // Predicated region
        $region57: #{cnn_forward.1} parent=55 // pred_check
          %p331 = pneg %p40
        $region58: #{cnn_forward.1} parent=55 // pred_check_branch
          %333 = sbr.rel (%p331) target = $region60
        $region59: #{cnn_forward.1} parent=55 // pred_region
          %s334 = smul.u32 98, %s20
          %p335 = scmp.lt.s32.totalorder %s334, 195
          %s336 = scalar_select %p335, %s334, 195
          %s337 = smul.addr %s336, 4
          %s338 = scalar_lea.vmem %s0, %s337
          %s339 = smul.u32 98, %s20
        $region60: #{cnn_forward.1} parent=55 // pred_fallthru
          _
      $region56: #{cnn_forward.1} parent=5 // pred_fallthru
        _
      %p340 = scmp.le.s32.totalorder 1, %s20
      %p341 = scmp.lt.s32.totalorder %s20, 3
      %p342 = pnand %p340, %p341
      %p343 = pneg %p342
      // Predicated region
      $region61: #{cnn_forward.1} parent=5 // pred_check
        _
      $region62: #{cnn_forward.1} parent=5 // pred_check_branch
        %345 = sbr.rel (%p342) target = $region64
      $region63: #{cnn_forward.1} parent=5 // pred_region
        %s346 = ssub.s32 %s20, 1
        %s347 = smul.u32 98, %s25
        %p348 = scmp.lt.s32.totalorder %s347, 195
        %s349 = scalar_select %p348, %s347, 195
        %s350 = smul.addr %s349, 4
        %s351 = scalar_lea.vmem %s0, %s350
        %p352 = pneg %p46
        %p353 = pneg %p43
        %p354 = pneg %p67
        %p355 = pneg %p64
        %p356 = pneg %p88
        %p357 = pneg %p85
        %p358 = pneg %p109
        %p359 = pneg %p106
        %p360 = pneg %p130
        %p361 = pneg %p127
        %p362 = pneg %p151
        %p363 = pneg %p148
        %p364 = pneg %p172
        %p365 = pneg %p169
        %p366 = pneg %p193
        %p367 = pneg %p190
        %p368 = pneg %p214
        %p369 = pneg %p211
        %p370 = pneg %p235
        %p371 = pneg %p232
        %p372 = pneg %p256
        %p373 = pneg %p253
        %p374 = pneg %p282
        %p375 = pneg %p279
        %s376 = sand.u32 %s269, 1
        %s377 = scalar_lea.sflag [#allocation8], %s376
        %s378 = sand.u32 %s269, 1
        %s379 = scalar_lea.vmem [#allocation7], %s378
        %s380 = smul.u32 98, %s25
        %p381 = scmp.lt.s32.totalorder %s380, 195
        %s382 = scalar_select %p381, %s380, 195
        %s383 = smul.addr %s382, 4
        %s384 = scalar_lea.vmem %s0, %s383
        %s385 = smul.u32 98, %s25
        %vm387 = vcmask 650240
        %388 = vst.msk [vmem:[#allocation2 + $0x188] sm:$0xf] %vm387, 0
        %389 = vst.msk [vmem:[#allocation2 + $0x18c] sm:$0xf] %vm387, 0
        %390 = vst.msk [vmem:[#allocation2 + $0x190] sm:$0xf] %vm387, 0
        %391 = vst.msk [vmem:[#allocation2 + $0x194] sm:$0xf] %vm387, 0
        %392 = vst.msk [vmem:[#allocation2 + $0x198] sm:$0xf] %vm387, 0
        %393 = vst.msk [vmem:[#allocation2 + $0x19c] sm:$0xf] %vm387, 0
        %394 = vst.msk [vmem:[#allocation2 + $0x1a0] sm:$0xf] %vm387, 0
        %395 = vst.msk [vmem:[#allocation2 + $0x1a4] sm:$0xf] %vm387, 0
        %396 = vst.msk [vmem:[#allocation2 + $0x1a8] sm:$0xf] %vm387, 0
        %397 = vst.msk [vmem:[#allocation2 + $0x1ac] sm:$0xf] %vm387, 0
        %398 = vst.msk [vmem:[#allocation2 + $0x1b0] sm:$0xf] %vm387, 0
        %399 = vst.msk [vmem:[#allocation2 + $0x1b4] sm:$0xf] %vm387, 0
        %400 = vst.msk [vmem:[#allocation2 + $0x1b8] sm:$0xf] %vm387, 0
        %401 = vst.msk [vmem:[#allocation2 + $0x1bc] sm:$0xf] %vm387, 0
        %vm402 = vcmask 648192
        %403 = vst.msk [vmem:[#allocation2 + $0x1c0] sm:$0x3] %vm402, 0
        %v404 = vld [vmem:[%s384] sm:$0xf]
        %v405 = vld [vmem:[%s384 + $0x4] sm:$0xf]
        %v406 = vld [vmem:[%s384 + $0x8] sm:$0xf]
        %v407 = vld [vmem:[%s384 + $0xc] sm:$0xf]
        %v408 = vld [vmem:[%s384 + $0x10] sm:$0xf]
        %v409 = vld [vmem:[%s384 + $0x14] sm:$0xf]
        %v410 = vld [vmem:[%s384 + $0x18] sm:$0xf]
        %v411 = vld [vmem:[%s384 + $0x1c] sm:$0xf]
        %v412 = vld [vmem:[%s384 + $0x20] sm:$0xf]
        %v413 = vld [vmem:[%s384 + $0x24] sm:$0xf]
        %v414 = vld [vmem:[%s384 + $0x28] sm:$0xf]
        %v415 = vld [vmem:[%s384 + $0x2c] sm:$0xf]
        %v416 = vld [vmem:[%s384 + $0x30] sm:$0xf]
        %v417 = vld [vmem:[%s384 + $0x34] sm:$0xf]
        %v418 = vld [vmem:[%s384 + $0x38] sm:$0xf]
        %v419 = vld [vmem:[%s384 + $0x3c] sm:$0xf]
        %v420 = vld [vmem:[%s384 + $0x40] sm:$0xf]
        %v421 = vld [vmem:[%s384 + $0x44] sm:$0xf]
        %v422 = vld [vmem:[%s384 + $0x48] sm:$0xf]
        %v423 = vld [vmem:[%s384 + $0x4c] sm:$0xf]
        %v424 = vld [vmem:[%s384 + $0x50] sm:$0xf]
        %v425 = vld [vmem:[%s384 + $0x54] sm:$0xf]
        %v426 = vld [vmem:[%s384 + $0x58] sm:$0xf]
        %v427 = vld [vmem:[%s384 + $0x5c] sm:$0xf]
        %v428 = vld [vmem:[%s384 + $0x60] sm:$0xf]
        %v429 = vld [vmem:[%s384 + $0x64] sm:$0xf]
        %v430 = vld [vmem:[%s384 + $0x68] sm:$0xf]
        %v431 = vld [vmem:[%s384 + $0x6c] sm:$0xf]
        %v432 = vld [vmem:[%s384 + $0x70] sm:$0xf]
        %v433 = vld [vmem:[%s384 + $0x74] sm:$0xf]
        %v434 = vld [vmem:[%s384 + $0x78] sm:$0xf]
        %v435 = vld [vmem:[%s384 + $0x7c] sm:$0xf]
        %v436 = vld [vmem:[%s384 + $0x80] sm:$0xf]
        %v437 = vld [vmem:[%s384 + $0x84] sm:$0xf]
        %v438 = vld [vmem:[%s384 + $0x88] sm:$0xf]
        %v439 = vld [vmem:[%s384 + $0x8c] sm:$0xf]
        %v440 = vld [vmem:[%s384 + $0x90] sm:$0xf]
        %v441 = vld [vmem:[%s384 + $0x94] sm:$0xf]
        %v442 = vld [vmem:[%s384 + $0x98] sm:$0xf]
        %v443 = vld [vmem:[%s384 + $0x9c] sm:$0xf]
        %v444 = vld [vmem:[%s384 + $0xa0] sm:$0xf]
        %v445 = vld [vmem:[%s384 + $0xa4] sm:$0xf]
        %v446 = vld [vmem:[%s384 + $0xa8] sm:$0xf]
        %v447 = vld [vmem:[%s384 + $0xac] sm:$0xf]
        %v448 = vld [vmem:[%s384 + $0xb0] sm:$0xf]
        %v449 = vld [vmem:[%s384 + $0xb4] sm:$0xf]
        %v450 = vld [vmem:[%s384 + $0xb8] sm:$0xf]
        %v451 = vld [vmem:[%s384 + $0xbc] sm:$0xf]
        %v452 = vld [vmem:[%s384 + $0xc0] sm:$0xf]
        %v453 = vld [vmem:[%s384 + $0xc4] sm:$0xf]
        %v454 = vld [vmem:[%s384 + $0xc8] sm:$0xf]
        %v455 = vld [vmem:[%s384 + $0xcc] sm:$0xf]
        %v456 = vld [vmem:[%s384 + $0xd0] sm:$0xf]
        %v457 = vld [vmem:[%s384 + $0xd4] sm:$0xf]
        %v458 = vld [vmem:[%s384 + $0xd8] sm:$0xf]
        %v459 = vld [vmem:[%s384 + $0xdc] sm:$0xf]
        %v460 = vld [vmem:[%s384 + $0xe0] sm:$0xf]
        %v461 = vld [vmem:[%s384 + $0xe4] sm:$0xf]
        %v462 = vld [vmem:[%s384 + $0xe8] sm:$0xf]
        %v463 = vld [vmem:[%s384 + $0xec] sm:$0xf]
        %v464 = vld [vmem:[%s384 + $0xf0] sm:$0xf]
        %v465 = vld [vmem:[%s384 + $0xf4] sm:$0xf]
        %v466 = vld [vmem:[%s384 + $0xf8] sm:$0xf]
        %v467 = vld [vmem:[%s384 + $0xfc] sm:$0xf]
        %v468 = vld [vmem:[%s384 + $0x100] sm:$0xf]
        %v469 = vld [vmem:[%s384 + $0x104] sm:$0xf]
        %v470 = vld [vmem:[%s384 + $0x108] sm:$0xf]
        %v471 = vld [vmem:[%s384 + $0x10c] sm:$0xf]
        %v472 = vld [vmem:[%s384 + $0x110] sm:$0xf]
        %v473 = vld [vmem:[%s384 + $0x114] sm:$0xf]
        %v474 = vld [vmem:[%s384 + $0x118] sm:$0xf]
        %v475 = vld [vmem:[%s384 + $0x11c] sm:$0xf]
        %v476 = vld [vmem:[%s384 + $0x120] sm:$0xf]
        %v477 = vld [vmem:[%s384 + $0x124] sm:$0xf]
        %v478 = vld [vmem:[%s384 + $0x128] sm:$0xf]
        %v479 = vld [vmem:[%s384 + $0x12c] sm:$0xf]
        %v480 = vld [vmem:[%s384 + $0x130] sm:$0xf]
        %v481 = vld [vmem:[%s384 + $0x134] sm:$0xf]
        %v482 = vld [vmem:[%s384 + $0x138] sm:$0xf]
        %v483 = vld [vmem:[%s384 + $0x13c] sm:$0xf]
        %v484 = vld [vmem:[%s384 + $0x140] sm:$0xf]
        %v485 = vld [vmem:[%s384 + $0x144] sm:$0xf]
        %v486 = vld [vmem:[%s384 + $0x148] sm:$0xf]
        %v487 = vld [vmem:[%s384 + $0x14c] sm:$0xf]
        %v488 = vld [vmem:[%s384 + $0x150] sm:$0xf]
        %v489 = vld [vmem:[%s384 + $0x154] sm:$0xf]
        %v490 = vld [vmem:[%s384 + $0x158] sm:$0xf]
        %v491 = vld [vmem:[%s384 + $0x15c] sm:$0xf]
        %v492 = vld [vmem:[%s384 + $0x160] sm:$0xf]
        %v493 = vld [vmem:[%s384 + $0x164] sm:$0xf]
        %v494 = vld [vmem:[%s384 + $0x168] sm:$0xf]
        %v495 = vld [vmem:[%s384 + $0x16c] sm:$0xf]
        %v496 = vld [vmem:[%s384 + $0x170] sm:$0xf]
        %v497 = vld [vmem:[%s384 + $0x174] sm:$0xf]
        %v498 = vld [vmem:[%s384 + $0x178] sm:$0xf]
        %v499 = vld [vmem:[%s384 + $0x17c] sm:$0xf]
        %v500 = vld [vmem:[%s384 + $0x180] sm:$0xf]
        %v501 = vld [vmem:[%s384 + $0x184] sm:$0xf]
        %v502 = vld [vmem:[%s1] sm:$0xf]
        %v503 = vld [vmem:[%s1 + $0x4] sm:$0xf]
        %v504 = vld [vmem:[%s1 + $0x8] sm:$0xf]
        %v505 = vld [vmem:[%s1 + $0xc] sm:$0x1]
        %v506 = vld [vmem:[%s2] sm:$0x1]
        %v508 = vperm.slane %v506, 0
        %v608 = vunpack.c.l.b16 %v404
        %v609 = vunpack.c.l.b16 %v405
        %v610 = vunpack.c.l.b16 %v406
        %v611 = vunpack.c.l.b16 %v407
        %v612 = vunpack.c.l.b16 %v408
        %v613 = vunpack.c.l.b16 %v409
        %v614 = vunpack.c.l.b16 %v410
        %v615 = vunpack.c.l.b16 %v411
        %v616 = vunpack.c.l.b16 %v412
        %v617 = vunpack.c.l.b16 %v413
        %v618 = vunpack.c.l.b16 %v414
        %v619 = vunpack.c.l.b16 %v415
        %v620 = vunpack.c.l.b16 %v416
        %v621 = vunpack.c.l.b16 %v417
        %v622 = vunpack.c.l.b16 %v418
        %v623 = vunpack.c.l.b16 %v419
        %v624 = vunpack.c.l.b16 %v420
        %v625 = vunpack.c.l.b16 %v421
        %v626 = vunpack.c.l.b16 %v422
        %v627 = vunpack.c.l.b16 %v423
        %v628 = vunpack.c.l.b16 %v424
        %v629 = vunpack.c.l.b16 %v425
        %v630 = vunpack.c.l.b16 %v426
        %v631 = vunpack.c.l.b16 %v427
        %v632 = vunpack.c.l.b16 %v428
        %v633 = vunpack.c.l.b16 %v429
        %v634 = vunpack.c.l.b16 %v430
        %v635 = vunpack.c.l.b16 %v431
        %v636 = vunpack.c.l.b16 %v432
        %v637 = vunpack.c.l.b16 %v433
        %v638 = vunpack.c.l.b16 %v434
        %v639 = vunpack.c.l.b16 %v435
        %v640 = vunpack.c.l.b16 %v436
        %v641 = vunpack.c.l.b16 %v437
        %v642 = vunpack.c.l.b16 %v438
        %v643 = vunpack.c.l.b16 %v439
        %v644 = vunpack.c.l.b16 %v440
        %v645 = vunpack.c.l.b16 %v441
        %v646 = vunpack.c.l.b16 %v442
        %v647 = vunpack.c.l.b16 %v443
        %v648 = vunpack.c.l.b16 %v444
        %v649 = vunpack.c.l.b16 %v445
        %v650 = vunpack.c.l.b16 %v446
        %v651 = vunpack.c.l.b16 %v447
        %v652 = vunpack.c.l.b16 %v448
        %v653 = vunpack.c.l.b16 %v449
        %v654 = vunpack.c.l.b16 %v450
        %v655 = vunpack.c.l.b16 %v451
        %v656 = vunpack.c.l.b16 %v452
        %v657 = vunpack.c.l.b16 %v453
        %v658 = vunpack.c.l.b16 %v454
        %v659 = vunpack.c.l.b16 %v455
        %v660 = vunpack.c.l.b16 %v456
        %v661 = vunpack.c.l.b16 %v457
        %v662 = vunpack.c.l.b16 %v458
        %v663 = vunpack.c.l.b16 %v459
        %v664 = vunpack.c.l.b16 %v460
        %v665 = vunpack.c.l.b16 %v461
        %v666 = vunpack.c.l.b16 %v462
        %v667 = vunpack.c.l.b16 %v463
        %v668 = vunpack.c.l.b16 %v464
        %v669 = vunpack.c.l.b16 %v465
        %v670 = vunpack.c.l.b16 %v466
        %v671 = vunpack.c.l.b16 %v467
        %v672 = vunpack.c.l.b16 %v468
        %v673 = vunpack.c.l.b16 %v469
        %v674 = vunpack.c.l.b16 %v470
        %v675 = vunpack.c.l.b16 %v471
        %v676 = vunpack.c.l.b16 %v472
        %v677 = vunpack.c.l.b16 %v473
        %v678 = vunpack.c.l.b16 %v474
        %v679 = vunpack.c.l.b16 %v475
        %v680 = vunpack.c.l.b16 %v476
        %v681 = vunpack.c.l.b16 %v477
        %v682 = vunpack.c.l.b16 %v478
        %v683 = vunpack.c.l.b16 %v479
        %v684 = vunpack.c.l.b16 %v480
        %v685 = vunpack.c.l.b16 %v481
        %v686 = vunpack.c.l.b16 %v482
        %v687 = vunpack.c.l.b16 %v483
        %v688 = vunpack.c.l.b16 %v484
        %v689 = vunpack.c.l.b16 %v485
        %v690 = vunpack.c.l.b16 %v486
        %v691 = vunpack.c.l.b16 %v487
        %v692 = vunpack.c.l.b16 %v488
        %v693 = vunpack.c.l.b16 %v489
        %v694 = vunpack.c.l.b16 %v490
        %v695 = vunpack.c.l.b16 %v491
        %v696 = vunpack.c.l.b16 %v492
        %v697 = vunpack.c.l.b16 %v493
        %v698 = vunpack.c.l.b16 %v494
        %v699 = vunpack.c.l.b16 %v495
        %v700 = vunpack.c.l.b16 %v496
        %v701 = vunpack.c.l.b16 %v497
        %v702 = vunpack.c.l.b16 %v498
        %v703 = vunpack.c.l.b16 %v499
        %v704 = vunpack.c.l.b16 %v500
        %v705 = vunpack.c.l.b16 %v501
        %v706 = vpack.c.b16 %v609, %v608
        %v707 = vpack.c.b16 %v611, %v610
        %v708 = vpack.c.b16 %v613, %v612
        %v709 = vpack.c.b16 %v615, %v614
        %v710 = vpack.c.b16 %v617, %v616
        %v711 = vpack.c.b16 %v619, %v618
        %v712 = vpack.c.b16 %v621, %v620
        %v713 = vpack.c.b16 %v623, %v622
        %v714 = vpack.c.b16 %v625, %v624
        %v715 = vpack.c.b16 %v627, %v626
        %v716 = vpack.c.b16 %v629, %v628
        %v717 = vpack.c.b16 %v631, %v630
        %v718 = vpack.c.b16 %v633, %v632
        %v719 = vpack.c.b16 %v635, %v634
        %v720 = vpack.c.b16 %v637, %v636
        %v721 = vpack.c.b16 %v639, %v638
        %v722 = vpack.c.b16 %v641, %v640
        %v723 = vpack.c.b16 %v643, %v642
        %v724 = vpack.c.b16 %v645, %v644
        %v725 = vpack.c.b16 %v647, %v646
        %v726 = vpack.c.b16 %v649, %v648
        %v727 = vpack.c.b16 %v651, %v650
        %v728 = vpack.c.b16 %v653, %v652
        %v729 = vpack.c.b16 %v655, %v654
        %v730 = vpack.c.b16 %v657, %v656
        %v731 = vpack.c.b16 %v659, %v658
        %v732 = vpack.c.b16 %v661, %v660
        %v733 = vpack.c.b16 %v663, %v662
        %v734 = vpack.c.b16 %v665, %v664
        %v735 = vpack.c.b16 %v667, %v666
        %v736 = vpack.c.b16 %v669, %v668
        %v737 = vpack.c.b16 %v671, %v670
        %v738 = vpack.c.b16 %v673, %v672
        %v739 = vpack.c.b16 %v675, %v674
        %v740 = vpack.c.b16 %v677, %v676
        %v741 = vpack.c.b16 %v679, %v678
        %v742 = vpack.c.b16 %v681, %v680
        %v743 = vpack.c.b16 %v683, %v682
        %v744 = vpack.c.b16 %v685, %v684
        %v745 = vpack.c.b16 %v687, %v686
        %v746 = vpack.c.b16 %v689, %v688
        %v747 = vpack.c.b16 %v691, %v690
        %v748 = vpack.c.b16 %v693, %v692
        %v749 = vpack.c.b16 %v695, %v694
        %v750 = vpack.c.b16 %v697, %v696
        %v751 = vpack.c.b16 %v699, %v698
        %v752 = vpack.c.b16 %v701, %v700
        %v753 = vpack.c.b16 %v703, %v702
        %v754 = vpack.c.b16 %v705, %v704
        %v759 = vunpack.c.l.b16 %v502
        %v760 = vunpack.c.l.b16 %v503
        %v761 = vunpack.c.l.b16 %v504
        %v762 = vunpack.c.l.b16 %v505
        %v763 = vpack.c.b16 %v760, %v759
        %v764 = vpack.c.b16 %v762, %v761
        %vm766 = vcmask 203776
        %v768 = vsel %vm766, %v706, 0
        %v771 = vsel %vm766, %v707, 0
        %v774 = vsel %vm766, %v708, 0
        %v777 = vsel %vm766, %v709, 0
        %v780 = vsel %vm766, %v710, 0
        %v783 = vsel %vm766, %v711, 0
        %v786 = vsel %vm766, %v712, 0
        %v789 = vsel %vm766, %v713, 0
        %v792 = vsel %vm766, %v714, 0
        %v795 = vsel %vm766, %v715, 0
        %v798 = vsel %vm766, %v716, 0
        %v801 = vsel %vm766, %v717, 0
        %v804 = vsel %vm766, %v718, 0
        %v807 = vsel %vm766, %v719, 0
        %v810 = vsel %vm766, %v720, 0
        %v813 = vsel %vm766, %v721, 0
        %v816 = vsel %vm766, %v722, 0
        %v819 = vsel %vm766, %v723, 0
        %v822 = vsel %vm766, %v724, 0
        %v825 = vsel %vm766, %v725, 0
        %v828 = vsel %vm766, %v726, 0
        %v831 = vsel %vm766, %v727, 0
        %v834 = vsel %vm766, %v728, 0
        %v837 = vsel %vm766, %v729, 0
        %v840 = vsel %vm766, %v730, 0
        %v843 = vsel %vm766, %v731, 0
        %v846 = vsel %vm766, %v732, 0
        %v849 = vsel %vm766, %v733, 0
        %v852 = vsel %vm766, %v734, 0
        %v855 = vsel %vm766, %v735, 0
        %v858 = vsel %vm766, %v736, 0
        %v861 = vsel %vm766, %v737, 0
        %v864 = vsel %vm766, %v738, 0
        %v867 = vsel %vm766, %v739, 0
        %v870 = vsel %vm766, %v740, 0
        %v873 = vsel %vm766, %v741, 0
        %v876 = vsel %vm766, %v742, 0
        %v879 = vsel %vm766, %v743, 0
        %v882 = vsel %vm766, %v744, 0
        %v885 = vsel %vm766, %v745, 0
        %v888 = vsel %vm766, %v746, 0
        %v891 = vsel %vm766, %v747, 0
        %v894 = vsel %vm766, %v748, 0
        %v897 = vsel %vm766, %v749, 0
        %v900 = vsel %vm766, %v750, 0
        %v903 = vsel %vm766, %v751, 0
        %v906 = vsel %vm766, %v752, 0
        %v909 = vsel %vm766, %v753, 0
        %v912 = vsel %vm766, %v754, 0
        %vm914 = vcmask 1043456
        %vm915 = vcmask 1044480
        %v916 = vsel %vm914, 4294967295, 65535
        %v917 = vsel %vm915, %v916, 0
        %v919 = vand.u32 %v764, %v917
        %921 = vmatpush.bf16.msra.mxu0 0
        %922 = vmatpush.bf16.msra.mxu0 0
        %923 = vmatpush.bf16.msra.mxu0 0
        %924 = vmatpush.bf16.msra.mxu0 0
        %925 = vmatpush.bf16.msra.mxu0 0
        %926 = vmatpush.bf16.msra.mxu0 0
        %927 = vmatpush.bf16.msra.mxu0 %v919
        %928 = vmatpush.bf16.msra.mxu0 %v763
        %929 = vmatmul.bf16.gmra.mxu0 %v768
        %v930 = vpop.f32.mrf.mxu0
        %v931 = vadd.f32 %v508, %v930
        %v932 = vpop.f32.mrf.mxu0
        %v933 = vadd.f32 %v508, %v932
        %934 = vmatmul.bf16.gmra.mxu0 %v771
        %v935 = vpop.f32.mrf.mxu0
        %v936 = vadd.f32 %v508, %v935
        %v937 = vpop.f32.mrf.mxu0
        %v938 = vadd.f32 %v508, %v937
        %939 = vmatmul.bf16.gmra.mxu0 %v774
        %v940 = vpop.f32.mrf.mxu0
        %v941 = vadd.f32 %v508, %v940
        %v942 = vpop.f32.mrf.mxu0
        %v943 = vadd.f32 %v508, %v942
        %944 = vmatmul.bf16.gmra.mxu0 %v777
        %v945 = vpop.f32.mrf.mxu0
        %v946 = vadd.f32 %v508, %v945
        %v947 = vpop.f32.mrf.mxu0
        %v948 = vadd.f32 %v508, %v947
        %949 = vmatmul.bf16.gmra.mxu0 %v780
        %v950 = vpop.f32.mrf.mxu0
        %v951 = vadd.f32 %v508, %v950
        %v952 = vpop.f32.mrf.mxu0
        %v953 = vadd.f32 %v508, %v952
        %954 = vmatmul.bf16.gmra.mxu0 %v783
        %v955 = vpop.f32.mrf.mxu0
        %v956 = vadd.f32 %v508, %v955
        %v957 = vpop.f32.mrf.mxu0
        %v958 = vadd.f32 %v508, %v957
        %959 = vmatmul.bf16.gmra.mxu0 %v786
        %v960 = vpop.f32.mrf.mxu0
        %v961 = vadd.f32 %v508, %v960
        %v962 = vpop.f32.mrf.mxu0
        %v963 = vadd.f32 %v508, %v962
        %964 = vmatmul.bf16.gmra.mxu0 %v789
        %v965 = vpop.f32.mrf.mxu0
        %v966 = vadd.f32 %v508, %v965
        %v967 = vpop.f32.mrf.mxu0
        %v968 = vadd.f32 %v508, %v967
        %969 = vmatmul.bf16.gmra.mxu0 %v792
        %v970 = vpop.f32.mrf.mxu0
        %v971 = vadd.f32 %v508, %v970
        %v972 = vpop.f32.mrf.mxu0
        %v973 = vadd.f32 %v508, %v972
        %974 = vmatmul.bf16.gmra.mxu0 %v795
        %v975 = vpop.f32.mrf.mxu0
        %v976 = vadd.f32 %v508, %v975
        %v977 = vpop.f32.mrf.mxu0
        %v978 = vadd.f32 %v508, %v977
        %979 = vmatmul.bf16.gmra.mxu0 %v798
        %v980 = vpop.f32.mrf.mxu0
        %v981 = vadd.f32 %v508, %v980
        %v982 = vpop.f32.mrf.mxu0
        %v983 = vadd.f32 %v508, %v982
        %984 = vmatmul.bf16.gmra.mxu0 %v801
        %v985 = vpop.f32.mrf.mxu0
        %v986 = vadd.f32 %v508, %v985
        %v987 = vpop.f32.mrf.mxu0
        %v988 = vadd.f32 %v508, %v987
        %989 = vmatmul.bf16.gmra.mxu0 %v804
        %v990 = vpop.f32.mrf.mxu0
        %v991 = vadd.f32 %v508, %v990
        %v992 = vpop.f32.mrf.mxu0
        %v993 = vadd.f32 %v508, %v992
        %994 = vmatmul.bf16.gmra.mxu0 %v807
        %v995 = vpop.f32.mrf.mxu0
        %v996 = vadd.f32 %v508, %v995
        %v997 = vpop.f32.mrf.mxu0
        %v998 = vadd.f32 %v508, %v997
        %999 = vmatmul.bf16.gmra.mxu0 %v810
        %v1000 = vpop.f32.mrf.mxu0
        %v1001 = vadd.f32 %v508, %v1000
        %v1002 = vpop.f32.mrf.mxu0
        %v1003 = vadd.f32 %v508, %v1002
        %1004 = vmatmul.bf16.gmra.mxu0 %v813
        %v1005 = vpop.f32.mrf.mxu0
        %v1006 = vadd.f32 %v508, %v1005
        %v1007 = vpop.f32.mrf.mxu0
        %v1008 = vadd.f32 %v508, %v1007
        %1009 = vmatmul.bf16.gmra.mxu0 %v816
        %v1010 = vpop.f32.mrf.mxu0
        %v1011 = vadd.f32 %v508, %v1010
        %v1012 = vpop.f32.mrf.mxu0
        %v1013 = vadd.f32 %v508, %v1012
        %1014 = vmatmul.bf16.gmra.mxu0 %v819
        %v1015 = vpop.f32.mrf.mxu0
        %v1016 = vadd.f32 %v508, %v1015
        %v1017 = vpop.f32.mrf.mxu0
        %v1018 = vadd.f32 %v508, %v1017
        %1019 = vmatmul.bf16.gmra.mxu0 %v822
        %v1020 = vpop.f32.mrf.mxu0
        %v1021 = vadd.f32 %v508, %v1020
        %v1022 = vpop.f32.mrf.mxu0
        %v1023 = vadd.f32 %v508, %v1022
        %1024 = vmatmul.bf16.gmra.mxu0 %v825
        %v1025 = vpop.f32.mrf.mxu0
        %v1026 = vadd.f32 %v508, %v1025
        %v1027 = vpop.f32.mrf.mxu0
        %v1028 = vadd.f32 %v508, %v1027
        %1029 = vmatmul.bf16.gmra.mxu0 %v828
        %v1030 = vpop.f32.mrf.mxu0
        %v1031 = vadd.f32 %v508, %v1030
        %v1032 = vpop.f32.mrf.mxu0
        %v1033 = vadd.f32 %v508, %v1032
        %1034 = vmatmul.bf16.gmra.mxu0 %v831
        %v1035 = vpop.f32.mrf.mxu0
        %v1036 = vadd.f32 %v508, %v1035
        %v1037 = vpop.f32.mrf.mxu0
        %v1038 = vadd.f32 %v508, %v1037
        %1039 = vmatmul.bf16.gmra.mxu0 %v834
        %v1040 = vpop.f32.mrf.mxu0
        %v1041 = vadd.f32 %v508, %v1040
        %v1042 = vpop.f32.mrf.mxu0
        %v1043 = vadd.f32 %v508, %v1042
        %1044 = vmatmul.bf16.gmra.mxu0 %v837
        %v1045 = vpop.f32.mrf.mxu0
        %v1046 = vadd.f32 %v508, %v1045
        %v1047 = vpop.f32.mrf.mxu0
        %v1048 = vadd.f32 %v508, %v1047
        %1049 = vmatmul.bf16.gmra.mxu0 %v840
        %v1050 = vpop.f32.mrf.mxu0
        %v1051 = vadd.f32 %v508, %v1050
        %v1052 = vpop.f32.mrf.mxu0
        %v1053 = vadd.f32 %v508, %v1052
        %1054 = vmatmul.bf16.gmra.mxu0 %v843
        %v1055 = vpop.f32.mrf.mxu0
        %v1056 = vadd.f32 %v508, %v1055
        %v1057 = vpop.f32.mrf.mxu0
        %v1058 = vadd.f32 %v508, %v1057
        %1059 = vmatmul.bf16.gmra.mxu0 %v846
        %v1060 = vpop.f32.mrf.mxu0
        %v1061 = vadd.f32 %v508, %v1060
        %v1062 = vpop.f32.mrf.mxu0
        %v1063 = vadd.f32 %v508, %v1062
        %1064 = vmatmul.bf16.gmra.mxu0 %v849
        %v1065 = vpop.f32.mrf.mxu0
        %v1066 = vadd.f32 %v508, %v1065
        %v1067 = vpop.f32.mrf.mxu0
        %v1068 = vadd.f32 %v508, %v1067
        %1069 = vmatmul.bf16.gmra.mxu0 %v852
        %v1070 = vpop.f32.mrf.mxu0
        %v1071 = vadd.f32 %v508, %v1070
        %v1072 = vpop.f32.mrf.mxu0
        %v1073 = vadd.f32 %v508, %v1072
        %1074 = vmatmul.bf16.gmra.mxu0 %v855
        %v1075 = vpop.f32.mrf.mxu0
        %v1076 = vadd.f32 %v508, %v1075
        %v1077 = vpop.f32.mrf.mxu0
        %v1078 = vadd.f32 %v508, %v1077
        %1079 = vmatmul.bf16.gmra.mxu0 %v858
        %v1080 = vpop.f32.mrf.mxu0
        %v1081 = vadd.f32 %v508, %v1080
        %v1082 = vpop.f32.mrf.mxu0
        %v1083 = vadd.f32 %v508, %v1082
        %1084 = vmatmul.bf16.gmra.mxu0 %v861
        %v1085 = vpop.f32.mrf.mxu0
        %v1086 = vadd.f32 %v508, %v1085
        %v1087 = vpop.f32.mrf.mxu0
        %v1088 = vadd.f32 %v508, %v1087
        %1089 = vmatmul.bf16.gmra.mxu0 %v864
        %v1090 = vpop.f32.mrf.mxu0
        %v1091 = vadd.f32 %v508, %v1090
        %v1092 = vpop.f32.mrf.mxu0
        %v1093 = vadd.f32 %v508, %v1092
        %1094 = vmatmul.bf16.gmra.mxu0 %v867
        %v1095 = vpop.f32.mrf.mxu0
        %v1096 = vadd.f32 %v508, %v1095
        %v1097 = vpop.f32.mrf.mxu0
        %v1098 = vadd.f32 %v508, %v1097
        %1099 = vmatmul.bf16.gmra.mxu0 %v870
        %v1100 = vpop.f32.mrf.mxu0
        %v1101 = vadd.f32 %v508, %v1100
        %v1102 = vpop.f32.mrf.mxu0
        %v1103 = vadd.f32 %v508, %v1102
        %1104 = vmatmul.bf16.gmra.mxu0 %v873
        %v1105 = vpop.f32.mrf.mxu0
        %v1106 = vadd.f32 %v508, %v1105
        %v1107 = vpop.f32.mrf.mxu0
        %v1108 = vadd.f32 %v508, %v1107
        %1109 = vmatmul.bf16.gmra.mxu0 %v876
        %v1110 = vpop.f32.mrf.mxu0
        %v1111 = vadd.f32 %v508, %v1110
        %v1112 = vpop.f32.mrf.mxu0
        %v1113 = vadd.f32 %v508, %v1112
        %1114 = vmatmul.bf16.gmra.mxu0 %v879
        %v1115 = vpop.f32.mrf.mxu0
        %v1116 = vadd.f32 %v508, %v1115
        %v1117 = vpop.f32.mrf.mxu0
        %v1118 = vadd.f32 %v508, %v1117
        %1119 = vmatmul.bf16.gmra.mxu0 %v882
        %v1120 = vpop.f32.mrf.mxu0
        %v1121 = vadd.f32 %v508, %v1120
        %v1122 = vpop.f32.mrf.mxu0
        %v1123 = vadd.f32 %v508, %v1122
        %1124 = vmatmul.bf16.gmra.mxu0 %v885
        %v1125 = vpop.f32.mrf.mxu0
        %v1126 = vadd.f32 %v508, %v1125
        %v1127 = vpop.f32.mrf.mxu0
        %v1128 = vadd.f32 %v508, %v1127
        %1129 = vmatmul.bf16.gmra.mxu0 %v888
        %v1130 = vpop.f32.mrf.mxu0
        %v1131 = vadd.f32 %v508, %v1130
        %v1132 = vpop.f32.mrf.mxu0
        %v1133 = vadd.f32 %v508, %v1132
        %1134 = vmatmul.bf16.gmra.mxu0 %v891
        %v1135 = vpop.f32.mrf.mxu0
        %v1136 = vadd.f32 %v508, %v1135
        %v1137 = vpop.f32.mrf.mxu0
        %v1138 = vadd.f32 %v508, %v1137
        %1139 = vmatmul.bf16.gmra.mxu0 %v894
        %v1140 = vpop.f32.mrf.mxu0
        %v1141 = vadd.f32 %v508, %v1140
        %v1142 = vpop.f32.mrf.mxu0
        %v1143 = vadd.f32 %v508, %v1142
        %1144 = vmatmul.bf16.gmra.mxu0 %v897
        %v1145 = vpop.f32.mrf.mxu0
        %v1146 = vadd.f32 %v508, %v1145
        %v1147 = vpop.f32.mrf.mxu0
        %v1148 = vadd.f32 %v508, %v1147
        %1149 = vmatmul.bf16.gmra.mxu0 %v900
        %v1150 = vpop.f32.mrf.mxu0
        %v1151 = vadd.f32 %v508, %v1150
        %v1152 = vpop.f32.mrf.mxu0
        %v1153 = vadd.f32 %v508, %v1152
        %1154 = vmatmul.bf16.gmra.mxu0 %v903
        %v1155 = vpop.f32.mrf.mxu0
        %v1156 = vadd.f32 %v508, %v1155
        %v1157 = vpop.f32.mrf.mxu0
        %v1158 = vadd.f32 %v508, %v1157
        %1159 = vmatmul.bf16.gmra.mxu0 %v906
        %v1160 = vpop.f32.mrf.mxu0
        %v1161 = vadd.f32 %v508, %v1160
        %v1162 = vpop.f32.mrf.mxu0
        %v1163 = vadd.f32 %v508, %v1162
        %1164 = vmatmul.bf16.gmra.mxu0 %v909
        %v1165 = vpop.f32.mrf.mxu0
        %v1166 = vadd.f32 %v508, %v1165
        %v1167 = vpop.f32.mrf.mxu0
        %v1168 = vadd.f32 %v508, %v1167
        %1169 = vmatmul.bf16.gmra.mxu0 %v912
        %v1170 = vpop.f32.mrf.mxu0
        %v1171 = vadd.f32 %v508, %v1170
        %v1172 = vpop.f32.mrf.mxu0
        %v1173 = vadd.f32 %v508, %v1172
        %1174 = vdwg.mxu0
        %v1175 = vmax.f32 %v931, 0.0
        %v1176 = vmax.f32 %v933, 0.0
        %v1177 = vmax.f32 %v936, 0.0
        %v1178 = vmax.f32 %v938, 0.0
        %v1179 = vmax.f32 %v941, 0.0
        %v1180 = vmax.f32 %v943, 0.0
        %v1181 = vmax.f32 %v946, 0.0
        %v1182 = vmax.f32 %v948, 0.0
        %v1183 = vmax.f32 %v951, 0.0
        %v1184 = vmax.f32 %v953, 0.0
        %v1185 = vmax.f32 %v956, 0.0
        %v1186 = vmax.f32 %v958, 0.0
        %v1187 = vmax.f32 %v961, 0.0
        %v1188 = vmax.f32 %v963, 0.0
        %v1189 = vmax.f32 %v966, 0.0
        %v1190 = vmax.f32 %v968, 0.0
        %v1191 = vmax.f32 %v971, 0.0
        %v1192 = vmax.f32 %v973, 0.0
        %v1193 = vmax.f32 %v976, 0.0
        %v1194 = vmax.f32 %v978, 0.0
        %v1195 = vmax.f32 %v981, 0.0
        %v1196 = vmax.f32 %v983, 0.0
        %v1197 = vmax.f32 %v986, 0.0
        %v1198 = vmax.f32 %v988, 0.0
        %v1199 = vmax.f32 %v991, 0.0
        %v1200 = vmax.f32 %v993, 0.0
        %v1201 = vmax.f32 %v996, 0.0
        %v1202 = vmax.f32 %v998, 0.0
        %v1203 = vmax.f32 %v1001, 0.0
        %v1204 = vmax.f32 %v1003, 0.0
        %v1205 = vmax.f32 %v1006, 0.0
        %v1206 = vmax.f32 %v1008, 0.0
        %v1207 = vmax.f32 %v1011, 0.0
        %v1208 = vmax.f32 %v1013, 0.0
        %v1209 = vmax.f32 %v1016, 0.0
        %v1210 = vmax.f32 %v1018, 0.0
        %v1211 = vmax.f32 %v1021, 0.0
        %v1212 = vmax.f32 %v1023, 0.0
        %v1213 = vmax.f32 %v1026, 0.0
        %v1214 = vmax.f32 %v1028, 0.0
        %v1215 = vmax.f32 %v1031, 0.0
        %v1216 = vmax.f32 %v1033, 0.0
        %v1217 = vmax.f32 %v1036, 0.0
        %v1218 = vmax.f32 %v1038, 0.0
        %v1219 = vmax.f32 %v1041, 0.0
        %v1220 = vmax.f32 %v1043, 0.0
        %v1221 = vmax.f32 %v1046, 0.0
        %v1222 = vmax.f32 %v1048, 0.0
        %v1223 = vmax.f32 %v1051, 0.0
        %v1224 = vmax.f32 %v1053, 0.0
        %v1225 = vmax.f32 %v1056, 0.0
        %v1226 = vmax.f32 %v1058, 0.0
        %v1227 = vmax.f32 %v1061, 0.0
        %v1228 = vmax.f32 %v1063, 0.0
        %v1229 = vmax.f32 %v1066, 0.0
        %v1230 = vmax.f32 %v1068, 0.0
        %v1231 = vmax.f32 %v1071, 0.0
        %v1232 = vmax.f32 %v1073, 0.0
        %v1233 = vmax.f32 %v1076, 0.0
        %v1234 = vmax.f32 %v1078, 0.0
        %v1235 = vmax.f32 %v1081, 0.0
        %v1236 = vmax.f32 %v1083, 0.0
        %v1237 = vmax.f32 %v1086, 0.0
        %v1238 = vmax.f32 %v1088, 0.0
        %v1239 = vmax.f32 %v1091, 0.0
        %v1240 = vmax.f32 %v1093, 0.0
        %v1241 = vmax.f32 %v1096, 0.0
        %v1242 = vmax.f32 %v1098, 0.0
        %v1243 = vmax.f32 %v1101, 0.0
        %v1244 = vmax.f32 %v1103, 0.0
        %v1245 = vmax.f32 %v1106, 0.0
        %v1246 = vmax.f32 %v1108, 0.0
        %v1247 = vmax.f32 %v1111, 0.0
        %v1248 = vmax.f32 %v1113, 0.0
        %v1249 = vmax.f32 %v1116, 0.0
        %v1250 = vmax.f32 %v1118, 0.0
        %v1251 = vmax.f32 %v1121, 0.0
        %v1252 = vmax.f32 %v1123, 0.0
        %v1253 = vmax.f32 %v1126, 0.0
        %v1254 = vmax.f32 %v1128, 0.0
        %v1255 = vmax.f32 %v1131, 0.0
        %v1256 = vmax.f32 %v1133, 0.0
        %v1257 = vmax.f32 %v1136, 0.0
        %v1258 = vmax.f32 %v1138, 0.0
        %v1259 = vmax.f32 %v1141, 0.0
        %v1260 = vmax.f32 %v1143, 0.0
        %v1261 = vmax.f32 %v1146, 0.0
        %v1262 = vmax.f32 %v1148, 0.0
        %v1263 = vmax.f32 %v1151, 0.0
        %v1264 = vmax.f32 %v1153, 0.0
        %v1265 = vmax.f32 %v1156, 0.0
        %v1266 = vmax.f32 %v1158, 0.0
        %v1267 = vmax.f32 %v1161, 0.0
        %v1268 = vmax.f32 %v1163, 0.0
        %v1269 = vmax.f32 %v1166, 0.0
        %v1270 = vmax.f32 %v1168, 0.0
        %v1271 = vmax.f32 %v1171, 0.0
        %v1272 = vmax.f32 %v1173, 0.0
        %v1273 = vpack.c.bf16 %v1175, %v1175
        %v1274 = vpack.c.bf16 %v1176, %v1176
        %v1275 = vpack.c.bf16 %v1177, %v1177
        %v1276 = vpack.c.bf16 %v1178, %v1178
        %v1277 = vpack.c.bf16 %v1179, %v1179
        %v1278 = vpack.c.bf16 %v1180, %v1180
        %v1279 = vpack.c.bf16 %v1181, %v1181
        %v1280 = vpack.c.bf16 %v1182, %v1182
        %v1281 = vpack.c.bf16 %v1183, %v1183
        %v1282 = vpack.c.bf16 %v1184, %v1184
        %v1283 = vpack.c.bf16 %v1185, %v1185
        %v1284 = vpack.c.bf16 %v1186, %v1186
        %v1285 = vpack.c.bf16 %v1187, %v1187
        %v1286 = vpack.c.bf16 %v1188, %v1188
        %v1287 = vpack.c.bf16 %v1189, %v1189
        %v1288 = vpack.c.bf16 %v1190, %v1190
        %v1289 = vpack.c.bf16 %v1191, %v1191
        %v1290 = vpack.c.bf16 %v1192, %v1192
        %v1291 = vpack.c.bf16 %v1193, %v1193
        %v1292 = vpack.c.bf16 %v1194, %v1194
        %v1293 = vpack.c.bf16 %v1195, %v1195
        %v1294 = vpack.c.bf16 %v1196, %v1196
        %v1295 = vpack.c.bf16 %v1197, %v1197
        %v1296 = vpack.c.bf16 %v1198, %v1198
        %v1297 = vpack.c.bf16 %v1199, %v1199
        %v1298 = vpack.c.bf16 %v1200, %v1200
        %v1299 = vpack.c.bf16 %v1201, %v1201
        %v1300 = vpack.c.bf16 %v1202, %v1202
        %v1301 = vpack.c.bf16 %v1203, %v1203
        %v1302 = vpack.c.bf16 %v1204, %v1204
        %v1303 = vpack.c.bf16 %v1205, %v1205
        %v1304 = vpack.c.bf16 %v1206, %v1206
        %v1305 = vpack.c.bf16 %v1207, %v1207
        %v1306 = vpack.c.bf16 %v1208, %v1208
        %v1307 = vpack.c.bf16 %v1209, %v1209
        %v1308 = vpack.c.bf16 %v1210, %v1210
        %v1309 = vpack.c.bf16 %v1211, %v1211
        %v1310 = vpack.c.bf16 %v1212, %v1212
        %v1311 = vpack.c.bf16 %v1213, %v1213
        %v1312 = vpack.c.bf16 %v1214, %v1214
        %v1313 = vpack.c.bf16 %v1215, %v1215
        %v1314 = vpack.c.bf16 %v1216, %v1216
        %v1315 = vpack.c.bf16 %v1217, %v1217
        %v1316 = vpack.c.bf16 %v1218, %v1218
        %v1317 = vpack.c.bf16 %v1219, %v1219
        %v1318 = vpack.c.bf16 %v1220, %v1220
        %v1319 = vpack.c.bf16 %v1221, %v1221
        %v1320 = vpack.c.bf16 %v1222, %v1222
        %v1321 = vpack.c.bf16 %v1223, %v1223
        %v1322 = vpack.c.bf16 %v1224, %v1224
        %v1323 = vpack.c.bf16 %v1225, %v1225
        %v1324 = vpack.c.bf16 %v1226, %v1226
        %v1325 = vpack.c.bf16 %v1227, %v1227
        %v1326 = vpack.c.bf16 %v1228, %v1228
        %v1327 = vpack.c.bf16 %v1229, %v1229
        %v1328 = vpack.c.bf16 %v1230, %v1230
        %v1329 = vpack.c.bf16 %v1231, %v1231
        %v1330 = vpack.c.bf16 %v1232, %v1232
        %v1331 = vpack.c.bf16 %v1233, %v1233
        %v1332 = vpack.c.bf16 %v1234, %v1234
        %v1333 = vpack.c.bf16 %v1235, %v1235
        %v1334 = vpack.c.bf16 %v1236, %v1236
        %v1335 = vpack.c.bf16 %v1237, %v1237
        %v1336 = vpack.c.bf16 %v1238, %v1238
        %v1337 = vpack.c.bf16 %v1239, %v1239
        %v1338 = vpack.c.bf16 %v1240, %v1240
        %v1339 = vpack.c.bf16 %v1241, %v1241
        %v1340 = vpack.c.bf16 %v1242, %v1242
        %v1341 = vpack.c.bf16 %v1243, %v1243
        %v1342 = vpack.c.bf16 %v1244, %v1244
        %v1343 = vpack.c.bf16 %v1245, %v1245
        %v1344 = vpack.c.bf16 %v1246, %v1246
        %v1345 = vpack.c.bf16 %v1247, %v1247
        %v1346 = vpack.c.bf16 %v1248, %v1248
        %v1347 = vpack.c.bf16 %v1249, %v1249
        %v1348 = vpack.c.bf16 %v1250, %v1250
        %v1349 = vpack.c.bf16 %v1251, %v1251
        %v1350 = vpack.c.bf16 %v1252, %v1252
        %v1351 = vpack.c.bf16 %v1253, %v1253
        %v1352 = vpack.c.bf16 %v1254, %v1254
        %v1353 = vpack.c.bf16 %v1255, %v1255
        %v1354 = vpack.c.bf16 %v1256, %v1256
        %v1355 = vpack.c.bf16 %v1257, %v1257
        %v1356 = vpack.c.bf16 %v1258, %v1258
        %v1357 = vpack.c.bf16 %v1259, %v1259
        %v1358 = vpack.c.bf16 %v1260, %v1260
        %v1359 = vpack.c.bf16 %v1261, %v1261
        %v1360 = vpack.c.bf16 %v1262, %v1262
        %v1361 = vpack.c.bf16 %v1263, %v1263
        %v1362 = vpack.c.bf16 %v1264, %v1264
        %v1363 = vpack.c.bf16 %v1265, %v1265
        %v1364 = vpack.c.bf16 %v1266, %v1266
        %v1365 = vpack.c.bf16 %v1267, %v1267
        %v1366 = vpack.c.bf16 %v1268, %v1268
        %v1367 = vpack.c.bf16 %v1269, %v1269
        %v1368 = vpack.c.bf16 %v1270, %v1270
        %v1369 = vpack.c.bf16 %v1271, %v1271
        %v1370 = vpack.c.bf16 %v1272, %v1272
        %vm1469 = vcmask 1041408
        %vm1470 = vcmask 1045508
        %vm1471 = vmor %vm1469, %vm1470
        %v1472 = vrot.slane %v1273, 6
        %v1473 = vrot.slane %v1472, 4
        %v1474 = vrot.slane %v1274, 6
        %v1475 = vsel %vm1471, %v1473, %v1474
        %v1476 = vrot.slane %v1474, 4
        %v1477 = vrot.slane %v1275, 6
        %v1478 = vsel %vm1471, %v1476, %v1477
        %v1479 = vrot.slane %v1477, 4
        %v1480 = vrot.slane %v1276, 6
        %v1481 = vsel %vm1471, %v1479, %v1480
        %v1482 = vrot.slane %v1480, 4
        %v1483 = vrot.slane %v1277, 6
        %v1484 = vsel %vm1471, %v1482, %v1483
        %v1485 = vrot.slane %v1483, 4
        %v1486 = vrot.slane %v1278, 6
        %v1487 = vsel %vm1471, %v1485, %v1486
        %v1488 = vrot.slane %v1486, 4
        %v1489 = vrot.slane %v1279, 6
        %v1490 = vsel %vm1471, %v1488, %v1489
        %v1491 = vrot.slane %v1489, 4
        %v1492 = vrot.slane %v1280, 6
        %v1493 = vsel %vm1471, %v1491, %v1492
        %v1494 = vrot.slane %v1492, 4
        %v1495 = vrot.slane %v1281, 6
        %v1496 = vsel %vm1471, %v1494, %v1495
        %v1497 = vrot.slane %v1495, 4
        %v1498 = vrot.slane %v1282, 6
        %v1499 = vsel %vm1471, %v1497, %v1498
        %v1500 = vrot.slane %v1498, 4
        %v1501 = vrot.slane %v1283, 6
        %v1502 = vsel %vm1471, %v1500, %v1501
        %v1503 = vrot.slane %v1501, 4
        %v1504 = vrot.slane %v1284, 6
        %v1505 = vsel %vm1471, %v1503, %v1504
        %v1506 = vrot.slane %v1504, 4
        %v1507 = vrot.slane %v1285, 6
        %v1508 = vsel %vm1471, %v1506, %v1507
        %v1509 = vrot.slane %v1507, 4
        %v1510 = vrot.slane %v1286, 6
        %v1511 = vsel %vm1471, %v1509, %v1510
        %v1512 = vrot.slane %v1510, 4
        %v1513 = vrot.slane %v1287, 6
        %v1514 = vsel %vm1471, %v1512, %v1513
        %v1515 = vrot.slane %v1513, 4
        %v1516 = vrot.slane %v1288, 6
        %v1517 = vsel %vm1471, %v1515, %v1516
        %v1518 = vrot.slane %v1516, 4
        %v1519 = vrot.slane %v1289, 6
        %v1520 = vsel %vm1471, %v1518, %v1519
        %v1521 = vrot.slane %v1519, 4
        %v1522 = vrot.slane %v1290, 6
        %v1523 = vsel %vm1471, %v1521, %v1522
        %v1524 = vrot.slane %v1522, 4
        %v1525 = vrot.slane %v1291, 6
        %v1526 = vsel %vm1471, %v1524, %v1525
        %v1527 = vrot.slane %v1525, 4
        %v1528 = vrot.slane %v1292, 6
        %v1529 = vsel %vm1471, %v1527, %v1528
        %v1530 = vrot.slane %v1528, 4
        %v1531 = vrot.slane %v1293, 6
        %v1532 = vsel %vm1471, %v1530, %v1531
        %v1533 = vrot.slane %v1531, 4
        %v1534 = vrot.slane %v1294, 6
        %v1535 = vsel %vm1471, %v1533, %v1534
        %v1536 = vrot.slane %v1534, 4
        %v1537 = vrot.slane %v1295, 6
        %v1538 = vsel %vm1471, %v1536, %v1537
        %v1539 = vrot.slane %v1537, 4
        %v1540 = vrot.slane %v1296, 6
        %v1541 = vsel %vm1471, %v1539, %v1540
        %v1542 = vrot.slane %v1540, 4
        %v1543 = vrot.slane %v1297, 6
        %v1544 = vsel %vm1471, %v1542, %v1543
        %v1545 = vrot.slane %v1543, 4
        %v1546 = vrot.slane %v1298, 6
        %v1547 = vsel %vm1471, %v1545, %v1546
        %v1548 = vrot.slane %v1546, 4
        %v1549 = vrot.slane %v1299, 6
        %v1550 = vsel %vm1471, %v1548, %v1549
        %v1551 = vrot.slane %v1549, 4
        %v1552 = vrot.slane %v1300, 6
        %v1553 = vsel %vm1471, %v1551, %v1552
        %v1554 = vrot.slane %v1552, 4
        %v1555 = vrot.slane %v1301, 6
        %v1556 = vsel %vm1471, %v1554, %v1555
        %v1557 = vrot.slane %v1555, 4
        %v1558 = vrot.slane %v1302, 6
        %v1559 = vsel %vm1471, %v1557, %v1558
        %v1560 = vrot.slane %v1558, 4
        %v1561 = vrot.slane %v1303, 6
        %v1562 = vsel %vm1471, %v1560, %v1561
        %v1563 = vrot.slane %v1561, 4
        %v1564 = vrot.slane %v1304, 6
        %v1565 = vsel %vm1471, %v1563, %v1564
        %v1566 = vrot.slane %v1564, 4
        %v1567 = vrot.slane %v1305, 6
        %v1568 = vsel %vm1471, %v1566, %v1567
        %v1569 = vrot.slane %v1567, 4
        %v1570 = vrot.slane %v1306, 6
        %v1571 = vsel %vm1471, %v1569, %v1570
        %v1572 = vrot.slane %v1570, 4
        %v1573 = vrot.slane %v1307, 6
        %v1574 = vsel %vm1471, %v1572, %v1573
        %v1575 = vrot.slane %v1573, 4
        %v1576 = vrot.slane %v1308, 6
        %v1577 = vsel %vm1471, %v1575, %v1576
        %v1578 = vrot.slane %v1576, 4
        %v1579 = vrot.slane %v1309, 6
        %v1580 = vsel %vm1471, %v1578, %v1579
        %v1581 = vrot.slane %v1579, 4
        %v1582 = vrot.slane %v1310, 6
        %v1583 = vsel %vm1471, %v1581, %v1582
        %v1584 = vrot.slane %v1582, 4
        %v1585 = vrot.slane %v1311, 6
        %v1586 = vsel %vm1471, %v1584, %v1585
        %v1587 = vrot.slane %v1585, 4
        %v1588 = vrot.slane %v1312, 6
        %v1589 = vsel %vm1471, %v1587, %v1588
        %v1590 = vrot.slane %v1588, 4
        %v1591 = vrot.slane %v1313, 6
        %v1592 = vsel %vm1471, %v1590, %v1591
        %v1593 = vrot.slane %v1591, 4
        %v1594 = vrot.slane %v1314, 6
        %v1595 = vsel %vm1471, %v1593, %v1594
        %v1596 = vrot.slane %v1594, 4
        %v1597 = vrot.slane %v1315, 6
        %v1598 = vsel %vm1471, %v1596, %v1597
        %v1599 = vrot.slane %v1597, 4
        %v1600 = vrot.slane %v1316, 6
        %v1601 = vsel %vm1471, %v1599, %v1600
        %v1602 = vrot.slane %v1600, 4
        %v1603 = vrot.slane %v1317, 6
        %v1604 = vsel %vm1471, %v1602, %v1603
        %v1605 = vrot.slane %v1603, 4
        %v1606 = vrot.slane %v1318, 6
        %v1607 = vsel %vm1471, %v1605, %v1606
        %v1608 = vrot.slane %v1606, 4
        %v1609 = vrot.slane %v1319, 6
        %v1610 = vsel %vm1471, %v1608, %v1609
        %v1611 = vrot.slane %v1609, 4
        %v1612 = vrot.slane %v1320, 6
        %v1613 = vsel %vm1471, %v1611, %v1612
        %v1614 = vrot.slane %v1612, 4
        %v1615 = vrot.slane %v1321, 6
        %v1616 = vsel %vm1471, %v1614, %v1615
        %v1617 = vrot.slane %v1615, 4
        %v1618 = vrot.slane %v1322, 6
        %v1619 = vsel %vm1471, %v1617, %v1618
        %v1620 = vrot.slane %v1618, 4
        %v1621 = vrot.slane %v1323, 6
        %v1622 = vsel %vm1471, %v1620, %v1621
        %v1623 = vrot.slane %v1621, 4
        %v1624 = vrot.slane %v1324, 6
        %v1625 = vsel %vm1471, %v1623, %v1624
        %v1626 = vrot.slane %v1624, 4
        %v1627 = vrot.slane %v1325, 6
        %v1628 = vsel %vm1471, %v1626, %v1627
        %v1629 = vrot.slane %v1627, 4
        %v1630 = vrot.slane %v1326, 6
        %v1631 = vsel %vm1471, %v1629, %v1630
        %v1632 = vrot.slane %v1630, 4
        %v1633 = vrot.slane %v1327, 6
        %v1634 = vsel %vm1471, %v1632, %v1633
        %v1635 = vrot.slane %v1633, 4
        %v1636 = vrot.slane %v1328, 6
        %v1637 = vsel %vm1471, %v1635, %v1636
        %v1638 = vrot.slane %v1636, 4
        %v1639 = vrot.slane %v1329, 6
        %v1640 = vsel %vm1471, %v1638, %v1639
        %v1641 = vrot.slane %v1639, 4
        %v1642 = vrot.slane %v1330, 6
        %v1643 = vsel %vm1471, %v1641, %v1642
        %v1644 = vrot.slane %v1642, 4
        %v1645 = vrot.slane %v1331, 6
        %v1646 = vsel %vm1471, %v1644, %v1645
        %v1647 = vrot.slane %v1645, 4
        %v1648 = vrot.slane %v1332, 6
        %v1649 = vsel %vm1471, %v1647, %v1648
        %v1650 = vrot.slane %v1648, 4
        %v1651 = vrot.slane %v1333, 6
        %v1652 = vsel %vm1471, %v1650, %v1651
        %v1653 = vrot.slane %v1651, 4
        %v1654 = vrot.slane %v1334, 6
        %v1655 = vsel %vm1471, %v1653, %v1654
        %v1656 = vrot.slane %v1654, 4
        %v1657 = vrot.slane %v1335, 6
        %v1658 = vsel %vm1471, %v1656, %v1657
        %v1659 = vrot.slane %v1657, 4
        %v1660 = vrot.slane %v1336, 6
        %v1661 = vsel %vm1471, %v1659, %v1660
        %v1662 = vrot.slane %v1660, 4
        %v1663 = vrot.slane %v1337, 6
        %v1664 = vsel %vm1471, %v1662, %v1663
        %v1665 = vrot.slane %v1663, 4
        %v1666 = vrot.slane %v1338, 6
        %v1667 = vsel %vm1471, %v1665, %v1666
        %v1668 = vrot.slane %v1666, 4
        %v1669 = vrot.slane %v1339, 6
        %v1670 = vsel %vm1471, %v1668, %v1669
        %v1671 = vrot.slane %v1669, 4
        %v1672 = vrot.slane %v1340, 6
        %v1673 = vsel %vm1471, %v1671, %v1672
        %v1674 = vrot.slane %v1672, 4
        %v1675 = vrot.slane %v1341, 6
        %v1676 = vsel %vm1471, %v1674, %v1675
        %v1677 = vrot.slane %v1675, 4
        %v1678 = vrot.slane %v1342, 6
        %v1679 = vsel %vm1471, %v1677, %v1678
        %v1680 = vrot.slane %v1678, 4
        %v1681 = vrot.slane %v1343, 6
        %v1682 = vsel %vm1471, %v1680, %v1681
        %v1683 = vrot.slane %v1681, 4
        %v1684 = vrot.slane %v1344, 6
        %v1685 = vsel %vm1471, %v1683, %v1684
        %v1686 = vrot.slane %v1684, 4
        %v1687 = vrot.slane %v1345, 6
        %v1688 = vsel %vm1471, %v1686, %v1687
        %v1689 = vrot.slane %v1687, 4
        %v1690 = vrot.slane %v1346, 6
        %v1691 = vsel %vm1471, %v1689, %v1690
        %v1692 = vrot.slane %v1690, 4
        %v1693 = vrot.slane %v1347, 6
        %v1694 = vsel %vm1471, %v1692, %v1693
        %v1695 = vrot.slane %v1693, 4
        %v1696 = vrot.slane %v1348, 6
        %v1697 = vsel %vm1471, %v1695, %v1696
        %v1698 = vrot.slane %v1696, 4
        %v1699 = vrot.slane %v1349, 6
        %v1700 = vsel %vm1471, %v1698, %v1699
        %v1701 = vrot.slane %v1699, 4
        %v1702 = vrot.slane %v1350, 6
        %v1703 = vsel %vm1471, %v1701, %v1702
        %v1704 = vrot.slane %v1702, 4
        %v1705 = vrot.slane %v1351, 6
        %v1706 = vsel %vm1471, %v1704, %v1705
        %v1707 = vrot.slane %v1705, 4
        %v1708 = vrot.slane %v1352, 6
        %v1709 = vsel %vm1471, %v1707, %v1708
        %v1710 = vrot.slane %v1708, 4
        %v1711 = vrot.slane %v1353, 6
        %v1712 = vsel %vm1471, %v1710, %v1711
        %v1713 = vrot.slane %v1711, 4
        %v1714 = vrot.slane %v1354, 6
        %v1715 = vsel %vm1471, %v1713, %v1714
        %v1716 = vrot.slane %v1714, 4
        %v1717 = vrot.slane %v1355, 6
        %v1718 = vsel %vm1471, %v1716, %v1717
        %v1719 = vrot.slane %v1717, 4
        %v1720 = vrot.slane %v1356, 6
        %v1721 = vsel %vm1471, %v1719, %v1720
        %v1722 = vrot.slane %v1720, 4
        %v1723 = vrot.slane %v1357, 6
        %v1724 = vsel %vm1471, %v1722, %v1723
        %v1725 = vrot.slane %v1723, 4
        %v1726 = vrot.slane %v1358, 6
        %v1727 = vsel %vm1471, %v1725, %v1726
        %v1728 = vrot.slane %v1726, 4
        %v1729 = vrot.slane %v1359, 6
        %v1730 = vsel %vm1471, %v1728, %v1729
        %v1731 = vrot.slane %v1729, 4
        %v1732 = vrot.slane %v1360, 6
        %v1733 = vsel %vm1471, %v1731, %v1732
        %v1734 = vrot.slane %v1732, 4
        %v1735 = vrot.slane %v1361, 6
        %v1736 = vsel %vm1471, %v1734, %v1735
        %v1737 = vrot.slane %v1735, 4
        %v1738 = vrot.slane %v1362, 6
        %v1739 = vsel %vm1471, %v1737, %v1738
        %v1740 = vrot.slane %v1738, 4
        %v1741 = vrot.slane %v1363, 6
        %v1742 = vsel %vm1471, %v1740, %v1741
        %v1743 = vrot.slane %v1741, 4
        %v1744 = vrot.slane %v1364, 6
        %v1745 = vsel %vm1471, %v1743, %v1744
        %v1746 = vrot.slane %v1744, 4
        %v1747 = vrot.slane %v1365, 6
        %v1748 = vsel %vm1471, %v1746, %v1747
        %v1749 = vrot.slane %v1747, 4
        %v1750 = vrot.slane %v1366, 6
        %v1751 = vsel %vm1471, %v1749, %v1750
        %v1752 = vrot.slane %v1750, 4
        %v1753 = vrot.slane %v1367, 6
        %v1754 = vsel %vm1471, %v1752, %v1753
        %v1755 = vrot.slane %v1753, 4
        %v1756 = vrot.slane %v1368, 6
        %v1757 = vsel %vm1471, %v1755, %v1756
        %v1758 = vrot.slane %v1756, 4
        %v1759 = vrot.slane %v1369, 6
        %v1760 = vsel %vm1471, %v1758, %v1759
        %v1761 = vrot.slane %v1759, 4
        %v1762 = vrot.slane %v1370, 6
        %v1763 = vsel %vm1471, %v1761, %v1762
        %v1764 = vrot.slane %v1762, 4
        %vm1864 = vcmask 125954
        %1865 = vst.msk [vmem:[#allocation2] sm:$0xc] %vm1864, %v1472
        %vm1866 = vcmask 125952
        %1867 = vst.msk [vmem:[#allocation2 + $0x4] sm:$0xf] %vm1866, %v1475
        %1868 = vst.msk [vmem:[#allocation2 + $0x8] sm:$0xf] %vm1866, %v1478
        %1869 = vst.msk [vmem:[#allocation2 + $0xc] sm:$0xf] %vm1866, %v1481
        %1870 = vst.msk [vmem:[#allocation2 + $0x10] sm:$0xf] %vm1866, %v1484
        %1871 = vst.msk [vmem:[#allocation2 + $0x14] sm:$0xf] %vm1866, %v1487
        %1872 = vst.msk [vmem:[#allocation2 + $0x18] sm:$0xf] %vm1866, %v1490
        %1873 = vst.msk [vmem:[#allocation2 + $0x1c] sm:$0xf] %vm1866, %v1493
        %1874 = vst.msk [vmem:[#allocation2 + $0x20] sm:$0xf] %vm1866, %v1496
        %1875 = vst.msk [vmem:[#allocation2 + $0x24] sm:$0xf] %vm1866, %v1499
        %1876 = vst.msk [vmem:[#allocation2 + $0x28] sm:$0xf] %vm1866, %v1502
        %1877 = vst.msk [vmem:[#allocation2 + $0x2c] sm:$0xf] %vm1866, %v1505
        %1878 = vst.msk [vmem:[#allocation2 + $0x30] sm:$0xf] %vm1866, %v1508
        %1879 = vst.msk [vmem:[#allocation2 + $0x34] sm:$0xf] %vm1866, %v1511
        %1880 = vst.msk [vmem:[#allocation2 + $0x38] sm:$0xf] %vm1866, %v1514
        %1881 = vst.msk [vmem:[#allocation2 + $0x3c] sm:$0xf] %vm1866, %v1517
        %1882 = vst.msk [vmem:[#allocation2 + $0x40] sm:$0xf] %vm1866, %v1520
        %1883 = vst.msk [vmem:[#allocation2 + $0x44] sm:$0xf] %vm1866, %v1523
        %1884 = vst.msk [vmem:[#allocation2 + $0x48] sm:$0xf] %vm1866, %v1526
        %1885 = vst.msk [vmem:[#allocation2 + $0x4c] sm:$0xf] %vm1866, %v1529
        %1886 = vst.msk [vmem:[#allocation2 + $0x50] sm:$0xf] %vm1866, %v1532
        %1887 = vst.msk [vmem:[#allocation2 + $0x54] sm:$0xf] %vm1866, %v1535
        %1888 = vst.msk [vmem:[#allocation2 + $0x58] sm:$0xf] %vm1866, %v1538
        %1889 = vst.msk [vmem:[#allocation2 + $0x5c] sm:$0xf] %vm1866, %v1541
        %1890 = vst.msk [vmem:[#allocation2 + $0x60] sm:$0xf] %vm1866, %v1544
        %1891 = vst.msk [vmem:[#allocation2 + $0x64] sm:$0xf] %vm1866, %v1547
        %1892 = vst.msk [vmem:[#allocation2 + $0x68] sm:$0xf] %vm1866, %v1550
        %1893 = vst.msk [vmem:[#allocation2 + $0x6c] sm:$0xf] %vm1866, %v1553
        %1894 = vst.msk [vmem:[#allocation2 + $0x70] sm:$0xf] %vm1866, %v1556
        %1895 = vst.msk [vmem:[#allocation2 + $0x74] sm:$0xf] %vm1866, %v1559
        %1896 = vst.msk [vmem:[#allocation2 + $0x78] sm:$0xf] %vm1866, %v1562
        %1897 = vst.msk [vmem:[#allocation2 + $0x7c] sm:$0xf] %vm1866, %v1565
        %1898 = vst.msk [vmem:[#allocation2 + $0x80] sm:$0xf] %vm1866, %v1568
        %1899 = vst.msk [vmem:[#allocation2 + $0x84] sm:$0xf] %vm1866, %v1571
        %1900 = vst.msk [vmem:[#allocation2 + $0x88] sm:$0xf] %vm1866, %v1574
        %1901 = vst.msk [vmem:[#allocation2 + $0x8c] sm:$0xf] %vm1866, %v1577
        %1902 = vst.msk [vmem:[#allocation2 + $0x90] sm:$0xf] %vm1866, %v1580
        %1903 = vst.msk [vmem:[#allocation2 + $0x94] sm:$0xf] %vm1866, %v1583
        %1904 = vst.msk [vmem:[#allocation2 + $0x98] sm:$0xf] %vm1866, %v1586
        %1905 = vst.msk [vmem:[#allocation2 + $0x9c] sm:$0xf] %vm1866, %v1589
        %1906 = vst.msk [vmem:[#allocation2 + $0xa0] sm:$0xf] %vm1866, %v1592
        %1907 = vst.msk [vmem:[#allocation2 + $0xa4] sm:$0xf] %vm1866, %v1595
        %1908 = vst.msk [vmem:[#allocation2 + $0xa8] sm:$0xf] %vm1866, %v1598
        %1909 = vst.msk [vmem:[#allocation2 + $0xac] sm:$0xf] %vm1866, %v1601
        %1910 = vst.msk [vmem:[#allocation2 + $0xb0] sm:$0xf] %vm1866, %v1604
        %1911 = vst.msk [vmem:[#allocation2 + $0xb4] sm:$0xf] %vm1866, %v1607
        %1912 = vst.msk [vmem:[#allocation2 + $0xb8] sm:$0xf] %vm1866, %v1610
        %1913 = vst.msk [vmem:[#allocation2 + $0xbc] sm:$0xf] %vm1866, %v1613
        %1914 = vst.msk [vmem:[#allocation2 + $0xc0] sm:$0xf] %vm1866, %v1616
        %1915 = vst.msk [vmem:[#allocation2 + $0xc4] sm:$0xf] %vm1866, %v1619
        %1916 = vst.msk [vmem:[#allocation2 + $0xc8] sm:$0xf] %vm1866, %v1622
        %1917 = vst.msk [vmem:[#allocation2 + $0xcc] sm:$0xf] %vm1866, %v1625
        %1918 = vst.msk [vmem:[#allocation2 + $0xd0] sm:$0xf] %vm1866, %v1628
        %1919 = vst.msk [vmem:[#allocation2 + $0xd4] sm:$0xf] %vm1866, %v1631
        %1920 = vst.msk [vmem:[#allocation2 + $0xd8] sm:$0xf] %vm1866, %v1634
        %1921 = vst.msk [vmem:[#allocation2 + $0xdc] sm:$0xf] %vm1866, %v1637
        %1922 = vst.msk [vmem:[#allocation2 + $0xe0] sm:$0xf] %vm1866, %v1640
        %1923 = vst.msk [vmem:[#allocation2 + $0xe4] sm:$0xf] %vm1866, %v1643
        %1924 = vst.msk [vmem:[#allocation2 + $0xe8] sm:$0xf] %vm1866, %v1646
        %1925 = vst.msk [vmem:[#allocation2 + $0xec] sm:$0xf] %vm1866, %v1649
        %1926 = vst.msk [vmem:[#allocation2 + $0xf0] sm:$0xf] %vm1866, %v1652
        %1927 = vst.msk [vmem:[#allocation2 + $0xf4] sm:$0xf] %vm1866, %v1655
        %1928 = vst.msk [vmem:[#allocation2 + $0xf8] sm:$0xf] %vm1866, %v1658
        %1929 = vst.msk [vmem:[#allocation2 + $0xfc] sm:$0xf] %vm1866, %v1661
        %1930 = vst.msk [vmem:[#allocation2 + $0x100] sm:$0xf] %vm1866, %v1664
        %1931 = vst.msk [vmem:[#allocation2 + $0x104] sm:$0xf] %vm1866, %v1667
        %1932 = vst.msk [vmem:[#allocation2 + $0x108] sm:$0xf] %vm1866, %v1670
        %1933 = vst.msk [vmem:[#allocation2 + $0x10c] sm:$0xf] %vm1866, %v1673
        %1934 = vst.msk [vmem:[#allocation2 + $0x110] sm:$0xf] %vm1866, %v1676
        %1935 = vst.msk [vmem:[#allocation2 + $0x114] sm:$0xf] %vm1866, %v1679
        %1936 = vst.msk [vmem:[#allocation2 + $0x118] sm:$0xf] %vm1866, %v1682
        %1937 = vst.msk [vmem:[#allocation2 + $0x11c] sm:$0xf] %vm1866, %v1685
        %1938 = vst.msk [vmem:[#allocation2 + $0x120] sm:$0xf] %vm1866, %v1688
        %1939 = vst.msk [vmem:[#allocation2 + $0x124] sm:$0xf] %vm1866, %v1691
        %1940 = vst.msk [vmem:[#allocation2 + $0x128] sm:$0xf] %vm1866, %v1694
        %1941 = vst.msk [vmem:[#allocation2 + $0x12c] sm:$0xf] %vm1866, %v1697
        %1942 = vst.msk [vmem:[#allocation2 + $0x130] sm:$0xf] %vm1866, %v1700
        %1943 = vst.msk [vmem:[#allocation2 + $0x134] sm:$0xf] %vm1866, %v1703
        %1944 = vst.msk [vmem:[#allocation2 + $0x138] sm:$0xf] %vm1866, %v1706
        %1945 = vst.msk [vmem:[#allocation2 + $0x13c] sm:$0xf] %vm1866, %v1709
        %1946 = vst.msk [vmem:[#allocation2 + $0x140] sm:$0xf] %vm1866, %v1712
        %1947 = vst.msk [vmem:[#allocation2 + $0x144] sm:$0xf] %vm1866, %v1715
        %1948 = vst.msk [vmem:[#allocation2 + $0x148] sm:$0xf] %vm1866, %v1718
        %1949 = vst.msk [vmem:[#allocation2 + $0x14c] sm:$0xf] %vm1866, %v1721
        %1950 = vst.msk [vmem:[#allocation2 + $0x150] sm:$0xf] %vm1866, %v1724
        %1951 = vst.msk [vmem:[#allocation2 + $0x154] sm:$0xf] %vm1866, %v1727
        %1952 = vst.msk [vmem:[#allocation2 + $0x158] sm:$0xf] %vm1866, %v1730
        %1953 = vst.msk [vmem:[#allocation2 + $0x15c] sm:$0xf] %vm1866, %v1733
        %1954 = vst.msk [vmem:[#allocation2 + $0x160] sm:$0xf] %vm1866, %v1736
        %1955 = vst.msk [vmem:[#allocation2 + $0x164] sm:$0xf] %vm1866, %v1739
        %1956 = vst.msk [vmem:[#allocation2 + $0x168] sm:$0xf] %vm1866, %v1742
        %1957 = vst.msk [vmem:[#allocation2 + $0x16c] sm:$0xf] %vm1866, %v1745
        %1958 = vst.msk [vmem:[#allocation2 + $0x170] sm:$0xf] %vm1866, %v1748
        %1959 = vst.msk [vmem:[#allocation2 + $0x174] sm:$0xf] %vm1866, %v1751
        %1960 = vst.msk [vmem:[#allocation2 + $0x178] sm:$0xf] %vm1866, %v1754
        %1961 = vst.msk [vmem:[#allocation2 + $0x17c] sm:$0xf] %vm1866, %v1757
        %1962 = vst.msk [vmem:[#allocation2 + $0x180] sm:$0xf] %vm1866, %v1760
        %1963 = vst.msk [vmem:[#allocation2 + $0x184] sm:$0xf] %vm1866, %v1763
        %vm1964 = vcmask 123904
        %1965 = vst.msk [vmem:[#allocation2 + $0x188] sm:$0x3] %vm1964, %v1764
        %vm1966 = vsmask.f32 1280
        %vm1967 = vsmask.f32 5392
        %vm1968 = vmor %vm1966, %vm1967
        %v1970 = vshrl.u32 %v1273, 16
        %v1972 = vrot.slane %v1970, 6
        %v1973 = vshll.u32 %v1273, 16
        %v1975 = vrot.slane %v1973, 7
        %v1976 = vor.u32 %v1972, %v1975
        %v1977 = vrot.slane %v1976, 4
        %v1979 = vshrl.u32 %v1274, 16
        %v1981 = vrot.slane %v1979, 6
        %v1982 = vshll.u32 %v1274, 16
        %v1984 = vrot.slane %v1982, 7
        %v1985 = vor.u32 %v1981, %v1984
        %v1986 = vsel %vm1968, %v1977, %v1985
        %v1987 = vrot.slane %v1985, 4
        %v1989 = vshrl.u32 %v1275, 16
        %v1991 = vrot.slane %v1989, 6
        %v1992 = vshll.u32 %v1275, 16
        %v1994 = vrot.slane %v1992, 7
        %v1995 = vor.u32 %v1991, %v1994
        %v1996 = vsel %vm1968, %v1987, %v1995
        %v1997 = vrot.slane %v1995, 4
        %v1999 = vshrl.u32 %v1276, 16
        %v2001 = vrot.slane %v1999, 6
        %v2002 = vshll.u32 %v1276, 16
        %v2004 = vrot.slane %v2002, 7
        %v2005 = vor.u32 %v2001, %v2004
        %v2006 = vsel %vm1968, %v1997, %v2005
        %v2007 = vrot.slane %v2005, 4
        %v2009 = vshrl.u32 %v1277, 16
        %v2011 = vrot.slane %v2009, 6
        %v2012 = vshll.u32 %v1277, 16
        %v2014 = vrot.slane %v2012, 7
        %v2015 = vor.u32 %v2011, %v2014
        %v2016 = vsel %vm1968, %v2007, %v2015
        %v2017 = vrot.slane %v2015, 4
        %v2019 = vshrl.u32 %v1278, 16
        %v2021 = vrot.slane %v2019, 6
        %v2022 = vshll.u32 %v1278, 16
        %v2024 = vrot.slane %v2022, 7
        %v2025 = vor.u32 %v2021, %v2024
        %v2026 = vsel %vm1968, %v2017, %v2025
        %v2027 = vrot.slane %v2025, 4
        %v2029 = vshrl.u32 %v1279, 16
        %v2031 = vrot.slane %v2029, 6
        %v2032 = vshll.u32 %v1279, 16
        %v2034 = vrot.slane %v2032, 7
        %v2035 = vor.u32 %v2031, %v2034
        %v2036 = vsel %vm1968, %v2027, %v2035
        %v2037 = vrot.slane %v2035, 4
        %v2039 = vshrl.u32 %v1280, 16
        %v2041 = vrot.slane %v2039, 6
        %v2042 = vshll.u32 %v1280, 16
        %v2044 = vrot.slane %v2042, 7
        %v2045 = vor.u32 %v2041, %v2044
        %v2046 = vsel %vm1968, %v2037, %v2045
        %v2047 = vrot.slane %v2045, 4
        %v2049 = vshrl.u32 %v1281, 16
        %v2051 = vrot.slane %v2049, 6
        %v2052 = vshll.u32 %v1281, 16
        %v2054 = vrot.slane %v2052, 7
        %v2055 = vor.u32 %v2051, %v2054
        %v2056 = vsel %vm1968, %v2047, %v2055
        %v2057 = vrot.slane %v2055, 4
        %v2059 = vshrl.u32 %v1282, 16
        %v2061 = vrot.slane %v2059, 6
        %v2062 = vshll.u32 %v1282, 16
        %v2064 = vrot.slane %v2062, 7
        %v2065 = vor.u32 %v2061, %v2064
        %v2066 = vsel %vm1968, %v2057, %v2065
        %v2067 = vrot.slane %v2065, 4
        %v2069 = vshrl.u32 %v1283, 16
        %v2071 = vrot.slane %v2069, 6
        %v2072 = vshll.u32 %v1283, 16
        %v2074 = vrot.slane %v2072, 7
        %v2075 = vor.u32 %v2071, %v2074
        %v2076 = vsel %vm1968, %v2067, %v2075
        %v2077 = vrot.slane %v2075, 4
        %v2079 = vshrl.u32 %v1284, 16
        %v2081 = vrot.slane %v2079, 6
        %v2082 = vshll.u32 %v1284, 16
        %v2084 = vrot.slane %v2082, 7
        %v2085 = vor.u32 %v2081, %v2084
        %v2086 = vsel %vm1968, %v2077, %v2085
        %v2087 = vrot.slane %v2085, 4
        %v2089 = vshrl.u32 %v1285, 16
        %v2091 = vrot.slane %v2089, 6
        %v2092 = vshll.u32 %v1285, 16
        %v2094 = vrot.slane %v2092, 7
        %v2095 = vor.u32 %v2091, %v2094
        %v2096 = vsel %vm1968, %v2087, %v2095
        %v2097 = vrot.slane %v2095, 4
        %v2099 = vshrl.u32 %v1286, 16
        %v2101 = vrot.slane %v2099, 6
        %v2102 = vshll.u32 %v1286, 16
        %v2104 = vrot.slane %v2102, 7
        %v2105 = vor.u32 %v2101, %v2104
        %v2106 = vsel %vm1968, %v2097, %v2105
        %v2107 = vrot.slane %v2105, 4
        %v2109 = vshrl.u32 %v1287, 16
        %v2111 = vrot.slane %v2109, 6
        %v2112 = vshll.u32 %v1287, 16
        %v2114 = vrot.slane %v2112, 7
        %v2115 = vor.u32 %v2111, %v2114
        %v2116 = vsel %vm1968, %v2107, %v2115
        %v2117 = vrot.slane %v2115, 4
        %v2119 = vshrl.u32 %v1288, 16
        %v2121 = vrot.slane %v2119, 6
        %v2122 = vshll.u32 %v1288, 16
        %v2124 = vrot.slane %v2122, 7
        %v2125 = vor.u32 %v2121, %v2124
        %v2126 = vsel %vm1968, %v2117, %v2125
        %v2127 = vrot.slane %v2125, 4
        %v2129 = vshrl.u32 %v1289, 16
        %v2131 = vrot.slane %v2129, 6
        %v2132 = vshll.u32 %v1289, 16
        %v2134 = vrot.slane %v2132, 7
        %v2135 = vor.u32 %v2131, %v2134
        %v2136 = vsel %vm1968, %v2127, %v2135
        %v2137 = vrot.slane %v2135, 4
        %v2139 = vshrl.u32 %v1290, 16
        %v2141 = vrot.slane %v2139, 6
        %v2142 = vshll.u32 %v1290, 16
        %v2144 = vrot.slane %v2142, 7
        %v2145 = vor.u32 %v2141, %v2144
        %v2146 = vsel %vm1968, %v2137, %v2145
        %v2147 = vrot.slane %v2145, 4
        %v2149 = vshrl.u32 %v1291, 16
        %v2151 = vrot.slane %v2149, 6
        %v2152 = vshll.u32 %v1291, 16
        %v2154 = vrot.slane %v2152, 7
        %v2155 = vor.u32 %v2151, %v2154
        %v2156 = vsel %vm1968, %v2147, %v2155
        %v2157 = vrot.slane %v2155, 4
        %v2159 = vshrl.u32 %v1292, 16
        %v2161 = vrot.slane %v2159, 6
        %v2162 = vshll.u32 %v1292, 16
        %v2164 = vrot.slane %v2162, 7
        %v2165 = vor.u32 %v2161, %v2164
        %v2166 = vsel %vm1968, %v2157, %v2165
        %v2167 = vrot.slane %v2165, 4
        %v2169 = vshrl.u32 %v1293, 16
        %v2171 = vrot.slane %v2169, 6
        %v2172 = vshll.u32 %v1293, 16
        %v2174 = vrot.slane %v2172, 7
        %v2175 = vor.u32 %v2171, %v2174
        %v2176 = vsel %vm1968, %v2167, %v2175
        %v2177 = vrot.slane %v2175, 4
        %v2179 = vshrl.u32 %v1294, 16
        %v2181 = vrot.slane %v2179, 6
        %v2182 = vshll.u32 %v1294, 16
        %v2184 = vrot.slane %v2182, 7
        %v2185 = vor.u32 %v2181, %v2184
        %v2186 = vsel %vm1968, %v2177, %v2185
        %v2187 = vrot.slane %v2185, 4
        %v2189 = vshrl.u32 %v1295, 16
        %v2191 = vrot.slane %v2189, 6
        %v2192 = vshll.u32 %v1295, 16
        %v2194 = vrot.slane %v2192, 7
        %v2195 = vor.u32 %v2191, %v2194
        %v2196 = vsel %vm1968, %v2187, %v2195
        %v2197 = vrot.slane %v2195, 4
        %v2199 = vshrl.u32 %v1296, 16
        %v2201 = vrot.slane %v2199, 6
        %v2202 = vshll.u32 %v1296, 16
        %v2204 = vrot.slane %v2202, 7
        %v2205 = vor.u32 %v2201, %v2204
        %v2206 = vsel %vm1968, %v2197, %v2205
        %v2207 = vrot.slane %v2205, 4
        %v2209 = vshrl.u32 %v1297, 16
        %v2211 = vrot.slane %v2209, 6
        %v2212 = vshll.u32 %v1297, 16
        %v2214 = vrot.slane %v2212, 7
        %v2215 = vor.u32 %v2211, %v2214
        %v2216 = vsel %vm1968, %v2207, %v2215
        %v2217 = vrot.slane %v2215, 4
        %v2219 = vshrl.u32 %v1298, 16
        %v2221 = vrot.slane %v2219, 6
        %v2222 = vshll.u32 %v1298, 16
        %v2224 = vrot.slane %v2222, 7
        %v2225 = vor.u32 %v2221, %v2224
        %v2226 = vsel %vm1968, %v2217, %v2225
        %v2227 = vrot.slane %v2225, 4
        %v2229 = vshrl.u32 %v1299, 16
        %v2231 = vrot.slane %v2229, 6
        %v2232 = vshll.u32 %v1299, 16
        %v2234 = vrot.slane %v2232, 7
        %v2235 = vor.u32 %v2231, %v2234
        %v2236 = vsel %vm1968, %v2227, %v2235
        %v2237 = vrot.slane %v2235, 4
        %v2239 = vshrl.u32 %v1300, 16
        %v2241 = vrot.slane %v2239, 6
        %v2242 = vshll.u32 %v1300, 16
        %v2244 = vrot.slane %v2242, 7
        %v2245 = vor.u32 %v2241, %v2244
        %v2246 = vsel %vm1968, %v2237, %v2245
        %v2247 = vrot.slane %v2245, 4
        %v2249 = vshrl.u32 %v1301, 16
        %v2251 = vrot.slane %v2249, 6
        %v2252 = vshll.u32 %v1301, 16
        %v2254 = vrot.slane %v2252, 7
        %v2255 = vor.u32 %v2251, %v2254
        %v2256 = vsel %vm1968, %v2247, %v2255
        %v2257 = vrot.slane %v2255, 4
        %v2259 = vshrl.u32 %v1302, 16
        %v2261 = vrot.slane %v2259, 6
        %v2262 = vshll.u32 %v1302, 16
        %v2264 = vrot.slane %v2262, 7
        %v2265 = vor.u32 %v2261, %v2264
        %v2266 = vsel %vm1968, %v2257, %v2265
        %v2267 = vrot.slane %v2265, 4
        %v2269 = vshrl.u32 %v1303, 16
        %v2271 = vrot.slane %v2269, 6
        %v2272 = vshll.u32 %v1303, 16
        %v2274 = vrot.slane %v2272, 7
        %v2275 = vor.u32 %v2271, %v2274
        %v2276 = vsel %vm1968, %v2267, %v2275
        %v2277 = vrot.slane %v2275, 4
        %v2279 = vshrl.u32 %v1304, 16
        %v2281 = vrot.slane %v2279, 6
        %v2282 = vshll.u32 %v1304, 16
        %v2284 = vrot.slane %v2282, 7
        %v2285 = vor.u32 %v2281, %v2284
        %v2286 = vsel %vm1968, %v2277, %v2285
        %v2287 = vrot.slane %v2285, 4
        %v2289 = vshrl.u32 %v1305, 16
        %v2291 = vrot.slane %v2289, 6
        %v2292 = vshll.u32 %v1305, 16
        %v2294 = vrot.slane %v2292, 7
        %v2295 = vor.u32 %v2291, %v2294
        %v2296 = vsel %vm1968, %v2287, %v2295
        %v2297 = vrot.slane %v2295, 4
        %v2299 = vshrl.u32 %v1306, 16
        %v2301 = vrot.slane %v2299, 6
        %v2302 = vshll.u32 %v1306, 16
        %v2304 = vrot.slane %v2302, 7
        %v2305 = vor.u32 %v2301, %v2304
        %v2306 = vsel %vm1968, %v2297, %v2305
        %v2307 = vrot.slane %v2305, 4
        %v2309 = vshrl.u32 %v1307, 16
        %v2311 = vrot.slane %v2309, 6
        %v2312 = vshll.u32 %v1307, 16
        %v2314 = vrot.slane %v2312, 7
        %v2315 = vor.u32 %v2311, %v2314
        %v2316 = vsel %vm1968, %v2307, %v2315
        %v2317 = vrot.slane %v2315, 4
        %v2319 = vshrl.u32 %v1308, 16
        %v2321 = vrot.slane %v2319, 6
        %v2322 = vshll.u32 %v1308, 16
        %v2324 = vrot.slane %v2322, 7
        %v2325 = vor.u32 %v2321, %v2324
        %v2326 = vsel %vm1968, %v2317, %v2325
        %v2327 = vrot.slane %v2325, 4
        %v2329 = vshrl.u32 %v1309, 16
        %v2331 = vrot.slane %v2329, 6
        %v2332 = vshll.u32 %v1309, 16
        %v2334 = vrot.slane %v2332, 7
        %v2335 = vor.u32 %v2331, %v2334
        %v2336 = vsel %vm1968, %v2327, %v2335
        %v2337 = vrot.slane %v2335, 4
        %v2339 = vshrl.u32 %v1310, 16
        %v2341 = vrot.slane %v2339, 6
        %v2342 = vshll.u32 %v1310, 16
        %v2344 = vrot.slane %v2342, 7
        %v2345 = vor.u32 %v2341, %v2344
        %v2346 = vsel %vm1968, %v2337, %v2345
        %v2347 = vrot.slane %v2345, 4
        %v2349 = vshrl.u32 %v1311, 16
        %v2351 = vrot.slane %v2349, 6
        %v2352 = vshll.u32 %v1311, 16
        %v2354 = vrot.slane %v2352, 7
        %v2355 = vor.u32 %v2351, %v2354
        %v2356 = vsel %vm1968, %v2347, %v2355
        %v2357 = vrot.slane %v2355, 4
        %v2359 = vshrl.u32 %v1312, 16
        %v2361 = vrot.slane %v2359, 6
        %v2362 = vshll.u32 %v1312, 16
        %v2364 = vrot.slane %v2362, 7
        %v2365 = vor.u32 %v2361, %v2364
        %v2366 = vsel %vm1968, %v2357, %v2365
        %v2367 = vrot.slane %v2365, 4
        %v2369 = vshrl.u32 %v1313, 16
        %v2371 = vrot.slane %v2369, 6
        %v2372 = vshll.u32 %v1313, 16
        %v2374 = vrot.slane %v2372, 7
        %v2375 = vor.u32 %v2371, %v2374
        %v2376 = vsel %vm1968, %v2367, %v2375
        %v2377 = vrot.slane %v2375, 4
        %v2379 = vshrl.u32 %v1314, 16
        %v2381 = vrot.slane %v2379, 6
        %v2382 = vshll.u32 %v1314, 16
        %v2384 = vrot.slane %v2382, 7
        %v2385 = vor.u32 %v2381, %v2384
        %v2386 = vsel %vm1968, %v2377, %v2385
        %v2387 = vrot.slane %v2385, 4
        %v2389 = vshrl.u32 %v1315, 16
        %v2391 = vrot.slane %v2389, 6
        %v2392 = vshll.u32 %v1315, 16
        %v2394 = vrot.slane %v2392, 7
        %v2395 = vor.u32 %v2391, %v2394
        %v2396 = vsel %vm1968, %v2387, %v2395
        %v2397 = vrot.slane %v2395, 4
        %v2399 = vshrl.u32 %v1316, 16
        %v2401 = vrot.slane %v2399, 6
        %v2402 = vshll.u32 %v1316, 16
        %v2404 = vrot.slane %v2402, 7
        %v2405 = vor.u32 %v2401, %v2404
        %v2406 = vsel %vm1968, %v2397, %v2405
        %v2407 = vrot.slane %v2405, 4
        %v2409 = vshrl.u32 %v1317, 16
        %v2411 = vrot.slane %v2409, 6
        %v2412 = vshll.u32 %v1317, 16
        %v2414 = vrot.slane %v2412, 7
        %v2415 = vor.u32 %v2411, %v2414
        %v2416 = vsel %vm1968, %v2407, %v2415
        %v2417 = vrot.slane %v2415, 4
        %v2419 = vshrl.u32 %v1318, 16
        %v2421 = vrot.slane %v2419, 6
        %v2422 = vshll.u32 %v1318, 16
        %v2424 = vrot.slane %v2422, 7
        %v2425 = vor.u32 %v2421, %v2424
        %v2426 = vsel %vm1968, %v2417, %v2425
        %v2427 = vrot.slane %v2425, 4
        %v2429 = vshrl.u32 %v1319, 16
        %v2431 = vrot.slane %v2429, 6
        %v2432 = vshll.u32 %v1319, 16
        %v2434 = vrot.slane %v2432, 7
        %v2435 = vor.u32 %v2431, %v2434
        %v2436 = vsel %vm1968, %v2427, %v2435
        %v2437 = vrot.slane %v2435, 4
        %v2439 = vshrl.u32 %v1320, 16
        %v2441 = vrot.slane %v2439, 6
        %v2442 = vshll.u32 %v1320, 16
        %v2444 = vrot.slane %v2442, 7
        %v2445 = vor.u32 %v2441, %v2444
        %v2446 = vsel %vm1968, %v2437, %v2445
        %v2447 = vrot.slane %v2445, 4
        %v2449 = vshrl.u32 %v1321, 16
        %v2451 = vrot.slane %v2449, 6
        %v2452 = vshll.u32 %v1321, 16
        %v2454 = vrot.slane %v2452, 7
        %v2455 = vor.u32 %v2451, %v2454
        %v2456 = vsel %vm1968, %v2447, %v2455
        %v2457 = vrot.slane %v2455, 4
        %v2459 = vshrl.u32 %v1322, 16
        %v2461 = vrot.slane %v2459, 6
        %v2462 = vshll.u32 %v1322, 16
        %v2464 = vrot.slane %v2462, 7
        %v2465 = vor.u32 %v2461, %v2464
        %v2466 = vsel %vm1968, %v2457, %v2465
        %v2467 = vrot.slane %v2465, 4
        %v2469 = vshrl.u32 %v1323, 16
        %v2471 = vrot.slane %v2469, 6
        %v2472 = vshll.u32 %v1323, 16
        %v2474 = vrot.slane %v2472, 7
        %v2475 = vor.u32 %v2471, %v2474
        %v2476 = vsel %vm1968, %v2467, %v2475
        %v2477 = vrot.slane %v2475, 4
        %v2479 = vshrl.u32 %v1324, 16
        %v2481 = vrot.slane %v2479, 6
        %v2482 = vshll.u32 %v1324, 16
        %v2484 = vrot.slane %v2482, 7
        %v2485 = vor.u32 %v2481, %v2484
        %v2486 = vsel %vm1968, %v2477, %v2485
        %v2487 = vrot.slane %v2485, 4
        %v2489 = vshrl.u32 %v1325, 16
        %v2491 = vrot.slane %v2489, 6
        %v2492 = vshll.u32 %v1325, 16
        %v2494 = vrot.slane %v2492, 7
        %v2495 = vor.u32 %v2491, %v2494
        %v2496 = vsel %vm1968, %v2487, %v2495
        %v2497 = vrot.slane %v2495, 4
        %v2499 = vshrl.u32 %v1326, 16
        %v2501 = vrot.slane %v2499, 6
        %v2502 = vshll.u32 %v1326, 16
        %v2504 = vrot.slane %v2502, 7
        %v2505 = vor.u32 %v2501, %v2504
        %v2506 = vsel %vm1968, %v2497, %v2505
        %v2507 = vrot.slane %v2505, 4
        %v2509 = vshrl.u32 %v1327, 16
        %v2511 = vrot.slane %v2509, 6
        %v2512 = vshll.u32 %v1327, 16
        %v2514 = vrot.slane %v2512, 7
        %v2515 = vor.u32 %v2511, %v2514
        %v2516 = vsel %vm1968, %v2507, %v2515
        %v2517 = vrot.slane %v2515, 4
        %v2519 = vshrl.u32 %v1328, 16
        %v2521 = vrot.slane %v2519, 6
        %v2522 = vshll.u32 %v1328, 16
        %v2524 = vrot.slane %v2522, 7
        %v2525 = vor.u32 %v2521, %v2524
        %v2526 = vsel %vm1968, %v2517, %v2525
        %v2527 = vrot.slane %v2525, 4
        %v2529 = vshrl.u32 %v1329, 16
        %v2531 = vrot.slane %v2529, 6
        %v2532 = vshll.u32 %v1329, 16
        %v2534 = vrot.slane %v2532, 7
        %v2535 = vor.u32 %v2531, %v2534
        %v2536 = vsel %vm1968, %v2527, %v2535
        %v2537 = vrot.slane %v2535, 4
        %v2539 = vshrl.u32 %v1330, 16
        %v2541 = vrot.slane %v2539, 6
        %v2542 = vshll.u32 %v1330, 16
        %v2544 = vrot.slane %v2542, 7
        %v2545 = vor.u32 %v2541, %v2544
        %v2546 = vsel %vm1968, %v2537, %v2545
        %v2547 = vrot.slane %v2545, 4
        %v2549 = vshrl.u32 %v1331, 16
        %v2551 = vrot.slane %v2549, 6
        %v2552 = vshll.u32 %v1331, 16
        %v2554 = vrot.slane %v2552, 7
        %v2555 = vor.u32 %v2551, %v2554
        %v2556 = vsel %vm1968, %v2547, %v2555
        %v2557 = vrot.slane %v2555, 4
        %v2559 = vshrl.u32 %v1332, 16
        %v2561 = vrot.slane %v2559, 6
        %v2562 = vshll.u32 %v1332, 16
        %v2564 = vrot.slane %v2562, 7
        %v2565 = vor.u32 %v2561, %v2564
        %v2566 = vsel %vm1968, %v2557, %v2565
        %v2567 = vrot.slane %v2565, 4
        %v2569 = vshrl.u32 %v1333, 16
        %v2571 = vrot.slane %v2569, 6
        %v2572 = vshll.u32 %v1333, 16
        %v2574 = vrot.slane %v2572, 7
        %v2575 = vor.u32 %v2571, %v2574
        %v2576 = vsel %vm1968, %v2567, %v2575
        %v2577 = vrot.slane %v2575, 4
        %v2579 = vshrl.u32 %v1334, 16
        %v2581 = vrot.slane %v2579, 6
        %v2582 = vshll.u32 %v1334, 16
        %v2584 = vrot.slane %v2582, 7
        %v2585 = vor.u32 %v2581, %v2584
        %v2586 = vsel %vm1968, %v2577, %v2585
        %v2587 = vrot.slane %v2585, 4
        %v2589 = vshrl.u32 %v1335, 16
        %v2591 = vrot.slane %v2589, 6
        %v2592 = vshll.u32 %v1335, 16
        %v2594 = vrot.slane %v2592, 7
        %v2595 = vor.u32 %v2591, %v2594
        %v2596 = vsel %vm1968, %v2587, %v2595
        %v2597 = vrot.slane %v2595, 4
        %v2599 = vshrl.u32 %v1336, 16
        %v2601 = vrot.slane %v2599, 6
        %v2602 = vshll.u32 %v1336, 16
        %v2604 = vrot.slane %v2602, 7
        %v2605 = vor.u32 %v2601, %v2604
        %v2606 = vsel %vm1968, %v2597, %v2605
        %v2607 = vrot.slane %v2605, 4
        %v2609 = vshrl.u32 %v1337, 16
        %v2611 = vrot.slane %v2609, 6
        %v2612 = vshll.u32 %v1337, 16
        %v2614 = vrot.slane %v2612, 7
        %v2615 = vor.u32 %v2611, %v2614
        %v2616 = vsel %vm1968, %v2607, %v2615
        %v2617 = vrot.slane %v2615, 4
        %v2619 = vshrl.u32 %v1338, 16
        %v2621 = vrot.slane %v2619, 6
        %v2622 = vshll.u32 %v1338, 16
        %v2624 = vrot.slane %v2622, 7
        %v2625 = vor.u32 %v2621, %v2624
        %v2626 = vsel %vm1968, %v2617, %v2625
        %v2627 = vrot.slane %v2625, 4
        %v2629 = vshrl.u32 %v1339, 16
        %v2631 = vrot.slane %v2629, 6
        %v2632 = vshll.u32 %v1339, 16
        %v2634 = vrot.slane %v2632, 7
        %v2635 = vor.u32 %v2631, %v2634
        %v2636 = vsel %vm1968, %v2627, %v2635
        %v2637 = vrot.slane %v2635, 4
        %v2639 = vshrl.u32 %v1340, 16
        %v2641 = vrot.slane %v2639, 6
        %v2642 = vshll.u32 %v1340, 16
        %v2644 = vrot.slane %v2642, 7
        %v2645 = vor.u32 %v2641, %v2644
        %v2646 = vsel %vm1968, %v2637, %v2645
        %v2647 = vrot.slane %v2645, 4
        %v2649 = vshrl.u32 %v1341, 16
        %v2651 = vrot.slane %v2649, 6
        %v2652 = vshll.u32 %v1341, 16
        %v2654 = vrot.slane %v2652, 7
        %v2655 = vor.u32 %v2651, %v2654
        %v2656 = vsel %vm1968, %v2647, %v2655
        %v2657 = vrot.slane %v2655, 4
        %v2659 = vshrl.u32 %v1342, 16
        %v2661 = vrot.slane %v2659, 6
        %v2662 = vshll.u32 %v1342, 16
        %v2664 = vrot.slane %v2662, 7
        %v2665 = vor.u32 %v2661, %v2664
        %v2666 = vsel %vm1968, %v2657, %v2665
        %v2667 = vrot.slane %v2665, 4
        %v2669 = vshrl.u32 %v1343, 16
        %v2671 = vrot.slane %v2669, 6
        %v2672 = vshll.u32 %v1343, 16
        %v2674 = vrot.slane %v2672, 7
        %v2675 = vor.u32 %v2671, %v2674
        %v2676 = vsel %vm1968, %v2667, %v2675
        %v2677 = vrot.slane %v2675, 4
        %v2679 = vshrl.u32 %v1344, 16
        %v2681 = vrot.slane %v2679, 6
        %v2682 = vshll.u32 %v1344, 16
        %v2684 = vrot.slane %v2682, 7
        %v2685 = vor.u32 %v2681, %v2684
        %v2686 = vsel %vm1968, %v2677, %v2685
        %v2687 = vrot.slane %v2685, 4
        %v2689 = vshrl.u32 %v1345, 16
        %v2691 = vrot.slane %v2689, 6
        %v2692 = vshll.u32 %v1345, 16
        %v2694 = vrot.slane %v2692, 7
        %v2695 = vor.u32 %v2691, %v2694
        %v2696 = vsel %vm1968, %v2687, %v2695
        %v2697 = vrot.slane %v2695, 4
        %v2699 = vshrl.u32 %v1346, 16
        %v2701 = vrot.slane %v2699, 6
        %v2702 = vshll.u32 %v1346, 16
        %v2704 = vrot.slane %v2702, 7
        %v2705 = vor.u32 %v2701, %v2704
        %v2706 = vsel %vm1968, %v2697, %v2705
        %v2707 = vrot.slane %v2705, 4
        %v2709 = vshrl.u32 %v1347, 16
        %v2711 = vrot.slane %v2709, 6
        %v2712 = vshll.u32 %v1347, 16
        %v2714 = vrot.slane %v2712, 7
        %v2715 = vor.u32 %v2711, %v2714
        %v2716 = vsel %vm1968, %v2707, %v2715
        %v2717 = vrot.slane %v2715, 4
        %v2719 = vshrl.u32 %v1348, 16
        %v2721 = vrot.slane %v2719, 6
        %v2722 = vshll.u32 %v1348, 16
        %v2724 = vrot.slane %v2722, 7
        %v2725 = vor.u32 %v2721, %v2724
        %v2726 = vsel %vm1968, %v2717, %v2725
        %v2727 = vrot.slane %v2725, 4
        %v2729 = vshrl.u32 %v1349, 16
        %v2731 = vrot.slane %v2729, 6
        %v2732 = vshll.u32 %v1349, 16
        %v2734 = vrot.slane %v2732, 7
        %v2735 = vor.u32 %v2731, %v2734
        %v2736 = vsel %vm1968, %v2727, %v2735
        %v2737 = vrot.slane %v2735, 4
        %v2739 = vshrl.u32 %v1350, 16
        %v2741 = vrot.slane %v2739, 6
        %v2742 = vshll.u32 %v1350, 16
        %v2744 = vrot.slane %v2742, 7
        %v2745 = vor.u32 %v2741, %v2744
        %v2746 = vsel %vm1968, %v2737, %v2745
        %v2747 = vrot.slane %v2745, 4
        %v2749 = vshrl.u32 %v1351, 16
        %v2751 = vrot.slane %v2749, 6
        %v2752 = vshll.u32 %v1351, 16
        %v2754 = vrot.slane %v2752, 7
        %v2755 = vor.u32 %v2751, %v2754
        %v2756 = vsel %vm1968, %v2747, %v2755
        %v2757 = vrot.slane %v2755, 4
        %v2759 = vshrl.u32 %v1352, 16
        %v2761 = vrot.slane %v2759, 6
        %v2762 = vshll.u32 %v1352, 16
        %v2764 = vrot.slane %v2762, 7
        %v2765 = vor.u32 %v2761, %v2764
        %v2766 = vsel %vm1968, %v2757, %v2765
        %v2767 = vrot.slane %v2765, 4
        %v2769 = vshrl.u32 %v1353, 16
        %v2771 = vrot.slane %v2769, 6
        %v2772 = vshll.u32 %v1353, 16
        %v2774 = vrot.slane %v2772, 7
        %v2775 = vor.u32 %v2771, %v2774
        %v2776 = vsel %vm1968, %v2767, %v2775
        %v2777 = vrot.slane %v2775, 4
        %v2779 = vshrl.u32 %v1354, 16
        %v2781 = vrot.slane %v2779, 6
        %v2782 = vshll.u32 %v1354, 16
        %v2784 = vrot.slane %v2782, 7
        %v2785 = vor.u32 %v2781, %v2784
        %v2786 = vsel %vm1968, %v2777, %v2785
        %v2787 = vrot.slane %v2785, 4
        %v2789 = vshrl.u32 %v1355, 16
        %v2791 = vrot.slane %v2789, 6
        %v2792 = vshll.u32 %v1355, 16
        %v2794 = vrot.slane %v2792, 7
        %v2795 = vor.u32 %v2791, %v2794
        %v2796 = vsel %vm1968, %v2787, %v2795
        %v2797 = vrot.slane %v2795, 4
        %v2799 = vshrl.u32 %v1356, 16
        %v2801 = vrot.slane %v2799, 6
        %v2802 = vshll.u32 %v1356, 16
        %v2804 = vrot.slane %v2802, 7
        %v2805 = vor.u32 %v2801, %v2804
        %v2806 = vsel %vm1968, %v2797, %v2805
        %v2807 = vrot.slane %v2805, 4
        %v2809 = vshrl.u32 %v1357, 16
        %v2811 = vrot.slane %v2809, 6
        %v2812 = vshll.u32 %v1357, 16
        %v2814 = vrot.slane %v2812, 7
        %v2815 = vor.u32 %v2811, %v2814
        %v2816 = vsel %vm1968, %v2807, %v2815
        %v2817 = vrot.slane %v2815, 4
        %v2819 = vshrl.u32 %v1358, 16
        %v2821 = vrot.slane %v2819, 6
        %v2822 = vshll.u32 %v1358, 16
        %v2824 = vrot.slane %v2822, 7
        %v2825 = vor.u32 %v2821, %v2824
        %v2826 = vsel %vm1968, %v2817, %v2825
        %v2827 = vrot.slane %v2825, 4
        %v2829 = vshrl.u32 %v1359, 16
        %v2831 = vrot.slane %v2829, 6
        %v2832 = vshll.u32 %v1359, 16
        %v2834 = vrot.slane %v2832, 7
        %v2835 = vor.u32 %v2831, %v2834
        %v2836 = vsel %vm1968, %v2827, %v2835
        %v2837 = vrot.slane %v2835, 4
        %v2839 = vshrl.u32 %v1360, 16
        %v2841 = vrot.slane %v2839, 6
        %v2842 = vshll.u32 %v1360, 16
        %v2844 = vrot.slane %v2842, 7
        %v2845 = vor.u32 %v2841, %v2844
        %v2846 = vsel %vm1968, %v2837, %v2845
        %v2847 = vrot.slane %v2845, 4
        %v2849 = vshrl.u32 %v1361, 16
        %v2851 = vrot.slane %v2849, 6
        %v2852 = vshll.u32 %v1361, 16
        %v2854 = vrot.slane %v2852, 7
        %v2855 = vor.u32 %v2851, %v2854
        %v2856 = vsel %vm1968, %v2847, %v2855
        %v2857 = vrot.slane %v2855, 4
        %v2859 = vshrl.u32 %v1362, 16
        %v2861 = vrot.slane %v2859, 6
        %v2862 = vshll.u32 %v1362, 16
        %v2864 = vrot.slane %v2862, 7
        %v2865 = vor.u32 %v2861, %v2864
        %v2866 = vsel %vm1968, %v2857, %v2865
        %v2867 = vrot.slane %v2865, 4
        %v2869 = vshrl.u32 %v1363, 16
        %v2871 = vrot.slane %v2869, 6
        %v2872 = vshll.u32 %v1363, 16
        %v2874 = vrot.slane %v2872, 7
        %v2875 = vor.u32 %v2871, %v2874
        %v2876 = vsel %vm1968, %v2867, %v2875
        %v2877 = vrot.slane %v2875, 4
        %v2879 = vshrl.u32 %v1364, 16
        %v2881 = vrot.slane %v2879, 6
        %v2882 = vshll.u32 %v1364, 16
        %v2884 = vrot.slane %v2882, 7
        %v2885 = vor.u32 %v2881, %v2884
        %v2886 = vsel %vm1968, %v2877, %v2885
        %v2887 = vrot.slane %v2885, 4
        %v2889 = vshrl.u32 %v1365, 16
        %v2891 = vrot.slane %v2889, 6
        %v2892 = vshll.u32 %v1365, 16
        %v2894 = vrot.slane %v2892, 7
        %v2895 = vor.u32 %v2891, %v2894
        %v2896 = vsel %vm1968, %v2887, %v2895
        %v2897 = vrot.slane %v2895, 4
        %v2899 = vshrl.u32 %v1366, 16
        %v2901 = vrot.slane %v2899, 6
        %v2902 = vshll.u32 %v1366, 16
        %v2904 = vrot.slane %v2902, 7
        %v2905 = vor.u32 %v2901, %v2904
        %v2906 = vsel %vm1968, %v2897, %v2905
        %v2907 = vrot.slane %v2905, 4
        %v2909 = vshrl.u32 %v1367, 16
        %v2911 = vrot.slane %v2909, 6
        %v2912 = vshll.u32 %v1367, 16
        %v2914 = vrot.slane %v2912, 7
        %v2915 = vor.u32 %v2911, %v2914
        %v2916 = vsel %vm1968, %v2907, %v2915
        %v2917 = vrot.slane %v2915, 4
        %v2919 = vshrl.u32 %v1368, 16
        %v2921 = vrot.slane %v2919, 6
        %v2922 = vshll.u32 %v1368, 16
        %v2924 = vrot.slane %v2922, 7
        %v2925 = vor.u32 %v2921, %v2924
        %v2926 = vsel %vm1968, %v2917, %v2925
        %v2927 = vrot.slane %v2925, 4
        %v2929 = vshrl.u32 %v1369, 16
        %v2931 = vrot.slane %v2929, 6
        %v2932 = vshll.u32 %v1369, 16
        %v2934 = vrot.slane %v2932, 7
        %v2935 = vor.u32 %v2931, %v2934
        %v2936 = vsel %vm1968, %v2927, %v2935
        %v2937 = vrot.slane %v2935, 4
        %v2939 = vshrl.u32 %v1370, 16
        %v2941 = vrot.slane %v2939, 6
        %v2942 = vshll.u32 %v1370, 16
        %v2944 = vrot.slane %v2942, 7
        %v2945 = vor.u32 %v2941, %v2944
        %v2946 = vsel %vm1968, %v2937, %v2945
        %v2947 = vrot.slane %v2945, 4
        %vm3047 = vcmask 257153
        %vm3048 = vsmask.f32 7942
        %vm3049 = vmand %vm3047, %vm3048
        %v3050 = vld [vmem:[#allocation2] sm:$0xe]
        %v3051 = vsel %vm3049, %v1976, %v3050
        %3052 = vst [vmem:[#allocation2] sm:$0xe] %v3051
        %vm3053 = vcmask 257152
        %3054 = vst.msk [vmem:[#allocation2 + $0x4] sm:$0xf] %vm3053, %v1986
        %3055 = vst.msk [vmem:[#allocation2 + $0x8] sm:$0xf] %vm3053, %v1996
        %3056 = vst.msk [vmem:[#allocation2 + $0xc] sm:$0xf] %vm3053, %v2006
        %3057 = vst.msk [vmem:[#allocation2 + $0x10] sm:$0xf] %vm3053, %v2016
        %3058 = vst.msk [vmem:[#allocation2 + $0x14] sm:$0xf] %vm3053, %v2026
        %3059 = vst.msk [vmem:[#allocation2 + $0x18] sm:$0xf] %vm3053, %v2036
        %3060 = vst.msk [vmem:[#allocation2 + $0x1c] sm:$0xf] %vm3053, %v2046
        %3061 = vst.msk [vmem:[#allocation2 + $0x20] sm:$0xf] %vm3053, %v2056
        %3062 = vst.msk [vmem:[#allocation2 + $0x24] sm:$0xf] %vm3053, %v2066
        %3063 = vst.msk [vmem:[#allocation2 + $0x28] sm:$0xf] %vm3053, %v2076
        %3064 = vst.msk [vmem:[#allocation2 + $0x2c] sm:$0xf] %vm3053, %v2086
        %3065 = vst.msk [vmem:[#allocation2 + $0x30] sm:$0xf] %vm3053, %v2096
        %3066 = vst.msk [vmem:[#allocation2 + $0x34] sm:$0xf] %vm3053, %v2106
        %3067 = vst.msk [vmem:[#allocation2 + $0x38] sm:$0xf] %vm3053, %v2116
        %3068 = vst.msk [vmem:[#allocation2 + $0x3c] sm:$0xf] %vm3053, %v2126
        %3069 = vst.msk [vmem:[#allocation2 + $0x40] sm:$0xf] %vm3053, %v2136
        %3070 = vst.msk [vmem:[#allocation2 + $0x44] sm:$0xf] %vm3053, %v2146
        %3071 = vst.msk [vmem:[#allocation2 + $0x48] sm:$0xf] %vm3053, %v2156
        %3072 = vst.msk [vmem:[#allocation2 + $0x4c] sm:$0xf] %vm3053, %v2166
        %3073 = vst.msk [vmem:[#allocation2 + $0x50] sm:$0xf] %vm3053, %v2176
        %3074 = vst.msk [vmem:[#allocation2 + $0x54] sm:$0xf] %vm3053, %v2186
        %3075 = vst.msk [vmem:[#allocation2 + $0x58] sm:$0xf] %vm3053, %v2196
        %3076 = vst.msk [vmem:[#allocation2 + $0x5c] sm:$0xf] %vm3053, %v2206
        %3077 = vst.msk [vmem:[#allocation2 + $0x60] sm:$0xf] %vm3053, %v2216
        %3078 = vst.msk [vmem:[#allocation2 + $0x64] sm:$0xf] %vm3053, %v2226
        %3079 = vst.msk [vmem:[#allocation2 + $0x68] sm:$0xf] %vm3053, %v2236
        %3080 = vst.msk [vmem:[#allocation2 + $0x6c] sm:$0xf] %vm3053, %v2246
        %3081 = vst.msk [vmem:[#allocation2 + $0x70] sm:$0xf] %vm3053, %v2256
        %3082 = vst.msk [vmem:[#allocation2 + $0x74] sm:$0xf] %vm3053, %v2266
        %3083 = vst.msk [vmem:[#allocation2 + $0x78] sm:$0xf] %vm3053, %v2276
        %3084 = vst.msk [vmem:[#allocation2 + $0x7c] sm:$0xf] %vm3053, %v2286
        %3085 = vst.msk [vmem:[#allocation2 + $0x80] sm:$0xf] %vm3053, %v2296
        %3086 = vst.msk [vmem:[#allocation2 + $0x84] sm:$0xf] %vm3053, %v2306
        %3087 = vst.msk [vmem:[#allocation2 + $0x88] sm:$0xf] %vm3053, %v2316
        %3088 = vst.msk [vmem:[#allocation2 + $0x8c] sm:$0xf] %vm3053, %v2326
        %3089 = vst.msk [vmem:[#allocation2 + $0x90] sm:$0xf] %vm3053, %v2336
        %3090 = vst.msk [vmem:[#allocation2 + $0x94] sm:$0xf] %vm3053, %v2346
        %3091 = vst.msk [vmem:[#allocation2 + $0x98] sm:$0xf] %vm3053, %v2356
        %3092 = vst.msk [vmem:[#allocation2 + $0x9c] sm:$0xf] %vm3053, %v2366
        %3093 = vst.msk [vmem:[#allocation2 + $0xa0] sm:$0xf] %vm3053, %v2376
        %3094 = vst.msk [vmem:[#allocation2 + $0xa4] sm:$0xf] %vm3053, %v2386
        %3095 = vst.msk [vmem:[#allocation2 + $0xa8] sm:$0xf] %vm3053, %v2396
        %3096 = vst.msk [vmem:[#allocation2 + $0xac] sm:$0xf] %vm3053, %v2406
        %3097 = vst.msk [vmem:[#allocation2 + $0xb0] sm:$0xf] %vm3053, %v2416
        %3098 = vst.msk [vmem:[#allocation2 + $0xb4] sm:$0xf] %vm3053, %v2426
        %3099 = vst.msk [vmem:[#allocation2 + $0xb8] sm:$0xf] %vm3053, %v2436
        %3100 = vst.msk [vmem:[#allocation2 + $0xbc] sm:$0xf] %vm3053, %v2446
        %3101 = vst.msk [vmem:[#allocation2 + $0xc0] sm:$0xf] %vm3053, %v2456
        %3102 = vst.msk [vmem:[#allocation2 + $0xc4] sm:$0xf] %vm3053, %v2466
        %3103 = vst.msk [vmem:[#allocation2 + $0xc8] sm:$0xf] %vm3053, %v2476
        %3104 = vst.msk [vmem:[#allocation2 + $0xcc] sm:$0xf] %vm3053, %v2486
        %3105 = vst.msk [vmem:[#allocation2 + $0xd0] sm:$0xf] %vm3053, %v2496
        %3106 = vst.msk [vmem:[#allocation2 + $0xd4] sm:$0xf] %vm3053, %v2506
        %3107 = vst.msk [vmem:[#allocation2 + $0xd8] sm:$0xf] %vm3053, %v2516
        %3108 = vst.msk [vmem:[#allocation2 + $0xdc] sm:$0xf] %vm3053, %v2526
        %3109 = vst.msk [vmem:[#allocation2 + $0xe0] sm:$0xf] %vm3053, %v2536
        %3110 = vst.msk [vmem:[#allocation2 + $0xe4] sm:$0xf] %vm3053, %v2546
        %3111 = vst.msk [vmem:[#allocation2 + $0xe8] sm:$0xf] %vm3053, %v2556
        %3112 = vst.msk [vmem:[#allocation2 + $0xec] sm:$0xf] %vm3053, %v2566
        %3113 = vst.msk [vmem:[#allocation2 + $0xf0] sm:$0xf] %vm3053, %v2576
        %3114 = vst.msk [vmem:[#allocation2 + $0xf4] sm:$0xf] %vm3053, %v2586
        %3115 = vst.msk [vmem:[#allocation2 + $0xf8] sm:$0xf] %vm3053, %v2596
        %3116 = vst.msk [vmem:[#allocation2 + $0xfc] sm:$0xf] %vm3053, %v2606
        %3117 = vst.msk [vmem:[#allocation2 + $0x100] sm:$0xf] %vm3053, %v2616
        %3118 = vst.msk [vmem:[#allocation2 + $0x104] sm:$0xf] %vm3053, %v2626
        %3119 = vst.msk [vmem:[#allocation2 + $0x108] sm:$0xf] %vm3053, %v2636
        %3120 = vst.msk [vmem:[#allocation2 + $0x10c] sm:$0xf] %vm3053, %v2646
        %3121 = vst.msk [vmem:[#allocation2 + $0x110] sm:$0xf] %vm3053, %v2656
        %3122 = vst.msk [vmem:[#allocation2 + $0x114] sm:$0xf] %vm3053, %v2666
        %3123 = vst.msk [vmem:[#allocation2 + $0x118] sm:$0xf] %vm3053, %v2676
        %3124 = vst.msk [vmem:[#allocation2 + $0x11c] sm:$0xf] %vm3053, %v2686
        %3125 = vst.msk [vmem:[#allocation2 + $0x120] sm:$0xf] %vm3053, %v2696
        %3126 = vst.msk [vmem:[#allocation2 + $0x124] sm:$0xf] %vm3053, %v2706
        %3127 = vst.msk [vmem:[#allocation2 + $0x128] sm:$0xf] %vm3053, %v2716
        %3128 = vst.msk [vmem:[#allocation2 + $0x12c] sm:$0xf] %vm3053, %v2726
        %3129 = vst.msk [vmem:[#allocation2 + $0x130] sm:$0xf] %vm3053, %v2736
        %3130 = vst.msk [vmem:[#allocation2 + $0x134] sm:$0xf] %vm3053, %v2746
        %3131 = vst.msk [vmem:[#allocation2 + $0x138] sm:$0xf] %vm3053, %v2756
        %3132 = vst.msk [vmem:[#allocation2 + $0x13c] sm:$0xf] %vm3053, %v2766
        %3133 = vst.msk [vmem:[#allocation2 + $0x140] sm:$0xf] %vm3053, %v2776
        %3134 = vst.msk [vmem:[#allocation2 + $0x144] sm:$0xf] %vm3053, %v2786
        %3135 = vst.msk [vmem:[#allocation2 + $0x148] sm:$0xf] %vm3053, %v2796
        %3136 = vst.msk [vmem:[#allocation2 + $0x14c] sm:$0xf] %vm3053, %v2806
        %3137 = vst.msk [vmem:[#allocation2 + $0x150] sm:$0xf] %vm3053, %v2816
        %3138 = vst.msk [vmem:[#allocation2 + $0x154] sm:$0xf] %vm3053, %v2826
        %3139 = vst.msk [vmem:[#allocation2 + $0x158] sm:$0xf] %vm3053, %v2836
        %3140 = vst.msk [vmem:[#allocation2 + $0x15c] sm:$0xf] %vm3053, %v2846
        %3141 = vst.msk [vmem:[#allocation2 + $0x160] sm:$0xf] %vm3053, %v2856
        %3142 = vst.msk [vmem:[#allocation2 + $0x164] sm:$0xf] %vm3053, %v2866
        %3143 = vst.msk [vmem:[#allocation2 + $0x168] sm:$0xf] %vm3053, %v2876
        %3144 = vst.msk [vmem:[#allocation2 + $0x16c] sm:$0xf] %vm3053, %v2886
        %3145 = vst.msk [vmem:[#allocation2 + $0x170] sm:$0xf] %vm3053, %v2896
        %3146 = vst.msk [vmem:[#allocation2 + $0x174] sm:$0xf] %vm3053, %v2906
        %3147 = vst.msk [vmem:[#allocation2 + $0x178] sm:$0xf] %vm3053, %v2916
        %3148 = vst.msk [vmem:[#allocation2 + $0x17c] sm:$0xf] %vm3053, %v2926
        %3149 = vst.msk [vmem:[#allocation2 + $0x180] sm:$0xf] %vm3053, %v2936
        %3150 = vst.msk [vmem:[#allocation2 + $0x184] sm:$0xf] %vm3053, %v2946
        %vm3151 = vcmask 255104
        %vm3152 = vmand %vm3151, %vm1966
        %v3153 = vld [vmem:[#allocation2 + $0x188] sm:$0x3]
        %v3154 = vsel %vm3152, %v2947, %v3153
        %3155 = vst [vmem:[#allocation2 + $0x188] sm:$0x3] %v3154
        %vm3156 = vcmask 1040384
        %vm3157 = vcmask 1044484
        %vm3158 = vmor %vm3156, %vm3157
        %v3159 = vrot.slane %v1273, 7
        %v3160 = vrot.slane %v3159, 4
        %v3161 = vrot.slane %v1274, 7
        %v3162 = vsel %vm3158, %v3160, %v3161
        %v3163 = vrot.slane %v3161, 4
        %v3164 = vrot.slane %v1275, 7
        %v3165 = vsel %vm3158, %v3163, %v3164
        %v3166 = vrot.slane %v3164, 4
        %v3167 = vrot.slane %v1276, 7
        %v3168 = vsel %vm3158, %v3166, %v3167
        %v3169 = vrot.slane %v3167, 4
        %v3170 = vrot.slane %v1277, 7
        %v3171 = vsel %vm3158, %v3169, %v3170
        %v3172 = vrot.slane %v3170, 4
        %v3173 = vrot.slane %v1278, 7
        %v3174 = vsel %vm3158, %v3172, %v3173
        %v3175 = vrot.slane %v3173, 4
        %v3176 = vrot.slane %v1279, 7
        %v3177 = vsel %vm3158, %v3175, %v3176
        %v3178 = vrot.slane %v3176, 4
        %v3179 = vrot.slane %v1280, 7
        %v3180 = vsel %vm3158, %v3178, %v3179
        %v3181 = vrot.slane %v3179, 4
        %v3182 = vrot.slane %v1281, 7
        %v3183 = vsel %vm3158, %v3181, %v3182
        %v3184 = vrot.slane %v3182, 4
        %v3185 = vrot.slane %v1282, 7
        %v3186 = vsel %vm3158, %v3184, %v3185
        %v3187 = vrot.slane %v3185, 4
        %v3188 = vrot.slane %v1283, 7
        %v3189 = vsel %vm3158, %v3187, %v3188
        %v3190 = vrot.slane %v3188, 4
        %v3191 = vrot.slane %v1284, 7
        %v3192 = vsel %vm3158, %v3190, %v3191
        %v3193 = vrot.slane %v3191, 4
        %v3194 = vrot.slane %v1285, 7
        %v3195 = vsel %vm3158, %v3193, %v3194
        %v3196 = vrot.slane %v3194, 4
        %v3197 = vrot.slane %v1286, 7
        %v3198 = vsel %vm3158, %v3196, %v3197
        %v3199 = vrot.slane %v3197, 4
        %v3200 = vrot.slane %v1287, 7
        %v3201 = vsel %vm3158, %v3199, %v3200
        %v3202 = vrot.slane %v3200, 4
        %v3203 = vrot.slane %v1288, 7
        %v3204 = vsel %vm3158, %v3202, %v3203
        %v3205 = vrot.slane %v3203, 4
        %v3206 = vrot.slane %v1289, 7
        %v3207 = vsel %vm3158, %v3205, %v3206
        %v3208 = vrot.slane %v3206, 4
        %v3209 = vrot.slane %v1290, 7
        %v3210 = vsel %vm3158, %v3208, %v3209
        %v3211 = vrot.slane %v3209, 4
        %v3212 = vrot.slane %v1291, 7
        %v3213 = vsel %vm3158, %v3211, %v3212
        %v3214 = vrot.slane %v3212, 4
        %v3215 = vrot.slane %v1292, 7
        %v3216 = vsel %vm3158, %v3214, %v3215
        %v3217 = vrot.slane %v3215, 4
        %v3218 = vrot.slane %v1293, 7
        %v3219 = vsel %vm3158, %v3217, %v3218
        %v3220 = vrot.slane %v3218, 4
        %v3221 = vrot.slane %v1294, 7
        %v3222 = vsel %vm3158, %v3220, %v3221
        %v3223 = vrot.slane %v3221, 4
        %v3224 = vrot.slane %v1295, 7
        %v3225 = vsel %vm3158, %v3223, %v3224
        %v3226 = vrot.slane %v3224, 4
        %v3227 = vrot.slane %v1296, 7
        %v3228 = vsel %vm3158, %v3226, %v3227
        %v3229 = vrot.slane %v3227, 4
        %v3230 = vrot.slane %v1297, 7
        %v3231 = vsel %vm3158, %v3229, %v3230
        %v3232 = vrot.slane %v3230, 4
        %v3233 = vrot.slane %v1298, 7
        %v3234 = vsel %vm3158, %v3232, %v3233
        %v3235 = vrot.slane %v3233, 4
        %v3236 = vrot.slane %v1299, 7
        %v3237 = vsel %vm3158, %v3235, %v3236
        %v3238 = vrot.slane %v3236, 4
        %v3239 = vrot.slane %v1300, 7
        %v3240 = vsel %vm3158, %v3238, %v3239
        %v3241 = vrot.slane %v3239, 4
        %v3242 = vrot.slane %v1301, 7
        %v3243 = vsel %vm3158, %v3241, %v3242
        %v3244 = vrot.slane %v3242, 4
        %v3245 = vrot.slane %v1302, 7
        %v3246 = vsel %vm3158, %v3244, %v3245
        %v3247 = vrot.slane %v3245, 4
        %v3248 = vrot.slane %v1303, 7
        %v3249 = vsel %vm3158, %v3247, %v3248
        %v3250 = vrot.slane %v3248, 4
        %v3251 = vrot.slane %v1304, 7
        %v3252 = vsel %vm3158, %v3250, %v3251
        %v3253 = vrot.slane %v3251, 4
        %v3254 = vrot.slane %v1305, 7
        %v3255 = vsel %vm3158, %v3253, %v3254
        %v3256 = vrot.slane %v3254, 4
        %v3257 = vrot.slane %v1306, 7
        %v3258 = vsel %vm3158, %v3256, %v3257
        %v3259 = vrot.slane %v3257, 4
        %v3260 = vrot.slane %v1307, 7
        %v3261 = vsel %vm3158, %v3259, %v3260
        %v3262 = vrot.slane %v3260, 4
        %v3263 = vrot.slane %v1308, 7
        %v3264 = vsel %vm3158, %v3262, %v3263
        %v3265 = vrot.slane %v3263, 4
        %v3266 = vrot.slane %v1309, 7
        %v3267 = vsel %vm3158, %v3265, %v3266
        %v3268 = vrot.slane %v3266, 4
        %v3269 = vrot.slane %v1310, 7
        %v3270 = vsel %vm3158, %v3268, %v3269
        %v3271 = vrot.slane %v3269, 4
        %v3272 = vrot.slane %v1311, 7
        %v3273 = vsel %vm3158, %v3271, %v3272
        %v3274 = vrot.slane %v3272, 4
        %v3275 = vrot.slane %v1312, 7
        %v3276 = vsel %vm3158, %v3274, %v3275
        %v3277 = vrot.slane %v3275, 4
        %v3278 = vrot.slane %v1313, 7
        %v3279 = vsel %vm3158, %v3277, %v3278
        %v3280 = vrot.slane %v3278, 4
        %v3281 = vrot.slane %v1314, 7
        %v3282 = vsel %vm3158, %v3280, %v3281
        %v3283 = vrot.slane %v3281, 4
        %v3284 = vrot.slane %v1315, 7
        %v3285 = vsel %vm3158, %v3283, %v3284
        %v3286 = vrot.slane %v3284, 4
        %v3287 = vrot.slane %v1316, 7
        %v3288 = vsel %vm3158, %v3286, %v3287
        %v3289 = vrot.slane %v3287, 4
        %v3290 = vrot.slane %v1317, 7
        %v3291 = vsel %vm3158, %v3289, %v3290
        %v3292 = vrot.slane %v3290, 4
        %v3293 = vrot.slane %v1318, 7
        %v3294 = vsel %vm3158, %v3292, %v3293
        %v3295 = vrot.slane %v3293, 4
        %v3296 = vrot.slane %v1319, 7
        %v3297 = vsel %vm3158, %v3295, %v3296
        %v3298 = vrot.slane %v3296, 4
        %v3299 = vrot.slane %v1320, 7
        %v3300 = vsel %vm3158, %v3298, %v3299
        %v3301 = vrot.slane %v3299, 4
        %v3302 = vrot.slane %v1321, 7
        %v3303 = vsel %vm3158, %v3301, %v3302
        %v3304 = vrot.slane %v3302, 4
        %v3305 = vrot.slane %v1322, 7
        %v3306 = vsel %vm3158, %v3304, %v3305
        %v3307 = vrot.slane %v3305, 4
        %v3308 = vrot.slane %v1323, 7
        %v3309 = vsel %vm3158, %v3307, %v3308
        %v3310 = vrot.slane %v3308, 4
        %v3311 = vrot.slane %v1324, 7
        %v3312 = vsel %vm3158, %v3310, %v3311
        %v3313 = vrot.slane %v3311, 4
        %v3314 = vrot.slane %v1325, 7
        %v3315 = vsel %vm3158, %v3313, %v3314
        %v3316 = vrot.slane %v3314, 4
        %v3317 = vrot.slane %v1326, 7
        %v3318 = vsel %vm3158, %v3316, %v3317
        %v3319 = vrot.slane %v3317, 4
        %v3320 = vrot.slane %v1327, 7
        %v3321 = vsel %vm3158, %v3319, %v3320
        %v3322 = vrot.slane %v3320, 4
        %v3323 = vrot.slane %v1328, 7
        %v3324 = vsel %vm3158, %v3322, %v3323
        %v3325 = vrot.slane %v3323, 4
        %v3326 = vrot.slane %v1329, 7
        %v3327 = vsel %vm3158, %v3325, %v3326
        %v3328 = vrot.slane %v3326, 4
        %v3329 = vrot.slane %v1330, 7
        %v3330 = vsel %vm3158, %v3328, %v3329
        %v3331 = vrot.slane %v3329, 4
        %v3332 = vrot.slane %v1331, 7
        %v3333 = vsel %vm3158, %v3331, %v3332
        %v3334 = vrot.slane %v3332, 4
        %v3335 = vrot.slane %v1332, 7
        %v3336 = vsel %vm3158, %v3334, %v3335
        %v3337 = vrot.slane %v3335, 4
        %v3338 = vrot.slane %v1333, 7
        %v3339 = vsel %vm3158, %v3337, %v3338
        %v3340 = vrot.slane %v3338, 4
        %v3341 = vrot.slane %v1334, 7
        %v3342 = vsel %vm3158, %v3340, %v3341
        %v3343 = vrot.slane %v3341, 4
        %v3344 = vrot.slane %v1335, 7
        %v3345 = vsel %vm3158, %v3343, %v3344
        %v3346 = vrot.slane %v3344, 4
        %v3347 = vrot.slane %v1336, 7
        %v3348 = vsel %vm3158, %v3346, %v3347
        %v3349 = vrot.slane %v3347, 4
        %v3350 = vrot.slane %v1337, 7
        %v3351 = vsel %vm3158, %v3349, %v3350
        %v3352 = vrot.slane %v3350, 4
        %v3353 = vrot.slane %v1338, 7
        %v3354 = vsel %vm3158, %v3352, %v3353
        %v3355 = vrot.slane %v3353, 4
        %v3356 = vrot.slane %v1339, 7
        %v3357 = vsel %vm3158, %v3355, %v3356
        %v3358 = vrot.slane %v3356, 4
        %v3359 = vrot.slane %v1340, 7
        %v3360 = vsel %vm3158, %v3358, %v3359
        %v3361 = vrot.slane %v3359, 4
        %v3362 = vrot.slane %v1341, 7
        %v3363 = vsel %vm3158, %v3361, %v3362
        %v3364 = vrot.slane %v3362, 4
        %v3365 = vrot.slane %v1342, 7
        %v3366 = vsel %vm3158, %v3364, %v3365
        %v3367 = vrot.slane %v3365, 4
        %v3368 = vrot.slane %v1343, 7
        %v3369 = vsel %vm3158, %v3367, %v3368
        %v3370 = vrot.slane %v3368, 4
        %v3371 = vrot.slane %v1344, 7
        %v3372 = vsel %vm3158, %v3370, %v3371
        %v3373 = vrot.slane %v3371, 4
        %v3374 = vrot.slane %v1345, 7
        %v3375 = vsel %vm3158, %v3373, %v3374
        %v3376 = vrot.slane %v3374, 4
        %v3377 = vrot.slane %v1346, 7
        %v3378 = vsel %vm3158, %v3376, %v3377
        %v3379 = vrot.slane %v3377, 4
        %v3380 = vrot.slane %v1347, 7
        %v3381 = vsel %vm3158, %v3379, %v3380
        %v3382 = vrot.slane %v3380, 4
        %v3383 = vrot.slane %v1348, 7
        %v3384 = vsel %vm3158, %v3382, %v3383
        %v3385 = vrot.slane %v3383, 4
        %v3386 = vrot.slane %v1349, 7
        %v3387 = vsel %vm3158, %v3385, %v3386
        %v3388 = vrot.slane %v3386, 4
        %v3389 = vrot.slane %v1350, 7
        %v3390 = vsel %vm3158, %v3388, %v3389
        %v3391 = vrot.slane %v3389, 4
        %v3392 = vrot.slane %v1351, 7
        %v3393 = vsel %vm3158, %v3391, %v3392
        %v3394 = vrot.slane %v3392, 4
        %v3395 = vrot.slane %v1352, 7
        %v3396 = vsel %vm3158, %v3394, %v3395
        %v3397 = vrot.slane %v3395, 4
        %v3398 = vrot.slane %v1353, 7
        %v3399 = vsel %vm3158, %v3397, %v3398
        %v3400 = vrot.slane %v3398, 4
        %v3401 = vrot.slane %v1354, 7
        %v3402 = vsel %vm3158, %v3400, %v3401
        %v3403 = vrot.slane %v3401, 4
        %v3404 = vrot.slane %v1355, 7
        %v3405 = vsel %vm3158, %v3403, %v3404
        %v3406 = vrot.slane %v3404, 4
        %v3407 = vrot.slane %v1356, 7
        %v3408 = vsel %vm3158, %v3406, %v3407
        %v3409 = vrot.slane %v3407, 4
        %v3410 = vrot.slane %v1357, 7
        %v3411 = vsel %vm3158, %v3409, %v3410
        %v3412 = vrot.slane %v3410, 4
        %v3413 = vrot.slane %v1358, 7
        %v3414 = vsel %vm3158, %v3412, %v3413
        %v3415 = vrot.slane %v3413, 4
        %v3416 = vrot.slane %v1359, 7
        %v3417 = vsel %vm3158, %v3415, %v3416
        %v3418 = vrot.slane %v3416, 4
        %v3419 = vrot.slane %v1360, 7
        %v3420 = vsel %vm3158, %v3418, %v3419
        %v3421 = vrot.slane %v3419, 4
        %v3422 = vrot.slane %v1361, 7
        %v3423 = vsel %vm3158, %v3421, %v3422
        %v3424 = vrot.slane %v3422, 4
        %v3425 = vrot.slane %v1362, 7
        %v3426 = vsel %vm3158, %v3424, %v3425
        %v3427 = vrot.slane %v3425, 4
        %v3428 = vrot.slane %v1363, 7
        %v3429 = vsel %vm3158, %v3427, %v3428
        %v3430 = vrot.slane %v3428, 4
        %v3431 = vrot.slane %v1364, 7
        %v3432 = vsel %vm3158, %v3430, %v3431
        %v3433 = vrot.slane %v3431, 4
        %v3434 = vrot.slane %v1365, 7
        %v3435 = vsel %vm3158, %v3433, %v3434
        %v3436 = vrot.slane %v3434, 4
        %v3437 = vrot.slane %v1366, 7
        %v3438 = vsel %vm3158, %v3436, %v3437
        %v3439 = vrot.slane %v3437, 4
        %v3440 = vrot.slane %v1367, 7
        %v3441 = vsel %vm3158, %v3439, %v3440
        %v3442 = vrot.slane %v3440, 4
        %v3443 = vrot.slane %v1368, 7
        %v3444 = vsel %vm3158, %v3442, %v3443
        %v3445 = vrot.slane %v3443, 4
        %v3446 = vrot.slane %v1369, 7
        %v3447 = vsel %vm3158, %v3445, %v3446
        %v3448 = vrot.slane %v3446, 4
        %v3449 = vrot.slane %v1370, 7
        %v3450 = vsel %vm3158, %v3448, %v3449
        %v3451 = vrot.slane %v3449, 4
        %vm3551 = vcmask 388353
        %3552 = vst.msk [vmem:[#allocation2] sm:$0xe] %vm3551, %v3159
        %vm3553 = vcmask 388352
        %3554 = vst.msk [vmem:[#allocation2 + $0x4] sm:$0xf] %vm3553, %v3162
        %3555 = vst.msk [vmem:[#allocation2 + $0x8] sm:$0xf] %vm3553, %v3165
        %3556 = vst.msk [vmem:[#allocation2 + $0xc] sm:$0xf] %vm3553, %v3168
        %3557 = vst.msk [vmem:[#allocation2 + $0x10] sm:$0xf] %vm3553, %v3171
        %3558 = vst.msk [vmem:[#allocation2 + $0x14] sm:$0xf] %vm3553, %v3174
        %3559 = vst.msk [vmem:[#allocation2 + $0x18] sm:$0xf] %vm3553, %v3177
        %3560 = vst.msk [vmem:[#allocation2 + $0x1c] sm:$0xf] %vm3553, %v3180
        %3561 = vst.msk [vmem:[#allocation2 + $0x20] sm:$0xf] %vm3553, %v3183
        %3562 = vst.msk [vmem:[#allocation2 + $0x24] sm:$0xf] %vm3553, %v3186
        %3563 = vst.msk [vmem:[#allocation2 + $0x28] sm:$0xf] %vm3553, %v3189
        %3564 = vst.msk [vmem:[#allocation2 + $0x2c] sm:$0xf] %vm3553, %v3192
        %3565 = vst.msk [vmem:[#allocation2 + $0x30] sm:$0xf] %vm3553, %v3195
        %3566 = vst.msk [vmem:[#allocation2 + $0x34] sm:$0xf] %vm3553, %v3198
        %3567 = vst.msk [vmem:[#allocation2 + $0x38] sm:$0xf] %vm3553, %v3201
        %3568 = vst.msk [vmem:[#allocation2 + $0x3c] sm:$0xf] %vm3553, %v3204
        %3569 = vst.msk [vmem:[#allocation2 + $0x40] sm:$0xf] %vm3553, %v3207
        %3570 = vst.msk [vmem:[#allocation2 + $0x44] sm:$0xf] %vm3553, %v3210
        %3571 = vst.msk [vmem:[#allocation2 + $0x48] sm:$0xf] %vm3553, %v3213
        %3572 = vst.msk [vmem:[#allocation2 + $0x4c] sm:$0xf] %vm3553, %v3216
        %3573 = vst.msk [vmem:[#allocation2 + $0x50] sm:$0xf] %vm3553, %v3219
        %3574 = vst.msk [vmem:[#allocation2 + $0x54] sm:$0xf] %vm3553, %v3222
        %3575 = vst.msk [vmem:[#allocation2 + $0x58] sm:$0xf] %vm3553, %v3225
        %3576 = vst.msk [vmem:[#allocation2 + $0x5c] sm:$0xf] %vm3553, %v3228
        %3577 = vst.msk [vmem:[#allocation2 + $0x60] sm:$0xf] %vm3553, %v3231
        %3578 = vst.msk [vmem:[#allocation2 + $0x64] sm:$0xf] %vm3553, %v3234
        %3579 = vst.msk [vmem:[#allocation2 + $0x68] sm:$0xf] %vm3553, %v3237
        %3580 = vst.msk [vmem:[#allocation2 + $0x6c] sm:$0xf] %vm3553, %v3240
        %3581 = vst.msk [vmem:[#allocation2 + $0x70] sm:$0xf] %vm3553, %v3243
        %3582 = vst.msk [vmem:[#allocation2 + $0x74] sm:$0xf] %vm3553, %v3246
        %3583 = vst.msk [vmem:[#allocation2 + $0x78] sm:$0xf] %vm3553, %v3249
        %3584 = vst.msk [vmem:[#allocation2 + $0x7c] sm:$0xf] %vm3553, %v3252
        %3585 = vst.msk [vmem:[#allocation2 + $0x80] sm:$0xf] %vm3553, %v3255
        %3586 = vst.msk [vmem:[#allocation2 + $0x84] sm:$0xf] %vm3553, %v3258
        %3587 = vst.msk [vmem:[#allocation2 + $0x88] sm:$0xf] %vm3553, %v3261
        %3588 = vst.msk [vmem:[#allocation2 + $0x8c] sm:$0xf] %vm3553, %v3264
        %3589 = vst.msk [vmem:[#allocation2 + $0x90] sm:$0xf] %vm3553, %v3267
        %3590 = vst.msk [vmem:[#allocation2 + $0x94] sm:$0xf] %vm3553, %v3270
        %3591 = vst.msk [vmem:[#allocation2 + $0x98] sm:$0xf] %vm3553, %v3273
        %3592 = vst.msk [vmem:[#allocation2 + $0x9c] sm:$0xf] %vm3553, %v3276
        %3593 = vst.msk [vmem:[#allocation2 + $0xa0] sm:$0xf] %vm3553, %v3279
        %3594 = vst.msk [vmem:[#allocation2 + $0xa4] sm:$0xf] %vm3553, %v3282
        %3595 = vst.msk [vmem:[#allocation2 + $0xa8] sm:$0xf] %vm3553, %v3285
        %3596 = vst.msk [vmem:[#allocation2 + $0xac] sm:$0xf] %vm3553, %v3288
        %3597 = vst.msk [vmem:[#allocation2 + $0xb0] sm:$0xf] %vm3553, %v3291
        %3598 = vst.msk [vmem:[#allocation2 + $0xb4] sm:$0xf] %vm3553, %v3294
        %3599 = vst.msk [vmem:[#allocation2 + $0xb8] sm:$0xf] %vm3553, %v3297
        %3600 = vst.msk [vmem:[#allocation2 + $0xbc] sm:$0xf] %vm3553, %v3300
        %3601 = vst.msk [vmem:[#allocation2 + $0xc0] sm:$0xf] %vm3553, %v3303
        %3602 = vst.msk [vmem:[#allocation2 + $0xc4] sm:$0xf] %vm3553, %v3306
        %3603 = vst.msk [vmem:[#allocation2 + $0xc8] sm:$0xf] %vm3553, %v3309
        %3604 = vst.msk [vmem:[#allocation2 + $0xcc] sm:$0xf] %vm3553, %v3312
        %3605 = vst.msk [vmem:[#allocation2 + $0xd0] sm:$0xf] %vm3553, %v3315
        %3606 = vst.msk [vmem:[#allocation2 + $0xd4] sm:$0xf] %vm3553, %v3318
        %3607 = vst.msk [vmem:[#allocation2 + $0xd8] sm:$0xf] %vm3553, %v3321
        %3608 = vst.msk [vmem:[#allocation2 + $0xdc] sm:$0xf] %vm3553, %v3324
        %3609 = vst.msk [vmem:[#allocation2 + $0xe0] sm:$0xf] %vm3553, %v3327
        %3610 = vst.msk [vmem:[#allocation2 + $0xe4] sm:$0xf] %vm3553, %v3330
        %3611 = vst.msk [vmem:[#allocation2 + $0xe8] sm:$0xf] %vm3553, %v3333
        %3612 = vst.msk [vmem:[#allocation2 + $0xec] sm:$0xf] %vm3553, %v3336
        %3613 = vst.msk [vmem:[#allocation2 + $0xf0] sm:$0xf] %vm3553, %v3339
        %3614 = vst.msk [vmem:[#allocation2 + $0xf4] sm:$0xf] %vm3553, %v3342
        %3615 = vst.msk [vmem:[#allocation2 + $0xf8] sm:$0xf] %vm3553, %v3345
        %3616 = vst.msk [vmem:[#allocation2 + $0xfc] sm:$0xf] %vm3553, %v3348
        %3617 = vst.msk [vmem:[#allocation2 + $0x100] sm:$0xf] %vm3553, %v3351
        %3618 = vst.msk [vmem:[#allocation2 + $0x104] sm:$0xf] %vm3553, %v3354
        %3619 = vst.msk [vmem:[#allocation2 + $0x108] sm:$0xf] %vm3553, %v3357
        %3620 = vst.msk [vmem:[#allocation2 + $0x10c] sm:$0xf] %vm3553, %v3360
        %3621 = vst.msk [vmem:[#allocation2 + $0x110] sm:$0xf] %vm3553, %v3363
        %3622 = vst.msk [vmem:[#allocation2 + $0x114] sm:$0xf] %vm3553, %v3366
        %3623 = vst.msk [vmem:[#allocation2 + $0x118] sm:$0xf] %vm3553, %v3369
        %3624 = vst.msk [vmem:[#allocation2 + $0x11c] sm:$0xf] %vm3553, %v3372
        %3625 = vst.msk [vmem:[#allocation2 + $0x120] sm:$0xf] %vm3553, %v3375
        %3626 = vst.msk [vmem:[#allocation2 + $0x124] sm:$0xf] %vm3553, %v3378
        %3627 = vst.msk [vmem:[#allocation2 + $0x128] sm:$0xf] %vm3553, %v3381
        %3628 = vst.msk [vmem:[#allocation2 + $0x12c] sm:$0xf] %vm3553, %v3384
        %3629 = vst.msk [vmem:[#allocation2 + $0x130] sm:$0xf] %vm3553, %v3387
        %3630 = vst.msk [vmem:[#allocation2 + $0x134] sm:$0xf] %vm3553, %v3390
        %3631 = vst.msk [vmem:[#allocation2 + $0x138] sm:$0xf] %vm3553, %v3393
        %3632 = vst.msk [vmem:[#allocation2 + $0x13c] sm:$0xf] %vm3553, %v3396
        %3633 = vst.msk [vmem:[#allocation2 + $0x140] sm:$0xf] %vm3553, %v3399
        %3634 = vst.msk [vmem:[#allocation2 + $0x144] sm:$0xf] %vm3553, %v3402
        %3635 = vst.msk [vmem:[#allocation2 + $0x148] sm:$0xf] %vm3553, %v3405
        %3636 = vst.msk [vmem:[#allocation2 + $0x14c] sm:$0xf] %vm3553, %v3408
        %3637 = vst.msk [vmem:[#allocation2 + $0x150] sm:$0xf] %vm3553, %v3411
        %3638 = vst.msk [vmem:[#allocation2 + $0x154] sm:$0xf] %vm3553, %v3414
        %3639 = vst.msk [vmem:[#allocation2 + $0x158] sm:$0xf] %vm3553, %v3417
        %3640 = vst.msk [vmem:[#allocation2 + $0x15c] sm:$0xf] %vm3553, %v3420
        %3641 = vst.msk [vmem:[#allocation2 + $0x160] sm:$0xf] %vm3553, %v3423
        %3642 = vst.msk [vmem:[#allocation2 + $0x164] sm:$0xf] %vm3553, %v3426
        %3643 = vst.msk [vmem:[#allocation2 + $0x168] sm:$0xf] %vm3553, %v3429
        %3644 = vst.msk [vmem:[#allocation2 + $0x16c] sm:$0xf] %vm3553, %v3432
        %3645 = vst.msk [vmem:[#allocation2 + $0x170] sm:$0xf] %vm3553, %v3435
        %3646 = vst.msk [vmem:[#allocation2 + $0x174] sm:$0xf] %vm3553, %v3438
        %3647 = vst.msk [vmem:[#allocation2 + $0x178] sm:$0xf] %vm3553, %v3441
        %3648 = vst.msk [vmem:[#allocation2 + $0x17c] sm:$0xf] %vm3553, %v3444
        %3649 = vst.msk [vmem:[#allocation2 + $0x180] sm:$0xf] %vm3553, %v3447
        %3650 = vst.msk [vmem:[#allocation2 + $0x184] sm:$0xf] %vm3553, %v3450
        %vm3651 = vcmask 385280
        %3652 = vst.msk [vmem:[#allocation2 + $0x188] sm:$0x1] %vm3651, %v3451
        %vm3653 = vsmask.f32 256
        %vm3654 = vsmask.f32 4368
        %vm3655 = vmor %vm3653, %vm3654
        %v3656 = vrot.slane %v1970, 7
        %v3657 = vor.u32 %v3656, %v1973
        %v3658 = vrot.slane %v3656, 4
        %v3659 = vrot.slane %v1979, 7
        %v3660 = vor.u32 %v3659, %v1982
        %v3661 = vsel %vm3655, %v3658, %v3660
        %v3662 = vrot.slane %v3659, 4
        %v3663 = vrot.slane %v1989, 7
        %v3664 = vor.u32 %v3663, %v1992
        %v3665 = vsel %vm3655, %v3662, %v3664
        %v3666 = vrot.slane %v3663, 4
        %v3667 = vrot.slane %v1999, 7
        %v3668 = vor.u32 %v3667, %v2002
        %v3669 = vsel %vm3655, %v3666, %v3668
        %v3670 = vrot.slane %v3667, 4
        %v3671 = vrot.slane %v2009, 7
        %v3672 = vor.u32 %v3671, %v2012
        %v3673 = vsel %vm3655, %v3670, %v3672
        %v3674 = vrot.slane %v3671, 4
        %v3675 = vrot.slane %v2019, 7
        %v3676 = vor.u32 %v3675, %v2022
        %v3677 = vsel %vm3655, %v3674, %v3676
        %v3678 = vrot.slane %v3675, 4
        %v3679 = vrot.slane %v2029, 7
        %v3680 = vor.u32 %v3679, %v2032
        %v3681 = vsel %vm3655, %v3678, %v3680
        %v3682 = vrot.slane %v3679, 4
        %v3683 = vrot.slane %v2039, 7
        %v3684 = vor.u32 %v3683, %v2042
        %v3685 = vsel %vm3655, %v3682, %v3684
        %v3686 = vrot.slane %v3683, 4
        %v3687 = vrot.slane %v2049, 7
        %v3688 = vor.u32 %v3687, %v2052
        %v3689 = vsel %vm3655, %v3686, %v3688
        %v3690 = vrot.slane %v3687, 4
        %v3691 = vrot.slane %v2059, 7
        %v3692 = vor.u32 %v3691, %v2062
        %v3693 = vsel %vm3655, %v3690, %v3692
        %v3694 = vrot.slane %v3691, 4
        %v3695 = vrot.slane %v2069, 7
        %v3696 = vor.u32 %v3695, %v2072
        %v3697 = vsel %vm3655, %v3694, %v3696
        %v3698 = vrot.slane %v3695, 4
        %v3699 = vrot.slane %v2079, 7
        %v3700 = vor.u32 %v3699, %v2082
        %v3701 = vsel %vm3655, %v3698, %v3700
        %v3702 = vrot.slane %v3699, 4
        %v3703 = vrot.slane %v2089, 7
        %v3704 = vor.u32 %v3703, %v2092
        %v3705 = vsel %vm3655, %v3702, %v3704
        %v3706 = vrot.slane %v3703, 4
        %v3707 = vrot.slane %v2099, 7
        %v3708 = vor.u32 %v3707, %v2102
        %v3709 = vsel %vm3655, %v3706, %v3708
        %v3710 = vrot.slane %v3707, 4
        %v3711 = vrot.slane %v2109, 7
        %v3712 = vor.u32 %v3711, %v2112
        %v3713 = vsel %vm3655, %v3710, %v3712
        %v3714 = vrot.slane %v3711, 4
        %v3715 = vrot.slane %v2119, 7
        %v3716 = vor.u32 %v3715, %v2122
        %v3717 = vsel %vm3655, %v3714, %v3716
        %v3718 = vrot.slane %v3715, 4
        %v3719 = vrot.slane %v2129, 7
        %v3720 = vor.u32 %v3719, %v2132
        %v3721 = vsel %vm3655, %v3718, %v3720
        %v3722 = vrot.slane %v3719, 4
        %v3723 = vrot.slane %v2139, 7
        %v3724 = vor.u32 %v3723, %v2142
        %v3725 = vsel %vm3655, %v3722, %v3724
        %v3726 = vrot.slane %v3723, 4
        %v3727 = vrot.slane %v2149, 7
        %v3728 = vor.u32 %v3727, %v2152
        %v3729 = vsel %vm3655, %v3726, %v3728
        %v3730 = vrot.slane %v3727, 4
        %v3731 = vrot.slane %v2159, 7
        %v3732 = vor.u32 %v3731, %v2162
        %v3733 = vsel %vm3655, %v3730, %v3732
        %v3734 = vrot.slane %v3731, 4
        %v3735 = vrot.slane %v2169, 7
        %v3736 = vor.u32 %v3735, %v2172
        %v3737 = vsel %vm3655, %v3734, %v3736
        %v3738 = vrot.slane %v3735, 4
        %v3739 = vrot.slane %v2179, 7
        %v3740 = vor.u32 %v3739, %v2182
        %v3741 = vsel %vm3655, %v3738, %v3740
        %v3742 = vrot.slane %v3739, 4
        %v3743 = vrot.slane %v2189, 7
        %v3744 = vor.u32 %v3743, %v2192
        %v3745 = vsel %vm3655, %v3742, %v3744
        %v3746 = vrot.slane %v3743, 4
        %v3747 = vrot.slane %v2199, 7
        %v3748 = vor.u32 %v3747, %v2202
        %v3749 = vsel %vm3655, %v3746, %v3748
        %v3750 = vrot.slane %v3747, 4
        %v3751 = vrot.slane %v2209, 7
        %v3752 = vor.u32 %v3751, %v2212
        %v3753 = vsel %vm3655, %v3750, %v3752
        %v3754 = vrot.slane %v3751, 4
        %v3755 = vrot.slane %v2219, 7
        %v3756 = vor.u32 %v3755, %v2222
        %v3757 = vsel %vm3655, %v3754, %v3756
        %v3758 = vrot.slane %v3755, 4
        %v3759 = vrot.slane %v2229, 7
        %v3760 = vor.u32 %v3759, %v2232
        %v3761 = vsel %vm3655, %v3758, %v3760
        %v3762 = vrot.slane %v3759, 4
        %v3763 = vrot.slane %v2239, 7
        %v3764 = vor.u32 %v3763, %v2242
        %v3765 = vsel %vm3655, %v3762, %v3764
        %v3766 = vrot.slane %v3763, 4
        %v3767 = vrot.slane %v2249, 7
        %v3768 = vor.u32 %v3767, %v2252
        %v3769 = vsel %vm3655, %v3766, %v3768
        %v3770 = vrot.slane %v3767, 4
        %v3771 = vrot.slane %v2259, 7
        %v3772 = vor.u32 %v3771, %v2262
        %v3773 = vsel %vm3655, %v3770, %v3772
        %v3774 = vrot.slane %v3771, 4
        %v3775 = vrot.slane %v2269, 7
        %v3776 = vor.u32 %v3775, %v2272
        %v3777 = vsel %vm3655, %v3774, %v3776
        %v3778 = vrot.slane %v3775, 4
        %v3779 = vrot.slane %v2279, 7
        %v3780 = vor.u32 %v3779, %v2282
        %v3781 = vsel %vm3655, %v3778, %v3780
        %v3782 = vrot.slane %v3779, 4
        %v3783 = vrot.slane %v2289, 7
        %v3784 = vor.u32 %v3783, %v2292
        %v3785 = vsel %vm3655, %v3782, %v3784
        %v3786 = vrot.slane %v3783, 4
        %v3787 = vrot.slane %v2299, 7
        %v3788 = vor.u32 %v3787, %v2302
        %v3789 = vsel %vm3655, %v3786, %v3788
        %v3790 = vrot.slane %v3787, 4
        %v3791 = vrot.slane %v2309, 7
        %v3792 = vor.u32 %v3791, %v2312
        %v3793 = vsel %vm3655, %v3790, %v3792
        %v3794 = vrot.slane %v3791, 4
        %v3795 = vrot.slane %v2319, 7
        %v3796 = vor.u32 %v3795, %v2322
        %v3797 = vsel %vm3655, %v3794, %v3796
        %v3798 = vrot.slane %v3795, 4
        %v3799 = vrot.slane %v2329, 7
        %v3800 = vor.u32 %v3799, %v2332
        %v3801 = vsel %vm3655, %v3798, %v3800
        %v3802 = vrot.slane %v3799, 4
        %v3803 = vrot.slane %v2339, 7
        %v3804 = vor.u32 %v3803, %v2342
        %v3805 = vsel %vm3655, %v3802, %v3804
        %v3806 = vrot.slane %v3803, 4
        %v3807 = vrot.slane %v2349, 7
        %v3808 = vor.u32 %v3807, %v2352
        %v3809 = vsel %vm3655, %v3806, %v3808
        %v3810 = vrot.slane %v3807, 4
        %v3811 = vrot.slane %v2359, 7
        %v3812 = vor.u32 %v3811, %v2362
        %v3813 = vsel %vm3655, %v3810, %v3812
        %v3814 = vrot.slane %v3811, 4
        %v3815 = vrot.slane %v2369, 7
        %v3816 = vor.u32 %v3815, %v2372
        %v3817 = vsel %vm3655, %v3814, %v3816
        %v3818 = vrot.slane %v3815, 4
        %v3819 = vrot.slane %v2379, 7
        %v3820 = vor.u32 %v3819, %v2382
        %v3821 = vsel %vm3655, %v3818, %v3820
        %v3822 = vrot.slane %v3819, 4
        %v3823 = vrot.slane %v2389, 7
        %v3824 = vor.u32 %v3823, %v2392
        %v3825 = vsel %vm3655, %v3822, %v3824
        %v3826 = vrot.slane %v3823, 4
        %v3827 = vrot.slane %v2399, 7
        %v3828 = vor.u32 %v3827, %v2402
        %v3829 = vsel %vm3655, %v3826, %v3828
        %v3830 = vrot.slane %v3827, 4
        %v3831 = vrot.slane %v2409, 7
        %v3832 = vor.u32 %v3831, %v2412
        %v3833 = vsel %vm3655, %v3830, %v3832
        %v3834 = vrot.slane %v3831, 4
        %v3835 = vrot.slane %v2419, 7
        %v3836 = vor.u32 %v3835, %v2422
        %v3837 = vsel %vm3655, %v3834, %v3836
        %v3838 = vrot.slane %v3835, 4
        %v3839 = vrot.slane %v2429, 7
        %v3840 = vor.u32 %v3839, %v2432
        %v3841 = vsel %vm3655, %v3838, %v3840
        %v3842 = vrot.slane %v3839, 4
        %v3843 = vrot.slane %v2439, 7
        %v3844 = vor.u32 %v3843, %v2442
        %v3845 = vsel %vm3655, %v3842, %v3844
        %v3846 = vrot.slane %v3843, 4
        %v3847 = vrot.slane %v2449, 7
        %v3848 = vor.u32 %v3847, %v2452
        %v3849 = vsel %vm3655, %v3846, %v3848
        %v3850 = vrot.slane %v3847, 4
        %v3851 = vrot.slane %v2459, 7
        %v3852 = vor.u32 %v3851, %v2462
        %v3853 = vsel %vm3655, %v3850, %v3852
        %v3854 = vrot.slane %v3851, 4
        %v3855 = vrot.slane %v2469, 7
        %v3856 = vor.u32 %v3855, %v2472
        %v3857 = vsel %vm3655, %v3854, %v3856
        %v3858 = vrot.slane %v3855, 4
        %v3859 = vrot.slane %v2479, 7
        %v3860 = vor.u32 %v3859, %v2482
        %v3861 = vsel %vm3655, %v3858, %v3860
        %v3862 = vrot.slane %v3859, 4
        %v3863 = vrot.slane %v2489, 7
        %v3864 = vor.u32 %v3863, %v2492
        %v3865 = vsel %vm3655, %v3862, %v3864
        %v3866 = vrot.slane %v3863, 4
        %v3867 = vrot.slane %v2499, 7
        %v3868 = vor.u32 %v3867, %v2502
        %v3869 = vsel %vm3655, %v3866, %v3868
        %v3870 = vrot.slane %v3867, 4
        %v3871 = vrot.slane %v2509, 7
        %v3872 = vor.u32 %v3871, %v2512
        %v3873 = vsel %vm3655, %v3870, %v3872
        %v3874 = vrot.slane %v3871, 4
        %v3875 = vrot.slane %v2519, 7
        %v3876 = vor.u32 %v3875, %v2522
        %v3877 = vsel %vm3655, %v3874, %v3876
        %v3878 = vrot.slane %v3875, 4
        %v3879 = vrot.slane %v2529, 7
        %v3880 = vor.u32 %v3879, %v2532
        %v3881 = vsel %vm3655, %v3878, %v3880
        %v3882 = vrot.slane %v3879, 4
        %v3883 = vrot.slane %v2539, 7
        %v3884 = vor.u32 %v3883, %v2542
        %v3885 = vsel %vm3655, %v3882, %v3884
        %v3886 = vrot.slane %v3883, 4
        %v3887 = vrot.slane %v2549, 7
        %v3888 = vor.u32 %v3887, %v2552
        %v3889 = vsel %vm3655, %v3886, %v3888
        %v3890 = vrot.slane %v3887, 4
        %v3891 = vrot.slane %v2559, 7
        %v3892 = vor.u32 %v3891, %v2562
        %v3893 = vsel %vm3655, %v3890, %v3892
        %v3894 = vrot.slane %v3891, 4
        %v3895 = vrot.slane %v2569, 7
        %v3896 = vor.u32 %v3895, %v2572
        %v3897 = vsel %vm3655, %v3894, %v3896
        %v3898 = vrot.slane %v3895, 4
        %v3899 = vrot.slane %v2579, 7
        %v3900 = vor.u32 %v3899, %v2582
        %v3901 = vsel %vm3655, %v3898, %v3900
        %v3902 = vrot.slane %v3899, 4
        %v3903 = vrot.slane %v2589, 7
        %v3904 = vor.u32 %v3903, %v2592
        %v3905 = vsel %vm3655, %v3902, %v3904
        %v3906 = vrot.slane %v3903, 4
        %v3907 = vrot.slane %v2599, 7
        %v3908 = vor.u32 %v3907, %v2602
        %v3909 = vsel %vm3655, %v3906, %v3908
        %v3910 = vrot.slane %v3907, 4
        %v3911 = vrot.slane %v2609, 7
        %v3912 = vor.u32 %v3911, %v2612
        %v3913 = vsel %vm3655, %v3910, %v3912
        %v3914 = vrot.slane %v3911, 4
        %v3915 = vrot.slane %v2619, 7
        %v3916 = vor.u32 %v3915, %v2622
        %v3917 = vsel %vm3655, %v3914, %v3916
        %v3918 = vrot.slane %v3915, 4
        %v3919 = vrot.slane %v2629, 7
        %v3920 = vor.u32 %v3919, %v2632
        %v3921 = vsel %vm3655, %v3918, %v3920
        %v3922 = vrot.slane %v3919, 4
        %v3923 = vrot.slane %v2639, 7
        %v3924 = vor.u32 %v3923, %v2642
        %v3925 = vsel %vm3655, %v3922, %v3924
        %v3926 = vrot.slane %v3923, 4
        %v3927 = vrot.slane %v2649, 7
        %v3928 = vor.u32 %v3927, %v2652
        %v3929 = vsel %vm3655, %v3926, %v3928
        %v3930 = vrot.slane %v3927, 4
        %v3931 = vrot.slane %v2659, 7
        %v3932 = vor.u32 %v3931, %v2662
        %v3933 = vsel %vm3655, %v3930, %v3932
        %v3934 = vrot.slane %v3931, 4
        %v3935 = vrot.slane %v2669, 7
        %v3936 = vor.u32 %v3935, %v2672
        %v3937 = vsel %vm3655, %v3934, %v3936
        %v3938 = vrot.slane %v3935, 4
        %v3939 = vrot.slane %v2679, 7
        %v3940 = vor.u32 %v3939, %v2682
        %v3941 = vsel %vm3655, %v3938, %v3940
        %v3942 = vrot.slane %v3939, 4
        %v3943 = vrot.slane %v2689, 7
        %v3944 = vor.u32 %v3943, %v2692
        %v3945 = vsel %vm3655, %v3942, %v3944
        %v3946 = vrot.slane %v3943, 4
        %v3947 = vrot.slane %v2699, 7
        %v3948 = vor.u32 %v3947, %v2702
        %v3949 = vsel %vm3655, %v3946, %v3948
        %v3950 = vrot.slane %v3947, 4
        %v3951 = vrot.slane %v2709, 7
        %v3952 = vor.u32 %v3951, %v2712
        %v3953 = vsel %vm3655, %v3950, %v3952
        %v3954 = vrot.slane %v3951, 4
        %v3955 = vrot.slane %v2719, 7
        %v3956 = vor.u32 %v3955, %v2722
        %v3957 = vsel %vm3655, %v3954, %v3956
        %v3958 = vrot.slane %v3955, 4
        %v3959 = vrot.slane %v2729, 7
        %v3960 = vor.u32 %v3959, %v2732
        %v3961 = vsel %vm3655, %v3958, %v3960
        %v3962 = vrot.slane %v3959, 4
        %v3963 = vrot.slane %v2739, 7
        %v3964 = vor.u32 %v3963, %v2742
        %v3965 = vsel %vm3655, %v3962, %v3964
        %v3966 = vrot.slane %v3963, 4
        %v3967 = vrot.slane %v2749, 7
        %v3968 = vor.u32 %v3967, %v2752
        %v3969 = vsel %vm3655, %v3966, %v3968
        %v3970 = vrot.slane %v3967, 4
        %v3971 = vrot.slane %v2759, 7
        %v3972 = vor.u32 %v3971, %v2762
        %v3973 = vsel %vm3655, %v3970, %v3972
        %v3974 = vrot.slane %v3971, 4
        %v3975 = vrot.slane %v2769, 7
        %v3976 = vor.u32 %v3975, %v2772
        %v3977 = vsel %vm3655, %v3974, %v3976
        %v3978 = vrot.slane %v3975, 4
        %v3979 = vrot.slane %v2779, 7
        %v3980 = vor.u32 %v3979, %v2782
        %v3981 = vsel %vm3655, %v3978, %v3980
        %v3982 = vrot.slane %v3979, 4
        %v3983 = vrot.slane %v2789, 7
        %v3984 = vor.u32 %v3983, %v2792
        %v3985 = vsel %vm3655, %v3982, %v3984
        %v3986 = vrot.slane %v3983, 4
        %v3987 = vrot.slane %v2799, 7
        %v3988 = vor.u32 %v3987, %v2802
        %v3989 = vsel %vm3655, %v3986, %v3988
        %v3990 = vrot.slane %v3987, 4
        %v3991 = vrot.slane %v2809, 7
        %v3992 = vor.u32 %v3991, %v2812
        %v3993 = vsel %vm3655, %v3990, %v3992
        %v3994 = vrot.slane %v3991, 4
        %v3995 = vrot.slane %v2819, 7
        %v3996 = vor.u32 %v3995, %v2822
        %v3997 = vsel %vm3655, %v3994, %v3996
        %v3998 = vrot.slane %v3995, 4
        %v3999 = vrot.slane %v2829, 7
        %v4000 = vor.u32 %v3999, %v2832
        %v4001 = vsel %vm3655, %v3998, %v4000
        %v4002 = vrot.slane %v3999, 4
        %v4003 = vrot.slane %v2839, 7
        %v4004 = vor.u32 %v4003, %v2842
        %v4005 = vsel %vm3655, %v4002, %v4004
        %v4006 = vrot.slane %v4003, 4
        %v4007 = vrot.slane %v2849, 7
        %v4008 = vor.u32 %v4007, %v2852
        %v4009 = vsel %vm3655, %v4006, %v4008
        %v4010 = vrot.slane %v4007, 4
        %v4011 = vrot.slane %v2859, 7
        %v4012 = vor.u32 %v4011, %v2862
        %v4013 = vsel %vm3655, %v4010, %v4012
        %v4014 = vrot.slane %v4011, 4
        %v4015 = vrot.slane %v2869, 7
        %v4016 = vor.u32 %v4015, %v2872
        %v4017 = vsel %vm3655, %v4014, %v4016
        %v4018 = vrot.slane %v4015, 4
        %v4019 = vrot.slane %v2879, 7
        %v4020 = vor.u32 %v4019, %v2882
        %v4021 = vsel %vm3655, %v4018, %v4020
        %v4022 = vrot.slane %v4019, 4
        %v4023 = vrot.slane %v2889, 7
        %v4024 = vor.u32 %v4023, %v2892
        %v4025 = vsel %vm3655, %v4022, %v4024
        %v4026 = vrot.slane %v4023, 4
        %v4027 = vrot.slane %v2899, 7
        %v4028 = vor.u32 %v4027, %v2902
        %v4029 = vsel %vm3655, %v4026, %v4028
        %v4030 = vrot.slane %v4027, 4
        %v4031 = vrot.slane %v2909, 7
        %v4032 = vor.u32 %v4031, %v2912
        %v4033 = vsel %vm3655, %v4030, %v4032
        %v4034 = vrot.slane %v4031, 4
        %v4035 = vrot.slane %v2919, 7
        %v4036 = vor.u32 %v4035, %v2922
        %v4037 = vsel %vm3655, %v4034, %v4036
        %v4038 = vrot.slane %v4035, 4
        %v4039 = vrot.slane %v2929, 7
        %v4040 = vor.u32 %v4039, %v2932
        %v4041 = vsel %vm3655, %v4038, %v4040
        %v4042 = vrot.slane %v4039, 4
        %v4043 = vrot.slane %v2939, 7
        %v4044 = vor.u32 %v4043, %v2942
        %v4045 = vsel %vm3655, %v4042, %v4044
        %v4046 = vrot.slane %v4043, 4
        %vm4146 = vcmask 519552
        %vm4147 = vsmask.f32 7938
        %vm4148 = vmand %vm4146, %vm4147
        %v4149 = vld [vmem:[#allocation2] sm:$0xf]
        %v4150 = vsel %vm4148, %v3657, %v4149
        %4151 = vst [vmem:[#allocation2] sm:$0xf] %v4150
        %vm4152 = vcmask 519552
        %4153 = vst.msk [vmem:[#allocation2 + $0x4] sm:$0xf] %vm4152, %v3661
        %4154 = vst.msk [vmem:[#allocation2 + $0x8] sm:$0xf] %vm4152, %v3665
        %4155 = vst.msk [vmem:[#allocation2 + $0xc] sm:$0xf] %vm4152, %v3669
        %4156 = vst.msk [vmem:[#allocation2 + $0x10] sm:$0xf] %vm4152, %v3673
        %4157 = vst.msk [vmem:[#allocation2 + $0x14] sm:$0xf] %vm4152, %v3677
        %4158 = vst.msk [vmem:[#allocation2 + $0x18] sm:$0xf] %vm4152, %v3681
        %4159 = vst.msk [vmem:[#allocation2 + $0x1c] sm:$0xf] %vm4152, %v3685
        %4160 = vst.msk [vmem:[#allocation2 + $0x20] sm:$0xf] %vm4152, %v3689
        %4161 = vst.msk [vmem:[#allocation2 + $0x24] sm:$0xf] %vm4152, %v3693
        %4162 = vst.msk [vmem:[#allocation2 + $0x28] sm:$0xf] %vm4152, %v3697
        %4163 = vst.msk [vmem:[#allocation2 + $0x2c] sm:$0xf] %vm4152, %v3701
        %4164 = vst.msk [vmem:[#allocation2 + $0x30] sm:$0xf] %vm4152, %v3705
        %4165 = vst.msk [vmem:[#allocation2 + $0x34] sm:$0xf] %vm4152, %v3709
        %4166 = vst.msk [vmem:[#allocation2 + $0x38] sm:$0xf] %vm4152, %v3713
        %4167 = vst.msk [vmem:[#allocation2 + $0x3c] sm:$0xf] %vm4152, %v3717
        %4168 = vst.msk [vmem:[#allocation2 + $0x40] sm:$0xf] %vm4152, %v3721
        %4169 = vst.msk [vmem:[#allocation2 + $0x44] sm:$0xf] %vm4152, %v3725
        %4170 = vst.msk [vmem:[#allocation2 + $0x48] sm:$0xf] %vm4152, %v3729
        %4171 = vst.msk [vmem:[#allocation2 + $0x4c] sm:$0xf] %vm4152, %v3733
        %4172 = vst.msk [vmem:[#allocation2 + $0x50] sm:$0xf] %vm4152, %v3737
        %4173 = vst.msk [vmem:[#allocation2 + $0x54] sm:$0xf] %vm4152, %v3741
        %4174 = vst.msk [vmem:[#allocation2 + $0x58] sm:$0xf] %vm4152, %v3745
        %4175 = vst.msk [vmem:[#allocation2 + $0x5c] sm:$0xf] %vm4152, %v3749
        %4176 = vst.msk [vmem:[#allocation2 + $0x60] sm:$0xf] %vm4152, %v3753
        %4177 = vst.msk [vmem:[#allocation2 + $0x64] sm:$0xf] %vm4152, %v3757
        %4178 = vst.msk [vmem:[#allocation2 + $0x68] sm:$0xf] %vm4152, %v3761
        %4179 = vst.msk [vmem:[#allocation2 + $0x6c] sm:$0xf] %vm4152, %v3765
        %4180 = vst.msk [vmem:[#allocation2 + $0x70] sm:$0xf] %vm4152, %v3769
        %4181 = vst.msk [vmem:[#allocation2 + $0x74] sm:$0xf] %vm4152, %v3773
        %4182 = vst.msk [vmem:[#allocation2 + $0x78] sm:$0xf] %vm4152, %v3777
        %4183 = vst.msk [vmem:[#allocation2 + $0x7c] sm:$0xf] %vm4152, %v3781
        %4184 = vst.msk [vmem:[#allocation2 + $0x80] sm:$0xf] %vm4152, %v3785
        %4185 = vst.msk [vmem:[#allocation2 + $0x84] sm:$0xf] %vm4152, %v3789
        %4186 = vst.msk [vmem:[#allocation2 + $0x88] sm:$0xf] %vm4152, %v3793
        %4187 = vst.msk [vmem:[#allocation2 + $0x8c] sm:$0xf] %vm4152, %v3797
        %4188 = vst.msk [vmem:[#allocation2 + $0x90] sm:$0xf] %vm4152, %v3801
        %4189 = vst.msk [vmem:[#allocation2 + $0x94] sm:$0xf] %vm4152, %v3805
        %4190 = vst.msk [vmem:[#allocation2 + $0x98] sm:$0xf] %vm4152, %v3809
        %4191 = vst.msk [vmem:[#allocation2 + $0x9c] sm:$0xf] %vm4152, %v3813
        %4192 = vst.msk [vmem:[#allocation2 + $0xa0] sm:$0xf] %vm4152, %v3817
        %4193 = vst.msk [vmem:[#allocation2 + $0xa4] sm:$0xf] %vm4152, %v3821
        %4194 = vst.msk [vmem:[#allocation2 + $0xa8] sm:$0xf] %vm4152, %v3825
        %4195 = vst.msk [vmem:[#allocation2 + $0xac] sm:$0xf] %vm4152, %v3829
        %4196 = vst.msk [vmem:[#allocation2 + $0xb0] sm:$0xf] %vm4152, %v3833
        %4197 = vst.msk [vmem:[#allocation2 + $0xb4] sm:$0xf] %vm4152, %v3837
        %4198 = vst.msk [vmem:[#allocation2 + $0xb8] sm:$0xf] %vm4152, %v3841
        %4199 = vst.msk [vmem:[#allocation2 + $0xbc] sm:$0xf] %vm4152, %v3845
        %4200 = vst.msk [vmem:[#allocation2 + $0xc0] sm:$0xf] %vm4152, %v3849
        %4201 = vst.msk [vmem:[#allocation2 + $0xc4] sm:$0xf] %vm4152, %v3853
        %4202 = vst.msk [vmem:[#allocation2 + $0xc8] sm:$0xf] %vm4152, %v3857
        %4203 = vst.msk [vmem:[#allocation2 + $0xcc] sm:$0xf] %vm4152, %v3861
        %4204 = vst.msk [vmem:[#allocation2 + $0xd0] sm:$0xf] %vm4152, %v3865
        %4205 = vst.msk [vmem:[#allocation2 + $0xd4] sm:$0xf] %vm4152, %v3869
        %4206 = vst.msk [vmem:[#allocation2 + $0xd8] sm:$0xf] %vm4152, %v3873
        %4207 = vst.msk [vmem:[#allocation2 + $0xdc] sm:$0xf] %vm4152, %v3877
        %4208 = vst.msk [vmem:[#allocation2 + $0xe0] sm:$0xf] %vm4152, %v3881
        %4209 = vst.msk [vmem:[#allocation2 + $0xe4] sm:$0xf] %vm4152, %v3885
        %4210 = vst.msk [vmem:[#allocation2 + $0xe8] sm:$0xf] %vm4152, %v3889
        %4211 = vst.msk [vmem:[#allocation2 + $0xec] sm:$0xf] %vm4152, %v3893
        %4212 = vst.msk [vmem:[#allocation2 + $0xf0] sm:$0xf] %vm4152, %v3897
        %4213 = vst.msk [vmem:[#allocation2 + $0xf4] sm:$0xf] %vm4152, %v3901
        %4214 = vst.msk [vmem:[#allocation2 + $0xf8] sm:$0xf] %vm4152, %v3905
        %4215 = vst.msk [vmem:[#allocation2 + $0xfc] sm:$0xf] %vm4152, %v3909
        %4216 = vst.msk [vmem:[#allocation2 + $0x100] sm:$0xf] %vm4152, %v3913
        %4217 = vst.msk [vmem:[#allocation2 + $0x104] sm:$0xf] %vm4152, %v3917
        %4218 = vst.msk [vmem:[#allocation2 + $0x108] sm:$0xf] %vm4152, %v3921
        %4219 = vst.msk [vmem:[#allocation2 + $0x10c] sm:$0xf] %vm4152, %v3925
        %4220 = vst.msk [vmem:[#allocation2 + $0x110] sm:$0xf] %vm4152, %v3929
        %4221 = vst.msk [vmem:[#allocation2 + $0x114] sm:$0xf] %vm4152, %v3933
        %4222 = vst.msk [vmem:[#allocation2 + $0x118] sm:$0xf] %vm4152, %v3937
        %4223 = vst.msk [vmem:[#allocation2 + $0x11c] sm:$0xf] %vm4152, %v3941
        %4224 = vst.msk [vmem:[#allocation2 + $0x120] sm:$0xf] %vm4152, %v3945
        %4225 = vst.msk [vmem:[#allocation2 + $0x124] sm:$0xf] %vm4152, %v3949
        %4226 = vst.msk [vmem:[#allocation2 + $0x128] sm:$0xf] %vm4152, %v3953
        %4227 = vst.msk [vmem:[#allocation2 + $0x12c] sm:$0xf] %vm4152, %v3957
        %4228 = vst.msk [vmem:[#allocation2 + $0x130] sm:$0xf] %vm4152, %v3961
        %4229 = vst.msk [vmem:[#allocation2 + $0x134] sm:$0xf] %vm4152, %v3965
        %4230 = vst.msk [vmem:[#allocation2 + $0x138] sm:$0xf] %vm4152, %v3969
        %4231 = vst.msk [vmem:[#allocation2 + $0x13c] sm:$0xf] %vm4152, %v3973
        %4232 = vst.msk [vmem:[#allocation2 + $0x140] sm:$0xf] %vm4152, %v3977
        %4233 = vst.msk [vmem:[#allocation2 + $0x144] sm:$0xf] %vm4152, %v3981
        %4234 = vst.msk [vmem:[#allocation2 + $0x148] sm:$0xf] %vm4152, %v3985
        %4235 = vst.msk [vmem:[#allocation2 + $0x14c] sm:$0xf] %vm4152, %v3989
        %4236 = vst.msk [vmem:[#allocation2 + $0x150] sm:$0xf] %vm4152, %v3993
        %4237 = vst.msk [vmem:[#allocation2 + $0x154] sm:$0xf] %vm4152, %v3997
        %4238 = vst.msk [vmem:[#allocation2 + $0x158] sm:$0xf] %vm4152, %v4001
        %4239 = vst.msk [vmem:[#allocation2 + $0x15c] sm:$0xf] %vm4152, %v4005
        %4240 = vst.msk [vmem:[#allocation2 + $0x160] sm:$0xf] %vm4152, %v4009
        %4241 = vst.msk [vmem:[#allocation2 + $0x164] sm:$0xf] %vm4152, %v4013
        %4242 = vst.msk [vmem:[#allocation2 + $0x168] sm:$0xf] %vm4152, %v4017
        %4243 = vst.msk [vmem:[#allocation2 + $0x16c] sm:$0xf] %vm4152, %v4021
        %4244 = vst.msk [vmem:[#allocation2 + $0x170] sm:$0xf] %vm4152, %v4025
        %4245 = vst.msk [vmem:[#allocation2 + $0x174] sm:$0xf] %vm4152, %v4029
        %4246 = vst.msk [vmem:[#allocation2 + $0x178] sm:$0xf] %vm4152, %v4033
        %4247 = vst.msk [vmem:[#allocation2 + $0x17c] sm:$0xf] %vm4152, %v4037
        %4248 = vst.msk [vmem:[#allocation2 + $0x180] sm:$0xf] %vm4152, %v4041
        %4249 = vst.msk [vmem:[#allocation2 + $0x184] sm:$0xf] %vm4152, %v4045
        %vm4250 = vcmask 516480
        %vm4251 = vmand %vm4250, %vm3653
        %v4252 = vld [vmem:[#allocation2 + $0x188] sm:$0x1]
        %v4253 = vsel %vm4251, %v4046, %v4252
        %4254 = vst [vmem:[#allocation2 + $0x188] sm:$0x1] %v4253
        %vm4255 = vcmask 650752
        %4256 = vst.msk [vmem:[#allocation2] sm:$0xf] %vm4255, %v1273
        %4257 = vst.msk [vmem:[#allocation2 + $0x4] sm:$0xf] %vm4255, %v1274
        %4258 = vst.msk [vmem:[#allocation2 + $0x8] sm:$0xf] %vm4255, %v1275
        %4259 = vst.msk [vmem:[#allocation2 + $0xc] sm:$0xf] %vm4255, %v1276
        %4260 = vst.msk [vmem:[#allocation2 + $0x10] sm:$0xf] %vm4255, %v1277
        %4261 = vst.msk [vmem:[#allocation2 + $0x14] sm:$0xf] %vm4255, %v1278
        %4262 = vst.msk [vmem:[#allocation2 + $0x18] sm:$0xf] %vm4255, %v1279
        %4263 = vst.msk [vmem:[#allocation2 + $0x1c] sm:$0xf] %vm4255, %v1280
        %4264 = vst.msk [vmem:[#allocation2 + $0x20] sm:$0xf] %vm4255, %v1281
        %4265 = vst.msk [vmem:[#allocation2 + $0x24] sm:$0xf] %vm4255, %v1282
        %4266 = vst.msk [vmem:[#allocation2 + $0x28] sm:$0xf] %vm4255, %v1283
        %4267 = vst.msk [vmem:[#allocation2 + $0x2c] sm:$0xf] %vm4255, %v1284
        %4268 = vst.msk [vmem:[#allocation2 + $0x30] sm:$0xf] %vm4255, %v1285
        %4269 = vst.msk [vmem:[#allocation2 + $0x34] sm:$0xf] %vm4255, %v1286
        %4270 = vst.msk [vmem:[#allocation2 + $0x38] sm:$0xf] %vm4255, %v1287
        %4271 = vst.msk [vmem:[#allocation2 + $0x3c] sm:$0xf] %vm4255, %v1288
        %4272 = vst.msk [vmem:[#allocation2 + $0x40] sm:$0xf] %vm4255, %v1289
        %4273 = vst.msk [vmem:[#allocation2 + $0x44] sm:$0xf] %vm4255, %v1290
        %4274 = vst.msk [vmem:[#allocation2 + $0x48] sm:$0xf] %vm4255, %v1291
        %4275 = vst.msk [vmem:[#allocation2 + $0x4c] sm:$0xf] %vm4255, %v1292
        %4276 = vst.msk [vmem:[#allocation2 + $0x50] sm:$0xf] %vm4255, %v1293
        %4277 = vst.msk [vmem:[#allocation2 + $0x54] sm:$0xf] %vm4255, %v1294
        %4278 = vst.msk [vmem:[#allocation2 + $0x58] sm:$0xf] %vm4255, %v1295
        %4279 = vst.msk [vmem:[#allocation2 + $0x5c] sm:$0xf] %vm4255, %v1296
        %4280 = vst.msk [vmem:[#allocation2 + $0x60] sm:$0xf] %vm4255, %v1297
        %4281 = vst.msk [vmem:[#allocation2 + $0x64] sm:$0xf] %vm4255, %v1298
        %4282 = vst.msk [vmem:[#allocation2 + $0x68] sm:$0xf] %vm4255, %v1299
        %4283 = vst.msk [vmem:[#allocation2 + $0x6c] sm:$0xf] %vm4255, %v1300
        %4284 = vst.msk [vmem:[#allocation2 + $0x70] sm:$0xf] %vm4255, %v1301
        %4285 = vst.msk [vmem:[#allocation2 + $0x74] sm:$0xf] %vm4255, %v1302
        %4286 = vst.msk [vmem:[#allocation2 + $0x78] sm:$0xf] %vm4255, %v1303
        %4287 = vst.msk [vmem:[#allocation2 + $0x7c] sm:$0xf] %vm4255, %v1304
        %4288 = vst.msk [vmem:[#allocation2 + $0x80] sm:$0xf] %vm4255, %v1305
        %4289 = vst.msk [vmem:[#allocation2 + $0x84] sm:$0xf] %vm4255, %v1306
        %4290 = vst.msk [vmem:[#allocation2 + $0x88] sm:$0xf] %vm4255, %v1307
        %4291 = vst.msk [vmem:[#allocation2 + $0x8c] sm:$0xf] %vm4255, %v1308
        %4292 = vst.msk [vmem:[#allocation2 + $0x90] sm:$0xf] %vm4255, %v1309
        %4293 = vst.msk [vmem:[#allocation2 + $0x94] sm:$0xf] %vm4255, %v1310
        %4294 = vst.msk [vmem:[#allocation2 + $0x98] sm:$0xf] %vm4255, %v1311
        %4295 = vst.msk [vmem:[#allocation2 + $0x9c] sm:$0xf] %vm4255, %v1312
        %4296 = vst.msk [vmem:[#allocation2 + $0xa0] sm:$0xf] %vm4255, %v1313
        %4297 = vst.msk [vmem:[#allocation2 + $0xa4] sm:$0xf] %vm4255, %v1314
        %4298 = vst.msk [vmem:[#allocation2 + $0xa8] sm:$0xf] %vm4255, %v1315
        %4299 = vst.msk [vmem:[#allocation2 + $0xac] sm:$0xf] %vm4255, %v1316
        %4300 = vst.msk [vmem:[#allocation2 + $0xb0] sm:$0xf] %vm4255, %v1317
        %4301 = vst.msk [vmem:[#allocation2 + $0xb4] sm:$0xf] %vm4255, %v1318
        %4302 = vst.msk [vmem:[#allocation2 + $0xb8] sm:$0xf] %vm4255, %v1319
        %4303 = vst.msk [vmem:[#allocation2 + $0xbc] sm:$0xf] %vm4255, %v1320
        %4304 = vst.msk [vmem:[#allocation2 + $0xc0] sm:$0xf] %vm4255, %v1321
        %4305 = vst.msk [vmem:[#allocation2 + $0xc4] sm:$0xf] %vm4255, %v1322
        %4306 = vst.msk [vmem:[#allocation2 + $0xc8] sm:$0xf] %vm4255, %v1323
        %4307 = vst.msk [vmem:[#allocation2 + $0xcc] sm:$0xf] %vm4255, %v1324
        %4308 = vst.msk [vmem:[#allocation2 + $0xd0] sm:$0xf] %vm4255, %v1325
        %4309 = vst.msk [vmem:[#allocation2 + $0xd4] sm:$0xf] %vm4255, %v1326
        %4310 = vst.msk [vmem:[#allocation2 + $0xd8] sm:$0xf] %vm4255, %v1327
        %4311 = vst.msk [vmem:[#allocation2 + $0xdc] sm:$0xf] %vm4255, %v1328
        %4312 = vst.msk [vmem:[#allocation2 + $0xe0] sm:$0xf] %vm4255, %v1329
        %4313 = vst.msk [vmem:[#allocation2 + $0xe4] sm:$0xf] %vm4255, %v1330
        %4314 = vst.msk [vmem:[#allocation2 + $0xe8] sm:$0xf] %vm4255, %v1331
        %4315 = vst.msk [vmem:[#allocation2 + $0xec] sm:$0xf] %vm4255, %v1332
        %4316 = vst.msk [vmem:[#allocation2 + $0xf0] sm:$0xf] %vm4255, %v1333
        %4317 = vst.msk [vmem:[#allocation2 + $0xf4] sm:$0xf] %vm4255, %v1334
        %4318 = vst.msk [vmem:[#allocation2 + $0xf8] sm:$0xf] %vm4255, %v1335
        %4319 = vst.msk [vmem:[#allocation2 + $0xfc] sm:$0xf] %vm4255, %v1336
        %4320 = vst.msk [vmem:[#allocation2 + $0x100] sm:$0xf] %vm4255, %v1337
        %4321 = vst.msk [vmem:[#allocation2 + $0x104] sm:$0xf] %vm4255, %v1338
        %4322 = vst.msk [vmem:[#allocation2 + $0x108] sm:$0xf] %vm4255, %v1339
        %4323 = vst.msk [vmem:[#allocation2 + $0x10c] sm:$0xf] %vm4255, %v1340
        %4324 = vst.msk [vmem:[#allocation2 + $0x110] sm:$0xf] %vm4255, %v1341
        %4325 = vst.msk [vmem:[#allocation2 + $0x114] sm:$0xf] %vm4255, %v1342
        %4326 = vst.msk [vmem:[#allocation2 + $0x118] sm:$0xf] %vm4255, %v1343
        %4327 = vst.msk [vmem:[#allocation2 + $0x11c] sm:$0xf] %vm4255, %v1344
        %4328 = vst.msk [vmem:[#allocation2 + $0x120] sm:$0xf] %vm4255, %v1345
        %4329 = vst.msk [vmem:[#allocation2 + $0x124] sm:$0xf] %vm4255, %v1346
        %4330 = vst.msk [vmem:[#allocation2 + $0x128] sm:$0xf] %vm4255, %v1347
        %4331 = vst.msk [vmem:[#allocation2 + $0x12c] sm:$0xf] %vm4255, %v1348
        %4332 = vst.msk [vmem:[#allocation2 + $0x130] sm:$0xf] %vm4255, %v1349
        %4333 = vst.msk [vmem:[#allocation2 + $0x134] sm:$0xf] %vm4255, %v1350
        %4334 = vst.msk [vmem:[#allocation2 + $0x138] sm:$0xf] %vm4255, %v1351
        %4335 = vst.msk [vmem:[#allocation2 + $0x13c] sm:$0xf] %vm4255, %v1352
        %4336 = vst.msk [vmem:[#allocation2 + $0x140] sm:$0xf] %vm4255, %v1353
        %4337 = vst.msk [vmem:[#allocation2 + $0x144] sm:$0xf] %vm4255, %v1354
        %4338 = vst.msk [vmem:[#allocation2 + $0x148] sm:$0xf] %vm4255, %v1355
        %4339 = vst.msk [vmem:[#allocation2 + $0x14c] sm:$0xf] %vm4255, %v1356
        %4340 = vst.msk [vmem:[#allocation2 + $0x150] sm:$0xf] %vm4255, %v1357
        %4341 = vst.msk [vmem:[#allocation2 + $0x154] sm:$0xf] %vm4255, %v1358
        %4342 = vst.msk [vmem:[#allocation2 + $0x158] sm:$0xf] %vm4255, %v1359
        %4343 = vst.msk [vmem:[#allocation2 + $0x15c] sm:$0xf] %vm4255, %v1360
        %4344 = vst.msk [vmem:[#allocation2 + $0x160] sm:$0xf] %vm4255, %v1361
        %4345 = vst.msk [vmem:[#allocation2 + $0x164] sm:$0xf] %vm4255, %v1362
        %4346 = vst.msk [vmem:[#allocation2 + $0x168] sm:$0xf] %vm4255, %v1363
        %4347 = vst.msk [vmem:[#allocation2 + $0x16c] sm:$0xf] %vm4255, %v1364
        %4348 = vst.msk [vmem:[#allocation2 + $0x170] sm:$0xf] %vm4255, %v1365
        %4349 = vst.msk [vmem:[#allocation2 + $0x174] sm:$0xf] %vm4255, %v1366
        %4350 = vst.msk [vmem:[#allocation2 + $0x178] sm:$0xf] %vm4255, %v1367
        %4351 = vst.msk [vmem:[#allocation2 + $0x17c] sm:$0xf] %vm4255, %v1368
        %4352 = vst.msk [vmem:[#allocation2 + $0x180] sm:$0xf] %vm4255, %v1369
        %4353 = vst.msk [vmem:[#allocation2 + $0x184] sm:$0xf] %vm4255, %v1370
        %v4354 = vld [vmem:[#allocation2] sm:$0xc]
        %v4355 = vld [vmem:[#allocation2 + $0x4] sm:$0xf]
        %v4356 = vld [vmem:[#allocation2 + $0x8] sm:$0xf]
        %v4357 = vld [vmem:[#allocation2 + $0xc] sm:$0xf]
        %v4358 = vld [vmem:[#allocation2 + $0x10] sm:$0xf]
        %v4359 = vld [vmem:[#allocation2 + $0x14] sm:$0xf]
        %v4360 = vld [vmem:[#allocation2 + $0x18] sm:$0xf]
        %v4361 = vld [vmem:[#allocation2 + $0x1c] sm:$0xf]
        %v4362 = vld [vmem:[#allocation2 + $0x20] sm:$0xf]
        %v4363 = vld [vmem:[#allocation2 + $0x24] sm:$0xf]
        %v4364 = vld [vmem:[#allocation2 + $0x28] sm:$0xf]
        %v4365 = vld [vmem:[#allocation2 + $0x2c] sm:$0xf]
        %v4366 = vld [vmem:[#allocation2 + $0x30] sm:$0xf]
        %v4367 = vld [vmem:[#allocation2 + $0x34] sm:$0xf]
        %v4368 = vld [vmem:[#allocation2 + $0x38] sm:$0xf]
        %v4369 = vld [vmem:[#allocation2 + $0x3c] sm:$0xf]
        %v4370 = vld [vmem:[#allocation2 + $0x40] sm:$0xf]
        %v4371 = vld [vmem:[#allocation2 + $0x44] sm:$0xf]
        %v4372 = vld [vmem:[#allocation2 + $0x48] sm:$0xf]
        %v4373 = vld [vmem:[#allocation2 + $0x4c] sm:$0xf]
        %v4374 = vld [vmem:[#allocation2 + $0x50] sm:$0xf]
        %v4375 = vld [vmem:[#allocation2 + $0x54] sm:$0xf]
        %v4376 = vld [vmem:[#allocation2 + $0x58] sm:$0xf]
        %v4377 = vld [vmem:[#allocation2 + $0x5c] sm:$0xf]
        %v4378 = vld [vmem:[#allocation2 + $0x60] sm:$0xf]
        %v4379 = vld [vmem:[#allocation2 + $0x64] sm:$0xf]
        %v4380 = vld [vmem:[#allocation2 + $0x68] sm:$0xf]
        %v4381 = vld [vmem:[#allocation2 + $0x6c] sm:$0xf]
        %v4382 = vld [vmem:[#allocation2 + $0x70] sm:$0xf]
        %v4383 = vld [vmem:[#allocation2 + $0x74] sm:$0xf]
        %v4384 = vld [vmem:[#allocation2 + $0x78] sm:$0xf]
        %v4385 = vld [vmem:[#allocation2 + $0x7c] sm:$0xf]
        %v4386 = vld [vmem:[#allocation2 + $0x80] sm:$0xf]
        %v4387 = vld [vmem:[#allocation2 + $0x84] sm:$0xf]
        %v4388 = vld [vmem:[#allocation2 + $0x88] sm:$0xf]
        %v4389 = vld [vmem:[#allocation2 + $0x8c] sm:$0xf]
        %v4390 = vld [vmem:[#allocation2 + $0x90] sm:$0xf]
        %v4391 = vld [vmem:[#allocation2 + $0x94] sm:$0xf]
        %v4392 = vld [vmem:[#allocation2 + $0x98] sm:$0xf]
        %v4393 = vld [vmem:[#allocation2 + $0x9c] sm:$0xf]
        %v4394 = vld [vmem:[#allocation2 + $0xa0] sm:$0xf]
        %v4395 = vld [vmem:[#allocation2 + $0xa4] sm:$0xf]
        %v4396 = vld [vmem:[#allocation2 + $0xa8] sm:$0xf]
        %v4397 = vld [vmem:[#allocation2 + $0xac] sm:$0xf]
        %v4398 = vld [vmem:[#allocation2 + $0xb0] sm:$0xf]
        %v4399 = vld [vmem:[#allocation2 + $0xb4] sm:$0xf]
        %v4400 = vld [vmem:[#allocation2 + $0xb8] sm:$0xf]
        %v4401 = vld [vmem:[#allocation2 + $0xbc] sm:$0xf]
        %v4402 = vld [vmem:[#allocation2 + $0xc0] sm:$0xf]
        %v4403 = vld [vmem:[#allocation2 + $0xc4] sm:$0xf]
        %v4404 = vld [vmem:[#allocation2 + $0xc8] sm:$0xf]
        %v4405 = vld [vmem:[#allocation2 + $0xcc] sm:$0xf]
        %v4406 = vld [vmem:[#allocation2 + $0xd0] sm:$0xf]
        %v4407 = vld [vmem:[#allocation2 + $0xd4] sm:$0xf]
        %v4408 = vld [vmem:[#allocation2 + $0xd8] sm:$0xf]
        %v4409 = vld [vmem:[#allocation2 + $0xdc] sm:$0xf]
        %v4410 = vld [vmem:[#allocation2 + $0xe0] sm:$0xf]
        %v4411 = vld [vmem:[#allocation2 + $0xe4] sm:$0xf]
        %v4412 = vld [vmem:[#allocation2 + $0xe8] sm:$0xf]
        %v4413 = vld [vmem:[#allocation2 + $0xec] sm:$0xf]
        %v4414 = vld [vmem:[#allocation2 + $0xf0] sm:$0xf]
        %v4415 = vld [vmem:[#allocation2 + $0xf4] sm:$0xf]
        %v4416 = vld [vmem:[#allocation2 + $0xf8] sm:$0xf]
        %v4417 = vld [vmem:[#allocation2 + $0xfc] sm:$0xf]
        %v4418 = vld [vmem:[#allocation2 + $0x100] sm:$0xf]
        %v4419 = vld [vmem:[#allocation2 + $0x104] sm:$0xf]
        %v4420 = vld [vmem:[#allocation2 + $0x108] sm:$0xf]
        %v4421 = vld [vmem:[#allocation2 + $0x10c] sm:$0xf]
        %v4422 = vld [vmem:[#allocation2 + $0x110] sm:$0xf]
        %v4423 = vld [vmem:[#allocation2 + $0x114] sm:$0xf]
        %v4424 = vld [vmem:[#allocation2 + $0x118] sm:$0xf]
        %v4425 = vld [vmem:[#allocation2 + $0x11c] sm:$0xf]
        %v4426 = vld [vmem:[#allocation2 + $0x120] sm:$0xf]
        %v4427 = vld [vmem:[#allocation2 + $0x124] sm:$0xf]
        %v4428 = vld [vmem:[#allocation2 + $0x128] sm:$0xf]
        %v4429 = vld [vmem:[#allocation2 + $0x12c] sm:$0xf]
        %v4430 = vld [vmem:[#allocation2 + $0x130] sm:$0xf]
        %v4431 = vld [vmem:[#allocation2 + $0x134] sm:$0xf]
        %v4432 = vld [vmem:[#allocation2 + $0x138] sm:$0xf]
        %v4433 = vld [vmem:[#allocation2 + $0x13c] sm:$0xf]
        %v4434 = vld [vmem:[#allocation2 + $0x140] sm:$0xf]
        %v4435 = vld [vmem:[#allocation2 + $0x144] sm:$0xf]
        %v4436 = vld [vmem:[#allocation2 + $0x148] sm:$0xf]
        %v4437 = vld [vmem:[#allocation2 + $0x14c] sm:$0xf]
        %v4438 = vld [vmem:[#allocation2 + $0x150] sm:$0xf]
        %v4439 = vld [vmem:[#allocation2 + $0x154] sm:$0xf]
        %v4440 = vld [vmem:[#allocation2 + $0x158] sm:$0xf]
        %v4441 = vld [vmem:[#allocation2 + $0x15c] sm:$0xf]
        %v4442 = vld [vmem:[#allocation2 + $0x160] sm:$0xf]
        %v4443 = vld [vmem:[#allocation2 + $0x164] sm:$0xf]
        %v4444 = vld [vmem:[#allocation2 + $0x168] sm:$0xf]
        %v4445 = vld [vmem:[#allocation2 + $0x16c] sm:$0xf]
        %v4446 = vld [vmem:[#allocation2 + $0x170] sm:$0xf]
        %v4447 = vld [vmem:[#allocation2 + $0x174] sm:$0xf]
        %v4448 = vld [vmem:[#allocation2 + $0x178] sm:$0xf]
        %v4449 = vld [vmem:[#allocation2 + $0x17c] sm:$0xf]
        %v4450 = vld [vmem:[#allocation2 + $0x180] sm:$0xf]
        %v4451 = vld [vmem:[#allocation2 + $0x184] sm:$0xf]
        %v4452 = vld [vmem:[#allocation2 + $0x188] sm:$0x3]
        %v4453 = vld [vmem:[%s3] sm:$0xf]
        %v4454 = vld [vmem:[%s3 + $0x4] sm:$0xf]
        %v4455 = vld [vmem:[%s3 + $0x8] sm:$0xf]
        %v4456 = vld [vmem:[%s3 + $0xc] sm:$0xf]
        %v4457 = vld [vmem:[%s3 + $0x10] sm:$0xf]
        %v4458 = vld [vmem:[%s3 + $0x14] sm:$0xf]
        %v4459 = vld [vmem:[%s3 + $0x18] sm:$0xf]
        %v4460 = vld [vmem:[%s3 + $0x1c] sm:$0xf]
        %v4461 = vld [vmem:[%s3 + $0x20] sm:$0xf]
        %v4462 = vld [vmem:[%s3 + $0x24] sm:$0xf]
        %v4463 = vld [vmem:[#allocation2 + $0x188] sm:$0xf]
        %v4464 = vld [vmem:[#allocation2 + $0x18c] sm:$0xf]
        %v4465 = vld [vmem:[#allocation2 + $0x190] sm:$0xf]
        %v4466 = vld [vmem:[#allocation2 + $0x194] sm:$0xf]
        %s4467 = scalar_lea.vmem %s3, 40
        %v4468 = vld [vmem:[%s4467] sm:$0xf]
        %v4469 = vld [vmem:[%s4467 + $0x4] sm:$0xf]
        %v4470 = vld [vmem:[%s4467 + $0x8] sm:$0xf]
        %v4471 = vld [vmem:[%s4467 + $0xc] sm:$0xf]
        %v4472 = vld [vmem:[%s4467 + $0x10] sm:$0xf]
        %v4473 = vld [vmem:[%s4467 + $0x14] sm:$0xf]
        %v4474 = vld [vmem:[%s4467 + $0x18] sm:$0xf]
        %v4475 = vld [vmem:[%s4467 + $0x1c] sm:$0xf]
        %v4476 = vld [vmem:[%s4467 + $0x20] sm:$0xf]
        %v4477 = vld [vmem:[%s4467 + $0x24] sm:$0xf]
        %v4576 = vunpack.c.l.b16 %v4358
        %v4577 = vunpack.c.l.b16 %v4359
        %v4578 = vunpack.c.l.b16 %v4360
        %v4579 = vunpack.c.l.b16 %v4361
        %v4580 = vunpack.c.l.b16 %v4362
        %v4581 = vunpack.c.l.b16 %v4363
        %v4582 = vunpack.c.l.b16 %v4364
        %v4583 = vunpack.c.l.b16 %v4365
        %v4584 = vunpack.c.l.b16 %v4366
        %v4585 = vunpack.c.l.b16 %v4367
        %v4586 = vunpack.c.l.b16 %v4368
        %v4587 = vunpack.c.l.b16 %v4369
        %v4588 = vunpack.c.l.b16 %v4370
        %v4589 = vunpack.c.l.b16 %v4371
        %v4590 = vunpack.c.l.b16 %v4372
        %v4591 = vunpack.c.l.b16 %v4373
        %v4592 = vunpack.c.l.b16 %v4374
        %v4593 = vunpack.c.l.b16 %v4375
        %v4594 = vunpack.c.l.b16 %v4376
        %v4595 = vunpack.c.l.b16 %v4377
        %v4596 = vunpack.c.l.b16 %v4378
        %v4597 = vunpack.c.l.b16 %v4379
        %v4598 = vunpack.c.l.b16 %v4380
        %v4599 = vunpack.c.l.b16 %v4381
        %v4600 = vunpack.c.l.b16 %v4382
        %v4601 = vunpack.c.l.b16 %v4383
        %v4602 = vunpack.c.l.b16 %v4384
        %v4603 = vunpack.c.l.b16 %v4385
        %v4604 = vunpack.c.l.b16 %v4386
        %v4605 = vunpack.c.l.b16 %v4387
        %v4606 = vunpack.c.l.b16 %v4388
        %v4607 = vunpack.c.l.b16 %v4389
        %v4608 = vunpack.c.l.b16 %v4390
        %v4609 = vunpack.c.l.b16 %v4391
        %v4610 = vunpack.c.l.b16 %v4392
        %v4611 = vunpack.c.l.b16 %v4393
        %v4612 = vunpack.c.l.b16 %v4394
        %v4613 = vunpack.c.l.b16 %v4395
        %v4614 = vunpack.c.l.b16 %v4396
        %v4615 = vunpack.c.l.b16 %v4397
        %v4616 = vunpack.c.l.b16 %v4398
        %v4617 = vunpack.c.l.b16 %v4399
        %v4618 = vunpack.c.l.b16 %v4400
        %v4619 = vunpack.c.l.b16 %v4401
        %v4620 = vunpack.c.l.b16 %v4402
        %v4621 = vunpack.c.l.b16 %v4403
        %v4622 = vunpack.c.l.b16 %v4404
        %v4623 = vunpack.c.l.b16 %v4405
        %v4624 = vunpack.c.l.b16 %v4406
        %v4625 = vunpack.c.l.b16 %v4407
        %v4626 = vunpack.c.l.b16 %v4408
        %v4627 = vunpack.c.l.b16 %v4409
        %v4628 = vunpack.c.l.b16 %v4410
        %v4629 = vunpack.c.l.b16 %v4411
        %v4630 = vunpack.c.l.b16 %v4412
        %v4631 = vunpack.c.l.b16 %v4413
        %v4632 = vunpack.c.l.b16 %v4414
        %v4633 = vunpack.c.l.b16 %v4415
        %v4634 = vunpack.c.l.b16 %v4416
        %v4635 = vunpack.c.l.b16 %v4417
        %v4636 = vunpack.c.l.b16 %v4418
        %v4637 = vunpack.c.l.b16 %v4419
        %v4638 = vunpack.c.l.b16 %v4420
        %v4639 = vunpack.c.l.b16 %v4421
        %v4640 = vunpack.c.l.b16 %v4422
        %v4641 = vunpack.c.l.b16 %v4423
        %v4642 = vunpack.c.l.b16 %v4424
        %v4643 = vunpack.c.l.b16 %v4425
        %v4644 = vunpack.c.l.b16 %v4426
        %v4645 = vunpack.c.l.b16 %v4427
        %v4646 = vunpack.c.l.b16 %v4428
        %v4647 = vunpack.c.l.b16 %v4429
        %v4648 = vunpack.c.l.b16 %v4430
        %v4649 = vunpack.c.l.b16 %v4431
        %v4650 = vunpack.c.l.b16 %v4432
        %v4651 = vunpack.c.l.b16 %v4433
        %v4652 = vunpack.c.l.b16 %v4434
        %v4653 = vunpack.c.l.b16 %v4435
        %v4654 = vunpack.c.l.b16 %v4436
        %v4655 = vunpack.c.l.b16 %v4437
        %v4656 = vunpack.c.l.b16 %v4438
        %v4657 = vunpack.c.l.b16 %v4439
        %v4658 = vunpack.c.l.b16 %v4440
        %v4659 = vunpack.c.l.b16 %v4441
        %v4660 = vunpack.c.l.b16 %v4442
        %v4661 = vunpack.c.l.b16 %v4443
        %v4662 = vunpack.c.l.b16 %v4444
        %v4663 = vunpack.c.l.b16 %v4445
        %v4664 = vunpack.c.l.b16 %v4446
        %v4665 = vunpack.c.l.b16 %v4447
        %v4666 = vunpack.c.l.b16 %v4448
        %v4667 = vunpack.c.l.b16 %v4449
        %v4668 = vunpack.c.l.b16 %v4450
        %v4669 = vunpack.c.l.b16 %v4451
        %v4670 = vunpack.c.l.b16 %v4463
        %v4671 = vunpack.c.l.b16 %v4464
        %v4672 = vunpack.c.l.b16 %v4465
        %v4673 = vunpack.c.l.b16 %v4466
        %v4674 = vpack.c.b16 %v4577, %v4576
        %v4675 = vpack.c.b16 %v4579, %v4578
        %v4676 = vpack.c.b16 %v4581, %v4580
        %v4677 = vpack.c.b16 %v4583, %v4582
        %v4678 = vpack.c.b16 %v4585, %v4584
        %v4679 = vpack.c.b16 %v4587, %v4586
        %v4680 = vpack.c.b16 %v4589, %v4588
        %v4681 = vpack.c.b16 %v4591, %v4590
        %v4682 = vpack.c.b16 %v4593, %v4592
        %v4683 = vpack.c.b16 %v4595, %v4594
        %v4684 = vpack.c.b16 %v4597, %v4596
        %v4685 = vpack.c.b16 %v4599, %v4598
        %v4686 = vpack.c.b16 %v4601, %v4600
        %v4687 = vpack.c.b16 %v4603, %v4602
        %v4688 = vpack.c.b16 %v4605, %v4604
        %v4689 = vpack.c.b16 %v4607, %v4606
        %v4690 = vpack.c.b16 %v4609, %v4608
        %v4691 = vpack.c.b16 %v4611, %v4610
        %v4692 = vpack.c.b16 %v4613, %v4612
        %v4693 = vpack.c.b16 %v4615, %v4614
        %v4694 = vpack.c.b16 %v4617, %v4616
        %v4695 = vpack.c.b16 %v4619, %v4618
        %v4696 = vpack.c.b16 %v4621, %v4620
        %v4697 = vpack.c.b16 %v4623, %v4622
        %v4698 = vpack.c.b16 %v4625, %v4624
        %v4699 = vpack.c.b16 %v4627, %v4626
        %v4700 = vpack.c.b16 %v4629, %v4628
        %v4701 = vpack.c.b16 %v4631, %v4630
        %v4702 = vpack.c.b16 %v4633, %v4632
        %v4703 = vpack.c.b16 %v4635, %v4634
        %v4704 = vpack.c.b16 %v4637, %v4636
        %v4705 = vpack.c.b16 %v4639, %v4638
        %v4706 = vpack.c.b16 %v4641, %v4640
        %v4707 = vpack.c.b16 %v4643, %v4642
        %v4708 = vpack.c.b16 %v4645, %v4644
        %v4709 = vpack.c.b16 %v4647, %v4646
        %v4710 = vpack.c.b16 %v4649, %v4648
        %v4711 = vpack.c.b16 %v4651, %v4650
        %v4712 = vpack.c.b16 %v4653, %v4652
        %v4713 = vpack.c.b16 %v4655, %v4654
        %v4714 = vpack.c.b16 %v4657, %v4656
        %v4715 = vpack.c.b16 %v4659, %v4658
        %v4716 = vpack.c.b16 %v4661, %v4660
        %v4717 = vpack.c.b16 %v4663, %v4662
        %v4718 = vpack.c.b16 %v4665, %v4664
        %v4719 = vpack.c.b16 %v4667, %v4666
        %v4720 = vpack.c.b16 %v4669, %v4668
        %v4721 = vpack.c.b16 %v4671, %v4670
        %v4722 = vpack.c.b16 %v4673, %v4672
        %v4733 = vunpack.c.l.b16 %v4468
        %v4734 = vunpack.c.l.b16 %v4469
        %v4735 = vunpack.c.l.b16 %v4470
        %v4736 = vunpack.c.l.b16 %v4471
        %v4737 = vunpack.c.l.b16 %v4472
        %v4738 = vunpack.c.l.b16 %v4473
        %v4739 = vunpack.c.l.b16 %v4474
        %v4740 = vunpack.c.l.b16 %v4475
        %v4741 = vunpack.c.l.b16 %v4476
        %v4742 = vunpack.c.l.b16 %v4477
        %v4743 = vpack.c.b16 %v4734, %v4733
        %v4744 = vpack.c.b16 %v4736, %v4735
        %v4745 = vpack.c.b16 %v4738, %v4737
        %v4746 = vpack.c.b16 %v4740, %v4739
        %v4747 = vpack.c.b16 %v4742, %v4741
        %vm4753 = vcmask 654336
        %v4755 = vsel %vm4753, %v4674, 0
        %v4758 = vsel %vm4753, %v4675, 0
        %v4761 = vsel %vm4753, %v4676, 0
        %v4764 = vsel %vm4753, %v4677, 0
        %v4767 = vsel %vm4753, %v4678, 0
        %v4770 = vsel %vm4753, %v4679, 0
        %v4773 = vsel %vm4753, %v4680, 0
        %v4776 = vsel %vm4753, %v4681, 0
        %v4779 = vsel %vm4753, %v4682, 0
        %v4782 = vsel %vm4753, %v4683, 0
        %v4785 = vsel %vm4753, %v4684, 0
        %v4788 = vsel %vm4753, %v4685, 0
        %v4791 = vsel %vm4753, %v4686, 0
        %v4794 = vsel %vm4753, %v4687, 0
        %v4797 = vsel %vm4753, %v4688, 0
        %v4800 = vsel %vm4753, %v4689, 0
        %v4803 = vsel %vm4753, %v4690, 0
        %v4806 = vsel %vm4753, %v4691, 0
        %v4809 = vsel %vm4753, %v4692, 0
        %v4812 = vsel %vm4753, %v4693, 0
        %v4815 = vsel %vm4753, %v4694, 0
        %v4818 = vsel %vm4753, %v4695, 0
        %v4821 = vsel %vm4753, %v4696, 0
        %v4824 = vsel %vm4753, %v4697, 0
        %v4827 = vsel %vm4753, %v4698, 0
        %v4830 = vsel %vm4753, %v4699, 0
        %v4833 = vsel %vm4753, %v4700, 0
        %v4836 = vsel %vm4753, %v4701, 0
        %v4839 = vsel %vm4753, %v4702, 0
        %v4842 = vsel %vm4753, %v4703, 0
        %v4845 = vsel %vm4753, %v4704, 0
        %v4848 = vsel %vm4753, %v4705, 0
        %v4851 = vsel %vm4753, %v4706, 0
        %v4854 = vsel %vm4753, %v4707, 0
        %v4857 = vsel %vm4753, %v4708, 0
        %v4860 = vsel %vm4753, %v4709, 0
        %v4863 = vsel %vm4753, %v4710, 0
        %v4866 = vsel %vm4753, %v4711, 0
        %v4869 = vsel %vm4753, %v4712, 0
        %v4872 = vsel %vm4753, %v4713, 0
        %v4875 = vsel %vm4753, %v4714, 0
        %v4878 = vsel %vm4753, %v4715, 0
        %v4881 = vsel %vm4753, %v4716, 0
        %v4884 = vsel %vm4753, %v4717, 0
        %v4887 = vsel %vm4753, %v4718, 0
        %v4890 = vsel %vm4753, %v4719, 0
        %v4893 = vsel %vm4753, %v4720, 0
        %v4896 = vsel %vm4753, %v4721, 0
        %v4899 = vsel %vm4753, %v4722, 0
        %4901 = vmatpush.bf16.msra.mxu0 0
        %4902 = vmatpush.bf16.msra.mxu0 0
        %4903 = vmatpush.bf16.msra.mxu0 0
        %4904 = vmatpush.bf16.msra.mxu0 %v4747
        %4905 = vmatpush.bf16.msra.mxu0 %v4746
        %4906 = vmatpush.bf16.msra.mxu0 %v4745
        %4907 = vmatpush.bf16.msra.mxu0 %v4744
        %4908 = vmatpush.bf16.msra.mxu0 %v4743
        %4909 = vmatmul.bf16.gmra.mxu0 %v4755
        %v4910 = vpop.f32.mrf.mxu0
        %v4911 = vadd.f32 0.0, %v4910
        %v4912 = vpop.f32.mrf.mxu0
        %v4913 = vadd.f32 0.0, %v4912
        %4914 = vmatmul.bf16.gmra.mxu0 %v4758
        %v4915 = vpop.f32.mrf.mxu0
        %v4916 = vadd.f32 0.0, %v4915
        %v4917 = vpop.f32.mrf.mxu0
        %v4918 = vadd.f32 0.0, %v4917
        %4919 = vmatmul.bf16.gmra.mxu0 %v4761
        %v4920 = vpop.f32.mrf.mxu0
        %v4921 = vadd.f32 0.0, %v4920
        %v4922 = vpop.f32.mrf.mxu0
        %v4923 = vadd.f32 0.0, %v4922
        %4924 = vmatmul.bf16.gmra.mxu0 %v4764
        %v4925 = vpop.f32.mrf.mxu0
        %v4926 = vadd.f32 0.0, %v4925
        %v4927 = vpop.f32.mrf.mxu0
        %v4928 = vadd.f32 0.0, %v4927
        %4929 = vmatmul.bf16.gmra.mxu0 %v4767
        %v4930 = vpop.f32.mrf.mxu0
        %v4931 = vadd.f32 0.0, %v4930
        %v4932 = vpop.f32.mrf.mxu0
        %v4933 = vadd.f32 0.0, %v4932
        %4934 = vmatmul.bf16.gmra.mxu0 %v4770
        %v4935 = vpop.f32.mrf.mxu0
        %v4936 = vadd.f32 0.0, %v4935
        %v4937 = vpop.f32.mrf.mxu0
        %v4938 = vadd.f32 0.0, %v4937
        %4939 = vmatmul.bf16.gmra.mxu0 %v4773
        %v4940 = vpop.f32.mrf.mxu0
        %v4941 = vadd.f32 0.0, %v4940
        %v4942 = vpop.f32.mrf.mxu0
        %v4943 = vadd.f32 0.0, %v4942
        %4944 = vmatmul.bf16.gmra.mxu0 %v4776
        %v4945 = vpop.f32.mrf.mxu0
        %v4946 = vadd.f32 0.0, %v4945
        %v4947 = vpop.f32.mrf.mxu0
        %v4948 = vadd.f32 0.0, %v4947
        %4949 = vmatmul.bf16.gmra.mxu0 %v4779
        %v4950 = vpop.f32.mrf.mxu0
        %v4951 = vadd.f32 0.0, %v4950
        %v4952 = vpop.f32.mrf.mxu0
        %v4953 = vadd.f32 0.0, %v4952
        %4954 = vmatmul.bf16.gmra.mxu0 %v4782
        %v4955 = vpop.f32.mrf.mxu0
        %v4956 = vadd.f32 0.0, %v4955
        %v4957 = vpop.f32.mrf.mxu0
        %v4958 = vadd.f32 0.0, %v4957
        %4959 = vmatmul.bf16.gmra.mxu0 %v4785
        %v4960 = vpop.f32.mrf.mxu0
        %v4961 = vadd.f32 0.0, %v4960
        %v4962 = vpop.f32.mrf.mxu0
        %v4963 = vadd.f32 0.0, %v4962
        %4964 = vmatmul.bf16.gmra.mxu0 %v4788
        %v4965 = vpop.f32.mrf.mxu0
        %v4966 = vadd.f32 0.0, %v4965
        %v4967 = vpop.f32.mrf.mxu0
        %v4968 = vadd.f32 0.0, %v4967
        %4969 = vmatmul.bf16.gmra.mxu0 %v4791
        %v4970 = vpop.f32.mrf.mxu0
        %v4971 = vadd.f32 0.0, %v4970
        %v4972 = vpop.f32.mrf.mxu0
        %v4973 = vadd.f32 0.0, %v4972
        %4974 = vmatmul.bf16.gmra.mxu0 %v4794
        %v4975 = vpop.f32.mrf.mxu0
        %v4976 = vadd.f32 0.0, %v4975
        %v4977 = vpop.f32.mrf.mxu0
        %v4978 = vadd.f32 0.0, %v4977
        %4979 = vmatmul.bf16.gmra.mxu0 %v4797
        %v4980 = vpop.f32.mrf.mxu0
        %v4981 = vadd.f32 0.0, %v4980
        %v4982 = vpop.f32.mrf.mxu0
        %v4983 = vadd.f32 0.0, %v4982
        %4984 = vmatmul.bf16.gmra.mxu0 %v4800
        %v4985 = vpop.f32.mrf.mxu0
        %v4986 = vadd.f32 0.0, %v4985
        %v4987 = vpop.f32.mrf.mxu0
        %v4988 = vadd.f32 0.0, %v4987
        %4989 = vmatmul.bf16.gmra.mxu0 %v4803
        %v4990 = vpop.f32.mrf.mxu0
        %v4991 = vadd.f32 0.0, %v4990
        %v4992 = vpop.f32.mrf.mxu0
        %v4993 = vadd.f32 0.0, %v4992
        %4994 = vmatmul.bf16.gmra.mxu0 %v4806
        %v4995 = vpop.f32.mrf.mxu0
        %v4996 = vadd.f32 0.0, %v4995
        %v4997 = vpop.f32.mrf.mxu0
        %v4998 = vadd.f32 0.0, %v4997
        %4999 = vmatmul.bf16.gmra.mxu0 %v4809
        %v5000 = vpop.f32.mrf.mxu0
        %v5001 = vadd.f32 0.0, %v5000
        %v5002 = vpop.f32.mrf.mxu0
        %v5003 = vadd.f32 0.0, %v5002
        %5004 = vmatmul.bf16.gmra.mxu0 %v4812
        %v5005 = vpop.f32.mrf.mxu0
        %v5006 = vadd.f32 0.0, %v5005
        %v5007 = vpop.f32.mrf.mxu0
        %v5008 = vadd.f32 0.0, %v5007
        %5009 = vmatmul.bf16.gmra.mxu0 %v4815
        %v5010 = vpop.f32.mrf.mxu0
        %v5011 = vadd.f32 0.0, %v5010
        %v5012 = vpop.f32.mrf.mxu0
        %v5013 = vadd.f32 0.0, %v5012
        %5014 = vmatmul.bf16.gmra.mxu0 %v4818
        %v5015 = vpop.f32.mrf.mxu0
        %v5016 = vadd.f32 0.0, %v5015
        %v5017 = vpop.f32.mrf.mxu0
        %v5018 = vadd.f32 0.0, %v5017
        %5019 = vmatmul.bf16.gmra.mxu0 %v4821
        %v5020 = vpop.f32.mrf.mxu0
        %v5021 = vadd.f32 0.0, %v5020
        %v5022 = vpop.f32.mrf.mxu0
        %v5023 = vadd.f32 0.0, %v5022
        %5024 = vmatmul.bf16.gmra.mxu0 %v4824
        %v5025 = vpop.f32.mrf.mxu0
        %v5026 = vadd.f32 0.0, %v5025
        %v5027 = vpop.f32.mrf.mxu0
        %v5028 = vadd.f32 0.0, %v5027
        %5029 = vmatmul.bf16.gmra.mxu0 %v4827
        %v5030 = vpop.f32.mrf.mxu0
        %v5031 = vadd.f32 0.0, %v5030
        %v5032 = vpop.f32.mrf.mxu0
        %v5033 = vadd.f32 0.0, %v5032
        %5034 = vmatmul.bf16.gmra.mxu0 %v4830
        %v5035 = vpop.f32.mrf.mxu0
        %v5036 = vadd.f32 0.0, %v5035
        %v5037 = vpop.f32.mrf.mxu0
        %v5038 = vadd.f32 0.0, %v5037
        %5039 = vmatmul.bf16.gmra.mxu0 %v4833
        %v5040 = vpop.f32.mrf.mxu0
        %v5041 = vadd.f32 0.0, %v5040
        %v5042 = vpop.f32.mrf.mxu0
        %v5043 = vadd.f32 0.0, %v5042
        %5044 = vmatmul.bf16.gmra.mxu0 %v4836
        %v5045 = vpop.f32.mrf.mxu0
        %v5046 = vadd.f32 0.0, %v5045
        %v5047 = vpop.f32.mrf.mxu0
        %v5048 = vadd.f32 0.0, %v5047
        %5049 = vmatmul.bf16.gmra.mxu0 %v4839
        %v5050 = vpop.f32.mrf.mxu0
        %v5051 = vadd.f32 0.0, %v5050
        %v5052 = vpop.f32.mrf.mxu0
        %v5053 = vadd.f32 0.0, %v5052
        %5054 = vmatmul.bf16.gmra.mxu0 %v4842
        %v5055 = vpop.f32.mrf.mxu0
        %v5056 = vadd.f32 0.0, %v5055
        %v5057 = vpop.f32.mrf.mxu0
        %v5058 = vadd.f32 0.0, %v5057
        %5059 = vmatmul.bf16.gmra.mxu0 %v4845
        %v5060 = vpop.f32.mrf.mxu0
        %v5061 = vadd.f32 0.0, %v5060
        %v5062 = vpop.f32.mrf.mxu0
        %v5063 = vadd.f32 0.0, %v5062
        %5064 = vmatmul.bf16.gmra.mxu0 %v4848
        %v5065 = vpop.f32.mrf.mxu0
        %v5066 = vadd.f32 0.0, %v5065
        %v5067 = vpop.f32.mrf.mxu0
        %v5068 = vadd.f32 0.0, %v5067
        %5069 = vmatmul.bf16.gmra.mxu0 %v4851
        %v5070 = vpop.f32.mrf.mxu0
        %v5071 = vadd.f32 0.0, %v5070
        %v5072 = vpop.f32.mrf.mxu0
        %v5073 = vadd.f32 0.0, %v5072
        %5074 = vmatmul.bf16.gmra.mxu0 %v4854
        %v5075 = vpop.f32.mrf.mxu0
        %v5076 = vadd.f32 0.0, %v5075
        %v5077 = vpop.f32.mrf.mxu0
        %v5078 = vadd.f32 0.0, %v5077
        %5079 = vmatmul.bf16.gmra.mxu0 %v4857
        %v5080 = vpop.f32.mrf.mxu0
        %v5081 = vadd.f32 0.0, %v5080
        %v5082 = vpop.f32.mrf.mxu0
        %v5083 = vadd.f32 0.0, %v5082
        %5084 = vmatmul.bf16.gmra.mxu0 %v4860
        %v5085 = vpop.f32.mrf.mxu0
        %v5086 = vadd.f32 0.0, %v5085
        %v5087 = vpop.f32.mrf.mxu0
        %v5088 = vadd.f32 0.0, %v5087
        %5089 = vmatmul.bf16.gmra.mxu0 %v4863
        %v5090 = vpop.f32.mrf.mxu0
        %v5091 = vadd.f32 0.0, %v5090
        %v5092 = vpop.f32.mrf.mxu0
        %v5093 = vadd.f32 0.0, %v5092
        %5094 = vmatmul.bf16.gmra.mxu0 %v4866
        %v5095 = vpop.f32.mrf.mxu0
        %v5096 = vadd.f32 0.0, %v5095
        %v5097 = vpop.f32.mrf.mxu0
        %v5098 = vadd.f32 0.0, %v5097
        %5099 = vmatmul.bf16.gmra.mxu0 %v4869
        %v5100 = vpop.f32.mrf.mxu0
        %v5101 = vadd.f32 0.0, %v5100
        %v5102 = vpop.f32.mrf.mxu0
        %v5103 = vadd.f32 0.0, %v5102
        %5104 = vmatmul.bf16.gmra.mxu0 %v4872
        %v5105 = vpop.f32.mrf.mxu0
        %v5106 = vadd.f32 0.0, %v5105
        %v5107 = vpop.f32.mrf.mxu0
        %v5108 = vadd.f32 0.0, %v5107
        %5109 = vmatmul.bf16.gmra.mxu0 %v4875
        %v5110 = vpop.f32.mrf.mxu0
        %v5111 = vadd.f32 0.0, %v5110
        %v5112 = vpop.f32.mrf.mxu0
        %v5113 = vadd.f32 0.0, %v5112
        %5114 = vmatmul.bf16.gmra.mxu0 %v4878
        %v5115 = vpop.f32.mrf.mxu0
        %v5116 = vadd.f32 0.0, %v5115
        %v5117 = vpop.f32.mrf.mxu0
        %v5118 = vadd.f32 0.0, %v5117
        %5119 = vmatmul.bf16.gmra.mxu0 %v4881
        %v5120 = vpop.f32.mrf.mxu0
        %v5121 = vadd.f32 0.0, %v5120
        %v5122 = vpop.f32.mrf.mxu0
        %v5123 = vadd.f32 0.0, %v5122
        %5124 = vmatmul.bf16.gmra.mxu0 %v4884
        %v5125 = vpop.f32.mrf.mxu0
        %v5126 = vadd.f32 0.0, %v5125
        %v5127 = vpop.f32.mrf.mxu0
        %v5128 = vadd.f32 0.0, %v5127
        %5129 = vmatmul.bf16.gmra.mxu0 %v4887
        %v5130 = vpop.f32.mrf.mxu0
        %v5131 = vadd.f32 0.0, %v5130
        %v5132 = vpop.f32.mrf.mxu0
        %v5133 = vadd.f32 0.0, %v5132
        %5134 = vmatmul.bf16.gmra.mxu0 %v4890
        %v5135 = vpop.f32.mrf.mxu0
        %v5136 = vadd.f32 0.0, %v5135
        %v5137 = vpop.f32.mrf.mxu0
        %v5138 = vadd.f32 0.0, %v5137
        %5139 = vmatmul.bf16.gmra.mxu0 %v4893
        %v5140 = vpop.f32.mrf.mxu0
        %v5141 = vadd.f32 0.0, %v5140
        %v5142 = vpop.f32.mrf.mxu0
        %v5143 = vadd.f32 0.0, %v5142
        %5144 = vmatmul.bf16.gmra.mxu0 %v4896
        %v5145 = vpop.f32.mrf.mxu0
        %v5146 = vadd.f32 0.0, %v5145
        %v5147 = vpop.f32.mrf.mxu0
        %v5148 = vadd.f32 0.0, %v5147
        %5149 = vmatmul.bf16.gmra.mxu0 %v4899
        %v5150 = vpop.f32.mrf.mxu0
        %v5151 = vadd.f32 0.0, %v5150
        %v5152 = vpop.f32.mrf.mxu0
        %v5153 = vadd.f32 0.0, %v5152
        %5154 = vdwg.mxu0
        %v5160 = vunpack.c.l.b16 %v4354
        %v5161 = vunpack.c.l.b16 %v4355
        %v5162 = vunpack.c.l.b16 %v4356
        %v5163 = vunpack.c.l.b16 %v4357
        %v5164 = vunpack.c.l.b16 %v4452
        %v5165 = vpack.c.b16 %v5161, %v5160
        %v5166 = vpack.c.b16 %v5163, %v5162
        %v5167 = vpack.c.b16 %v5164, %v5164
        %vm5168 = vcmask 1045504
        %v5169 = vrot.slane %v5165, 2
        %v5170 = vrot.slane %v5166, 2
        %v5171 = vsel %vm5168, %v5169, %v5170
        %v5172 = vrot.slane %v4674, 2
        %v5173 = vsel %vm5168, %v5170, %v5172
        %v5174 = vrot.slane %v4675, 2
        %v5175 = vsel %vm5168, %v5172, %v5174
        %v5176 = vrot.slane %v4676, 2
        %v5177 = vsel %vm5168, %v5174, %v5176
        %v5178 = vrot.slane %v4677, 2
        %v5179 = vsel %vm5168, %v5176, %v5178
        %v5180 = vrot.slane %v4678, 2
        %v5181 = vsel %vm5168, %v5178, %v5180
        %v5182 = vrot.slane %v4679, 2
        %v5183 = vsel %vm5168, %v5180, %v5182
        %v5184 = vrot.slane %v4680, 2
        %v5185 = vsel %vm5168, %v5182, %v5184
        %v5186 = vrot.slane %v4681, 2
        %v5187 = vsel %vm5168, %v5184, %v5186
        %v5188 = vrot.slane %v4682, 2
        %v5189 = vsel %vm5168, %v5186, %v5188
        %v5190 = vrot.slane %v4683, 2
        %v5191 = vsel %vm5168, %v5188, %v5190
        %v5192 = vrot.slane %v4684, 2
        %v5193 = vsel %vm5168, %v5190, %v5192
        %v5194 = vrot.slane %v4685, 2
        %v5195 = vsel %vm5168, %v5192, %v5194
        %v5196 = vrot.slane %v4686, 2
        %v5197 = vsel %vm5168, %v5194, %v5196
        %v5198 = vrot.slane %v4687, 2
        %v5199 = vsel %vm5168, %v5196, %v5198
        %v5200 = vrot.slane %v4688, 2
        %v5201 = vsel %vm5168, %v5198, %v5200
        %v5202 = vrot.slane %v4689, 2
        %v5203 = vsel %vm5168, %v5200, %v5202
        %v5204 = vrot.slane %v4690, 2
        %v5205 = vsel %vm5168, %v5202, %v5204
        %v5206 = vrot.slane %v4691, 2
        %v5207 = vsel %vm5168, %v5204, %v5206
        %v5208 = vrot.slane %v4692, 2
        %v5209 = vsel %vm5168, %v5206, %v5208
        %v5210 = vrot.slane %v4693, 2
        %v5211 = vsel %vm5168, %v5208, %v5210
        %v5212 = vrot.slane %v4694, 2
        %v5213 = vsel %vm5168, %v5210, %v5212
        %v5214 = vrot.slane %v4695, 2
        %v5215 = vsel %vm5168, %v5212, %v5214
        %v5216 = vrot.slane %v4696, 2
        %v5217 = vsel %vm5168, %v5214, %v5216
        %v5218 = vrot.slane %v4697, 2
        %v5219 = vsel %vm5168, %v5216, %v5218
        %v5220 = vrot.slane %v4698, 2
        %v5221 = vsel %vm5168, %v5218, %v5220
        %v5222 = vrot.slane %v4699, 2
        %v5223 = vsel %vm5168, %v5220, %v5222
        %v5224 = vrot.slane %v4700, 2
        %v5225 = vsel %vm5168, %v5222, %v5224
        %v5226 = vrot.slane %v4701, 2
        %v5227 = vsel %vm5168, %v5224, %v5226
        %v5228 = vrot.slane %v4702, 2
        %v5229 = vsel %vm5168, %v5226, %v5228
        %v5230 = vrot.slane %v4703, 2
        %v5231 = vsel %vm5168, %v5228, %v5230
        %v5232 = vrot.slane %v4704, 2
        %v5233 = vsel %vm5168, %v5230, %v5232
        %v5234 = vrot.slane %v4705, 2
        %v5235 = vsel %vm5168, %v5232, %v5234
        %v5236 = vrot.slane %v4706, 2
        %v5237 = vsel %vm5168, %v5234, %v5236
        %v5238 = vrot.slane %v4707, 2
        %v5239 = vsel %vm5168, %v5236, %v5238
        %v5240 = vrot.slane %v4708, 2
        %v5241 = vsel %vm5168, %v5238, %v5240
        %v5242 = vrot.slane %v4709, 2
        %v5243 = vsel %vm5168, %v5240, %v5242
        %v5244 = vrot.slane %v4710, 2
        %v5245 = vsel %vm5168, %v5242, %v5244
        %v5246 = vrot.slane %v4711, 2
        %v5247 = vsel %vm5168, %v5244, %v5246
        %v5248 = vrot.slane %v4712, 2
        %v5249 = vsel %vm5168, %v5246, %v5248
        %v5250 = vrot.slane %v4713, 2
        %v5251 = vsel %vm5168, %v5248, %v5250
        %v5252 = vrot.slane %v4714, 2
        %v5253 = vsel %vm5168, %v5250, %v5252
        %v5254 = vrot.slane %v4715, 2
        %v5255 = vsel %vm5168, %v5252, %v5254
        %v5256 = vrot.slane %v4716, 2
        %v5257 = vsel %vm5168, %v5254, %v5256
        %v5258 = vrot.slane %v4717, 2
        %v5259 = vsel %vm5168, %v5256, %v5258
        %v5260 = vrot.slane %v4718, 2
        %v5261 = vsel %vm5168, %v5258, %v5260
        %v5262 = vrot.slane %v4719, 2
        %v5263 = vsel %vm5168, %v5260, %v5262
        %v5264 = vrot.slane %v4720, 2
        %v5265 = vsel %vm5168, %v5262, %v5264
        %v5266 = vrot.slane %v5167, 2
        %v5267 = vsel %vm5168, %v5264, %v5266
        %v5278 = vunpack.c.l.b16 %v4453
        %v5279 = vunpack.c.l.b16 %v4454
        %v5280 = vunpack.c.l.b16 %v4455
        %v5281 = vunpack.c.l.b16 %v4456
        %v5282 = vunpack.c.l.b16 %v4457
        %v5283 = vunpack.c.l.b16 %v4458
        %v5284 = vunpack.c.l.b16 %v4459
        %v5285 = vunpack.c.l.b16 %v4460
        %v5286 = vunpack.c.l.b16 %v4461
        %v5287 = vunpack.c.l.b16 %v4462
        %v5288 = vpack.c.b16 %v5279, %v5278
        %v5289 = vpack.c.b16 %v5281, %v5280
        %v5290 = vpack.c.b16 %v5283, %v5282
        %v5291 = vpack.c.b16 %v5285, %v5284
        %v5292 = vpack.c.b16 %v5287, %v5286
        %v5299 = vsel %vm4753, %v5171, 0
        %v5302 = vsel %vm4753, %v5173, 0
        %v5305 = vsel %vm4753, %v5175, 0
        %v5308 = vsel %vm4753, %v5177, 0
        %v5311 = vsel %vm4753, %v5179, 0
        %v5314 = vsel %vm4753, %v5181, 0
        %v5317 = vsel %vm4753, %v5183, 0
        %v5320 = vsel %vm4753, %v5185, 0
        %v5323 = vsel %vm4753, %v5187, 0
        %v5326 = vsel %vm4753, %v5189, 0
        %v5329 = vsel %vm4753, %v5191, 0
        %v5332 = vsel %vm4753, %v5193, 0
        %v5335 = vsel %vm4753, %v5195, 0
        %v5338 = vsel %vm4753, %v5197, 0
        %v5341 = vsel %vm4753, %v5199, 0
        %v5344 = vsel %vm4753, %v5201, 0
        %v5347 = vsel %vm4753, %v5203, 0
        %v5350 = vsel %vm4753, %v5205, 0
        %v5353 = vsel %vm4753, %v5207, 0
        %v5356 = vsel %vm4753, %v5209, 0
        %v5359 = vsel %vm4753, %v5211, 0
        %v5362 = vsel %vm4753, %v5213, 0
        %v5365 = vsel %vm4753, %v5215, 0
        %v5368 = vsel %vm4753, %v5217, 0
        %v5371 = vsel %vm4753, %v5219, 0
        %v5374 = vsel %vm4753, %v5221, 0
        %v5377 = vsel %vm4753, %v5223, 0
        %v5380 = vsel %vm4753, %v5225, 0
        %v5383 = vsel %vm4753, %v5227, 0
        %v5386 = vsel %vm4753, %v5229, 0
        %v5389 = vsel %vm4753, %v5231, 0
        %v5392 = vsel %vm4753, %v5233, 0
        %v5395 = vsel %vm4753, %v5235, 0
        %v5398 = vsel %vm4753, %v5237, 0
        %v5401 = vsel %vm4753, %v5239, 0
        %v5404 = vsel %vm4753, %v5241, 0
        %v5407 = vsel %vm4753, %v5243, 0
        %v5410 = vsel %vm4753, %v5245, 0
        %v5413 = vsel %vm4753, %v5247, 0
        %v5416 = vsel %vm4753, %v5249, 0
        %v5419 = vsel %vm4753, %v5251, 0
        %v5422 = vsel %vm4753, %v5253, 0
        %v5425 = vsel %vm4753, %v5255, 0
        %v5428 = vsel %vm4753, %v5257, 0
        %v5431 = vsel %vm4753, %v5259, 0
        %v5434 = vsel %vm4753, %v5261, 0
        %v5437 = vsel %vm4753, %v5263, 0
        %v5440 = vsel %vm4753, %v5265, 0
        %v5443 = vsel %vm4753, %v5267, 0
        %5445 = vmatpush.bf16.msra.mxu0 0
        %5446 = vmatpush.bf16.msra.mxu0 0
        %5447 = vmatpush.bf16.msra.mxu0 0
        %5448 = vmatpush.bf16.msra.mxu0 %v5292
        %5449 = vmatpush.bf16.msra.mxu0 %v5291
        %5450 = vmatpush.bf16.msra.mxu0 %v5290
        %5451 = vmatpush.bf16.msra.mxu0 %v5289
        %5452 = vmatpush.bf16.msra.mxu0 %v5288
        %5453 = vmatmul.bf16.gmra.mxu0 %v5299
        %v5454 = vpop.f32.mrf.mxu0
        %v5455 = vadd.f32 %v4911, %v5454
        %v5456 = vpop.f32.mrf.mxu0
        %v5457 = vadd.f32 %v4913, %v5456
        %5458 = vmatmul.bf16.gmra.mxu0 %v5302
        %v5459 = vpop.f32.mrf.mxu0
        %v5460 = vadd.f32 %v4916, %v5459
        %v5461 = vpop.f32.mrf.mxu0
        %v5462 = vadd.f32 %v4918, %v5461
        %5463 = vmatmul.bf16.gmra.mxu0 %v5305
        %v5464 = vpop.f32.mrf.mxu0
        %v5465 = vadd.f32 %v4921, %v5464
        %v5466 = vpop.f32.mrf.mxu0
        %v5467 = vadd.f32 %v4923, %v5466
        %5468 = vmatmul.bf16.gmra.mxu0 %v5308
        %v5469 = vpop.f32.mrf.mxu0
        %v5470 = vadd.f32 %v4926, %v5469
        %v5471 = vpop.f32.mrf.mxu0
        %v5472 = vadd.f32 %v4928, %v5471
        %5473 = vmatmul.bf16.gmra.mxu0 %v5311
        %v5474 = vpop.f32.mrf.mxu0
        %v5475 = vadd.f32 %v4931, %v5474
        %v5476 = vpop.f32.mrf.mxu0
        %v5477 = vadd.f32 %v4933, %v5476
        %5478 = vmatmul.bf16.gmra.mxu0 %v5314
        %v5479 = vpop.f32.mrf.mxu0
        %v5480 = vadd.f32 %v4936, %v5479
        %v5481 = vpop.f32.mrf.mxu0
        %v5482 = vadd.f32 %v4938, %v5481
        %5483 = vmatmul.bf16.gmra.mxu0 %v5317
        %v5484 = vpop.f32.mrf.mxu0
        %v5485 = vadd.f32 %v4941, %v5484
        %v5486 = vpop.f32.mrf.mxu0
        %v5487 = vadd.f32 %v4943, %v5486
        %5488 = vmatmul.bf16.gmra.mxu0 %v5320
        %v5489 = vpop.f32.mrf.mxu0
        %v5490 = vadd.f32 %v4946, %v5489
        %v5491 = vpop.f32.mrf.mxu0
        %v5492 = vadd.f32 %v4948, %v5491
        %5493 = vmatmul.bf16.gmra.mxu0 %v5323
        %v5494 = vpop.f32.mrf.mxu0
        %v5495 = vadd.f32 %v4951, %v5494
        %v5496 = vpop.f32.mrf.mxu0
        %v5497 = vadd.f32 %v4953, %v5496
        %5498 = vmatmul.bf16.gmra.mxu0 %v5326
        %v5499 = vpop.f32.mrf.mxu0
        %v5500 = vadd.f32 %v4956, %v5499
        %v5501 = vpop.f32.mrf.mxu0
        %v5502 = vadd.f32 %v4958, %v5501
        %5503 = vmatmul.bf16.gmra.mxu0 %v5329
        %v5504 = vpop.f32.mrf.mxu0
        %v5505 = vadd.f32 %v4961, %v5504
        %v5506 = vpop.f32.mrf.mxu0
        %v5507 = vadd.f32 %v4963, %v5506
        %5508 = vmatmul.bf16.gmra.mxu0 %v5332
        %v5509 = vpop.f32.mrf.mxu0
        %v5510 = vadd.f32 %v4966, %v5509
        %v5511 = vpop.f32.mrf.mxu0
        %v5512 = vadd.f32 %v4968, %v5511
        %5513 = vmatmul.bf16.gmra.mxu0 %v5335
        %v5514 = vpop.f32.mrf.mxu0
        %v5515 = vadd.f32 %v4971, %v5514
        %v5516 = vpop.f32.mrf.mxu0
        %v5517 = vadd.f32 %v4973, %v5516
        %5518 = vmatmul.bf16.gmra.mxu0 %v5338
        %v5519 = vpop.f32.mrf.mxu0
        %v5520 = vadd.f32 %v4976, %v5519
        %v5521 = vpop.f32.mrf.mxu0
        %v5522 = vadd.f32 %v4978, %v5521
        %5523 = vmatmul.bf16.gmra.mxu0 %v5341
        %v5524 = vpop.f32.mrf.mxu0
        %v5525 = vadd.f32 %v4981, %v5524
        %v5526 = vpop.f32.mrf.mxu0
        %v5527 = vadd.f32 %v4983, %v5526
        %5528 = vmatmul.bf16.gmra.mxu0 %v5344
        %v5529 = vpop.f32.mrf.mxu0
        %v5530 = vadd.f32 %v4986, %v5529
        %v5531 = vpop.f32.mrf.mxu0
        %v5532 = vadd.f32 %v4988, %v5531
        %5533 = vmatmul.bf16.gmra.mxu0 %v5347
        %v5534 = vpop.f32.mrf.mxu0
        %v5535 = vadd.f32 %v4991, %v5534
        %v5536 = vpop.f32.mrf.mxu0
        %v5537 = vadd.f32 %v4993, %v5536
        %5538 = vmatmul.bf16.gmra.mxu0 %v5350
        %v5539 = vpop.f32.mrf.mxu0
        %v5540 = vadd.f32 %v4996, %v5539
        %v5541 = vpop.f32.mrf.mxu0
        %v5542 = vadd.f32 %v4998, %v5541
        %5543 = vmatmul.bf16.gmra.mxu0 %v5353
        %v5544 = vpop.f32.mrf.mxu0
        %v5545 = vadd.f32 %v5001, %v5544
        %v5546 = vpop.f32.mrf.mxu0
        %v5547 = vadd.f32 %v5003, %v5546
        %5548 = vmatmul.bf16.gmra.mxu0 %v5356
        %v5549 = vpop.f32.mrf.mxu0
        %v5550 = vadd.f32 %v5006, %v5549
        %v5551 = vpop.f32.mrf.mxu0
        %v5552 = vadd.f32 %v5008, %v5551
        %5553 = vmatmul.bf16.gmra.mxu0 %v5359
        %v5554 = vpop.f32.mrf.mxu0
        %v5555 = vadd.f32 %v5011, %v5554
        %v5556 = vpop.f32.mrf.mxu0
        %v5557 = vadd.f32 %v5013, %v5556
        %5558 = vmatmul.bf16.gmra.mxu0 %v5362
        %v5559 = vpop.f32.mrf.mxu0
        %v5560 = vadd.f32 %v5016, %v5559
        %v5561 = vpop.f32.mrf.mxu0
        %v5562 = vadd.f32 %v5018, %v5561
        %5563 = vmatmul.bf16.gmra.mxu0 %v5365
        %v5564 = vpop.f32.mrf.mxu0
        %v5565 = vadd.f32 %v5021, %v5564
        %v5566 = vpop.f32.mrf.mxu0
        %v5567 = vadd.f32 %v5023, %v5566
        %5568 = vmatmul.bf16.gmra.mxu0 %v5368
        %v5569 = vpop.f32.mrf.mxu0
        %v5570 = vadd.f32 %v5026, %v5569
        %v5571 = vpop.f32.mrf.mxu0
        %v5572 = vadd.f32 %v5028, %v5571
        %5573 = vmatmul.bf16.gmra.mxu0 %v5371
        %v5574 = vpop.f32.mrf.mxu0
        %v5575 = vadd.f32 %v5031, %v5574
        %v5576 = vpop.f32.mrf.mxu0
        %v5577 = vadd.f32 %v5033, %v5576
        %5578 = vmatmul.bf16.gmra.mxu0 %v5374
        %v5579 = vpop.f32.mrf.mxu0
        %v5580 = vadd.f32 %v5036, %v5579
        %v5581 = vpop.f32.mrf.mxu0
        %v5582 = vadd.f32 %v5038, %v5581
        %5583 = vmatmul.bf16.gmra.mxu0 %v5377
        %v5584 = vpop.f32.mrf.mxu0
        %v5585 = vadd.f32 %v5041, %v5584
        %v5586 = vpop.f32.mrf.mxu0
        %v5587 = vadd.f32 %v5043, %v5586
        %5588 = vmatmul.bf16.gmra.mxu0 %v5380
        %v5589 = vpop.f32.mrf.mxu0
        %v5590 = vadd.f32 %v5046, %v5589
        %v5591 = vpop.f32.mrf.mxu0
        %v5592 = vadd.f32 %v5048, %v5591
        %5593 = vmatmul.bf16.gmra.mxu0 %v5383
        %v5594 = vpop.f32.mrf.mxu0
        %v5595 = vadd.f32 %v5051, %v5594
        %v5596 = vpop.f32.mrf.mxu0
        %v5597 = vadd.f32 %v5053, %v5596
        %5598 = vmatmul.bf16.gmra.mxu0 %v5386
        %v5599 = vpop.f32.mrf.mxu0
        %v5600 = vadd.f32 %v5056, %v5599
        %v5601 = vpop.f32.mrf.mxu0
        %v5602 = vadd.f32 %v5058, %v5601
        %5603 = vmatmul.bf16.gmra.mxu0 %v5389
        %v5604 = vpop.f32.mrf.mxu0
        %v5605 = vadd.f32 %v5061, %v5604
        %v5606 = vpop.f32.mrf.mxu0
        %v5607 = vadd.f32 %v5063, %v5606
        %5608 = vmatmul.bf16.gmra.mxu0 %v5392
        %v5609 = vpop.f32.mrf.mxu0
        %v5610 = vadd.f32 %v5066, %v5609
        %v5611 = vpop.f32.mrf.mxu0
        %v5612 = vadd.f32 %v5068, %v5611
        %5613 = vmatmul.bf16.gmra.mxu0 %v5395
        %v5614 = vpop.f32.mrf.mxu0
        %v5615 = vadd.f32 %v5071, %v5614
        %v5616 = vpop.f32.mrf.mxu0
        %v5617 = vadd.f32 %v5073, %v5616
        %5618 = vmatmul.bf16.gmra.mxu0 %v5398
        %v5619 = vpop.f32.mrf.mxu0
        %v5620 = vadd.f32 %v5076, %v5619
        %v5621 = vpop.f32.mrf.mxu0
        %v5622 = vadd.f32 %v5078, %v5621
        %5623 = vmatmul.bf16.gmra.mxu0 %v5401
        %v5624 = vpop.f32.mrf.mxu0
        %v5625 = vadd.f32 %v5081, %v5624
        %v5626 = vpop.f32.mrf.mxu0
        %v5627 = vadd.f32 %v5083, %v5626
        %5628 = vmatmul.bf16.gmra.mxu0 %v5404
        %v5629 = vpop.f32.mrf.mxu0
        %v5630 = vadd.f32 %v5086, %v5629
        %v5631 = vpop.f32.mrf.mxu0
        %v5632 = vadd.f32 %v5088, %v5631
        %5633 = vmatmul.bf16.gmra.mxu0 %v5407
        %v5634 = vpop.f32.mrf.mxu0
        %v5635 = vadd.f32 %v5091, %v5634
        %v5636 = vpop.f32.mrf.mxu0
        %v5637 = vadd.f32 %v5093, %v5636
        %5638 = vmatmul.bf16.gmra.mxu0 %v5410
        %v5639 = vpop.f32.mrf.mxu0
        %v5640 = vadd.f32 %v5096, %v5639
        %v5641 = vpop.f32.mrf.mxu0
        %v5642 = vadd.f32 %v5098, %v5641
        %5643 = vmatmul.bf16.gmra.mxu0 %v5413
        %v5644 = vpop.f32.mrf.mxu0
        %v5645 = vadd.f32 %v5101, %v5644
        %v5646 = vpop.f32.mrf.mxu0
        %v5647 = vadd.f32 %v5103, %v5646
        %5648 = vmatmul.bf16.gmra.mxu0 %v5416
        %v5649 = vpop.f32.mrf.mxu0
        %v5650 = vadd.f32 %v5106, %v5649
        %v5651 = vpop.f32.mrf.mxu0
        %v5652 = vadd.f32 %v5108, %v5651
        %5653 = vmatmul.bf16.gmra.mxu0 %v5419
        %v5654 = vpop.f32.mrf.mxu0
        %v5655 = vadd.f32 %v5111, %v5654
        %v5656 = vpop.f32.mrf.mxu0
        %v5657 = vadd.f32 %v5113, %v5656
        %5658 = vmatmul.bf16.gmra.mxu0 %v5422
        %v5659 = vpop.f32.mrf.mxu0
        %v5660 = vadd.f32 %v5116, %v5659
        %v5661 = vpop.f32.mrf.mxu0
        %v5662 = vadd.f32 %v5118, %v5661
        %5663 = vmatmul.bf16.gmra.mxu0 %v5425
        %v5664 = vpop.f32.mrf.mxu0
        %v5665 = vadd.f32 %v5121, %v5664
        %v5666 = vpop.f32.mrf.mxu0
        %v5667 = vadd.f32 %v5123, %v5666
        %5668 = vmatmul.bf16.gmra.mxu0 %v5428
        %v5669 = vpop.f32.mrf.mxu0
        %v5670 = vadd.f32 %v5126, %v5669
        %v5671 = vpop.f32.mrf.mxu0
        %v5672 = vadd.f32 %v5128, %v5671
        %5673 = vmatmul.bf16.gmra.mxu0 %v5431
        %v5674 = vpop.f32.mrf.mxu0
        %v5675 = vadd.f32 %v5131, %v5674
        %v5676 = vpop.f32.mrf.mxu0
        %v5677 = vadd.f32 %v5133, %v5676
        %5678 = vmatmul.bf16.gmra.mxu0 %v5434
        %v5679 = vpop.f32.mrf.mxu0
        %v5680 = vadd.f32 %v5136, %v5679
        %v5681 = vpop.f32.mrf.mxu0
        %v5682 = vadd.f32 %v5138, %v5681
        %5683 = vmatmul.bf16.gmra.mxu0 %v5437
        %v5684 = vpop.f32.mrf.mxu0
        %v5685 = vadd.f32 %v5141, %v5684
        %v5686 = vpop.f32.mrf.mxu0
        %v5687 = vadd.f32 %v5143, %v5686
        %5688 = vmatmul.bf16.gmra.mxu0 %v5440
        %v5689 = vpop.f32.mrf.mxu0
        %v5690 = vadd.f32 %v5146, %v5689
        %v5691 = vpop.f32.mrf.mxu0
        %v5692 = vadd.f32 %v5148, %v5691
        %5693 = vmatmul.bf16.gmra.mxu0 %v5443
        %v5694 = vpop.f32.mrf.mxu0
        %v5695 = vadd.f32 %v5151, %v5694
        %v5696 = vpop.f32.mrf.mxu0
        %v5697 = vadd.f32 %v5153, %v5696
        %5698 = vdwg.mxu0
        %v5699 = vld [vmem:[#allocation2 + $0x1c] sm:$0xc]
        %v5700 = vld [vmem:[#allocation2 + $0x20] sm:$0xf]
        %v5701 = vld [vmem:[#allocation2 + $0x24] sm:$0xf]
        %v5702 = vld [vmem:[#allocation2 + $0x28] sm:$0xf]
        %v5703 = vld [vmem:[#allocation2 + $0x2c] sm:$0xf]
        %v5704 = vld [vmem:[#allocation2 + $0x30] sm:$0xf]
        %v5705 = vld [vmem:[#allocation2 + $0x34] sm:$0xf]
        %v5706 = vld [vmem:[#allocation2 + $0x38] sm:$0xf]
        %v5707 = vld [vmem:[#allocation2 + $0x3c] sm:$0xf]
        %v5708 = vld [vmem:[#allocation2 + $0x40] sm:$0xf]
        %v5709 = vld [vmem:[#allocation2 + $0x44] sm:$0xf]
        %v5710 = vld [vmem:[#allocation2 + $0x48] sm:$0xf]
        %v5711 = vld [vmem:[#allocation2 + $0x4c] sm:$0xf]
        %v5712 = vld [vmem:[#allocation2 + $0x50] sm:$0xf]
        %v5713 = vld [vmem:[#allocation2 + $0x54] sm:$0xf]
        %v5714 = vld [vmem:[#allocation2 + $0x58] sm:$0xf]
        %v5715 = vld [vmem:[#allocation2 + $0x5c] sm:$0xf]
        %v5716 = vld [vmem:[#allocation2 + $0x60] sm:$0xf]
        %v5717 = vld [vmem:[#allocation2 + $0x64] sm:$0xf]
        %v5718 = vld [vmem:[#allocation2 + $0x68] sm:$0xf]
        %v5719 = vld [vmem:[#allocation2 + $0x6c] sm:$0xf]
        %v5720 = vld [vmem:[#allocation2 + $0x70] sm:$0xf]
        %v5721 = vld [vmem:[#allocation2 + $0x74] sm:$0xf]
        %v5722 = vld [vmem:[#allocation2 + $0x78] sm:$0xf]
        %v5723 = vld [vmem:[#allocation2 + $0x7c] sm:$0xf]
        %v5724 = vld [vmem:[#allocation2 + $0x80] sm:$0xf]
        %v5725 = vld [vmem:[#allocation2 + $0x84] sm:$0xf]
        %v5726 = vld [vmem:[#allocation2 + $0x88] sm:$0xf]
        %v5727 = vld [vmem:[#allocation2 + $0x8c] sm:$0xf]
        %v5728 = vld [vmem:[#allocation2 + $0x90] sm:$0xf]
        %v5729 = vld [vmem:[#allocation2 + $0x94] sm:$0xf]
        %v5730 = vld [vmem:[#allocation2 + $0x98] sm:$0xf]
        %v5731 = vld [vmem:[#allocation2 + $0x9c] sm:$0xf]
        %v5732 = vld [vmem:[#allocation2 + $0xa0] sm:$0xf]
        %v5733 = vld [vmem:[#allocation2 + $0xa4] sm:$0xf]
        %v5734 = vld [vmem:[#allocation2 + $0xa8] sm:$0xf]
        %v5735 = vld [vmem:[#allocation2 + $0xac] sm:$0xf]
        %v5736 = vld [vmem:[#allocation2 + $0xb0] sm:$0xf]
        %v5737 = vld [vmem:[#allocation2 + $0xb4] sm:$0xf]
        %v5738 = vld [vmem:[#allocation2 + $0xb8] sm:$0xf]
        %v5739 = vld [vmem:[#allocation2 + $0xbc] sm:$0xf]
        %v5740 = vld [vmem:[#allocation2 + $0xc0] sm:$0xf]
        %v5741 = vld [vmem:[#allocation2 + $0xc4] sm:$0xf]
        %v5742 = vld [vmem:[#allocation2 + $0xc8] sm:$0xf]
        %v5743 = vld [vmem:[#allocation2 + $0xcc] sm:$0xf]
        %v5744 = vld [vmem:[#allocation2 + $0xd0] sm:$0xf]
        %v5745 = vld [vmem:[#allocation2 + $0xd4] sm:$0xf]
        %v5746 = vld [vmem:[#allocation2 + $0xd8] sm:$0xf]
        %v5747 = vld [vmem:[#allocation2 + $0xdc] sm:$0xf]
        %v5748 = vld [vmem:[#allocation2 + $0xe0] sm:$0xf]
        %v5749 = vld [vmem:[#allocation2 + $0xe4] sm:$0xf]
        %v5750 = vld [vmem:[#allocation2 + $0xe8] sm:$0xf]
        %v5751 = vld [vmem:[#allocation2 + $0xec] sm:$0xf]
        %v5752 = vld [vmem:[#allocation2 + $0xf0] sm:$0xf]
        %v5753 = vld [vmem:[#allocation2 + $0xf4] sm:$0xf]
        %v5754 = vld [vmem:[#allocation2 + $0xf8] sm:$0xf]
        %v5755 = vld [vmem:[#allocation2 + $0xfc] sm:$0xf]
        %v5756 = vld [vmem:[#allocation2 + $0x100] sm:$0xf]
        %v5757 = vld [vmem:[#allocation2 + $0x104] sm:$0xf]
        %v5758 = vld [vmem:[#allocation2 + $0x108] sm:$0xf]
        %v5759 = vld [vmem:[#allocation2 + $0x10c] sm:$0xf]
        %v5760 = vld [vmem:[#allocation2 + $0x110] sm:$0xf]
        %v5761 = vld [vmem:[#allocation2 + $0x114] sm:$0xf]
        %v5762 = vld [vmem:[#allocation2 + $0x118] sm:$0xf]
        %v5763 = vld [vmem:[#allocation2 + $0x11c] sm:$0xf]
        %v5764 = vld [vmem:[#allocation2 + $0x120] sm:$0xf]
        %v5765 = vld [vmem:[#allocation2 + $0x124] sm:$0xf]
        %v5766 = vld [vmem:[#allocation2 + $0x128] sm:$0xf]
        %v5767 = vld [vmem:[#allocation2 + $0x12c] sm:$0xf]
        %v5768 = vld [vmem:[#allocation2 + $0x130] sm:$0xf]
        %v5769 = vld [vmem:[#allocation2 + $0x134] sm:$0xf]
        %v5770 = vld [vmem:[#allocation2 + $0x138] sm:$0xf]
        %v5771 = vld [vmem:[#allocation2 + $0x13c] sm:$0xf]
        %v5772 = vld [vmem:[#allocation2 + $0x140] sm:$0xf]
        %v5773 = vld [vmem:[#allocation2 + $0x144] sm:$0xf]
        %v5774 = vld [vmem:[#allocation2 + $0x148] sm:$0xf]
        %v5775 = vld [vmem:[#allocation2 + $0x14c] sm:$0xf]
        %v5776 = vld [vmem:[#allocation2 + $0x150] sm:$0xf]
        %v5777 = vld [vmem:[#allocation2 + $0x154] sm:$0xf]
        %v5778 = vld [vmem:[#allocation2 + $0x158] sm:$0xf]
        %v5779 = vld [vmem:[#allocation2 + $0x15c] sm:$0xf]
        %v5780 = vld [vmem:[#allocation2 + $0x160] sm:$0xf]
        %v5781 = vld [vmem:[#allocation2 + $0x164] sm:$0xf]
        %v5782 = vld [vmem:[#allocation2 + $0x168] sm:$0xf]
        %v5783 = vld [vmem:[#allocation2 + $0x16c] sm:$0xf]
        %v5784 = vld [vmem:[#allocation2 + $0x170] sm:$0xf]
        %v5785 = vld [vmem:[#allocation2 + $0x174] sm:$0xf]
        %v5786 = vld [vmem:[#allocation2 + $0x178] sm:$0xf]
        %v5787 = vld [vmem:[#allocation2 + $0x17c] sm:$0xf]
        %v5788 = vld [vmem:[#allocation2 + $0x180] sm:$0xf]
        %v5789 = vld [vmem:[#allocation2 + $0x184] sm:$0xf]
        %v5790 = vld [vmem:[#allocation2 + $0x188] sm:$0xf]
        %v5791 = vld [vmem:[#allocation2 + $0x18c] sm:$0xf]
        %v5792 = vld [vmem:[#allocation2 + $0x190] sm:$0xf]
        %v5793 = vld [vmem:[#allocation2 + $0x194] sm:$0xf]
        %v5794 = vld [vmem:[#allocation2 + $0x198] sm:$0xf]
        %v5795 = vld [vmem:[#allocation2 + $0x19c] sm:$0xf]
        %v5796 = vld [vmem:[#allocation2 + $0x1a0] sm:$0xf]
        %v5797 = vld [vmem:[#allocation2 + $0x1a4] sm:$0x3]
        %s5798 = scalar_lea.vmem %s3, 80
        %v5799 = vld [vmem:[%s5798] sm:$0xf]
        %v5800 = vld [vmem:[%s5798 + $0x4] sm:$0xf]
        %v5801 = vld [vmem:[%s5798 + $0x8] sm:$0xf]
        %v5802 = vld [vmem:[%s5798 + $0xc] sm:$0xf]
        %v5803 = vld [vmem:[%s5798 + $0x10] sm:$0xf]
        %v5804 = vld [vmem:[%s5798 + $0x14] sm:$0xf]
        %v5805 = vld [vmem:[%s5798 + $0x18] sm:$0xf]
        %v5806 = vld [vmem:[%s5798 + $0x1c] sm:$0xf]
        %v5807 = vld [vmem:[%s5798 + $0x20] sm:$0xf]
        %v5808 = vld [vmem:[%s5798 + $0x24] sm:$0xf]
        %v5908 = vunpack.c.l.b16 %v5699
        %v5909 = vunpack.c.l.b16 %v5700
        %v5910 = vunpack.c.l.b16 %v5701
        %v5911 = vunpack.c.l.b16 %v5702
        %v5912 = vunpack.c.l.b16 %v5703
        %v5913 = vunpack.c.l.b16 %v5704
        %v5914 = vunpack.c.l.b16 %v5705
        %v5915 = vunpack.c.l.b16 %v5706
        %v5916 = vunpack.c.l.b16 %v5707
        %v5917 = vunpack.c.l.b16 %v5708
        %v5918 = vunpack.c.l.b16 %v5709
        %v5919 = vunpack.c.l.b16 %v5710
        %v5920 = vunpack.c.l.b16 %v5711
        %v5921 = vunpack.c.l.b16 %v5712
        %v5922 = vunpack.c.l.b16 %v5713
        %v5923 = vunpack.c.l.b16 %v5714
        %v5924 = vunpack.c.l.b16 %v5715
        %v5925 = vunpack.c.l.b16 %v5716
        %v5926 = vunpack.c.l.b16 %v5717
        %v5927 = vunpack.c.l.b16 %v5718
        %v5928 = vunpack.c.l.b16 %v5719
        %v5929 = vunpack.c.l.b16 %v5720
        %v5930 = vunpack.c.l.b16 %v5721
        %v5931 = vunpack.c.l.b16 %v5722
        %v5932 = vunpack.c.l.b16 %v5723
        %v5933 = vunpack.c.l.b16 %v5724
        %v5934 = vunpack.c.l.b16 %v5725
        %v5935 = vunpack.c.l.b16 %v5726
        %v5936 = vunpack.c.l.b16 %v5727
        %v5937 = vunpack.c.l.b16 %v5728
        %v5938 = vunpack.c.l.b16 %v5729
        %v5939 = vunpack.c.l.b16 %v5730
        %v5940 = vunpack.c.l.b16 %v5731
        %v5941 = vunpack.c.l.b16 %v5732
        %v5942 = vunpack.c.l.b16 %v5733
        %v5943 = vunpack.c.l.b16 %v5734
        %v5944 = vunpack.c.l.b16 %v5735
        %v5945 = vunpack.c.l.b16 %v5736
        %v5946 = vunpack.c.l.b16 %v5737
        %v5947 = vunpack.c.l.b16 %v5738
        %v5948 = vunpack.c.l.b16 %v5739
        %v5949 = vunpack.c.l.b16 %v5740
        %v5950 = vunpack.c.l.b16 %v5741
        %v5951 = vunpack.c.l.b16 %v5742
        %v5952 = vunpack.c.l.b16 %v5743
        %v5953 = vunpack.c.l.b16 %v5744
        %v5954 = vunpack.c.l.b16 %v5745
        %v5955 = vunpack.c.l.b16 %v5746
        %v5956 = vunpack.c.l.b16 %v5747
        %v5957 = vunpack.c.l.b16 %v5748
        %v5958 = vunpack.c.l.b16 %v5749
        %v5959 = vunpack.c.l.b16 %v5750
        %v5960 = vunpack.c.l.b16 %v5751
        %v5961 = vunpack.c.l.b16 %v5752
        %v5962 = vunpack.c.l.b16 %v5753
        %v5963 = vunpack.c.l.b16 %v5754
        %v5964 = vunpack.c.l.b16 %v5755
        %v5965 = vunpack.c.l.b16 %v5756
        %v5966 = vunpack.c.l.b16 %v5757
        %v5967 = vunpack.c.l.b16 %v5758
        %v5968 = vunpack.c.l.b16 %v5759
        %v5969 = vunpack.c.l.b16 %v5760
        %v5970 = vunpack.c.l.b16 %v5761
        %v5971 = vunpack.c.l.b16 %v5762
        %v5972 = vunpack.c.l.b16 %v5763
        %v5973 = vunpack.c.l.b16 %v5764
        %v5974 = vunpack.c.l.b16 %v5765
        %v5975 = vunpack.c.l.b16 %v5766
        %v5976 = vunpack.c.l.b16 %v5767
        %v5977 = vunpack.c.l.b16 %v5768
        %v5978 = vunpack.c.l.b16 %v5769
        %v5979 = vunpack.c.l.b16 %v5770
        %v5980 = vunpack.c.l.b16 %v5771
        %v5981 = vunpack.c.l.b16 %v5772
        %v5982 = vunpack.c.l.b16 %v5773
        %v5983 = vunpack.c.l.b16 %v5774
        %v5984 = vunpack.c.l.b16 %v5775
        %v5985 = vunpack.c.l.b16 %v5776
        %v5986 = vunpack.c.l.b16 %v5777
        %v5987 = vunpack.c.l.b16 %v5778
        %v5988 = vunpack.c.l.b16 %v5779
        %v5989 = vunpack.c.l.b16 %v5780
        %v5990 = vunpack.c.l.b16 %v5781
        %v5991 = vunpack.c.l.b16 %v5782
        %v5992 = vunpack.c.l.b16 %v5783
        %v5993 = vunpack.c.l.b16 %v5784
        %v5994 = vunpack.c.l.b16 %v5785
        %v5995 = vunpack.c.l.b16 %v5786
        %v5996 = vunpack.c.l.b16 %v5787
        %v5997 = vunpack.c.l.b16 %v5788
        %v5998 = vunpack.c.l.b16 %v5789
        %v5999 = vunpack.c.l.b16 %v5790
        %v6000 = vunpack.c.l.b16 %v5791
        %v6001 = vunpack.c.l.b16 %v5792
        %v6002 = vunpack.c.l.b16 %v5793
        %v6003 = vunpack.c.l.b16 %v5794
        %v6004 = vunpack.c.l.b16 %v5795
        %v6005 = vunpack.c.l.b16 %v5796
        %v6006 = vunpack.c.l.b16 %v5797
        %v6007 = vpack.c.b16 %v5909, %v5908
        %v6008 = vpack.c.b16 %v5911, %v5910
        %v6009 = vpack.c.b16 %v5913, %v5912
        %v6010 = vpack.c.b16 %v5915, %v5914
        %v6011 = vpack.c.b16 %v5917, %v5916
        %v6012 = vpack.c.b16 %v5919, %v5918
        %v6013 = vpack.c.b16 %v5921, %v5920
        %v6014 = vpack.c.b16 %v5923, %v5922
        %v6015 = vpack.c.b16 %v5925, %v5924
        %v6016 = vpack.c.b16 %v5927, %v5926
        %v6017 = vpack.c.b16 %v5929, %v5928
        %v6018 = vpack.c.b16 %v5931, %v5930
        %v6019 = vpack.c.b16 %v5933, %v5932
        %v6020 = vpack.c.b16 %v5935, %v5934
        %v6021 = vpack.c.b16 %v5937, %v5936
        %v6022 = vpack.c.b16 %v5939, %v5938
        %v6023 = vpack.c.b16 %v5941, %v5940
        %v6024 = vpack.c.b16 %v5943, %v5942
        %v6025 = vpack.c.b16 %v5945, %v5944
        %v6026 = vpack.c.b16 %v5947, %v5946
        %v6027 = vpack.c.b16 %v5949, %v5948
        %v6028 = vpack.c.b16 %v5951, %v5950
        %v6029 = vpack.c.b16 %v5953, %v5952
        %v6030 = vpack.c.b16 %v5955, %v5954
        %v6031 = vpack.c.b16 %v5957, %v5956
        %v6032 = vpack.c.b16 %v5959, %v5958
        %v6033 = vpack.c.b16 %v5961, %v5960
        %v6034 = vpack.c.b16 %v5963, %v5962
        %v6035 = vpack.c.b16 %v5965, %v5964
        %v6036 = vpack.c.b16 %v5967, %v5966
        %v6037 = vpack.c.b16 %v5969, %v5968
        %v6038 = vpack.c.b16 %v5971, %v5970
        %v6039 = vpack.c.b16 %v5973, %v5972
        %v6040 = vpack.c.b16 %v5975, %v5974
        %v6041 = vpack.c.b16 %v5977, %v5976
        %v6042 = vpack.c.b16 %v5979, %v5978
        %v6043 = vpack.c.b16 %v5981, %v5980
        %v6044 = vpack.c.b16 %v5983, %v5982
        %v6045 = vpack.c.b16 %v5985, %v5984
        %v6046 = vpack.c.b16 %v5987, %v5986
        %v6047 = vpack.c.b16 %v5989, %v5988
        %v6048 = vpack.c.b16 %v5991, %v5990
        %v6049 = vpack.c.b16 %v5993, %v5992
        %v6050 = vpack.c.b16 %v5995, %v5994
        %v6051 = vpack.c.b16 %v5997, %v5996
        %v6052 = vpack.c.b16 %v5999, %v5998
        %v6053 = vpack.c.b16 %v6001, %v6000
        %v6054 = vpack.c.b16 %v6003, %v6002
        %v6055 = vpack.c.b16 %v6005, %v6004
        %v6056 = vpack.c.b16 %v6006, %v6006
        %v6057 = vrot.slane %v6007, 2
        %v6058 = vrot.slane %v6008, 2
        %v6059 = vsel %vm5168, %v6057, %v6058
        %v6060 = vrot.slane %v6009, 2
        %v6061 = vsel %vm5168, %v6058, %v6060
        %v6062 = vrot.slane %v6010, 2
        %v6063 = vsel %vm5168, %v6060, %v6062
        %v6064 = vrot.slane %v6011, 2
        %v6065 = vsel %vm5168, %v6062, %v6064
        %v6066 = vrot.slane %v6012, 2
        %v6067 = vsel %vm5168, %v6064, %v6066
        %v6068 = vrot.slane %v6013, 2
        %v6069 = vsel %vm5168, %v6066, %v6068
        %v6070 = vrot.slane %v6014, 2
        %v6071 = vsel %vm5168, %v6068, %v6070
        %v6072 = vrot.slane %v6015, 2
        %v6073 = vsel %vm5168, %v6070, %v6072
        %v6074 = vrot.slane %v6016, 2
        %v6075 = vsel %vm5168, %v6072, %v6074
        %v6076 = vrot.slane %v6017, 2
        %v6077 = vsel %vm5168, %v6074, %v6076
        %v6078 = vrot.slane %v6018, 2
        %v6079 = vsel %vm5168, %v6076, %v6078
        %v6080 = vrot.slane %v6019, 2
        %v6081 = vsel %vm5168, %v6078, %v6080
        %v6082 = vrot.slane %v6020, 2
        %v6083 = vsel %vm5168, %v6080, %v6082
        %v6084 = vrot.slane %v6021, 2
        %v6085 = vsel %vm5168, %v6082, %v6084
        %v6086 = vrot.slane %v6022, 2
        %v6087 = vsel %vm5168, %v6084, %v6086
        %v6088 = vrot.slane %v6023, 2
        %v6089 = vsel %vm5168, %v6086, %v6088
        %v6090 = vrot.slane %v6024, 2
        %v6091 = vsel %vm5168, %v6088, %v6090
        %v6092 = vrot.slane %v6025, 2
        %v6093 = vsel %vm5168, %v6090, %v6092
        %v6094 = vrot.slane %v6026, 2
        %v6095 = vsel %vm5168, %v6092, %v6094
        %v6096 = vrot.slane %v6027, 2
        %v6097 = vsel %vm5168, %v6094, %v6096
        %v6098 = vrot.slane %v6028, 2
        %v6099 = vsel %vm5168, %v6096, %v6098
        %v6100 = vrot.slane %v6029, 2
        %v6101 = vsel %vm5168, %v6098, %v6100
        %v6102 = vrot.slane %v6030, 2
        %v6103 = vsel %vm5168, %v6100, %v6102
        %v6104 = vrot.slane %v6031, 2
        %v6105 = vsel %vm5168, %v6102, %v6104
        %v6106 = vrot.slane %v6032, 2
        %v6107 = vsel %vm5168, %v6104, %v6106
        %v6108 = vrot.slane %v6033, 2
        %v6109 = vsel %vm5168, %v6106, %v6108
        %v6110 = vrot.slane %v6034, 2
        %v6111 = vsel %vm5168, %v6108, %v6110
        %v6112 = vrot.slane %v6035, 2
        %v6113 = vsel %vm5168, %v6110, %v6112
        %v6114 = vrot.slane %v6036, 2
        %v6115 = vsel %vm5168, %v6112, %v6114
        %v6116 = vrot.slane %v6037, 2
        %v6117 = vsel %vm5168, %v6114, %v6116
        %v6118 = vrot.slane %v6038, 2
        %v6119 = vsel %vm5168, %v6116, %v6118
        %v6120 = vrot.slane %v6039, 2
        %v6121 = vsel %vm5168, %v6118, %v6120
        %v6122 = vrot.slane %v6040, 2
        %v6123 = vsel %vm5168, %v6120, %v6122
        %v6124 = vrot.slane %v6041, 2
        %v6125 = vsel %vm5168, %v6122, %v6124
        %v6126 = vrot.slane %v6042, 2
        %v6127 = vsel %vm5168, %v6124, %v6126
        %v6128 = vrot.slane %v6043, 2
        %v6129 = vsel %vm5168, %v6126, %v6128
        %v6130 = vrot.slane %v6044, 2
        %v6131 = vsel %vm5168, %v6128, %v6130
        %v6132 = vrot.slane %v6045, 2
        %v6133 = vsel %vm5168, %v6130, %v6132
        %v6134 = vrot.slane %v6046, 2
        %v6135 = vsel %vm5168, %v6132, %v6134
        %v6136 = vrot.slane %v6047, 2
        %v6137 = vsel %vm5168, %v6134, %v6136
        %v6138 = vrot.slane %v6048, 2
        %v6139 = vsel %vm5168, %v6136, %v6138
        %v6140 = vrot.slane %v6049, 2
        %v6141 = vsel %vm5168, %v6138, %v6140
        %v6142 = vrot.slane %v6050, 2
        %v6143 = vsel %vm5168, %v6140, %v6142
        %v6144 = vrot.slane %v6051, 2
        %v6145 = vsel %vm5168, %v6142, %v6144
        %v6146 = vrot.slane %v6052, 2
        %v6147 = vsel %vm5168, %v6144, %v6146
        %v6148 = vrot.slane %v6053, 2
        %v6149 = vsel %vm5168, %v6146, %v6148
        %v6150 = vrot.slane %v6054, 2
        %v6151 = vsel %vm5168, %v6148, %v6150
        %v6152 = vrot.slane %v6055, 2
        %v6153 = vsel %vm5168, %v6150, %v6152
        %v6154 = vrot.slane %v6056, 2
        %v6155 = vsel %vm5168, %v6152, %v6154
        %v6166 = vunpack.c.l.b16 %v5799
        %v6167 = vunpack.c.l.b16 %v5800
        %v6168 = vunpack.c.l.b16 %v5801
        %v6169 = vunpack.c.l.b16 %v5802
        %v6170 = vunpack.c.l.b16 %v5803
        %v6171 = vunpack.c.l.b16 %v5804
        %v6172 = vunpack.c.l.b16 %v5805
        %v6173 = vunpack.c.l.b16 %v5806
        %v6174 = vunpack.c.l.b16 %v5807
        %v6175 = vunpack.c.l.b16 %v5808
        %v6176 = vpack.c.b16 %v6167, %v6166
        %v6177 = vpack.c.b16 %v6169, %v6168
        %v6178 = vpack.c.b16 %v6171, %v6170
        %v6179 = vpack.c.b16 %v6173, %v6172
        %v6180 = vpack.c.b16 %v6175, %v6174
        %v6187 = vsel %vm4753, %v6059, 0
        %v6190 = vsel %vm4753, %v6061, 0
        %v6193 = vsel %vm4753, %v6063, 0
        %v6196 = vsel %vm4753, %v6065, 0
        %v6199 = vsel %vm4753, %v6067, 0
        %v6202 = vsel %vm4753, %v6069, 0
        %v6205 = vsel %vm4753, %v6071, 0
        %v6208 = vsel %vm4753, %v6073, 0
        %v6211 = vsel %vm4753, %v6075, 0
        %v6214 = vsel %vm4753, %v6077, 0
        %v6217 = vsel %vm4753, %v6079, 0
        %v6220 = vsel %vm4753, %v6081, 0
        %v6223 = vsel %vm4753, %v6083, 0
        %v6226 = vsel %vm4753, %v6085, 0
        %v6229 = vsel %vm4753, %v6087, 0
        %v6232 = vsel %vm4753, %v6089, 0
        %v6235 = vsel %vm4753, %v6091, 0
        %v6238 = vsel %vm4753, %v6093, 0
        %v6241 = vsel %vm4753, %v6095, 0
        %v6244 = vsel %vm4753, %v6097, 0
        %v6247 = vsel %vm4753, %v6099, 0
        %v6250 = vsel %vm4753, %v6101, 0
        %v6253 = vsel %vm4753, %v6103, 0
        %v6256 = vsel %vm4753, %v6105, 0
        %v6259 = vsel %vm4753, %v6107, 0
        %v6262 = vsel %vm4753, %v6109, 0
        %v6265 = vsel %vm4753, %v6111, 0
        %v6268 = vsel %vm4753, %v6113, 0
        %v6271 = vsel %vm4753, %v6115, 0
        %v6274 = vsel %vm4753, %v6117, 0
        %v6277 = vsel %vm4753, %v6119, 0
        %v6280 = vsel %vm4753, %v6121, 0
        %v6283 = vsel %vm4753, %v6123, 0
        %v6286 = vsel %vm4753, %v6125, 0
        %v6289 = vsel %vm4753, %v6127, 0
        %v6292 = vsel %vm4753, %v6129, 0
        %v6295 = vsel %vm4753, %v6131, 0
        %v6298 = vsel %vm4753, %v6133, 0
        %v6301 = vsel %vm4753, %v6135, 0
        %v6304 = vsel %vm4753, %v6137, 0
        %v6307 = vsel %vm4753, %v6139, 0
        %v6310 = vsel %vm4753, %v6141, 0
        %v6313 = vsel %vm4753, %v6143, 0
        %v6316 = vsel %vm4753, %v6145, 0
        %v6319 = vsel %vm4753, %v6147, 0
        %v6322 = vsel %vm4753, %v6149, 0
        %v6325 = vsel %vm4753, %v6151, 0
        %v6328 = vsel %vm4753, %v6153, 0
        %v6331 = vsel %vm4753, %v6155, 0
        %6333 = vmatpush.bf16.msra.mxu0 0
        %6334 = vmatpush.bf16.msra.mxu0 0
        %6335 = vmatpush.bf16.msra.mxu0 0
        %6336 = vmatpush.bf16.msra.mxu0 %v6180
        %6337 = vmatpush.bf16.msra.mxu0 %v6179
        %6338 = vmatpush.bf16.msra.mxu0 %v6178
        %6339 = vmatpush.bf16.msra.mxu0 %v6177
        %6340 = vmatpush.bf16.msra.mxu0 %v6176
        %6341 = vmatmul.bf16.gmra.mxu0 %v6187
        %v6342 = vpop.f32.mrf.mxu0
        %v6343 = vadd.f32 0.0, %v6342
        %v6344 = vpop.f32.mrf.mxu0
        %v6345 = vadd.f32 0.0, %v6344
        %6346 = vmatmul.bf16.gmra.mxu0 %v6190
        %v6347 = vpop.f32.mrf.mxu0
        %v6348 = vadd.f32 0.0, %v6347
        %v6349 = vpop.f32.mrf.mxu0
        %v6350 = vadd.f32 0.0, %v6349
        %6351 = vmatmul.bf16.gmra.mxu0 %v6193
        %v6352 = vpop.f32.mrf.mxu0
        %v6353 = vadd.f32 0.0, %v6352
        %v6354 = vpop.f32.mrf.mxu0
        %v6355 = vadd.f32 0.0, %v6354
        %6356 = vmatmul.bf16.gmra.mxu0 %v6196
        %v6357 = vpop.f32.mrf.mxu0
        %v6358 = vadd.f32 0.0, %v6357
        %v6359 = vpop.f32.mrf.mxu0
        %v6360 = vadd.f32 0.0, %v6359
        %6361 = vmatmul.bf16.gmra.mxu0 %v6199
        %v6362 = vpop.f32.mrf.mxu0
        %v6363 = vadd.f32 0.0, %v6362
        %v6364 = vpop.f32.mrf.mxu0
        %v6365 = vadd.f32 0.0, %v6364
        %6366 = vmatmul.bf16.gmra.mxu0 %v6202
        %v6367 = vpop.f32.mrf.mxu0
        %v6368 = vadd.f32 0.0, %v6367
        %v6369 = vpop.f32.mrf.mxu0
        %v6370 = vadd.f32 0.0, %v6369
        %6371 = vmatmul.bf16.gmra.mxu0 %v6205
        %v6372 = vpop.f32.mrf.mxu0
        %v6373 = vadd.f32 0.0, %v6372
        %v6374 = vpop.f32.mrf.mxu0
        %v6375 = vadd.f32 0.0, %v6374
        %6376 = vmatmul.bf16.gmra.mxu0 %v6208
        %v6377 = vpop.f32.mrf.mxu0
        %v6378 = vadd.f32 0.0, %v6377
        %v6379 = vpop.f32.mrf.mxu0
        %v6380 = vadd.f32 0.0, %v6379
        %6381 = vmatmul.bf16.gmra.mxu0 %v6211
        %v6382 = vpop.f32.mrf.mxu0
        %v6383 = vadd.f32 0.0, %v6382
        %v6384 = vpop.f32.mrf.mxu0
        %v6385 = vadd.f32 0.0, %v6384
        %6386 = vmatmul.bf16.gmra.mxu0 %v6214
        %v6387 = vpop.f32.mrf.mxu0
        %v6388 = vadd.f32 0.0, %v6387
        %v6389 = vpop.f32.mrf.mxu0
        %v6390 = vadd.f32 0.0, %v6389
        %6391 = vmatmul.bf16.gmra.mxu0 %v6217
        %v6392 = vpop.f32.mrf.mxu0
        %v6393 = vadd.f32 0.0, %v6392
        %v6394 = vpop.f32.mrf.mxu0
        %v6395 = vadd.f32 0.0, %v6394
        %6396 = vmatmul.bf16.gmra.mxu0 %v6220
        %v6397 = vpop.f32.mrf.mxu0
        %v6398 = vadd.f32 0.0, %v6397
        %v6399 = vpop.f32.mrf.mxu0
        %v6400 = vadd.f32 0.0, %v6399
        %6401 = vmatmul.bf16.gmra.mxu0 %v6223
        %v6402 = vpop.f32.mrf.mxu0
        %v6403 = vadd.f32 0.0, %v6402
        %v6404 = vpop.f32.mrf.mxu0
        %v6405 = vadd.f32 0.0, %v6404
        %6406 = vmatmul.bf16.gmra.mxu0 %v6226
        %v6407 = vpop.f32.mrf.mxu0
        %v6408 = vadd.f32 0.0, %v6407
        %v6409 = vpop.f32.mrf.mxu0
        %v6410 = vadd.f32 0.0, %v6409
        %6411 = vmatmul.bf16.gmra.mxu0 %v6229
        %v6412 = vpop.f32.mrf.mxu0
        %v6413 = vadd.f32 0.0, %v6412
        %v6414 = vpop.f32.mrf.mxu0
        %v6415 = vadd.f32 0.0, %v6414
        %6416 = vmatmul.bf16.gmra.mxu0 %v6232
        %v6417 = vpop.f32.mrf.mxu0
        %v6418 = vadd.f32 0.0, %v6417
        %v6419 = vpop.f32.mrf.mxu0
        %v6420 = vadd.f32 0.0, %v6419
        %6421 = vmatmul.bf16.gmra.mxu0 %v6235
        %v6422 = vpop.f32.mrf.mxu0
        %v6423 = vadd.f32 0.0, %v6422
        %v6424 = vpop.f32.mrf.mxu0
        %v6425 = vadd.f32 0.0, %v6424
        %6426 = vmatmul.bf16.gmra.mxu0 %v6238
        %v6427 = vpop.f32.mrf.mxu0
        %v6428 = vadd.f32 0.0, %v6427
        %v6429 = vpop.f32.mrf.mxu0
        %v6430 = vadd.f32 0.0, %v6429
        %6431 = vmatmul.bf16.gmra.mxu0 %v6241
        %v6432 = vpop.f32.mrf.mxu0
        %v6433 = vadd.f32 0.0, %v6432
        %v6434 = vpop.f32.mrf.mxu0
        %v6435 = vadd.f32 0.0, %v6434
        %6436 = vmatmul.bf16.gmra.mxu0 %v6244
        %v6437 = vpop.f32.mrf.mxu0
        %v6438 = vadd.f32 0.0, %v6437
        %v6439 = vpop.f32.mrf.mxu0
        %v6440 = vadd.f32 0.0, %v6439
        %6441 = vmatmul.bf16.gmra.mxu0 %v6247
        %v6442 = vpop.f32.mrf.mxu0
        %v6443 = vadd.f32 0.0, %v6442
        %v6444 = vpop.f32.mrf.mxu0
        %v6445 = vadd.f32 0.0, %v6444
        %6446 = vmatmul.bf16.gmra.mxu0 %v6250
        %v6447 = vpop.f32.mrf.mxu0
        %v6448 = vadd.f32 0.0, %v6447
        %v6449 = vpop.f32.mrf.mxu0
        %v6450 = vadd.f32 0.0, %v6449
        %6451 = vmatmul.bf16.gmra.mxu0 %v6253
        %v6452 = vpop.f32.mrf.mxu0
        %v6453 = vadd.f32 0.0, %v6452
        %v6454 = vpop.f32.mrf.mxu0
        %v6455 = vadd.f32 0.0, %v6454
        %6456 = vmatmul.bf16.gmra.mxu0 %v6256
        %v6457 = vpop.f32.mrf.mxu0
        %v6458 = vadd.f32 0.0, %v6457
        %v6459 = vpop.f32.mrf.mxu0
        %v6460 = vadd.f32 0.0, %v6459
        %6461 = vmatmul.bf16.gmra.mxu0 %v6259
        %v6462 = vpop.f32.mrf.mxu0
        %v6463 = vadd.f32 0.0, %v6462
        %v6464 = vpop.f32.mrf.mxu0
        %v6465 = vadd.f32 0.0, %v6464
        %6466 = vmatmul.bf16.gmra.mxu0 %v6262
        %v6467 = vpop.f32.mrf.mxu0
        %v6468 = vadd.f32 0.0, %v6467
        %v6469 = vpop.f32.mrf.mxu0
        %v6470 = vadd.f32 0.0, %v6469
        %6471 = vmatmul.bf16.gmra.mxu0 %v6265
        %v6472 = vpop.f32.mrf.mxu0
        %v6473 = vadd.f32 0.0, %v6472
        %v6474 = vpop.f32.mrf.mxu0
        %v6475 = vadd.f32 0.0, %v6474
        %6476 = vmatmul.bf16.gmra.mxu0 %v6268
        %v6477 = vpop.f32.mrf.mxu0
        %v6478 = vadd.f32 0.0, %v6477
        %v6479 = vpop.f32.mrf.mxu0
        %v6480 = vadd.f32 0.0, %v6479
        %6481 = vmatmul.bf16.gmra.mxu0 %v6271
        %v6482 = vpop.f32.mrf.mxu0
        %v6483 = vadd.f32 0.0, %v6482
        %v6484 = vpop.f32.mrf.mxu0
        %v6485 = vadd.f32 0.0, %v6484
        %6486 = vmatmul.bf16.gmra.mxu0 %v6274
        %v6487 = vpop.f32.mrf.mxu0
        %v6488 = vadd.f32 0.0, %v6487
        %v6489 = vpop.f32.mrf.mxu0
        %v6490 = vadd.f32 0.0, %v6489
        %6491 = vmatmul.bf16.gmra.mxu0 %v6277
        %v6492 = vpop.f32.mrf.mxu0
        %v6493 = vadd.f32 0.0, %v6492
        %v6494 = vpop.f32.mrf.mxu0
        %v6495 = vadd.f32 0.0, %v6494
        %6496 = vmatmul.bf16.gmra.mxu0 %v6280
        %v6497 = vpop.f32.mrf.mxu0
        %v6498 = vadd.f32 0.0, %v6497
        %v6499 = vpop.f32.mrf.mxu0
        %v6500 = vadd.f32 0.0, %v6499
        %6501 = vmatmul.bf16.gmra.mxu0 %v6283
        %v6502 = vpop.f32.mrf.mxu0
        %v6503 = vadd.f32 0.0, %v6502
        %v6504 = vpop.f32.mrf.mxu0
        %v6505 = vadd.f32 0.0, %v6504
        %6506 = vmatmul.bf16.gmra.mxu0 %v6286
        %v6507 = vpop.f32.mrf.mxu0
        %v6508 = vadd.f32 0.0, %v6507
        %v6509 = vpop.f32.mrf.mxu0
        %v6510 = vadd.f32 0.0, %v6509
        %6511 = vmatmul.bf16.gmra.mxu0 %v6289
        %v6512 = vpop.f32.mrf.mxu0
        %v6513 = vadd.f32 0.0, %v6512
        %v6514 = vpop.f32.mrf.mxu0
        %v6515 = vadd.f32 0.0, %v6514
        %6516 = vmatmul.bf16.gmra.mxu0 %v6292
        %v6517 = vpop.f32.mrf.mxu0
        %v6518 = vadd.f32 0.0, %v6517
        %v6519 = vpop.f32.mrf.mxu0
        %v6520 = vadd.f32 0.0, %v6519
        %6521 = vmatmul.bf16.gmra.mxu0 %v6295
        %v6522 = vpop.f32.mrf.mxu0
        %v6523 = vadd.f32 0.0, %v6522
        %v6524 = vpop.f32.mrf.mxu0
        %v6525 = vadd.f32 0.0, %v6524
        %6526 = vmatmul.bf16.gmra.mxu0 %v6298
        %v6527 = vpop.f32.mrf.mxu0
        %v6528 = vadd.f32 0.0, %v6527
        %v6529 = vpop.f32.mrf.mxu0
        %v6530 = vadd.f32 0.0, %v6529
        %6531 = vmatmul.bf16.gmra.mxu0 %v6301
        %v6532 = vpop.f32.mrf.mxu0
        %v6533 = vadd.f32 0.0, %v6532
        %v6534 = vpop.f32.mrf.mxu0
        %v6535 = vadd.f32 0.0, %v6534
        %6536 = vmatmul.bf16.gmra.mxu0 %v6304
        %v6537 = vpop.f32.mrf.mxu0
        %v6538 = vadd.f32 0.0, %v6537
        %v6539 = vpop.f32.mrf.mxu0
        %v6540 = vadd.f32 0.0, %v6539
        %6541 = vmatmul.bf16.gmra.mxu0 %v6307
        %v6542 = vpop.f32.mrf.mxu0
        %v6543 = vadd.f32 0.0, %v6542
        %v6544 = vpop.f32.mrf.mxu0
        %v6545 = vadd.f32 0.0, %v6544
        %6546 = vmatmul.bf16.gmra.mxu0 %v6310
        %v6547 = vpop.f32.mrf.mxu0
        %v6548 = vadd.f32 0.0, %v6547
        %v6549 = vpop.f32.mrf.mxu0
        %v6550 = vadd.f32 0.0, %v6549
        %6551 = vmatmul.bf16.gmra.mxu0 %v6313
        %v6552 = vpop.f32.mrf.mxu0
        %v6553 = vadd.f32 0.0, %v6552
        %v6554 = vpop.f32.mrf.mxu0
        %v6555 = vadd.f32 0.0, %v6554
        %6556 = vmatmul.bf16.gmra.mxu0 %v6316
        %v6557 = vpop.f32.mrf.mxu0
        %v6558 = vadd.f32 0.0, %v6557
        %v6559 = vpop.f32.mrf.mxu0
        %v6560 = vadd.f32 0.0, %v6559
        %6561 = vmatmul.bf16.gmra.mxu0 %v6319
        %v6562 = vpop.f32.mrf.mxu0
        %v6563 = vadd.f32 0.0, %v6562
        %v6564 = vpop.f32.mrf.mxu0
        %v6565 = vadd.f32 0.0, %v6564
        %6566 = vmatmul.bf16.gmra.mxu0 %v6322
        %v6567 = vpop.f32.mrf.mxu0
        %v6568 = vadd.f32 0.0, %v6567
        %v6569 = vpop.f32.mrf.mxu0
        %v6570 = vadd.f32 0.0, %v6569
        %6571 = vmatmul.bf16.gmra.mxu0 %v6325
        %v6572 = vpop.f32.mrf.mxu0
        %v6573 = vadd.f32 0.0, %v6572
        %v6574 = vpop.f32.mrf.mxu0
        %v6575 = vadd.f32 0.0, %v6574
        %6576 = vmatmul.bf16.gmra.mxu0 %v6328
        %v6577 = vpop.f32.mrf.mxu0
        %v6578 = vadd.f32 0.0, %v6577
        %v6579 = vpop.f32.mrf.mxu0
        %v6580 = vadd.f32 0.0, %v6579
        %6581 = vmatmul.bf16.gmra.mxu0 %v6331
        %v6582 = vpop.f32.mrf.mxu0
        %v6583 = vadd.f32 0.0, %v6582
        %v6584 = vpop.f32.mrf.mxu0
        %v6585 = vadd.f32 0.0, %v6584
        %6586 = vdwg.mxu0
        %v6587 = vadd.f32 %v5455, %v6343
        %v6588 = vadd.f32 %v5457, %v6345
        %v6589 = vadd.f32 %v5460, %v6348
        %v6590 = vadd.f32 %v5462, %v6350
        %v6591 = vadd.f32 %v5465, %v6353
        %v6592 = vadd.f32 %v5467, %v6355
        %v6593 = vadd.f32 %v5470, %v6358
        %v6594 = vadd.f32 %v5472, %v6360
        %v6595 = vadd.f32 %v5475, %v6363
        %v6596 = vadd.f32 %v5477, %v6365
        %v6597 = vadd.f32 %v5480, %v6368
        %v6598 = vadd.f32 %v5482, %v6370
        %v6599 = vadd.f32 %v5485, %v6373
        %v6600 = vadd.f32 %v5487, %v6375
        %v6601 = vadd.f32 %v5490, %v6378
        %v6602 = vadd.f32 %v5492, %v6380
        %v6603 = vadd.f32 %v5495, %v6383
        %v6604 = vadd.f32 %v5497, %v6385
        %v6605 = vadd.f32 %v5500, %v6388
        %v6606 = vadd.f32 %v5502, %v6390
        %v6607 = vadd.f32 %v5505, %v6393
        %v6608 = vadd.f32 %v5507, %v6395
        %v6609 = vadd.f32 %v5510, %v6398
        %v6610 = vadd.f32 %v5512, %v6400
        %v6611 = vadd.f32 %v5515, %v6403
        %v6612 = vadd.f32 %v5517, %v6405
        %v6613 = vadd.f32 %v5520, %v6408
        %v6614 = vadd.f32 %v5522, %v6410
        %v6615 = vadd.f32 %v5525, %v6413
        %v6616 = vadd.f32 %v5527, %v6415
        %v6617 = vadd.f32 %v5530, %v6418
        %v6618 = vadd.f32 %v5532, %v6420
        %v6619 = vadd.f32 %v5535, %v6423
        %v6620 = vadd.f32 %v5537, %v6425
        %v6621 = vadd.f32 %v5540, %v6428
        %v6622 = vadd.f32 %v5542, %v6430
        %v6623 = vadd.f32 %v5545, %v6433
        %v6624 = vadd.f32 %v5547, %v6435
        %v6625 = vadd.f32 %v5550, %v6438
        %v6626 = vadd.f32 %v5552, %v6440
        %v6627 = vadd.f32 %v5555, %v6443
        %v6628 = vadd.f32 %v5557, %v6445
        %v6629 = vadd.f32 %v5560, %v6448
        %v6630 = vadd.f32 %v5562, %v6450
        %v6631 = vadd.f32 %v5565, %v6453
        %v6632 = vadd.f32 %v5567, %v6455
        %v6633 = vadd.f32 %v5570, %v6458
        %v6634 = vadd.f32 %v5572, %v6460
        %v6635 = vadd.f32 %v5575, %v6463
        %v6636 = vadd.f32 %v5577, %v6465
        %v6637 = vadd.f32 %v5580, %v6468
        %v6638 = vadd.f32 %v5582, %v6470
        %v6639 = vadd.f32 %v5585, %v6473
        %v6640 = vadd.f32 %v5587, %v6475
        %v6641 = vadd.f32 %v5590, %v6478
        %v6642 = vadd.f32 %v5592, %v6480
        %v6643 = vadd.f32 %v5595, %v6483
        %v6644 = vadd.f32 %v5597, %v6485
        %v6645 = vadd.f32 %v5600, %v6488
        %v6646 = vadd.f32 %v5602, %v6490
        %v6647 = vadd.f32 %v5605, %v6493
        %v6648 = vadd.f32 %v5607, %v6495
        %v6649 = vadd.f32 %v5610, %v6498
        %v6650 = vadd.f32 %v5612, %v6500
        %v6651 = vadd.f32 %v5615, %v6503
        %v6652 = vadd.f32 %v5617, %v6505
        %v6653 = vadd.f32 %v5620, %v6508
        %v6654 = vadd.f32 %v5622, %v6510
        %v6655 = vadd.f32 %v5625, %v6513
        %v6656 = vadd.f32 %v5627, %v6515
        %v6657 = vadd.f32 %v5630, %v6518
        %v6658 = vadd.f32 %v5632, %v6520
        %v6659 = vadd.f32 %v5635, %v6523
        %v6660 = vadd.f32 %v5637, %v6525
        %v6661 = vadd.f32 %v5640, %v6528
        %v6662 = vadd.f32 %v5642, %v6530
        %v6663 = vadd.f32 %v5645, %v6533
        %v6664 = vadd.f32 %v5647, %v6535
        %v6665 = vadd.f32 %v5650, %v6538
        %v6666 = vadd.f32 %v5652, %v6540
        %v6667 = vadd.f32 %v5655, %v6543
        %v6668 = vadd.f32 %v5657, %v6545
        %v6669 = vadd.f32 %v5660, %v6548
        %v6670 = vadd.f32 %v5662, %v6550
        %v6671 = vadd.f32 %v5665, %v6553
        %v6672 = vadd.f32 %v5667, %v6555
        %v6673 = vadd.f32 %v5670, %v6558
        %v6674 = vadd.f32 %v5672, %v6560
        %v6675 = vadd.f32 %v5675, %v6563
        %v6676 = vadd.f32 %v5677, %v6565
        %v6677 = vadd.f32 %v5680, %v6568
        %v6678 = vadd.f32 %v5682, %v6570
        %v6679 = vadd.f32 %v5685, %v6573
        %v6680 = vadd.f32 %v5687, %v6575
        %v6681 = vadd.f32 %v5690, %v6578
        %v6682 = vadd.f32 %v5692, %v6580
        %v6683 = vadd.f32 %v5695, %v6583
        %v6684 = vadd.f32 %v5697, %v6585
        %v6685 = vld [vmem:[#allocation2 + $0x2c] sm:$0xf]
        %v6686 = vld [vmem:[#allocation2 + $0x30] sm:$0xf]
        %v6687 = vld [vmem:[#allocation2 + $0x34] sm:$0xf]
        %v6688 = vld [vmem:[#allocation2 + $0x38] sm:$0xf]
        %v6689 = vld [vmem:[#allocation2 + $0x3c] sm:$0xf]
        %v6690 = vld [vmem:[#allocation2 + $0x40] sm:$0xf]
        %v6691 = vld [vmem:[#allocation2 + $0x44] sm:$0xf]
        %v6692 = vld [vmem:[#allocation2 + $0x48] sm:$0xf]
        %v6693 = vld [vmem:[#allocation2 + $0x4c] sm:$0xf]
        %v6694 = vld [vmem:[#allocation2 + $0x50] sm:$0xf]
        %v6695 = vld [vmem:[#allocation2 + $0x54] sm:$0xf]
        %v6696 = vld [vmem:[#allocation2 + $0x58] sm:$0xf]
        %v6697 = vld [vmem:[#allocation2 + $0x5c] sm:$0xf]
        %v6698 = vld [vmem:[#allocation2 + $0x60] sm:$0xf]
        %v6699 = vld [vmem:[#allocation2 + $0x64] sm:$0xf]
        %v6700 = vld [vmem:[#allocation2 + $0x68] sm:$0xf]
        %v6701 = vld [vmem:[#allocation2 + $0x6c] sm:$0xf]
        %v6702 = vld [vmem:[#allocation2 + $0x70] sm:$0xf]
        %v6703 = vld [vmem:[#allocation2 + $0x74] sm:$0xf]
        %v6704 = vld [vmem:[#allocation2 + $0x78] sm:$0xf]
        %v6705 = vld [vmem:[#allocation2 + $0x7c] sm:$0xf]
        %v6706 = vld [vmem:[#allocation2 + $0x80] sm:$0xf]
        %v6707 = vld [vmem:[#allocation2 + $0x84] sm:$0xf]
        %v6708 = vld [vmem:[#allocation2 + $0x88] sm:$0xf]
        %v6709 = vld [vmem:[#allocation2 + $0x8c] sm:$0xf]
        %v6710 = vld [vmem:[#allocation2 + $0x90] sm:$0xf]
        %v6711 = vld [vmem:[#allocation2 + $0x94] sm:$0xf]
        %v6712 = vld [vmem:[#allocation2 + $0x98] sm:$0xf]
        %v6713 = vld [vmem:[#allocation2 + $0x9c] sm:$0xf]
        %v6714 = vld [vmem:[#allocation2 + $0xa0] sm:$0xf]
        %v6715 = vld [vmem:[#allocation2 + $0xa4] sm:$0xf]
        %v6716 = vld [vmem:[#allocation2 + $0xa8] sm:$0xf]
        %v6717 = vld [vmem:[#allocation2 + $0xac] sm:$0xf]
        %v6718 = vld [vmem:[#allocation2 + $0xb0] sm:$0xf]
        %v6719 = vld [vmem:[#allocation2 + $0xb4] sm:$0xf]
        %v6720 = vld [vmem:[#allocation2 + $0xb8] sm:$0xf]
        %v6721 = vld [vmem:[#allocation2 + $0xbc] sm:$0xf]
        %v6722 = vld [vmem:[#allocation2 + $0xc0] sm:$0xf]
        %v6723 = vld [vmem:[#allocation2 + $0xc4] sm:$0xf]
        %v6724 = vld [vmem:[#allocation2 + $0xc8] sm:$0xf]
        %v6725 = vld [vmem:[#allocation2 + $0xcc] sm:$0xf]
        %v6726 = vld [vmem:[#allocation2 + $0xd0] sm:$0xf]
        %v6727 = vld [vmem:[#allocation2 + $0xd4] sm:$0xf]
        %v6728 = vld [vmem:[#allocation2 + $0xd8] sm:$0xf]
        %v6729 = vld [vmem:[#allocation2 + $0xdc] sm:$0xf]
        %v6730 = vld [vmem:[#allocation2 + $0xe0] sm:$0xf]
        %v6731 = vld [vmem:[#allocation2 + $0xe4] sm:$0xf]
        %v6732 = vld [vmem:[#allocation2 + $0xe8] sm:$0xf]
        %v6733 = vld [vmem:[#allocation2 + $0xec] sm:$0xf]
        %v6734 = vld [vmem:[#allocation2 + $0xf0] sm:$0xf]
        %v6735 = vld [vmem:[#allocation2 + $0xf4] sm:$0xf]
        %v6736 = vld [vmem:[#allocation2 + $0xf8] sm:$0xf]
        %v6737 = vld [vmem:[#allocation2 + $0xfc] sm:$0xf]
        %v6738 = vld [vmem:[#allocation2 + $0x100] sm:$0xf]
        %v6739 = vld [vmem:[#allocation2 + $0x104] sm:$0xf]
        %v6740 = vld [vmem:[#allocation2 + $0x108] sm:$0xf]
        %v6741 = vld [vmem:[#allocation2 + $0x10c] sm:$0xf]
        %v6742 = vld [vmem:[#allocation2 + $0x110] sm:$0xf]
        %v6743 = vld [vmem:[#allocation2 + $0x114] sm:$0xf]
        %v6744 = vld [vmem:[#allocation2 + $0x118] sm:$0xf]
        %v6745 = vld [vmem:[#allocation2 + $0x11c] sm:$0xf]
        %v6746 = vld [vmem:[#allocation2 + $0x120] sm:$0xf]
        %v6747 = vld [vmem:[#allocation2 + $0x124] sm:$0xf]
        %v6748 = vld [vmem:[#allocation2 + $0x128] sm:$0xf]
        %v6749 = vld [vmem:[#allocation2 + $0x12c] sm:$0xf]
        %v6750 = vld [vmem:[#allocation2 + $0x130] sm:$0xf]
        %v6751 = vld [vmem:[#allocation2 + $0x134] sm:$0xf]
        %v6752 = vld [vmem:[#allocation2 + $0x138] sm:$0xf]
        %v6753 = vld [vmem:[#allocation2 + $0x13c] sm:$0xf]
        %v6754 = vld [vmem:[#allocation2 + $0x140] sm:$0xf]
        %v6755 = vld [vmem:[#allocation2 + $0x144] sm:$0xf]
        %v6756 = vld [vmem:[#allocation2 + $0x148] sm:$0xf]
        %v6757 = vld [vmem:[#allocation2 + $0x14c] sm:$0xf]
        %v6758 = vld [vmem:[#allocation2 + $0x150] sm:$0xf]
        %v6759 = vld [vmem:[#allocation2 + $0x154] sm:$0xf]
        %v6760 = vld [vmem:[#allocation2 + $0x158] sm:$0xf]
        %v6761 = vld [vmem:[#allocation2 + $0x15c] sm:$0xf]
        %v6762 = vld [vmem:[#allocation2 + $0x160] sm:$0xf]
        %v6763 = vld [vmem:[#allocation2 + $0x164] sm:$0xf]
        %v6764 = vld [vmem:[#allocation2 + $0x168] sm:$0xf]
        %v6765 = vld [vmem:[#allocation2 + $0x16c] sm:$0xf]
        %v6766 = vld [vmem:[#allocation2 + $0x170] sm:$0xf]
        %v6767 = vld [vmem:[#allocation2 + $0x174] sm:$0xf]
        %v6768 = vld [vmem:[#allocation2 + $0x178] sm:$0xf]
        %v6769 = vld [vmem:[#allocation2 + $0x17c] sm:$0xf]
        %v6770 = vld [vmem:[#allocation2 + $0x180] sm:$0xf]
        %v6771 = vld [vmem:[#allocation2 + $0x184] sm:$0xf]
        %v6772 = vld [vmem:[#allocation2 + $0x188] sm:$0xf]
        %v6773 = vld [vmem:[#allocation2 + $0x18c] sm:$0xf]
        %v6774 = vld [vmem:[#allocation2 + $0x190] sm:$0xf]
        %v6775 = vld [vmem:[#allocation2 + $0x194] sm:$0xf]
        %v6776 = vld [vmem:[#allocation2 + $0x198] sm:$0xf]
        %v6777 = vld [vmem:[#allocation2 + $0x19c] sm:$0xf]
        %v6778 = vld [vmem:[#allocation2 + $0x1a0] sm:$0xf]
        %v6779 = vld [vmem:[#allocation2 + $0x1a4] sm:$0xf]
        %v6780 = vld [vmem:[#allocation2 + $0x1a8] sm:$0xf]
        %v6781 = vld [vmem:[#allocation2 + $0x1ac] sm:$0xf]
        %v6782 = vld [vmem:[#allocation2 + $0x1b0] sm:$0xf]
        %s6783 = scalar_lea.vmem %s3, 120
        %v6784 = vld [vmem:[%s6783] sm:$0xf]
        %v6785 = vld [vmem:[%s6783 + $0x4] sm:$0xf]
        %v6786 = vld [vmem:[%s6783 + $0x8] sm:$0xf]
        %v6787 = vld [vmem:[%s6783 + $0xc] sm:$0xf]
        %v6788 = vld [vmem:[%s6783 + $0x10] sm:$0xf]
        %v6789 = vld [vmem:[%s6783 + $0x14] sm:$0xf]
        %v6790 = vld [vmem:[%s6783 + $0x18] sm:$0xf]
        %v6791 = vld [vmem:[%s6783 + $0x1c] sm:$0xf]
        %v6792 = vld [vmem:[%s6783 + $0x20] sm:$0xf]
        %v6793 = vld [vmem:[%s6783 + $0x24] sm:$0xf]
        %v6892 = vunpack.c.l.b16 %v6685
        %v6893 = vunpack.c.l.b16 %v6686
        %v6894 = vunpack.c.l.b16 %v6687
        %v6895 = vunpack.c.l.b16 %v6688
        %v6896 = vunpack.c.l.b16 %v6689
        %v6897 = vunpack.c.l.b16 %v6690
        %v6898 = vunpack.c.l.b16 %v6691
        %v6899 = vunpack.c.l.b16 %v6692
        %v6900 = vunpack.c.l.b16 %v6693
        %v6901 = vunpack.c.l.b16 %v6694
        %v6902 = vunpack.c.l.b16 %v6695
        %v6903 = vunpack.c.l.b16 %v6696
        %v6904 = vunpack.c.l.b16 %v6697
        %v6905 = vunpack.c.l.b16 %v6698
        %v6906 = vunpack.c.l.b16 %v6699
        %v6907 = vunpack.c.l.b16 %v6700
        %v6908 = vunpack.c.l.b16 %v6701
        %v6909 = vunpack.c.l.b16 %v6702
        %v6910 = vunpack.c.l.b16 %v6703
        %v6911 = vunpack.c.l.b16 %v6704
        %v6912 = vunpack.c.l.b16 %v6705
        %v6913 = vunpack.c.l.b16 %v6706
        %v6914 = vunpack.c.l.b16 %v6707
        %v6915 = vunpack.c.l.b16 %v6708
        %v6916 = vunpack.c.l.b16 %v6709
        %v6917 = vunpack.c.l.b16 %v6710
        %v6918 = vunpack.c.l.b16 %v6711
        %v6919 = vunpack.c.l.b16 %v6712
        %v6920 = vunpack.c.l.b16 %v6713
        %v6921 = vunpack.c.l.b16 %v6714
        %v6922 = vunpack.c.l.b16 %v6715
        %v6923 = vunpack.c.l.b16 %v6716
        %v6924 = vunpack.c.l.b16 %v6717
        %v6925 = vunpack.c.l.b16 %v6718
        %v6926 = vunpack.c.l.b16 %v6719
        %v6927 = vunpack.c.l.b16 %v6720
        %v6928 = vunpack.c.l.b16 %v6721
        %v6929 = vunpack.c.l.b16 %v6722
        %v6930 = vunpack.c.l.b16 %v6723
        %v6931 = vunpack.c.l.b16 %v6724
        %v6932 = vunpack.c.l.b16 %v6725
        %v6933 = vunpack.c.l.b16 %v6726
        %v6934 = vunpack.c.l.b16 %v6727
        %v6935 = vunpack.c.l.b16 %v6728
        %v6936 = vunpack.c.l.b16 %v6729
        %v6937 = vunpack.c.l.b16 %v6730
        %v6938 = vunpack.c.l.b16 %v6731
        %v6939 = vunpack.c.l.b16 %v6732
        %v6940 = vunpack.c.l.b16 %v6733
        %v6941 = vunpack.c.l.b16 %v6734
        %v6942 = vunpack.c.l.b16 %v6735
        %v6943 = vunpack.c.l.b16 %v6736
        %v6944 = vunpack.c.l.b16 %v6737
        %v6945 = vunpack.c.l.b16 %v6738
        %v6946 = vunpack.c.l.b16 %v6739
        %v6947 = vunpack.c.l.b16 %v6740
        %v6948 = vunpack.c.l.b16 %v6741
        %v6949 = vunpack.c.l.b16 %v6742
        %v6950 = vunpack.c.l.b16 %v6743
        %v6951 = vunpack.c.l.b16 %v6744
        %v6952 = vunpack.c.l.b16 %v6745
        %v6953 = vunpack.c.l.b16 %v6746
        %v6954 = vunpack.c.l.b16 %v6747
        %v6955 = vunpack.c.l.b16 %v6748
        %v6956 = vunpack.c.l.b16 %v6749
        %v6957 = vunpack.c.l.b16 %v6750
        %v6958 = vunpack.c.l.b16 %v6751
        %v6959 = vunpack.c.l.b16 %v6752
        %v6960 = vunpack.c.l.b16 %v6753
        %v6961 = vunpack.c.l.b16 %v6754
        %v6962 = vunpack.c.l.b16 %v6755
        %v6963 = vunpack.c.l.b16 %v6756
        %v6964 = vunpack.c.l.b16 %v6757
        %v6965 = vunpack.c.l.b16 %v6758
        %v6966 = vunpack.c.l.b16 %v6759
        %v6967 = vunpack.c.l.b16 %v6760
        %v6968 = vunpack.c.l.b16 %v6761
        %v6969 = vunpack.c.l.b16 %v6762
        %v6970 = vunpack.c.l.b16 %v6763
        %v6971 = vunpack.c.l.b16 %v6764
        %v6972 = vunpack.c.l.b16 %v6765
        %v6973 = vunpack.c.l.b16 %v6766
        %v6974 = vunpack.c.l.b16 %v6767
        %v6975 = vunpack.c.l.b16 %v6768
        %v6976 = vunpack.c.l.b16 %v6769
        %v6977 = vunpack.c.l.b16 %v6770
        %v6978 = vunpack.c.l.b16 %v6771
        %v6979 = vunpack.c.l.b16 %v6772
        %v6980 = vunpack.c.l.b16 %v6773
        %v6981 = vunpack.c.l.b16 %v6774
        %v6982 = vunpack.c.l.b16 %v6775
        %v6983 = vunpack.c.l.b16 %v6776
        %v6984 = vunpack.c.l.b16 %v6777
        %v6985 = vunpack.c.l.b16 %v6778
        %v6986 = vunpack.c.l.b16 %v6779
        %v6987 = vunpack.c.l.b16 %v6780
        %v6988 = vunpack.c.l.b16 %v6781
        %v6989 = vunpack.c.l.b16 %v6782
        %v6990 = vpack.c.b16 %v6893, %v6892
        %v6991 = vpack.c.b16 %v6895, %v6894
        %v6992 = vpack.c.b16 %v6897, %v6896
        %v6993 = vpack.c.b16 %v6899, %v6898
        %v6994 = vpack.c.b16 %v6901, %v6900
        %v6995 = vpack.c.b16 %v6903, %v6902
        %v6996 = vpack.c.b16 %v6905, %v6904
        %v6997 = vpack.c.b16 %v6907, %v6906
        %v6998 = vpack.c.b16 %v6909, %v6908
        %v6999 = vpack.c.b16 %v6911, %v6910
        %v7000 = vpack.c.b16 %v6913, %v6912
        %v7001 = vpack.c.b16 %v6915, %v6914
        %v7002 = vpack.c.b16 %v6917, %v6916
        %v7003 = vpack.c.b16 %v6919, %v6918
        %v7004 = vpack.c.b16 %v6921, %v6920
        %v7005 = vpack.c.b16 %v6923, %v6922
        %v7006 = vpack.c.b16 %v6925, %v6924
        %v7007 = vpack.c.b16 %v6927, %v6926
        %v7008 = vpack.c.b16 %v6929, %v6928
        %v7009 = vpack.c.b16 %v6931, %v6930
        %v7010 = vpack.c.b16 %v6933, %v6932
        %v7011 = vpack.c.b16 %v6935, %v6934
        %v7012 = vpack.c.b16 %v6937, %v6936
        %v7013 = vpack.c.b16 %v6939, %v6938
        %v7014 = vpack.c.b16 %v6941, %v6940
        %v7015 = vpack.c.b16 %v6943, %v6942
        %v7016 = vpack.c.b16 %v6945, %v6944
        %v7017 = vpack.c.b16 %v6947, %v6946
        %v7018 = vpack.c.b16 %v6949, %v6948
        %v7019 = vpack.c.b16 %v6951, %v6950
        %v7020 = vpack.c.b16 %v6953, %v6952
        %v7021 = vpack.c.b16 %v6955, %v6954
        %v7022 = vpack.c.b16 %v6957, %v6956
        %v7023 = vpack.c.b16 %v6959, %v6958
        %v7024 = vpack.c.b16 %v6961, %v6960
        %v7025 = vpack.c.b16 %v6963, %v6962
        %v7026 = vpack.c.b16 %v6965, %v6964
        %v7027 = vpack.c.b16 %v6967, %v6966
        %v7028 = vpack.c.b16 %v6969, %v6968
        %v7029 = vpack.c.b16 %v6971, %v6970
        %v7030 = vpack.c.b16 %v6973, %v6972
        %v7031 = vpack.c.b16 %v6975, %v6974
        %v7032 = vpack.c.b16 %v6977, %v6976
        %v7033 = vpack.c.b16 %v6979, %v6978
        %v7034 = vpack.c.b16 %v6981, %v6980
        %v7035 = vpack.c.b16 %v6983, %v6982
        %v7036 = vpack.c.b16 %v6985, %v6984
        %v7037 = vpack.c.b16 %v6987, %v6986
        %v7038 = vpack.c.b16 %v6989, %v6988
        %v7049 = vunpack.c.l.b16 %v6784
        %v7050 = vunpack.c.l.b16 %v6785
        %v7051 = vunpack.c.l.b16 %v6786
        %v7052 = vunpack.c.l.b16 %v6787
        %v7053 = vunpack.c.l.b16 %v6788
        %v7054 = vunpack.c.l.b16 %v6789
        %v7055 = vunpack.c.l.b16 %v6790
        %v7056 = vunpack.c.l.b16 %v6791
        %v7057 = vunpack.c.l.b16 %v6792
        %v7058 = vunpack.c.l.b16 %v6793
        %v7059 = vpack.c.b16 %v7050, %v7049
        %v7060 = vpack.c.b16 %v7052, %v7051
        %v7061 = vpack.c.b16 %v7054, %v7053
        %v7062 = vpack.c.b16 %v7056, %v7055
        %v7063 = vpack.c.b16 %v7058, %v7057
        %v7070 = vsel %vm4753, %v6990, 0
        %v7073 = vsel %vm4753, %v6991, 0
        %v7076 = vsel %vm4753, %v6992, 0
        %v7079 = vsel %vm4753, %v6993, 0
        %v7082 = vsel %vm4753, %v6994, 0
        %v7085 = vsel %vm4753, %v6995, 0
        %v7088 = vsel %vm4753, %v6996, 0
        %v7091 = vsel %vm4753, %v6997, 0
        %v7094 = vsel %vm4753, %v6998, 0
        %v7097 = vsel %vm4753, %v6999, 0
        %v7100 = vsel %vm4753, %v7000, 0
        %v7103 = vsel %vm4753, %v7001, 0
        %v7106 = vsel %vm4753, %v7002, 0
        %v7109 = vsel %vm4753, %v7003, 0
        %v7112 = vsel %vm4753, %v7004, 0
        %v7115 = vsel %vm4753, %v7005, 0
        %v7118 = vsel %vm4753, %v7006, 0
        %v7121 = vsel %vm4753, %v7007, 0
        %v7124 = vsel %vm4753, %v7008, 0
        %v7127 = vsel %vm4753, %v7009, 0
        %v7130 = vsel %vm4753, %v7010, 0
        %v7133 = vsel %vm4753, %v7011, 0
        %v7136 = vsel %vm4753, %v7012, 0
        %v7139 = vsel %vm4753, %v7013, 0
        %v7142 = vsel %vm4753, %v7014, 0
        %v7145 = vsel %vm4753, %v7015, 0
        %v7148 = vsel %vm4753, %v7016, 0
        %v7151 = vsel %vm4753, %v7017, 0
        %v7154 = vsel %vm4753, %v7018, 0
        %v7157 = vsel %vm4753, %v7019, 0
        %v7160 = vsel %vm4753, %v7020, 0
        %v7163 = vsel %vm4753, %v7021, 0
        %v7166 = vsel %vm4753, %v7022, 0
        %v7169 = vsel %vm4753, %v7023, 0
        %v7172 = vsel %vm4753, %v7024, 0
        %v7175 = vsel %vm4753, %v7025, 0
        %v7178 = vsel %vm4753, %v7026, 0
        %v7181 = vsel %vm4753, %v7027, 0
        %v7184 = vsel %vm4753, %v7028, 0
        %v7187 = vsel %vm4753, %v7029, 0
        %v7190 = vsel %vm4753, %v7030, 0
        %v7193 = vsel %vm4753, %v7031, 0
        %v7196 = vsel %vm4753, %v7032, 0
        %v7199 = vsel %vm4753, %v7033, 0
        %v7202 = vsel %vm4753, %v7034, 0
        %v7205 = vsel %vm4753, %v7035, 0
        %v7208 = vsel %vm4753, %v7036, 0
        %v7211 = vsel %vm4753, %v7037, 0
        %v7214 = vsel %vm4753, %v7038, 0
        %7216 = vmatpush.bf16.msra.mxu0 0
        %7217 = vmatpush.bf16.msra.mxu0 0
        %7218 = vmatpush.bf16.msra.mxu0 0
        %7219 = vmatpush.bf16.msra.mxu0 %v7063
        %7220 = vmatpush.bf16.msra.mxu0 %v7062
        %7221 = vmatpush.bf16.msra.mxu0 %v7061
        %7222 = vmatpush.bf16.msra.mxu0 %v7060
        %7223 = vmatpush.bf16.msra.mxu0 %v7059
        %7224 = vmatmul.bf16.gmra.mxu0 %v7070
        %v7225 = vpop.f32.mrf.mxu0
        %v7226 = vadd.f32 0.0, %v7225
        %v7227 = vpop.f32.mrf.mxu0
        %v7228 = vadd.f32 0.0, %v7227
        %7229 = vmatmul.bf16.gmra.mxu0 %v7073
        %v7230 = vpop.f32.mrf.mxu0
        %v7231 = vadd.f32 0.0, %v7230
        %v7232 = vpop.f32.mrf.mxu0
        %v7233 = vadd.f32 0.0, %v7232
        %7234 = vmatmul.bf16.gmra.mxu0 %v7076
        %v7235 = vpop.f32.mrf.mxu0
        %v7236 = vadd.f32 0.0, %v7235
        %v7237 = vpop.f32.mrf.mxu0
        %v7238 = vadd.f32 0.0, %v7237
        %7239 = vmatmul.bf16.gmra.mxu0 %v7079
        %v7240 = vpop.f32.mrf.mxu0
        %v7241 = vadd.f32 0.0, %v7240
        %v7242 = vpop.f32.mrf.mxu0
        %v7243 = vadd.f32 0.0, %v7242
        %7244 = vmatmul.bf16.gmra.mxu0 %v7082
        %v7245 = vpop.f32.mrf.mxu0
        %v7246 = vadd.f32 0.0, %v7245
        %v7247 = vpop.f32.mrf.mxu0
        %v7248 = vadd.f32 0.0, %v7247
        %7249 = vmatmul.bf16.gmra.mxu0 %v7085
        %v7250 = vpop.f32.mrf.mxu0
        %v7251 = vadd.f32 0.0, %v7250
        %v7252 = vpop.f32.mrf.mxu0
        %v7253 = vadd.f32 0.0, %v7252
        %7254 = vmatmul.bf16.gmra.mxu0 %v7088
        %v7255 = vpop.f32.mrf.mxu0
        %v7256 = vadd.f32 0.0, %v7255
        %v7257 = vpop.f32.mrf.mxu0
        %v7258 = vadd.f32 0.0, %v7257
        %7259 = vmatmul.bf16.gmra.mxu0 %v7091
        %v7260 = vpop.f32.mrf.mxu0
        %v7261 = vadd.f32 0.0, %v7260
        %v7262 = vpop.f32.mrf.mxu0
        %v7263 = vadd.f32 0.0, %v7262
        %7264 = vmatmul.bf16.gmra.mxu0 %v7094
        %v7265 = vpop.f32.mrf.mxu0
        %v7266 = vadd.f32 0.0, %v7265
        %v7267 = vpop.f32.mrf.mxu0
        %v7268 = vadd.f32 0.0, %v7267
        %7269 = vmatmul.bf16.gmra.mxu0 %v7097
        %v7270 = vpop.f32.mrf.mxu0
        %v7271 = vadd.f32 0.0, %v7270
        %v7272 = vpop.f32.mrf.mxu0
        %v7273 = vadd.f32 0.0, %v7272
        %7274 = vmatmul.bf16.gmra.mxu0 %v7100
        %v7275 = vpop.f32.mrf.mxu0
        %v7276 = vadd.f32 0.0, %v7275
        %v7277 = vpop.f32.mrf.mxu0
        %v7278 = vadd.f32 0.0, %v7277
        %7279 = vmatmul.bf16.gmra.mxu0 %v7103
        %v7280 = vpop.f32.mrf.mxu0
        %v7281 = vadd.f32 0.0, %v7280
        %v7282 = vpop.f32.mrf.mxu0
        %v7283 = vadd.f32 0.0, %v7282
        %7284 = vmatmul.bf16.gmra.mxu0 %v7106
        %v7285 = vpop.f32.mrf.mxu0
        %v7286 = vadd.f32 0.0, %v7285
        %v7287 = vpop.f32.mrf.mxu0
        %v7288 = vadd.f32 0.0, %v7287
        %7289 = vmatmul.bf16.gmra.mxu0 %v7109
        %v7290 = vpop.f32.mrf.mxu0
        %v7291 = vadd.f32 0.0, %v7290
        %v7292 = vpop.f32.mrf.mxu0
        %v7293 = vadd.f32 0.0, %v7292
        %7294 = vmatmul.bf16.gmra.mxu0 %v7112
        %v7295 = vpop.f32.mrf.mxu0
        %v7296 = vadd.f32 0.0, %v7295
        %v7297 = vpop.f32.mrf.mxu0
        %v7298 = vadd.f32 0.0, %v7297
        %7299 = vmatmul.bf16.gmra.mxu0 %v7115
        %v7300 = vpop.f32.mrf.mxu0
        %v7301 = vadd.f32 0.0, %v7300
        %v7302 = vpop.f32.mrf.mxu0
        %v7303 = vadd.f32 0.0, %v7302
        %7304 = vmatmul.bf16.gmra.mxu0 %v7118
        %v7305 = vpop.f32.mrf.mxu0
        %v7306 = vadd.f32 0.0, %v7305
        %v7307 = vpop.f32.mrf.mxu0
        %v7308 = vadd.f32 0.0, %v7307
        %7309 = vmatmul.bf16.gmra.mxu0 %v7121
        %v7310 = vpop.f32.mrf.mxu0
        %v7311 = vadd.f32 0.0, %v7310
        %v7312 = vpop.f32.mrf.mxu0
        %v7313 = vadd.f32 0.0, %v7312
        %7314 = vmatmul.bf16.gmra.mxu0 %v7124
        %v7315 = vpop.f32.mrf.mxu0
        %v7316 = vadd.f32 0.0, %v7315
        %v7317 = vpop.f32.mrf.mxu0
        %v7318 = vadd.f32 0.0, %v7317
        %7319 = vmatmul.bf16.gmra.mxu0 %v7127
        %v7320 = vpop.f32.mrf.mxu0
        %v7321 = vadd.f32 0.0, %v7320
        %v7322 = vpop.f32.mrf.mxu0
        %v7323 = vadd.f32 0.0, %v7322
        %7324 = vmatmul.bf16.gmra.mxu0 %v7130
        %v7325 = vpop.f32.mrf.mxu0
        %v7326 = vadd.f32 0.0, %v7325
        %v7327 = vpop.f32.mrf.mxu0
        %v7328 = vadd.f32 0.0, %v7327
        %7329 = vmatmul.bf16.gmra.mxu0 %v7133
        %v7330 = vpop.f32.mrf.mxu0
        %v7331 = vadd.f32 0.0, %v7330
        %v7332 = vpop.f32.mrf.mxu0
        %v7333 = vadd.f32 0.0, %v7332
        %7334 = vmatmul.bf16.gmra.mxu0 %v7136
        %v7335 = vpop.f32.mrf.mxu0
        %v7336 = vadd.f32 0.0, %v7335
        %v7337 = vpop.f32.mrf.mxu0
        %v7338 = vadd.f32 0.0, %v7337
        %7339 = vmatmul.bf16.gmra.mxu0 %v7139
        %v7340 = vpop.f32.mrf.mxu0
        %v7341 = vadd.f32 0.0, %v7340
        %v7342 = vpop.f32.mrf.mxu0
        %v7343 = vadd.f32 0.0, %v7342
        %7344 = vmatmul.bf16.gmra.mxu0 %v7142
        %v7345 = vpop.f32.mrf.mxu0
        %v7346 = vadd.f32 0.0, %v7345
        %v7347 = vpop.f32.mrf.mxu0
        %v7348 = vadd.f32 0.0, %v7347
        %7349 = vmatmul.bf16.gmra.mxu0 %v7145
        %v7350 = vpop.f32.mrf.mxu0
        %v7351 = vadd.f32 0.0, %v7350
        %v7352 = vpop.f32.mrf.mxu0
        %v7353 = vadd.f32 0.0, %v7352
        %7354 = vmatmul.bf16.gmra.mxu0 %v7148
        %v7355 = vpop.f32.mrf.mxu0
        %v7356 = vadd.f32 0.0, %v7355
        %v7357 = vpop.f32.mrf.mxu0
        %v7358 = vadd.f32 0.0, %v7357
        %7359 = vmatmul.bf16.gmra.mxu0 %v7151
        %v7360 = vpop.f32.mrf.mxu0
        %v7361 = vadd.f32 0.0, %v7360
        %v7362 = vpop.f32.mrf.mxu0
        %v7363 = vadd.f32 0.0, %v7362
        %7364 = vmatmul.bf16.gmra.mxu0 %v7154
        %v7365 = vpop.f32.mrf.mxu0
        %v7366 = vadd.f32 0.0, %v7365
        %v7367 = vpop.f32.mrf.mxu0
        %v7368 = vadd.f32 0.0, %v7367
        %7369 = vmatmul.bf16.gmra.mxu0 %v7157
        %v7370 = vpop.f32.mrf.mxu0
        %v7371 = vadd.f32 0.0, %v7370
        %v7372 = vpop.f32.mrf.mxu0
        %v7373 = vadd.f32 0.0, %v7372
        %7374 = vmatmul.bf16.gmra.mxu0 %v7160
        %v7375 = vpop.f32.mrf.mxu0
        %v7376 = vadd.f32 0.0, %v7375
        %v7377 = vpop.f32.mrf.mxu0
        %v7378 = vadd.f32 0.0, %v7377
        %7379 = vmatmul.bf16.gmra.mxu0 %v7163
        %v7380 = vpop.f32.mrf.mxu0
        %v7381 = vadd.f32 0.0, %v7380
        %v7382 = vpop.f32.mrf.mxu0
        %v7383 = vadd.f32 0.0, %v7382
        %7384 = vmatmul.bf16.gmra.mxu0 %v7166
        %v7385 = vpop.f32.mrf.mxu0
        %v7386 = vadd.f32 0.0, %v7385
        %v7387 = vpop.f32.mrf.mxu0
        %v7388 = vadd.f32 0.0, %v7387
        %7389 = vmatmul.bf16.gmra.mxu0 %v7169
        %v7390 = vpop.f32.mrf.mxu0
        %v7391 = vadd.f32 0.0, %v7390
        %v7392 = vpop.f32.mrf.mxu0
        %v7393 = vadd.f32 0.0, %v7392
        %7394 = vmatmul.bf16.gmra.mxu0 %v7172
        %v7395 = vpop.f32.mrf.mxu0
        %v7396 = vadd.f32 0.0, %v7395
        %v7397 = vpop.f32.mrf.mxu0
        %v7398 = vadd.f32 0.0, %v7397
        %7399 = vmatmul.bf16.gmra.mxu0 %v7175
        %v7400 = vpop.f32.mrf.mxu0
        %v7401 = vadd.f32 0.0, %v7400
        %v7402 = vpop.f32.mrf.mxu0
        %v7403 = vadd.f32 0.0, %v7402
        %7404 = vmatmul.bf16.gmra.mxu0 %v7178
        %v7405 = vpop.f32.mrf.mxu0
        %v7406 = vadd.f32 0.0, %v7405
        %v7407 = vpop.f32.mrf.mxu0
        %v7408 = vadd.f32 0.0, %v7407
        %7409 = vmatmul.bf16.gmra.mxu0 %v7181
        %v7410 = vpop.f32.mrf.mxu0
        %v7411 = vadd.f32 0.0, %v7410
        %v7412 = vpop.f32.mrf.mxu0
        %v7413 = vadd.f32 0.0, %v7412
        %7414 = vmatmul.bf16.gmra.mxu0 %v7184
        %v7415 = vpop.f32.mrf.mxu0
        %v7416 = vadd.f32 0.0, %v7415
        %v7417 = vpop.f32.mrf.mxu0
        %v7418 = vadd.f32 0.0, %v7417
        %7419 = vmatmul.bf16.gmra.mxu0 %v7187
        %v7420 = vpop.f32.mrf.mxu0
        %v7421 = vadd.f32 0.0, %v7420
        %v7422 = vpop.f32.mrf.mxu0
        %v7423 = vadd.f32 0.0, %v7422
        %7424 = vmatmul.bf16.gmra.mxu0 %v7190
        %v7425 = vpop.f32.mrf.mxu0
        %v7426 = vadd.f32 0.0, %v7425
        %v7427 = vpop.f32.mrf.mxu0
        %v7428 = vadd.f32 0.0, %v7427
        %7429 = vmatmul.bf16.gmra.mxu0 %v7193
        %v7430 = vpop.f32.mrf.mxu0
        %v7431 = vadd.f32 0.0, %v7430
        %v7432 = vpop.f32.mrf.mxu0
        %v7433 = vadd.f32 0.0, %v7432
        %7434 = vmatmul.bf16.gmra.mxu0 %v7196
        %v7435 = vpop.f32.mrf.mxu0
        %v7436 = vadd.f32 0.0, %v7435
        %v7437 = vpop.f32.mrf.mxu0
        %v7438 = vadd.f32 0.0, %v7437
        %7439 = vmatmul.bf16.gmra.mxu0 %v7199
        %v7440 = vpop.f32.mrf.mxu0
        %v7441 = vadd.f32 0.0, %v7440
        %v7442 = vpop.f32.mrf.mxu0
        %v7443 = vadd.f32 0.0, %v7442
        %7444 = vmatmul.bf16.gmra.mxu0 %v7202
        %v7445 = vpop.f32.mrf.mxu0
        %v7446 = vadd.f32 0.0, %v7445
        %v7447 = vpop.f32.mrf.mxu0
        %v7448 = vadd.f32 0.0, %v7447
        %7449 = vmatmul.bf16.gmra.mxu0 %v7205
        %v7450 = vpop.f32.mrf.mxu0
        %v7451 = vadd.f32 0.0, %v7450
        %v7452 = vpop.f32.mrf.mxu0
        %v7453 = vadd.f32 0.0, %v7452
        %7454 = vmatmul.bf16.gmra.mxu0 %v7208
        %v7455 = vpop.f32.mrf.mxu0
        %v7456 = vadd.f32 0.0, %v7455
        %v7457 = vpop.f32.mrf.mxu0
        %v7458 = vadd.f32 0.0, %v7457
        %7459 = vmatmul.bf16.gmra.mxu0 %v7211
        %v7460 = vpop.f32.mrf.mxu0
        %v7461 = vadd.f32 0.0, %v7460
        %v7462 = vpop.f32.mrf.mxu0
        %v7463 = vadd.f32 0.0, %v7462
        %7464 = vmatmul.bf16.gmra.mxu0 %v7214
        %v7465 = vpop.f32.mrf.mxu0
        %v7466 = vadd.f32 0.0, %v7465
        %v7467 = vpop.f32.mrf.mxu0
        %v7468 = vadd.f32 0.0, %v7467
        %7469 = vdwg.mxu0
        %v7470 = vadd.f32 %v6587, %v7226
        %v7471 = vadd.f32 %v6588, %v7228
        %v7472 = vadd.f32 %v6589, %v7231
        %v7473 = vadd.f32 %v6590, %v7233
        %v7474 = vadd.f32 %v6591, %v7236
        %v7475 = vadd.f32 %v6592, %v7238
        %v7476 = vadd.f32 %v6593, %v7241
        %v7477 = vadd.f32 %v6594, %v7243
        %v7478 = vadd.f32 %v6595, %v7246
        %v7479 = vadd.f32 %v6596, %v7248
        %v7480 = vadd.f32 %v6597, %v7251
        %v7481 = vadd.f32 %v6598, %v7253
        %v7482 = vadd.f32 %v6599, %v7256
        %v7483 = vadd.f32 %v6600, %v7258
        %v7484 = vadd.f32 %v6601, %v7261
        %v7485 = vadd.f32 %v6602, %v7263
        %v7486 = vadd.f32 %v6603, %v7266
        %v7487 = vadd.f32 %v6604, %v7268
        %v7488 = vadd.f32 %v6605, %v7271
        %v7489 = vadd.f32 %v6606, %v7273
        %v7490 = vadd.f32 %v6607, %v7276
        %v7491 = vadd.f32 %v6608, %v7278
        %v7492 = vadd.f32 %v6609, %v7281
        %v7493 = vadd.f32 %v6610, %v7283
        %v7494 = vadd.f32 %v6611, %v7286
        %v7495 = vadd.f32 %v6612, %v7288
        %v7496 = vadd.f32 %v6613, %v7291
        %v7497 = vadd.f32 %v6614, %v7293
        %v7498 = vadd.f32 %v6615, %v7296
        %v7499 = vadd.f32 %v6616, %v7298
        %v7500 = vadd.f32 %v6617, %v7301
        %v7501 = vadd.f32 %v6618, %v7303
        %v7502 = vadd.f32 %v6619, %v7306
        %v7503 = vadd.f32 %v6620, %v7308
        %v7504 = vadd.f32 %v6621, %v7311
        %v7505 = vadd.f32 %v6622, %v7313
        %v7506 = vadd.f32 %v6623, %v7316
        %v7507 = vadd.f32 %v6624, %v7318
        %v7508 = vadd.f32 %v6625, %v7321
        %v7509 = vadd.f32 %v6626, %v7323
        %v7510 = vadd.f32 %v6627, %v7326
        %v7511 = vadd.f32 %v6628, %v7328
        %v7512 = vadd.f32 %v6629, %v7331
        %v7513 = vadd.f32 %v6630, %v7333
        %v7514 = vadd.f32 %v6631, %v7336
        %v7515 = vadd.f32 %v6632, %v7338
        %v7516 = vadd.f32 %v6633, %v7341
        %v7517 = vadd.f32 %v6634, %v7343
        %v7518 = vadd.f32 %v6635, %v7346
        %v7519 = vadd.f32 %v6636, %v7348
        %v7520 = vadd.f32 %v6637, %v7351
        %v7521 = vadd.f32 %v6638, %v7353
        %v7522 = vadd.f32 %v6639, %v7356
        %v7523 = vadd.f32 %v6640, %v7358
        %v7524 = vadd.f32 %v6641, %v7361
        %v7525 = vadd.f32 %v6642, %v7363
        %v7526 = vadd.f32 %v6643, %v7366
        %v7527 = vadd.f32 %v6644, %v7368
        %v7528 = vadd.f32 %v6645, %v7371
        %v7529 = vadd.f32 %v6646, %v7373
        %v7530 = vadd.f32 %v6647, %v7376
        %v7531 = vadd.f32 %v6648, %v7378
        %v7532 = vadd.f32 %v6649, %v7381
        %v7533 = vadd.f32 %v6650, %v7383
        %v7534 = vadd.f32 %v6651, %v7386
        %v7535 = vadd.f32 %v6652, %v7388
        %v7536 = vadd.f32 %v6653, %v7391
        %v7537 = vadd.f32 %v6654, %v7393
        %v7538 = vadd.f32 %v6655, %v7396
        %v7539 = vadd.f32 %v6656, %v7398
        %v7540 = vadd.f32 %v6657, %v7401
        %v7541 = vadd.f32 %v6658, %v7403
        %v7542 = vadd.f32 %v6659, %v7406
        %v7543 = vadd.f32 %v6660, %v7408
        %v7544 = vadd.f32 %v6661, %v7411
        %v7545 = vadd.f32 %v6662, %v7413
        %v7546 = vadd.f32 %v6663, %v7416
        %v7547 = vadd.f32 %v6664, %v7418
        %v7548 = vadd.f32 %v6665, %v7421
        %v7549 = vadd.f32 %v6666, %v7423
        %v7550 = vadd.f32 %v6667, %v7426
        %v7551 = vadd.f32 %v6668, %v7428
        %v7552 = vadd.f32 %v6669, %v7431
        %v7553 = vadd.f32 %v6670, %v7433
        %v7554 = vadd.f32 %v6671, %v7436
        %v7555 = vadd.f32 %v6672, %v7438
        %v7556 = vadd.f32 %v6673, %v7441
        %v7557 = vadd.f32 %v6674, %v7443
        %v7558 = vadd.f32 %v6675, %v7446
        %v7559 = vadd.f32 %v6676, %v7448
        %v7560 = vadd.f32 %v6677, %v7451
        %v7561 = vadd.f32 %v6678, %v7453
        %v7562 = vadd.f32 %v6679, %v7456
        %v7563 = vadd.f32 %v6680, %v7458
        %v7564 = vadd.f32 %v6681, %v7461
        %v7565 = vadd.f32 %v6682, %v7463
        %v7566 = vadd.f32 %v6683, %v7466
        %v7567 = vadd.f32 %v6684, %v7468
        %v7568 = vld [vmem:[#allocation2 + $0x38] sm:$0xc]
        %v7569 = vld [vmem:[#allocation2 + $0x3c] sm:$0xf]
        %v7570 = vld [vmem:[#allocation2 + $0x40] sm:$0xf]
        %v7571 = vld [vmem:[#allocation2 + $0x44] sm:$0xf]
        %v7572 = vld [vmem:[#allocation2 + $0x48] sm:$0xf]
        %v7573 = vld [vmem:[#allocation2 + $0x4c] sm:$0xf]
        %v7574 = vld [vmem:[#allocation2 + $0x50] sm:$0xf]
        %v7575 = vld [vmem:[#allocation2 + $0x54] sm:$0xf]
        %v7576 = vld [vmem:[#allocation2 + $0x58] sm:$0xf]
        %v7577 = vld [vmem:[#allocation2 + $0x5c] sm:$0xf]
        %v7578 = vld [vmem:[#allocation2 + $0x60] sm:$0xf]
        %v7579 = vld [vmem:[#allocation2 + $0x64] sm:$0xf]
        %v7580 = vld [vmem:[#allocation2 + $0x68] sm:$0xf]
        %v7581 = vld [vmem:[#allocation2 + $0x6c] sm:$0xf]
        %v7582 = vld [vmem:[#allocation2 + $0x70] sm:$0xf]
        %v7583 = vld [vmem:[#allocation2 + $0x74] sm:$0xf]
        %v7584 = vld [vmem:[#allocation2 + $0x78] sm:$0xf]
        %v7585 = vld [vmem:[#allocation2 + $0x7c] sm:$0xf]
        %v7586 = vld [vmem:[#allocation2 + $0x80] sm:$0xf]
        %v7587 = vld [vmem:[#allocation2 + $0x84] sm:$0xf]
        %v7588 = vld [vmem:[#allocation2 + $0x88] sm:$0xf]
        %v7589 = vld [vmem:[#allocation2 + $0x8c] sm:$0xf]
        %v7590 = vld [vmem:[#allocation2 + $0x90] sm:$0xf]
        %v7591 = vld [vmem:[#allocation2 + $0x94] sm:$0xf]
        %v7592 = vld [vmem:[#allocation2 + $0x98] sm:$0xf]
        %v7593 = vld [vmem:[#allocation2 + $0x9c] sm:$0xf]
        %v7594 = vld [vmem:[#allocation2 + $0xa0] sm:$0xf]
        %v7595 = vld [vmem:[#allocation2 + $0xa4] sm:$0xf]
        %v7596 = vld [vmem:[#allocation2 + $0xa8] sm:$0xf]
        %v7597 = vld [vmem:[#allocation2 + $0xac] sm:$0xf]
        %v7598 = vld [vmem:[#allocation2 + $0xb0] sm:$0xf]
        %v7599 = vld [vmem:[#allocation2 + $0xb4] sm:$0xf]
        %v7600 = vld [vmem:[#allocation2 + $0xb8] sm:$0xf]
        %v7601 = vld [vmem:[#allocation2 + $0xbc] sm:$0xf]
        %v7602 = vld [vmem:[#allocation2 + $0xc0] sm:$0xf]
        %v7603 = vld [vmem:[#allocation2 + $0xc4] sm:$0xf]
        %v7604 = vld [vmem:[#allocation2 + $0xc8] sm:$0xf]
        %v7605 = vld [vmem:[#allocation2 + $0xcc] sm:$0xf]
        %v7606 = vld [vmem:[#allocation2 + $0xd0] sm:$0xf]
        %v7607 = vld [vmem:[#allocation2 + $0xd4] sm:$0xf]
        %v7608 = vld [vmem:[#allocation2 + $0xd8] sm:$0xf]
        %v7609 = vld [vmem:[#allocation2 + $0xdc] sm:$0xf]
        %v7610 = vld [vmem:[#allocation2 + $0xe0] sm:$0xf]
        %v7611 = vld [vmem:[#allocation2 + $0xe4] sm:$0xf]
        %v7612 = vld [vmem:[#allocation2 + $0xe8] sm:$0xf]
        %v7613 = vld [vmem:[#allocation2 + $0xec] sm:$0xf]
        %v7614 = vld [vmem:[#allocation2 + $0xf0] sm:$0xf]
        %v7615 = vld [vmem:[#allocation2 + $0xf4] sm:$0xf]
        %v7616 = vld [vmem:[#allocation2 + $0xf8] sm:$0xf]
        %v7617 = vld [vmem:[#allocation2 + $0xfc] sm:$0xf]
        %v7618 = vld [vmem:[#allocation2 + $0x100] sm:$0xf]
        %v7619 = vld [vmem:[#allocation2 + $0x104] sm:$0xf]
        %v7620 = vld [vmem:[#allocation2 + $0x108] sm:$0xf]
        %v7621 = vld [vmem:[#allocation2 + $0x10c] sm:$0xf]
        %v7622 = vld [vmem:[#allocation2 + $0x110] sm:$0xf]
        %v7623 = vld [vmem:[#allocation2 + $0x114] sm:$0xf]
        %v7624 = vld [vmem:[#allocation2 + $0x118] sm:$0xf]
        %v7625 = vld [vmem:[#allocation2 + $0x11c] sm:$0xf]
        %v7626 = vld [vmem:[#allocation2 + $0x120] sm:$0xf]
        %v7627 = vld [vmem:[#allocation2 + $0x124] sm:$0xf]
        %v7628 = vld [vmem:[#allocation2 + $0x128] sm:$0xf]
        %v7629 = vld [vmem:[#allocation2 + $0x12c] sm:$0xf]
        %v7630 = vld [vmem:[#allocation2 + $0x130] sm:$0xf]
        %v7631 = vld [vmem:[#allocation2 + $0x134] sm:$0xf]
        %v7632 = vld [vmem:[#allocation2 + $0x138] sm:$0xf]
        %v7633 = vld [vmem:[#allocation2 + $0x13c] sm:$0xf]
        %v7634 = vld [vmem:[#allocation2 + $0x140] sm:$0xf]
        %v7635 = vld [vmem:[#allocation2 + $0x144] sm:$0xf]
        %v7636 = vld [vmem:[#allocation2 + $0x148] sm:$0xf]
        %v7637 = vld [vmem:[#allocation2 + $0x14c] sm:$0xf]
        %v7638 = vld [vmem:[#allocation2 + $0x150] sm:$0xf]
        %v7639 = vld [vmem:[#allocation2 + $0x154] sm:$0xf]
        %v7640 = vld [vmem:[#allocation2 + $0x158] sm:$0xf]
        %v7641 = vld [vmem:[#allocation2 + $0x15c] sm:$0xf]
        %v7642 = vld [vmem:[#allocation2 + $0x160] sm:$0xf]
        %v7643 = vld [vmem:[#allocation2 + $0x164] sm:$0xf]
        %v7644 = vld [vmem:[#allocation2 + $0x168] sm:$0xf]
        %v7645 = vld [vmem:[#allocation2 + $0x16c] sm:$0xf]
        %v7646 = vld [vmem:[#allocation2 + $0x170] sm:$0xf]
        %v7647 = vld [vmem:[#allocation2 + $0x174] sm:$0xf]
        %v7648 = vld [vmem:[#allocation2 + $0x178] sm:$0xf]
        %v7649 = vld [vmem:[#allocation2 + $0x17c] sm:$0xf]
        %v7650 = vld [vmem:[#allocation2 + $0x180] sm:$0xf]
        %v7651 = vld [vmem:[#allocation2 + $0x184] sm:$0xf]
        %v7652 = vld [vmem:[#allocation2 + $0x188] sm:$0xf]
        %v7653 = vld [vmem:[#allocation2 + $0x18c] sm:$0xf]
        %v7654 = vld [vmem:[#allocation2 + $0x190] sm:$0xf]
        %v7655 = vld [vmem:[#allocation2 + $0x194] sm:$0xf]
        %v7656 = vld [vmem:[#allocation2 + $0x198] sm:$0xf]
        %v7657 = vld [vmem:[#allocation2 + $0x19c] sm:$0xf]
        %v7658 = vld [vmem:[#allocation2 + $0x1a0] sm:$0xf]
        %v7659 = vld [vmem:[#allocation2 + $0x1a4] sm:$0xf]
        %v7660 = vld [vmem:[#allocation2 + $0x1a8] sm:$0xf]
        %v7661 = vld [vmem:[#allocation2 + $0x1ac] sm:$0xf]
        %v7662 = vld [vmem:[#allocation2 + $0x1b0] sm:$0xf]
        %v7663 = vld [vmem:[#allocation2 + $0x1b4] sm:$0xf]
        %v7664 = vld [vmem:[#allocation2 + $0x1b8] sm:$0xf]
        %v7665 = vld [vmem:[#allocation2 + $0x1bc] sm:$0xf]
        %v7666 = vld [vmem:[#allocation2 + $0x1c0] sm:$0x3]
        %s7667 = scalar_lea.vmem %s3, 160
        %v7668 = vld [vmem:[%s7667] sm:$0xf]
        %v7669 = vld [vmem:[%s7667 + $0x4] sm:$0xf]
        %v7670 = vld [vmem:[%s7667 + $0x8] sm:$0xf]
        %v7671 = vld [vmem:[%s7667 + $0xc] sm:$0xf]
        %v7672 = vld [vmem:[%s7667 + $0x10] sm:$0xf]
        %v7673 = vld [vmem:[%s7667 + $0x14] sm:$0xf]
        %v7674 = vld [vmem:[%s7667 + $0x18] sm:$0xf]
        %v7675 = vld [vmem:[%s7667 + $0x1c] sm:$0xf]
        %v7676 = vld [vmem:[%s7667 + $0x20] sm:$0xf]
        %v7677 = vld [vmem:[%s7667 + $0x24] sm:$0xf]
        %v7777 = vunpack.c.l.b16 %v7568
        %v7778 = vunpack.c.l.b16 %v7569
        %v7779 = vunpack.c.l.b16 %v7570
        %v7780 = vunpack.c.l.b16 %v7571
        %v7781 = vunpack.c.l.b16 %v7572
        %v7782 = vunpack.c.l.b16 %v7573
        %v7783 = vunpack.c.l.b16 %v7574
        %v7784 = vunpack.c.l.b16 %v7575
        %v7785 = vunpack.c.l.b16 %v7576
        %v7786 = vunpack.c.l.b16 %v7577
        %v7787 = vunpack.c.l.b16 %v7578
        %v7788 = vunpack.c.l.b16 %v7579
        %v7789 = vunpack.c.l.b16 %v7580
        %v7790 = vunpack.c.l.b16 %v7581
        %v7791 = vunpack.c.l.b16 %v7582
        %v7792 = vunpack.c.l.b16 %v7583
        %v7793 = vunpack.c.l.b16 %v7584
        %v7794 = vunpack.c.l.b16 %v7585
        %v7795 = vunpack.c.l.b16 %v7586
        %v7796 = vunpack.c.l.b16 %v7587
        %v7797 = vunpack.c.l.b16 %v7588
        %v7798 = vunpack.c.l.b16 %v7589
        %v7799 = vunpack.c.l.b16 %v7590
        %v7800 = vunpack.c.l.b16 %v7591
        %v7801 = vunpack.c.l.b16 %v7592
        %v7802 = vunpack.c.l.b16 %v7593
        %v7803 = vunpack.c.l.b16 %v7594
        %v7804 = vunpack.c.l.b16 %v7595
        %v7805 = vunpack.c.l.b16 %v7596
        %v7806 = vunpack.c.l.b16 %v7597
        %v7807 = vunpack.c.l.b16 %v7598
        %v7808 = vunpack.c.l.b16 %v7599
        %v7809 = vunpack.c.l.b16 %v7600
        %v7810 = vunpack.c.l.b16 %v7601
        %v7811 = vunpack.c.l.b16 %v7602
        %v7812 = vunpack.c.l.b16 %v7603
        %v7813 = vunpack.c.l.b16 %v7604
        %v7814 = vunpack.c.l.b16 %v7605
        %v7815 = vunpack.c.l.b16 %v7606
        %v7816 = vunpack.c.l.b16 %v7607
        %v7817 = vunpack.c.l.b16 %v7608
        %v7818 = vunpack.c.l.b16 %v7609
        %v7819 = vunpack.c.l.b16 %v7610
        %v7820 = vunpack.c.l.b16 %v7611
        %v7821 = vunpack.c.l.b16 %v7612
        %v7822 = vunpack.c.l.b16 %v7613
        %v7823 = vunpack.c.l.b16 %v7614
        %v7824 = vunpack.c.l.b16 %v7615
        %v7825 = vunpack.c.l.b16 %v7616
        %v7826 = vunpack.c.l.b16 %v7617
        %v7827 = vunpack.c.l.b16 %v7618
        %v7828 = vunpack.c.l.b16 %v7619
        %v7829 = vunpack.c.l.b16 %v7620
        %v7830 = vunpack.c.l.b16 %v7621
        %v7831 = vunpack.c.l.b16 %v7622
        %v7832 = vunpack.c.l.b16 %v7623
        %v7833 = vunpack.c.l.b16 %v7624
        %v7834 = vunpack.c.l.b16 %v7625
        %v7835 = vunpack.c.l.b16 %v7626
        %v7836 = vunpack.c.l.b16 %v7627
        %v7837 = vunpack.c.l.b16 %v7628
        %v7838 = vunpack.c.l.b16 %v7629
        %v7839 = vunpack.c.l.b16 %v7630
        %v7840 = vunpack.c.l.b16 %v7631
        %v7841 = vunpack.c.l.b16 %v7632
        %v7842 = vunpack.c.l.b16 %v7633
        %v7843 = vunpack.c.l.b16 %v7634
        %v7844 = vunpack.c.l.b16 %v7635
        %v7845 = vunpack.c.l.b16 %v7636
        %v7846 = vunpack.c.l.b16 %v7637
        %v7847 = vunpack.c.l.b16 %v7638
        %v7848 = vunpack.c.l.b16 %v7639
        %v7849 = vunpack.c.l.b16 %v7640
        %v7850 = vunpack.c.l.b16 %v7641
        %v7851 = vunpack.c.l.b16 %v7642
        %v7852 = vunpack.c.l.b16 %v7643
        %v7853 = vunpack.c.l.b16 %v7644
        %v7854 = vunpack.c.l.b16 %v7645
        %v7855 = vunpack.c.l.b16 %v7646
        %v7856 = vunpack.c.l.b16 %v7647
        %v7857 = vunpack.c.l.b16 %v7648
        %v7858 = vunpack.c.l.b16 %v7649
        %v7859 = vunpack.c.l.b16 %v7650
        %v7860 = vunpack.c.l.b16 %v7651
        %v7861 = vunpack.c.l.b16 %v7652
        %v7862 = vunpack.c.l.b16 %v7653
        %v7863 = vunpack.c.l.b16 %v7654
        %v7864 = vunpack.c.l.b16 %v7655
        %v7865 = vunpack.c.l.b16 %v7656
        %v7866 = vunpack.c.l.b16 %v7657
        %v7867 = vunpack.c.l.b16 %v7658
        %v7868 = vunpack.c.l.b16 %v7659
        %v7869 = vunpack.c.l.b16 %v7660
        %v7870 = vunpack.c.l.b16 %v7661
        %v7871 = vunpack.c.l.b16 %v7662
        %v7872 = vunpack.c.l.b16 %v7663
        %v7873 = vunpack.c.l.b16 %v7664
        %v7874 = vunpack.c.l.b16 %v7665
        %v7875 = vunpack.c.l.b16 %v7666
        %v7876 = vpack.c.b16 %v7778, %v7777
        %v7877 = vpack.c.b16 %v7780, %v7779
        %v7878 = vpack.c.b16 %v7782, %v7781
        %v7879 = vpack.c.b16 %v7784, %v7783
        %v7880 = vpack.c.b16 %v7786, %v7785
        %v7881 = vpack.c.b16 %v7788, %v7787
        %v7882 = vpack.c.b16 %v7790, %v7789
        %v7883 = vpack.c.b16 %v7792, %v7791
        %v7884 = vpack.c.b16 %v7794, %v7793
        %v7885 = vpack.c.b16 %v7796, %v7795
        %v7886 = vpack.c.b16 %v7798, %v7797
        %v7887 = vpack.c.b16 %v7800, %v7799
        %v7888 = vpack.c.b16 %v7802, %v7801
        %v7889 = vpack.c.b16 %v7804, %v7803
        %v7890 = vpack.c.b16 %v7806, %v7805
        %v7891 = vpack.c.b16 %v7808, %v7807
        %v7892 = vpack.c.b16 %v7810, %v7809
        %v7893 = vpack.c.b16 %v7812, %v7811
        %v7894 = vpack.c.b16 %v7814, %v7813
        %v7895 = vpack.c.b16 %v7816, %v7815
        %v7896 = vpack.c.b16 %v7818, %v7817
        %v7897 = vpack.c.b16 %v7820, %v7819
        %v7898 = vpack.c.b16 %v7822, %v7821
        %v7899 = vpack.c.b16 %v7824, %v7823
        %v7900 = vpack.c.b16 %v7826, %v7825
        %v7901 = vpack.c.b16 %v7828, %v7827
        %v7902 = vpack.c.b16 %v7830, %v7829
        %v7903 = vpack.c.b16 %v7832, %v7831
        %v7904 = vpack.c.b16 %v7834, %v7833
        %v7905 = vpack.c.b16 %v7836, %v7835
        %v7906 = vpack.c.b16 %v7838, %v7837
        %v7907 = vpack.c.b16 %v7840, %v7839
        %v7908 = vpack.c.b16 %v7842, %v7841
        %v7909 = vpack.c.b16 %v7844, %v7843
        %v7910 = vpack.c.b16 %v7846, %v7845
        %v7911 = vpack.c.b16 %v7848, %v7847
        %v7912 = vpack.c.b16 %v7850, %v7849
        %v7913 = vpack.c.b16 %v7852, %v7851
        %v7914 = vpack.c.b16 %v7854, %v7853
        %v7915 = vpack.c.b16 %v7856, %v7855
        %v7916 = vpack.c.b16 %v7858, %v7857
        %v7917 = vpack.c.b16 %v7860, %v7859
        %v7918 = vpack.c.b16 %v7862, %v7861
        %v7919 = vpack.c.b16 %v7864, %v7863
        %v7920 = vpack.c.b16 %v7866, %v7865
        %v7921 = vpack.c.b16 %v7868, %v7867
        %v7922 = vpack.c.b16 %v7870, %v7869
        %v7923 = vpack.c.b16 %v7872, %v7871
        %v7924 = vpack.c.b16 %v7874, %v7873
        %v7925 = vpack.c.b16 %v7875, %v7875
        %v7926 = vrot.slane %v7876, 2
        %v7927 = vrot.slane %v7877, 2
        %v7928 = vsel %vm5168, %v7926, %v7927
        %v7929 = vrot.slane %v7878, 2
        %v7930 = vsel %vm5168, %v7927, %v7929
        %v7931 = vrot.slane %v7879, 2
        %v7932 = vsel %vm5168, %v7929, %v7931
        %v7933 = vrot.slane %v7880, 2
        %v7934 = vsel %vm5168, %v7931, %v7933
        %v7935 = vrot.slane %v7881, 2
        %v7936 = vsel %vm5168, %v7933, %v7935
        %v7937 = vrot.slane %v7882, 2
        %v7938 = vsel %vm5168, %v7935, %v7937
        %v7939 = vrot.slane %v7883, 2
        %v7940 = vsel %vm5168, %v7937, %v7939
        %v7941 = vrot.slane %v7884, 2
        %v7942 = vsel %vm5168, %v7939, %v7941
        %v7943 = vrot.slane %v7885, 2
        %v7944 = vsel %vm5168, %v7941, %v7943
        %v7945 = vrot.slane %v7886, 2
        %v7946 = vsel %vm5168, %v7943, %v7945
        %v7947 = vrot.slane %v7887, 2
        %v7948 = vsel %vm5168, %v7945, %v7947
        %v7949 = vrot.slane %v7888, 2
        %v7950 = vsel %vm5168, %v7947, %v7949
        %v7951 = vrot.slane %v7889, 2
        %v7952 = vsel %vm5168, %v7949, %v7951
        %v7953 = vrot.slane %v7890, 2
        %v7954 = vsel %vm5168, %v7951, %v7953
        %v7955 = vrot.slane %v7891, 2
        %v7956 = vsel %vm5168, %v7953, %v7955
        %v7957 = vrot.slane %v7892, 2
        %v7958 = vsel %vm5168, %v7955, %v7957
        %v7959 = vrot.slane %v7893, 2
        %v7960 = vsel %vm5168, %v7957, %v7959
        %v7961 = vrot.slane %v7894, 2
        %v7962 = vsel %vm5168, %v7959, %v7961
        %v7963 = vrot.slane %v7895, 2
        %v7964 = vsel %vm5168, %v7961, %v7963
        %v7965 = vrot.slane %v7896, 2
        %v7966 = vsel %vm5168, %v7963, %v7965
        %v7967 = vrot.slane %v7897, 2
        %v7968 = vsel %vm5168, %v7965, %v7967
        %v7969 = vrot.slane %v7898, 2
        %v7970 = vsel %vm5168, %v7967, %v7969
        %v7971 = vrot.slane %v7899, 2
        %v7972 = vsel %vm5168, %v7969, %v7971
        %v7973 = vrot.slane %v7900, 2
        %v7974 = vsel %vm5168, %v7971, %v7973
        %v7975 = vrot.slane %v7901, 2
        %v7976 = vsel %vm5168, %v7973, %v7975
        %v7977 = vrot.slane %v7902, 2
        %v7978 = vsel %vm5168, %v7975, %v7977
        %v7979 = vrot.slane %v7903, 2
        %v7980 = vsel %vm5168, %v7977, %v7979
        %v7981 = vrot.slane %v7904, 2
        %v7982 = vsel %vm5168, %v7979, %v7981
        %v7983 = vrot.slane %v7905, 2
        %v7984 = vsel %vm5168, %v7981, %v7983
        %v7985 = vrot.slane %v7906, 2
        %v7986 = vsel %vm5168, %v7983, %v7985
        %v7987 = vrot.slane %v7907, 2
        %v7988 = vsel %vm5168, %v7985, %v7987
        %v7989 = vrot.slane %v7908, 2
        %v7990 = vsel %vm5168, %v7987, %v7989
        %v7991 = vrot.slane %v7909, 2
        %v7992 = vsel %vm5168, %v7989, %v7991
        %v7993 = vrot.slane %v7910, 2
        %v7994 = vsel %vm5168, %v7991, %v7993
        %v7995 = vrot.slane %v7911, 2
        %v7996 = vsel %vm5168, %v7993, %v7995
        %v7997 = vrot.slane %v7912, 2
        %v7998 = vsel %vm5168, %v7995, %v7997
        %v7999 = vrot.slane %v7913, 2
        %v8000 = vsel %vm5168, %v7997, %v7999
        %v8001 = vrot.slane %v7914, 2
        %v8002 = vsel %vm5168, %v7999, %v8001
        %v8003 = vrot.slane %v7915, 2
        %v8004 = vsel %vm5168, %v8001, %v8003
        %v8005 = vrot.slane %v7916, 2
        %v8006 = vsel %vm5168, %v8003, %v8005
        %v8007 = vrot.slane %v7917, 2
        %v8008 = vsel %vm5168, %v8005, %v8007
        %v8009 = vrot.slane %v7918, 2
        %v8010 = vsel %vm5168, %v8007, %v8009
        %v8011 = vrot.slane %v7919, 2
        %v8012 = vsel %vm5168, %v8009, %v8011
        %v8013 = vrot.slane %v7920, 2
        %v8014 = vsel %vm5168, %v8011, %v8013
        %v8015 = vrot.slane %v7921, 2
        %v8016 = vsel %vm5168, %v8013, %v8015
        %v8017 = vrot.slane %v7922, 2
        %v8018 = vsel %vm5168, %v8015, %v8017
        %v8019 = vrot.slane %v7923, 2
        %v8020 = vsel %vm5168, %v8017, %v8019
        %v8021 = vrot.slane %v7924, 2
        %v8022 = vsel %vm5168, %v8019, %v8021
        %v8023 = vrot.slane %v7925, 2
        %v8024 = vsel %vm5168, %v8021, %v8023
        %v8035 = vunpack.c.l.b16 %v7668
        %v8036 = vunpack.c.l.b16 %v7669
        %v8037 = vunpack.c.l.b16 %v7670
        %v8038 = vunpack.c.l.b16 %v7671
        %v8039 = vunpack.c.l.b16 %v7672
        %v8040 = vunpack.c.l.b16 %v7673
        %v8041 = vunpack.c.l.b16 %v7674
        %v8042 = vunpack.c.l.b16 %v7675
        %v8043 = vunpack.c.l.b16 %v7676
        %v8044 = vunpack.c.l.b16 %v7677
        %v8045 = vpack.c.b16 %v8036, %v8035
        %v8046 = vpack.c.b16 %v8038, %v8037
        %v8047 = vpack.c.b16 %v8040, %v8039
        %v8048 = vpack.c.b16 %v8042, %v8041
        %v8049 = vpack.c.b16 %v8044, %v8043
        %v8056 = vsel %vm4753, %v7928, 0
        %v8059 = vsel %vm4753, %v7930, 0
        %v8062 = vsel %vm4753, %v7932, 0
        %v8065 = vsel %vm4753, %v7934, 0
        %v8068 = vsel %vm4753, %v7936, 0
        %v8071 = vsel %vm4753, %v7938, 0
        %v8074 = vsel %vm4753, %v7940, 0
        %v8077 = vsel %vm4753, %v7942, 0
        %v8080 = vsel %vm4753, %v7944, 0
        %v8083 = vsel %vm4753, %v7946, 0
        %v8086 = vsel %vm4753, %v7948, 0
        %v8089 = vsel %vm4753, %v7950, 0
        %v8092 = vsel %vm4753, %v7952, 0
        %v8095 = vsel %vm4753, %v7954, 0
        %v8098 = vsel %vm4753, %v7956, 0
        %v8101 = vsel %vm4753, %v7958, 0
        %v8104 = vsel %vm4753, %v7960, 0
        %v8107 = vsel %vm4753, %v7962, 0
        %v8110 = vsel %vm4753, %v7964, 0
        %v8113 = vsel %vm4753, %v7966, 0
        %v8116 = vsel %vm4753, %v7968, 0
        %v8119 = vsel %vm4753, %v7970, 0
        %v8122 = vsel %vm4753, %v7972, 0
        %v8125 = vsel %vm4753, %v7974, 0
        %v8128 = vsel %vm4753, %v7976, 0
        %v8131 = vsel %vm4753, %v7978, 0
        %v8134 = vsel %vm4753, %v7980, 0
        %v8137 = vsel %vm4753, %v7982, 0
        %v8140 = vsel %vm4753, %v7984, 0
        %v8143 = vsel %vm4753, %v7986, 0
        %v8146 = vsel %vm4753, %v7988, 0
        %v8149 = vsel %vm4753, %v7990, 0
        %v8152 = vsel %vm4753, %v7992, 0
        %v8155 = vsel %vm4753, %v7994, 0
        %v8158 = vsel %vm4753, %v7996, 0
        %v8161 = vsel %vm4753, %v7998, 0
        %v8164 = vsel %vm4753, %v8000, 0
        %v8167 = vsel %vm4753, %v8002, 0
        %v8170 = vsel %vm4753, %v8004, 0
        %v8173 = vsel %vm4753, %v8006, 0
        %v8176 = vsel %vm4753, %v8008, 0
        %v8179 = vsel %vm4753, %v8010, 0
        %v8182 = vsel %vm4753, %v8012, 0
        %v8185 = vsel %vm4753, %v8014, 0
        %v8188 = vsel %vm4753, %v8016, 0
        %v8191 = vsel %vm4753, %v8018, 0
        %v8194 = vsel %vm4753, %v8020, 0
        %v8197 = vsel %vm4753, %v8022, 0
        %v8200 = vsel %vm4753, %v8024, 0
        %8202 = vmatpush.bf16.msra.mxu0 0
        %8203 = vmatpush.bf16.msra.mxu0 0
        %8204 = vmatpush.bf16.msra.mxu0 0
        %8205 = vmatpush.bf16.msra.mxu0 %v8049
        %8206 = vmatpush.bf16.msra.mxu0 %v8048
        %8207 = vmatpush.bf16.msra.mxu0 %v8047
        %8208 = vmatpush.bf16.msra.mxu0 %v8046
        %8209 = vmatpush.bf16.msra.mxu0 %v8045
        %8210 = vmatmul.bf16.gmra.mxu0 %v8056
        %v8211 = vpop.f32.mrf.mxu0
        %v8212 = vadd.f32 0.0, %v8211
        %v8213 = vpop.f32.mrf.mxu0
        %v8214 = vadd.f32 0.0, %v8213
        %8215 = vmatmul.bf16.gmra.mxu0 %v8059
        %v8216 = vpop.f32.mrf.mxu0
        %v8217 = vadd.f32 0.0, %v8216
        %v8218 = vpop.f32.mrf.mxu0
        %v8219 = vadd.f32 0.0, %v8218
        %8220 = vmatmul.bf16.gmra.mxu0 %v8062
        %v8221 = vpop.f32.mrf.mxu0
        %v8222 = vadd.f32 0.0, %v8221
        %v8223 = vpop.f32.mrf.mxu0
        %v8224 = vadd.f32 0.0, %v8223
        %8225 = vmatmul.bf16.gmra.mxu0 %v8065
        %v8226 = vpop.f32.mrf.mxu0
        %v8227 = vadd.f32 0.0, %v8226
        %v8228 = vpop.f32.mrf.mxu0
        %v8229 = vadd.f32 0.0, %v8228
        %8230 = vmatmul.bf16.gmra.mxu0 %v8068
        %v8231 = vpop.f32.mrf.mxu0
        %v8232 = vadd.f32 0.0, %v8231
        %v8233 = vpop.f32.mrf.mxu0
        %v8234 = vadd.f32 0.0, %v8233
        %8235 = vmatmul.bf16.gmra.mxu0 %v8071
        %v8236 = vpop.f32.mrf.mxu0
        %v8237 = vadd.f32 0.0, %v8236
        %v8238 = vpop.f32.mrf.mxu0
        %v8239 = vadd.f32 0.0, %v8238
        %8240 = vmatmul.bf16.gmra.mxu0 %v8074
        %v8241 = vpop.f32.mrf.mxu0
        %v8242 = vadd.f32 0.0, %v8241
        %v8243 = vpop.f32.mrf.mxu0
        %v8244 = vadd.f32 0.0, %v8243
        %8245 = vmatmul.bf16.gmra.mxu0 %v8077
        %v8246 = vpop.f32.mrf.mxu0
        %v8247 = vadd.f32 0.0, %v8246
        %v8248 = vpop.f32.mrf.mxu0
        %v8249 = vadd.f32 0.0, %v8248
        %8250 = vmatmul.bf16.gmra.mxu0 %v8080
        %v8251 = vpop.f32.mrf.mxu0
        %v8252 = vadd.f32 0.0, %v8251
        %v8253 = vpop.f32.mrf.mxu0
        %v8254 = vadd.f32 0.0, %v8253
        %8255 = vmatmul.bf16.gmra.mxu0 %v8083
        %v8256 = vpop.f32.mrf.mxu0
        %v8257 = vadd.f32 0.0, %v8256
        %v8258 = vpop.f32.mrf.mxu0
        %v8259 = vadd.f32 0.0, %v8258
        %8260 = vmatmul.bf16.gmra.mxu0 %v8086
        %v8261 = vpop.f32.mrf.mxu0
        %v8262 = vadd.f32 0.0, %v8261
        %v8263 = vpop.f32.mrf.mxu0
        %v8264 = vadd.f32 0.0, %v8263
        %8265 = vmatmul.bf16.gmra.mxu0 %v8089
        %v8266 = vpop.f32.mrf.mxu0
        %v8267 = vadd.f32 0.0, %v8266
        %v8268 = vpop.f32.mrf.mxu0
        %v8269 = vadd.f32 0.0, %v8268
        %8270 = vmatmul.bf16.gmra.mxu0 %v8092
        %v8271 = vpop.f32.mrf.mxu0
        %v8272 = vadd.f32 0.0, %v8271
        %v8273 = vpop.f32.mrf.mxu0
        %v8274 = vadd.f32 0.0, %v8273
        %8275 = vmatmul.bf16.gmra.mxu0 %v8095
        %v8276 = vpop.f32.mrf.mxu0
        %v8277 = vadd.f32 0.0, %v8276
        %v8278 = vpop.f32.mrf.mxu0
        %v8279 = vadd.f32 0.0, %v8278
        %8280 = vmatmul.bf16.gmra.mxu0 %v8098
        %v8281 = vpop.f32.mrf.mxu0
        %v8282 = vadd.f32 0.0, %v8281
        %v8283 = vpop.f32.mrf.mxu0
        %v8284 = vadd.f32 0.0, %v8283
        %8285 = vmatmul.bf16.gmra.mxu0 %v8101
        %v8286 = vpop.f32.mrf.mxu0
        %v8287 = vadd.f32 0.0, %v8286
        %v8288 = vpop.f32.mrf.mxu0
        %v8289 = vadd.f32 0.0, %v8288
        %8290 = vmatmul.bf16.gmra.mxu0 %v8104
        %v8291 = vpop.f32.mrf.mxu0
        %v8292 = vadd.f32 0.0, %v8291
        %v8293 = vpop.f32.mrf.mxu0
        %v8294 = vadd.f32 0.0, %v8293
        %8295 = vmatmul.bf16.gmra.mxu0 %v8107
        %v8296 = vpop.f32.mrf.mxu0
        %v8297 = vadd.f32 0.0, %v8296
        %v8298 = vpop.f32.mrf.mxu0
        %v8299 = vadd.f32 0.0, %v8298
        %8300 = vmatmul.bf16.gmra.mxu0 %v8110
        %v8301 = vpop.f32.mrf.mxu0
        %v8302 = vadd.f32 0.0, %v8301
        %v8303 = vpop.f32.mrf.mxu0
        %v8304 = vadd.f32 0.0, %v8303
        %8305 = vmatmul.bf16.gmra.mxu0 %v8113
        %v8306 = vpop.f32.mrf.mxu0
        %v8307 = vadd.f32 0.0, %v8306
        %v8308 = vpop.f32.mrf.mxu0
        %v8309 = vadd.f32 0.0, %v8308
        %8310 = vmatmul.bf16.gmra.mxu0 %v8116
        %v8311 = vpop.f32.mrf.mxu0
        %v8312 = vadd.f32 0.0, %v8311
        %v8313 = vpop.f32.mrf.mxu0
        %v8314 = vadd.f32 0.0, %v8313
        %8315 = vmatmul.bf16.gmra.mxu0 %v8119
        %v8316 = vpop.f32.mrf.mxu0
        %v8317 = vadd.f32 0.0, %v8316
        %v8318 = vpop.f32.mrf.mxu0
        %v8319 = vadd.f32 0.0, %v8318
        %8320 = vmatmul.bf16.gmra.mxu0 %v8122
        %v8321 = vpop.f32.mrf.mxu0
        %v8322 = vadd.f32 0.0, %v8321
        %v8323 = vpop.f32.mrf.mxu0
        %v8324 = vadd.f32 0.0, %v8323
        %8325 = vmatmul.bf16.gmra.mxu0 %v8125
        %v8326 = vpop.f32.mrf.mxu0
        %v8327 = vadd.f32 0.0, %v8326
        %v8328 = vpop.f32.mrf.mxu0
        %v8329 = vadd.f32 0.0, %v8328
        %8330 = vmatmul.bf16.gmra.mxu0 %v8128
        %v8331 = vpop.f32.mrf.mxu0
        %v8332 = vadd.f32 0.0, %v8331
        %v8333 = vpop.f32.mrf.mxu0
        %v8334 = vadd.f32 0.0, %v8333
        %8335 = vmatmul.bf16.gmra.mxu0 %v8131
        %v8336 = vpop.f32.mrf.mxu0
        %v8337 = vadd.f32 0.0, %v8336
        %v8338 = vpop.f32.mrf.mxu0
        %v8339 = vadd.f32 0.0, %v8338
        %8340 = vmatmul.bf16.gmra.mxu0 %v8134
        %v8341 = vpop.f32.mrf.mxu0
        %v8342 = vadd.f32 0.0, %v8341
        %v8343 = vpop.f32.mrf.mxu0
        %v8344 = vadd.f32 0.0, %v8343
        %8345 = vmatmul.bf16.gmra.mxu0 %v8137
        %v8346 = vpop.f32.mrf.mxu0
        %v8347 = vadd.f32 0.0, %v8346
        %v8348 = vpop.f32.mrf.mxu0
        %v8349 = vadd.f32 0.0, %v8348
        %8350 = vmatmul.bf16.gmra.mxu0 %v8140
        %v8351 = vpop.f32.mrf.mxu0
        %v8352 = vadd.f32 0.0, %v8351
        %v8353 = vpop.f32.mrf.mxu0
        %v8354 = vadd.f32 0.0, %v8353
        %8355 = vmatmul.bf16.gmra.mxu0 %v8143
        %v8356 = vpop.f32.mrf.mxu0
        %v8357 = vadd.f32 0.0, %v8356
        %v8358 = vpop.f32.mrf.mxu0
        %v8359 = vadd.f32 0.0, %v8358
        %8360 = vmatmul.bf16.gmra.mxu0 %v8146
        %v8361 = vpop.f32.mrf.mxu0
        %v8362 = vadd.f32 0.0, %v8361
        %v8363 = vpop.f32.mrf.mxu0
        %v8364 = vadd.f32 0.0, %v8363
        %8365 = vmatmul.bf16.gmra.mxu0 %v8149
        %v8366 = vpop.f32.mrf.mxu0
        %v8367 = vadd.f32 0.0, %v8366
        %v8368 = vpop.f32.mrf.mxu0
        %v8369 = vadd.f32 0.0, %v8368
        %8370 = vmatmul.bf16.gmra.mxu0 %v8152
        %v8371 = vpop.f32.mrf.mxu0
        %v8372 = vadd.f32 0.0, %v8371
        %v8373 = vpop.f32.mrf.mxu0
        %v8374 = vadd.f32 0.0, %v8373
        %8375 = vmatmul.bf16.gmra.mxu0 %v8155
        %v8376 = vpop.f32.mrf.mxu0
        %v8377 = vadd.f32 0.0, %v8376
        %v8378 = vpop.f32.mrf.mxu0
        %v8379 = vadd.f32 0.0, %v8378
        %8380 = vmatmul.bf16.gmra.mxu0 %v8158
        %v8381 = vpop.f32.mrf.mxu0
        %v8382 = vadd.f32 0.0, %v8381
        %v8383 = vpop.f32.mrf.mxu0
        %v8384 = vadd.f32 0.0, %v8383
        %8385 = vmatmul.bf16.gmra.mxu0 %v8161
        %v8386 = vpop.f32.mrf.mxu0
        %v8387 = vadd.f32 0.0, %v8386
        %v8388 = vpop.f32.mrf.mxu0
        %v8389 = vadd.f32 0.0, %v8388
        %8390 = vmatmul.bf16.gmra.mxu0 %v8164
        %v8391 = vpop.f32.mrf.mxu0
        %v8392 = vadd.f32 0.0, %v8391
        %v8393 = vpop.f32.mrf.mxu0
        %v8394 = vadd.f32 0.0, %v8393
        %8395 = vmatmul.bf16.gmra.mxu0 %v8167
        %v8396 = vpop.f32.mrf.mxu0
        %v8397 = vadd.f32 0.0, %v8396
        %v8398 = vpop.f32.mrf.mxu0
        %v8399 = vadd.f32 0.0, %v8398
        %8400 = vmatmul.bf16.gmra.mxu0 %v8170
        %v8401 = vpop.f32.mrf.mxu0
        %v8402 = vadd.f32 0.0, %v8401
        %v8403 = vpop.f32.mrf.mxu0
        %v8404 = vadd.f32 0.0, %v8403
        %8405 = vmatmul.bf16.gmra.mxu0 %v8173
        %v8406 = vpop.f32.mrf.mxu0
        %v8407 = vadd.f32 0.0, %v8406
        %v8408 = vpop.f32.mrf.mxu0
        %v8409 = vadd.f32 0.0, %v8408
        %8410 = vmatmul.bf16.gmra.mxu0 %v8176
        %v8411 = vpop.f32.mrf.mxu0
        %v8412 = vadd.f32 0.0, %v8411
        %v8413 = vpop.f32.mrf.mxu0
        %v8414 = vadd.f32 0.0, %v8413
        %8415 = vmatmul.bf16.gmra.mxu0 %v8179
        %v8416 = vpop.f32.mrf.mxu0
        %v8417 = vadd.f32 0.0, %v8416
        %v8418 = vpop.f32.mrf.mxu0
        %v8419 = vadd.f32 0.0, %v8418
        %8420 = vmatmul.bf16.gmra.mxu0 %v8182
        %v8421 = vpop.f32.mrf.mxu0
        %v8422 = vadd.f32 0.0, %v8421
        %v8423 = vpop.f32.mrf.mxu0
        %v8424 = vadd.f32 0.0, %v8423
        %8425 = vmatmul.bf16.gmra.mxu0 %v8185
        %v8426 = vpop.f32.mrf.mxu0
        %v8427 = vadd.f32 0.0, %v8426
        %v8428 = vpop.f32.mrf.mxu0
        %v8429 = vadd.f32 0.0, %v8428
        %8430 = vmatmul.bf16.gmra.mxu0 %v8188
        %v8431 = vpop.f32.mrf.mxu0
        %v8432 = vadd.f32 0.0, %v8431
        %v8433 = vpop.f32.mrf.mxu0
        %v8434 = vadd.f32 0.0, %v8433
        %8435 = vmatmul.bf16.gmra.mxu0 %v8191
        %v8436 = vpop.f32.mrf.mxu0
        %v8437 = vadd.f32 0.0, %v8436
        %v8438 = vpop.f32.mrf.mxu0
        %v8439 = vadd.f32 0.0, %v8438
        %8440 = vmatmul.bf16.gmra.mxu0 %v8194
        %v8441 = vpop.f32.mrf.mxu0
        %v8442 = vadd.f32 0.0, %v8441
        %v8443 = vpop.f32.mrf.mxu0
        %v8444 = vadd.f32 0.0, %v8443
        %8445 = vmatmul.bf16.gmra.mxu0 %v8197
        %v8446 = vpop.f32.mrf.mxu0
        %v8447 = vadd.f32 0.0, %v8446
        %v8448 = vpop.f32.mrf.mxu0
        %v8449 = vadd.f32 0.0, %v8448
        %8450 = vmatmul.bf16.gmra.mxu0 %v8200
        %v8451 = vpop.f32.mrf.mxu0
        %v8452 = vadd.f32 0.0, %v8451
        %v8453 = vpop.f32.mrf.mxu0
        %v8454 = vadd.f32 0.0, %v8453
        %8455 = vdwg.mxu0
        %v8456 = vadd.f32 %v7470, %v8212
        %v8457 = vadd.f32 %v7471, %v8214
        %v8458 = vadd.f32 %v7472, %v8217
        %v8459 = vadd.f32 %v7473, %v8219
        %v8460 = vadd.f32 %v7474, %v8222
        %v8461 = vadd.f32 %v7475, %v8224
        %v8462 = vadd.f32 %v7476, %v8227
        %v8463 = vadd.f32 %v7477, %v8229
        %v8464 = vadd.f32 %v7478, %v8232
        %v8465 = vadd.f32 %v7479, %v8234
        %v8466 = vadd.f32 %v7480, %v8237
        %v8467 = vadd.f32 %v7481, %v8239
        %v8468 = vadd.f32 %v7482, %v8242
        %v8469 = vadd.f32 %v7483, %v8244
        %v8470 = vadd.f32 %v7484, %v8247
        %v8471 = vadd.f32 %v7485, %v8249
        %v8472 = vadd.f32 %v7486, %v8252
        %v8473 = vadd.f32 %v7487, %v8254
        %v8474 = vadd.f32 %v7488, %v8257
        %v8475 = vadd.f32 %v7489, %v8259
        %v8476 = vadd.f32 %v7490, %v8262
        %v8477 = vadd.f32 %v7491, %v8264
        %v8478 = vadd.f32 %v7492, %v8267
        %v8479 = vadd.f32 %v7493, %v8269
        %v8480 = vadd.f32 %v7494, %v8272
        %v8481 = vadd.f32 %v7495, %v8274
        %v8482 = vadd.f32 %v7496, %v8277
        %v8483 = vadd.f32 %v7497, %v8279
        %v8484 = vadd.f32 %v7498, %v8282
        %v8485 = vadd.f32 %v7499, %v8284
        %v8486 = vadd.f32 %v7500, %v8287
        %v8487 = vadd.f32 %v7501, %v8289
        %v8488 = vadd.f32 %v7502, %v8292
        %v8489 = vadd.f32 %v7503, %v8294
        %v8490 = vadd.f32 %v7504, %v8297
        %v8491 = vadd.f32 %v7505, %v8299
        %v8492 = vadd.f32 %v7506, %v8302
        %v8493 = vadd.f32 %v7507, %v8304
        %v8494 = vadd.f32 %v7508, %v8307
        %v8495 = vadd.f32 %v7509, %v8309
        %v8496 = vadd.f32 %v7510, %v8312
        %v8497 = vadd.f32 %v7511, %v8314
        %v8498 = vadd.f32 %v7512, %v8317
        %v8499 = vadd.f32 %v7513, %v8319
        %v8500 = vadd.f32 %v7514, %v8322
        %v8501 = vadd.f32 %v7515, %v8324
        %v8502 = vadd.f32 %v7516, %v8327
        %v8503 = vadd.f32 %v7517, %v8329
        %v8504 = vadd.f32 %v7518, %v8332
        %v8505 = vadd.f32 %v7519, %v8334
        %v8506 = vadd.f32 %v7520, %v8337
        %v8507 = vadd.f32 %v7521, %v8339
        %v8508 = vadd.f32 %v7522, %v8342
        %v8509 = vadd.f32 %v7523, %v8344
        %v8510 = vadd.f32 %v7524, %v8347
        %v8511 = vadd.f32 %v7525, %v8349
        %v8512 = vadd.f32 %v7526, %v8352
        %v8513 = vadd.f32 %v7527, %v8354
        %v8514 = vadd.f32 %v7528, %v8357
        %v8515 = vadd.f32 %v7529, %v8359
        %v8516 = vadd.f32 %v7530, %v8362
        %v8517 = vadd.f32 %v7531, %v8364
        %v8518 = vadd.f32 %v7532, %v8367
        %v8519 = vadd.f32 %v7533, %v8369
        %v8520 = vadd.f32 %v7534, %v8372
        %v8521 = vadd.f32 %v7535, %v8374
        %v8522 = vadd.f32 %v7536, %v8377
        %v8523 = vadd.f32 %v7537, %v8379
        %v8524 = vadd.f32 %v7538, %v8382
        %v8525 = vadd.f32 %v7539, %v8384
        %v8526 = vadd.f32 %v7540, %v8387
        %v8527 = vadd.f32 %v7541, %v8389
        %v8528 = vadd.f32 %v7542, %v8392
        %v8529 = vadd.f32 %v7543, %v8394
        %v8530 = vadd.f32 %v7544, %v8397
        %v8531 = vadd.f32 %v7545, %v8399
        %v8532 = vadd.f32 %v7546, %v8402
        %v8533 = vadd.f32 %v7547, %v8404
        %v8534 = vadd.f32 %v7548, %v8407
        %v8535 = vadd.f32 %v7549, %v8409
        %v8536 = vadd.f32 %v7550, %v8412
        %v8537 = vadd.f32 %v7551, %v8414
        %v8538 = vadd.f32 %v7552, %v8417
        %v8539 = vadd.f32 %v7553, %v8419
        %v8540 = vadd.f32 %v7554, %v8422
        %v8541 = vadd.f32 %v7555, %v8424
        %v8542 = vadd.f32 %v7556, %v8427
        %v8543 = vadd.f32 %v7557, %v8429
        %v8544 = vadd.f32 %v7558, %v8432
        %v8545 = vadd.f32 %v7559, %v8434
        %v8546 = vadd.f32 %v7560, %v8437
        %v8547 = vadd.f32 %v7561, %v8439
        %v8548 = vadd.f32 %v7562, %v8442
        %v8549 = vadd.f32 %v7563, %v8444
        %v8550 = vadd.f32 %v7564, %v8447
        %v8551 = vadd.f32 %v7565, %v8449
        %v8552 = vadd.f32 %v7566, %v8452
        %v8553 = vadd.f32 %v7567, %v8454
        %v8554 = vld [vmem:[%s4] sm:$0x1]
        %v8556 = vperm.slane %v8554, 0
        %v8558 = vadd.f32 %v8456, %v8556
        %v8559 = vadd.f32 %v8457, %v8556
        %v8560 = vadd.f32 %v8458, %v8556
        %v8561 = vadd.f32 %v8459, %v8556
        %v8562 = vadd.f32 %v8460, %v8556
        %v8563 = vadd.f32 %v8461, %v8556
        %v8564 = vadd.f32 %v8462, %v8556
        %v8565 = vadd.f32 %v8463, %v8556
        %v8566 = vadd.f32 %v8464, %v8556
        %v8567 = vadd.f32 %v8465, %v8556
        %v8568 = vadd.f32 %v8466, %v8556
        %v8569 = vadd.f32 %v8467, %v8556
        %v8570 = vadd.f32 %v8468, %v8556
        %v8571 = vadd.f32 %v8469, %v8556
        %v8572 = vadd.f32 %v8470, %v8556
        %v8573 = vadd.f32 %v8471, %v8556
        %v8574 = vadd.f32 %v8472, %v8556
        %v8575 = vadd.f32 %v8473, %v8556
        %v8576 = vadd.f32 %v8474, %v8556
        %v8577 = vadd.f32 %v8475, %v8556
        %v8578 = vadd.f32 %v8476, %v8556
        %v8579 = vadd.f32 %v8477, %v8556
        %v8580 = vadd.f32 %v8478, %v8556
        %v8581 = vadd.f32 %v8479, %v8556
        %v8582 = vadd.f32 %v8480, %v8556
        %v8583 = vadd.f32 %v8481, %v8556
        %v8584 = vadd.f32 %v8482, %v8556
        %v8585 = vadd.f32 %v8483, %v8556
        %v8586 = vadd.f32 %v8484, %v8556
        %v8587 = vadd.f32 %v8485, %v8556
        %v8588 = vadd.f32 %v8486, %v8556
        %v8589 = vadd.f32 %v8487, %v8556
        %v8590 = vadd.f32 %v8488, %v8556
        %v8591 = vadd.f32 %v8489, %v8556
        %v8592 = vadd.f32 %v8490, %v8556
        %v8593 = vadd.f32 %v8491, %v8556
        %v8594 = vadd.f32 %v8492, %v8556
        %v8595 = vadd.f32 %v8493, %v8556
        %v8596 = vadd.f32 %v8494, %v8556
        %v8597 = vadd.f32 %v8495, %v8556
        %v8598 = vadd.f32 %v8496, %v8556
        %v8599 = vadd.f32 %v8497, %v8556
        %v8600 = vadd.f32 %v8498, %v8556
        %v8601 = vadd.f32 %v8499, %v8556
        %v8602 = vadd.f32 %v8500, %v8556
        %v8603 = vadd.f32 %v8501, %v8556
        %v8604 = vadd.f32 %v8502, %v8556
        %v8605 = vadd.f32 %v8503, %v8556
        %v8606 = vadd.f32 %v8504, %v8556
        %v8607 = vadd.f32 %v8505, %v8556
        %v8608 = vadd.f32 %v8506, %v8556
        %v8609 = vadd.f32 %v8507, %v8556
        %v8610 = vadd.f32 %v8508, %v8556
        %v8611 = vadd.f32 %v8509, %v8556
        %v8612 = vadd.f32 %v8510, %v8556
        %v8613 = vadd.f32 %v8511, %v8556
        %v8614 = vadd.f32 %v8512, %v8556
        %v8615 = vadd.f32 %v8513, %v8556
        %v8616 = vadd.f32 %v8514, %v8556
        %v8617 = vadd.f32 %v8515, %v8556
        %v8618 = vadd.f32 %v8516, %v8556
        %v8619 = vadd.f32 %v8517, %v8556
        %v8620 = vadd.f32 %v8518, %v8556
        %v8621 = vadd.f32 %v8519, %v8556
        %v8622 = vadd.f32 %v8520, %v8556
        %v8623 = vadd.f32 %v8521, %v8556
        %v8624 = vadd.f32 %v8522, %v8556
        %v8625 = vadd.f32 %v8523, %v8556
        %v8626 = vadd.f32 %v8524, %v8556
        %v8627 = vadd.f32 %v8525, %v8556
        %v8628 = vadd.f32 %v8526, %v8556
        %v8629 = vadd.f32 %v8527, %v8556
        %v8630 = vadd.f32 %v8528, %v8556
        %v8631 = vadd.f32 %v8529, %v8556
        %v8632 = vadd.f32 %v8530, %v8556
        %v8633 = vadd.f32 %v8531, %v8556
        %v8634 = vadd.f32 %v8532, %v8556
        %v8635 = vadd.f32 %v8533, %v8556
        %v8636 = vadd.f32 %v8534, %v8556
        %v8637 = vadd.f32 %v8535, %v8556
        %v8638 = vadd.f32 %v8536, %v8556
        %v8639 = vadd.f32 %v8537, %v8556
        %v8640 = vadd.f32 %v8538, %v8556
        %v8641 = vadd.f32 %v8539, %v8556
        %v8642 = vadd.f32 %v8540, %v8556
        %v8643 = vadd.f32 %v8541, %v8556
        %v8644 = vadd.f32 %v8542, %v8556
        %v8645 = vadd.f32 %v8543, %v8556
        %v8646 = vadd.f32 %v8544, %v8556
        %v8647 = vadd.f32 %v8545, %v8556
        %v8648 = vadd.f32 %v8546, %v8556
        %v8649 = vadd.f32 %v8547, %v8556
        %v8650 = vadd.f32 %v8548, %v8556
        %v8651 = vadd.f32 %v8549, %v8556
        %v8652 = vadd.f32 %v8550, %v8556
        %v8653 = vadd.f32 %v8551, %v8556
        %v8654 = vadd.f32 %v8552, %v8556
        %v8655 = vadd.f32 %v8553, %v8556
        %v8656 = vmax.f32 %v8558, 0.0
        %v8657 = vmax.f32 %v8559, 0.0
        %v8658 = vmax.f32 %v8560, 0.0
        %v8659 = vmax.f32 %v8561, 0.0
        %v8660 = vmax.f32 %v8562, 0.0
        %v8661 = vmax.f32 %v8563, 0.0
        %v8662 = vmax.f32 %v8564, 0.0
        %v8663 = vmax.f32 %v8565, 0.0
        %v8664 = vmax.f32 %v8566, 0.0
        %v8665 = vmax.f32 %v8567, 0.0
        %v8666 = vmax.f32 %v8568, 0.0
        %v8667 = vmax.f32 %v8569, 0.0
        %v8668 = vmax.f32 %v8570, 0.0
        %v8669 = vmax.f32 %v8571, 0.0
        %v8670 = vmax.f32 %v8572, 0.0
        %v8671 = vmax.f32 %v8573, 0.0
        %v8672 = vmax.f32 %v8574, 0.0
        %v8673 = vmax.f32 %v8575, 0.0
        %v8674 = vmax.f32 %v8576, 0.0
        %v8675 = vmax.f32 %v8577, 0.0
        %v8676 = vmax.f32 %v8578, 0.0
        %v8677 = vmax.f32 %v8579, 0.0
        %v8678 = vmax.f32 %v8580, 0.0
        %v8679 = vmax.f32 %v8581, 0.0
        %v8680 = vmax.f32 %v8582, 0.0
        %v8681 = vmax.f32 %v8583, 0.0
        %v8682 = vmax.f32 %v8584, 0.0
        %v8683 = vmax.f32 %v8585, 0.0
        %v8684 = vmax.f32 %v8586, 0.0
        %v8685 = vmax.f32 %v8587, 0.0
        %v8686 = vmax.f32 %v8588, 0.0
        %v8687 = vmax.f32 %v8589, 0.0
        %v8688 = vmax.f32 %v8590, 0.0
        %v8689 = vmax.f32 %v8591, 0.0
        %v8690 = vmax.f32 %v8592, 0.0
        %v8691 = vmax.f32 %v8593, 0.0
        %v8692 = vmax.f32 %v8594, 0.0
        %v8693 = vmax.f32 %v8595, 0.0
        %v8694 = vmax.f32 %v8596, 0.0
        %v8695 = vmax.f32 %v8597, 0.0
        %v8696 = vmax.f32 %v8598, 0.0
        %v8697 = vmax.f32 %v8599, 0.0
        %v8698 = vmax.f32 %v8600, 0.0
        %v8699 = vmax.f32 %v8601, 0.0
        %v8700 = vmax.f32 %v8602, 0.0
        %v8701 = vmax.f32 %v8603, 0.0
        %v8702 = vmax.f32 %v8604, 0.0
        %v8703 = vmax.f32 %v8605, 0.0
        %v8704 = vmax.f32 %v8606, 0.0
        %v8705 = vmax.f32 %v8607, 0.0
        %v8706 = vmax.f32 %v8608, 0.0
        %v8707 = vmax.f32 %v8609, 0.0
        %v8708 = vmax.f32 %v8610, 0.0
        %v8709 = vmax.f32 %v8611, 0.0
        %v8710 = vmax.f32 %v8612, 0.0
        %v8711 = vmax.f32 %v8613, 0.0
        %v8712 = vmax.f32 %v8614, 0.0
        %v8713 = vmax.f32 %v8615, 0.0
        %v8714 = vmax.f32 %v8616, 0.0
        %v8715 = vmax.f32 %v8617, 0.0
        %v8716 = vmax.f32 %v8618, 0.0
        %v8717 = vmax.f32 %v8619, 0.0
        %v8718 = vmax.f32 %v8620, 0.0
        %v8719 = vmax.f32 %v8621, 0.0
        %v8720 = vmax.f32 %v8622, 0.0
        %v8721 = vmax.f32 %v8623, 0.0
        %v8722 = vmax.f32 %v8624, 0.0
        %v8723 = vmax.f32 %v8625, 0.0
        %v8724 = vmax.f32 %v8626, 0.0
        %v8725 = vmax.f32 %v8627, 0.0
        %v8726 = vmax.f32 %v8628, 0.0
        %v8727 = vmax.f32 %v8629, 0.0
        %v8728 = vmax.f32 %v8630, 0.0
        %v8729 = vmax.f32 %v8631, 0.0
        %v8730 = vmax.f32 %v8632, 0.0
        %v8731 = vmax.f32 %v8633, 0.0
        %v8732 = vmax.f32 %v8634, 0.0
        %v8733 = vmax.f32 %v8635, 0.0
        %v8734 = vmax.f32 %v8636, 0.0
        %v8735 = vmax.f32 %v8637, 0.0
        %v8736 = vmax.f32 %v8638, 0.0
        %v8737 = vmax.f32 %v8639, 0.0
        %v8738 = vmax.f32 %v8640, 0.0
        %v8739 = vmax.f32 %v8641, 0.0
        %v8740 = vmax.f32 %v8642, 0.0
        %v8741 = vmax.f32 %v8643, 0.0
        %v8742 = vmax.f32 %v8644, 0.0
        %v8743 = vmax.f32 %v8645, 0.0
        %v8744 = vmax.f32 %v8646, 0.0
        %v8745 = vmax.f32 %v8647, 0.0
        %v8746 = vmax.f32 %v8648, 0.0
        %v8747 = vmax.f32 %v8649, 0.0
        %v8748 = vmax.f32 %v8650, 0.0
        %v8749 = vmax.f32 %v8651, 0.0
        %v8750 = vmax.f32 %v8652, 0.0
        %v8751 = vmax.f32 %v8653, 0.0
        %v8752 = vmax.f32 %v8654, 0.0
        %v8753 = vmax.f32 %v8655, 0.0
        %vm8754 = vcmask 261120
        %8755 = vst.msk [vmem:[#allocation3] sm:$0xff] %vm8754, %v8656
        %8756 = vst.msk [vmem:[#allocation3 + $0x8] sm:$0xff] %vm8754, %v8657
        %8757 = vst.msk [vmem:[#allocation3 + $0x10] sm:$0xff] %vm8754, %v8658
        %8758 = vst.msk [vmem:[#allocation3 + $0x18] sm:$0xff] %vm8754, %v8659
        %8759 = vst.msk [vmem:[#allocation3 + $0x20] sm:$0xff] %vm8754, %v8660
        %8760 = vst.msk [vmem:[#allocation3 + $0x28] sm:$0xff] %vm8754, %v8661
        %8761 = vst.msk [vmem:[#allocation3 + $0x30] sm:$0xff] %vm8754, %v8662
        %8762 = vst.msk [vmem:[#allocation3 + $0x38] sm:$0xff] %vm8754, %v8663
        %8763 = vst.msk [vmem:[#allocation3 + $0x40] sm:$0xff] %vm8754, %v8664
        %8764 = vst.msk [vmem:[#allocation3 + $0x48] sm:$0xff] %vm8754, %v8665
        %8765 = vst.msk [vmem:[#allocation3 + $0x50] sm:$0xff] %vm8754, %v8666
        %8766 = vst.msk [vmem:[#allocation3 + $0x58] sm:$0xff] %vm8754, %v8667
        %8767 = vst.msk [vmem:[#allocation3 + $0x60] sm:$0xff] %vm8754, %v8668
        %8768 = vst.msk [vmem:[#allocation3 + $0x68] sm:$0xff] %vm8754, %v8669
        %8769 = vst.msk [vmem:[#allocation3 + $0x70] sm:$0xff] %vm8754, %v8670
        %8770 = vst.msk [vmem:[#allocation3 + $0x78] sm:$0xff] %vm8754, %v8671
        %8771 = vst.msk [vmem:[#allocation3 + $0x80] sm:$0xff] %vm8754, %v8672
        %8772 = vst.msk [vmem:[#allocation3 + $0x88] sm:$0xff] %vm8754, %v8673
        %8773 = vst.msk [vmem:[#allocation3 + $0x90] sm:$0xff] %vm8754, %v8674
        %8774 = vst.msk [vmem:[#allocation3 + $0x98] sm:$0xff] %vm8754, %v8675
        %8775 = vst.msk [vmem:[#allocation3 + $0xa0] sm:$0xff] %vm8754, %v8676
        %8776 = vst.msk [vmem:[#allocation3 + $0xa8] sm:$0xff] %vm8754, %v8677
        %8777 = vst.msk [vmem:[#allocation3 + $0xb0] sm:$0xff] %vm8754, %v8678
        %8778 = vst.msk [vmem:[#allocation3 + $0xb8] sm:$0xff] %vm8754, %v8679
        %8779 = vst.msk [vmem:[#allocation3 + $0xc0] sm:$0xff] %vm8754, %v8680
        %8780 = vst.msk [vmem:[#allocation3 + $0xc8] sm:$0xff] %vm8754, %v8681
        %8781 = vst.msk [vmem:[#allocation3 + $0xd0] sm:$0xff] %vm8754, %v8682
        %8782 = vst.msk [vmem:[#allocation3 + $0xd8] sm:$0xff] %vm8754, %v8683
        %8783 = vst.msk [vmem:[#allocation3 + $0xe0] sm:$0xff] %vm8754, %v8684
        %8784 = vst.msk [vmem:[#allocation3 + $0xe8] sm:$0xff] %vm8754, %v8685
        %8785 = vst.msk [vmem:[#allocation3 + $0xf0] sm:$0xff] %vm8754, %v8686
        %8786 = vst.msk [vmem:[#allocation3 + $0xf8] sm:$0xff] %vm8754, %v8687
        %8787 = vst.msk [vmem:[#allocation3 + $0x100] sm:$0xff] %vm8754, %v8688
        %8788 = vst.msk [vmem:[#allocation3 + $0x108] sm:$0xff] %vm8754, %v8689
        %8789 = vst.msk [vmem:[#allocation3 + $0x110] sm:$0xff] %vm8754, %v8690
        %8790 = vst.msk [vmem:[#allocation3 + $0x118] sm:$0xff] %vm8754, %v8691
        %8791 = vst.msk [vmem:[#allocation3 + $0x120] sm:$0xff] %vm8754, %v8692
        %8792 = vst.msk [vmem:[#allocation3 + $0x128] sm:$0xff] %vm8754, %v8693
        %8793 = vst.msk [vmem:[#allocation3 + $0x130] sm:$0xff] %vm8754, %v8694
        %8794 = vst.msk [vmem:[#allocation3 + $0x138] sm:$0xff] %vm8754, %v8695
        %8795 = vst.msk [vmem:[#allocation3 + $0x140] sm:$0xff] %vm8754, %v8696
        %8796 = vst.msk [vmem:[#allocation3 + $0x148] sm:$0xff] %vm8754, %v8697
        %8797 = vst.msk [vmem:[#allocation3 + $0x150] sm:$0xff] %vm8754, %v8698
        %8798 = vst.msk [vmem:[#allocation3 + $0x158] sm:$0xff] %vm8754, %v8699
        %8799 = vst.msk [vmem:[#allocation3 + $0x160] sm:$0xff] %vm8754, %v8700
        %8800 = vst.msk [vmem:[#allocation3 + $0x168] sm:$0xff] %vm8754, %v8701
        %8801 = vst.msk [vmem:[#allocation3 + $0x170] sm:$0xff] %vm8754, %v8702
        %8802 = vst.msk [vmem:[#allocation3 + $0x178] sm:$0xff] %vm8754, %v8703
        %8803 = vst.msk [vmem:[#allocation3 + $0x180] sm:$0xff] %vm8754, %v8704
        %8804 = vst.msk [vmem:[#allocation3 + $0x188] sm:$0xff] %vm8754, %v8705
        %8805 = vst.msk [vmem:[#allocation3 + $0x190] sm:$0xff] %vm8754, %v8706
        %8806 = vst.msk [vmem:[#allocation3 + $0x198] sm:$0xff] %vm8754, %v8707
        %8807 = vst.msk [vmem:[#allocation3 + $0x1a0] sm:$0xff] %vm8754, %v8708
        %8808 = vst.msk [vmem:[#allocation3 + $0x1a8] sm:$0xff] %vm8754, %v8709
        %8809 = vst.msk [vmem:[#allocation3 + $0x1b0] sm:$0xff] %vm8754, %v8710
        %8810 = vst.msk [vmem:[#allocation3 + $0x1b8] sm:$0xff] %vm8754, %v8711
        %8811 = vst.msk [vmem:[#allocation3 + $0x1c0] sm:$0xff] %vm8754, %v8712
        %8812 = vst.msk [vmem:[#allocation3 + $0x1c8] sm:$0xff] %vm8754, %v8713
        %8813 = vst.msk [vmem:[#allocation3 + $0x1d0] sm:$0xff] %vm8754, %v8714
        %8814 = vst.msk [vmem:[#allocation3 + $0x1d8] sm:$0xff] %vm8754, %v8715
        %8815 = vst.msk [vmem:[#allocation3 + $0x1e0] sm:$0xff] %vm8754, %v8716
        %8816 = vst.msk [vmem:[#allocation3 + $0x1e8] sm:$0xff] %vm8754, %v8717
        %8817 = vst.msk [vmem:[#allocation3 + $0x1f0] sm:$0xff] %vm8754, %v8718
        %8818 = vst.msk [vmem:[#allocation3 + $0x1f8] sm:$0xff] %vm8754, %v8719
        %8819 = vst.msk [vmem:[#allocation3 + $0x200] sm:$0xff] %vm8754, %v8720
        %8820 = vst.msk [vmem:[#allocation3 + $0x208] sm:$0xff] %vm8754, %v8721
        %8821 = vst.msk [vmem:[#allocation3 + $0x210] sm:$0xff] %vm8754, %v8722
        %8822 = vst.msk [vmem:[#allocation3 + $0x218] sm:$0xff] %vm8754, %v8723
        %8823 = vst.msk [vmem:[#allocation3 + $0x220] sm:$0xff] %vm8754, %v8724
        %8824 = vst.msk [vmem:[#allocation3 + $0x228] sm:$0xff] %vm8754, %v8725
        %8825 = vst.msk [vmem:[#allocation3 + $0x230] sm:$0xff] %vm8754, %v8726
        %8826 = vst.msk [vmem:[#allocation3 + $0x238] sm:$0xff] %vm8754, %v8727
        %8827 = vst.msk [vmem:[#allocation3 + $0x240] sm:$0xff] %vm8754, %v8728
        %8828 = vst.msk [vmem:[#allocation3 + $0x248] sm:$0xff] %vm8754, %v8729
        %8829 = vst.msk [vmem:[#allocation3 + $0x250] sm:$0xff] %vm8754, %v8730
        %8830 = vst.msk [vmem:[#allocation3 + $0x258] sm:$0xff] %vm8754, %v8731
        %8831 = vst.msk [vmem:[#allocation3 + $0x260] sm:$0xff] %vm8754, %v8732
        %8832 = vst.msk [vmem:[#allocation3 + $0x268] sm:$0xff] %vm8754, %v8733
        %8833 = vst.msk [vmem:[#allocation3 + $0x270] sm:$0xff] %vm8754, %v8734
        %8834 = vst.msk [vmem:[#allocation3 + $0x278] sm:$0xff] %vm8754, %v8735
        %8835 = vst.msk [vmem:[#allocation3 + $0x280] sm:$0xff] %vm8754, %v8736
        %8836 = vst.msk [vmem:[#allocation3 + $0x288] sm:$0xff] %vm8754, %v8737
        %8837 = vst.msk [vmem:[#allocation3 + $0x290] sm:$0xff] %vm8754, %v8738
        %8838 = vst.msk [vmem:[#allocation3 + $0x298] sm:$0xff] %vm8754, %v8739
        %8839 = vst.msk [vmem:[#allocation3 + $0x2a0] sm:$0xff] %vm8754, %v8740
        %8840 = vst.msk [vmem:[#allocation3 + $0x2a8] sm:$0xff] %vm8754, %v8741
        %8841 = vst.msk [vmem:[#allocation3 + $0x2b0] sm:$0xff] %vm8754, %v8742
        %8842 = vst.msk [vmem:[#allocation3 + $0x2b8] sm:$0xff] %vm8754, %v8743
        %8843 = vst.msk [vmem:[#allocation3 + $0x2c0] sm:$0xff] %vm8754, %v8744
        %8844 = vst.msk [vmem:[#allocation3 + $0x2c8] sm:$0xff] %vm8754, %v8745
        %8845 = vst.msk [vmem:[#allocation3 + $0x2d0] sm:$0xff] %vm8754, %v8746
        %8846 = vst.msk [vmem:[#allocation3 + $0x2d8] sm:$0xff] %vm8754, %v8747
        %8847 = vst.msk [vmem:[#allocation3 + $0x2e0] sm:$0xff] %vm8754, %v8748
        %8848 = vst.msk [vmem:[#allocation3 + $0x2e8] sm:$0xff] %vm8754, %v8749
        %8849 = vst.msk [vmem:[#allocation3 + $0x2f0] sm:$0xff] %vm8754, %v8750
        %8850 = vst.msk [vmem:[#allocation3 + $0x2f8] sm:$0xff] %vm8754, %v8751
        %8851 = vst.msk [vmem:[#allocation3 + $0x300] sm:$0xff] %vm8754, %v8752
        %8852 = vst.msk [vmem:[#allocation3 + $0x308] sm:$0xff] %vm8754, %v8753
        %v8853 = vld [vmem:[#allocation3] ss:$2 sm:$0xff]
        %s8854 = scalar_lea.vmem [#allocation3], 16
        %v8855 = vld [vmem:[%s8854] ss:$2 sm:$0x3]
        %s8856 = scalar_lea.vmem [#allocation3], 1
        %v8857 = vld [vmem:[%s8856] ss:$2 sm:$0xff]
        %s8858 = scalar_lea.vmem [#allocation3], 17
        %v8859 = vld [vmem:[%s8858] ss:$2 sm:$0x3]
        %s8860 = scalar_lea.vmem [#allocation3], 28
        %v8861 = vld [vmem:[%s8860] ss:$2 sm:$0xff]
        %s8862 = scalar_lea.vmem [#allocation3], 44
        %v8863 = vld [vmem:[%s8862] ss:$2 sm:$0x3]
        %s8864 = scalar_lea.vmem [#allocation3], 29
        %v8865 = vld [vmem:[%s8864] ss:$2 sm:$0xff]
        %s8866 = scalar_lea.vmem [#allocation3], 45
        %v8867 = vld [vmem:[%s8866] ss:$2 sm:$0x3]
        %v8868 = vmax.f32 %v8853, %v8857
        %v8869 = vmax.f32 %v8855, %v8859
        %v8870 = vmax.f32 %v8861, %v8865
        %v8871 = vmax.f32 %v8863, %v8867
        %v8872 = vmax.f32 %v8868, %v8870
        %v8873 = vmax.f32 %v8869, %v8871
        %v8874 = vpack.c.bf16 %v8872, %v8872
        %v8875 = vpack.c.bf16 %v8873, %v8873
        %vm8876 = vcmask 257024
        %8877 = vst.msk [vmem:[#allocation4] sm:$0xf] %vm8876, %v8874
        %vm8878 = vcmask 253952
        %8879 = vst.msk [vmem:[#allocation4 + $0x4] sm:$0x1] %vm8878, %v8875
        %s8880 = scalar_lea.vmem [#allocation3], 56
        %v8881 = vld [vmem:[%s8880] ss:$2 sm:$0xff]
        %s8882 = scalar_lea.vmem [#allocation3], 72
        %v8883 = vld [vmem:[%s8882] ss:$2 sm:$0x3]
        %s8884 = scalar_lea.vmem [#allocation3], 57
        %v8885 = vld [vmem:[%s8884] ss:$2 sm:$0xff]
        %s8886 = scalar_lea.vmem [#allocation3], 73
        %v8887 = vld [vmem:[%s8886] ss:$2 sm:$0x3]
        %s8888 = scalar_lea.vmem [#allocation3], 84
        %v8889 = vld [vmem:[%s8888] ss:$2 sm:$0xff]
        %s8890 = scalar_lea.vmem [#allocation3], 100
        %v8891 = vld [vmem:[%s8890] ss:$2 sm:$0x3]
        %s8892 = scalar_lea.vmem [#allocation3], 85
        %v8893 = vld [vmem:[%s8892] ss:$2 sm:$0xff]
        %s8894 = scalar_lea.vmem [#allocation3], 101
        %v8895 = vld [vmem:[%s8894] ss:$2 sm:$0x3]
        %v8896 = vmax.f32 %v8881, %v8885
        %v8897 = vmax.f32 %v8883, %v8887
        %v8898 = vmax.f32 %v8889, %v8893
        %v8899 = vmax.f32 %v8891, %v8895
        %v8900 = vmax.f32 %v8896, %v8898
        %v8901 = vmax.f32 %v8897, %v8899
        %v8902 = vpack.c.bf16 %v8900, %v8900
        %v8903 = vpack.c.bf16 %v8901, %v8901
        %v8906 = vrot.slane %v8902, 7
        %v8907 = vrot.slane %v8906, 4
        %v8908 = vrot.slane %v8903, 7
        %v8909 = vsel %vm3158, %v8907, %v8908
        %vm8912 = vcmask 257025
        %8913 = vst.msk [vmem:[#allocation4 + $0x4] sm:$0xe] %vm8912, %v8906
        %vm8914 = vcmask 254976
        %8915 = vst.msk [vmem:[#allocation4 + $0x8] sm:$0x3] %vm8914, %v8909
        %s8916 = scalar_lea.vmem [#allocation3], 112
        %v8917 = vld [vmem:[%s8916] ss:$2 sm:$0xff]
        %s8918 = scalar_lea.vmem [#allocation3], 128
        %v8919 = vld [vmem:[%s8918] ss:$2 sm:$0x3]
        %s8920 = scalar_lea.vmem [#allocation3], 113
        %v8921 = vld [vmem:[%s8920] ss:$2 sm:$0xff]
        %s8922 = scalar_lea.vmem [#allocation3], 129
        %v8923 = vld [vmem:[%s8922] ss:$2 sm:$0x3]
        %s8924 = scalar_lea.vmem [#allocation3], 140
        %v8925 = vld [vmem:[%s8924] ss:$2 sm:$0xff]
        %s8926 = scalar_lea.vmem [#allocation3], 156
        %v8927 = vld [vmem:[%s8926] ss:$2 sm:$0x3]
        %s8928 = scalar_lea.vmem [#allocation3], 141
        %v8929 = vld [vmem:[%s8928] ss:$2 sm:$0xff]
        %s8930 = scalar_lea.vmem [#allocation3], 157
        %v8931 = vld [vmem:[%s8930] ss:$2 sm:$0x3]
        %v8932 = vmax.f32 %v8917, %v8921
        %v8933 = vmax.f32 %v8919, %v8923
        %v8934 = vmax.f32 %v8925, %v8929
        %v8935 = vmax.f32 %v8927, %v8931
        %v8936 = vmax.f32 %v8932, %v8934
        %v8937 = vmax.f32 %v8933, %v8935
        %v8938 = vpack.c.bf16 %v8936, %v8936
        %v8939 = vpack.c.bf16 %v8937, %v8937
        %v8942 = vrot.slane %v8938, 6
        %v8943 = vrot.slane %v8942, 4
        %v8944 = vrot.slane %v8939, 6
        %v8945 = vsel %vm1471, %v8943, %v8944
        %vm8948 = vcmask 257026
        %8949 = vst.msk [vmem:[#allocation4 + $0x8] sm:$0xc] %vm8948, %v8942
        %vm8950 = vcmask 256000
        %8951 = vst.msk [vmem:[#allocation4 + $0xc] sm:$0x7] %vm8950, %v8945
        %s8952 = scalar_lea.vmem [#allocation3], 168
        %v8953 = vld [vmem:[%s8952] ss:$2 sm:$0xff]
        %s8954 = scalar_lea.vmem [#allocation3], 184
        %v8955 = vld [vmem:[%s8954] ss:$2 sm:$0x3]
        %s8956 = scalar_lea.vmem [#allocation3], 169
        %v8957 = vld [vmem:[%s8956] ss:$2 sm:$0xff]
        %s8958 = scalar_lea.vmem [#allocation3], 185
        %v8959 = vld [vmem:[%s8958] ss:$2 sm:$0x3]
        %s8960 = scalar_lea.vmem [#allocation3], 196
        %v8961 = vld [vmem:[%s8960] ss:$2 sm:$0xff]
        %s8962 = scalar_lea.vmem [#allocation3], 212
        %v8963 = vld [vmem:[%s8962] ss:$2 sm:$0x3]
        %s8964 = scalar_lea.vmem [#allocation3], 197
        %v8965 = vld [vmem:[%s8964] ss:$2 sm:$0xff]
        %s8966 = scalar_lea.vmem [#allocation3], 213
        %v8967 = vld [vmem:[%s8966] ss:$2 sm:$0x3]
        %v8968 = vmax.f32 %v8953, %v8957
        %v8969 = vmax.f32 %v8955, %v8959
        %v8970 = vmax.f32 %v8961, %v8965
        %v8971 = vmax.f32 %v8963, %v8967
        %v8972 = vmax.f32 %v8968, %v8970
        %v8973 = vmax.f32 %v8969, %v8971
        %v8974 = vpack.c.bf16 %v8972, %v8972
        %v8975 = vpack.c.bf16 %v8973, %v8973
        %vm8978 = vcmask 1042432
        %vm8979 = vcmask 1046532
        %vm8980 = vmor %vm8978, %vm8979
        %v8981 = vrot.slane %v8974, 5
        %v8982 = vrot.slane %v8981, 4
        %v8983 = vrot.slane %v8975, 5
        %v8984 = vsel %vm8980, %v8982, %v8983
        %vm8987 = vcmask 257027
        %8988 = vst.msk [vmem:[#allocation4 + $0xc] sm:$0x8] %vm8987, %v8981
        %8989 = vst.msk [vmem:[#allocation4 + $0x10] sm:$0xf] %vm8876, %v8984
        %s8990 = scalar_lea.vmem [#allocation3], 224
        %v8991 = vld [vmem:[%s8990] ss:$2 sm:$0xff]
        %s8992 = scalar_lea.vmem [#allocation3], 240
        %v8993 = vld [vmem:[%s8992] ss:$2 sm:$0x3]
        %s8994 = scalar_lea.vmem [#allocation3], 225
        %v8995 = vld [vmem:[%s8994] ss:$2 sm:$0xff]
        %s8996 = scalar_lea.vmem [#allocation3], 241
        %v8997 = vld [vmem:[%s8996] ss:$2 sm:$0x3]
        %s8998 = scalar_lea.vmem [#allocation3], 252
        %v8999 = vld [vmem:[%s8998] ss:$2 sm:$0xff]
        %s9000 = scalar_lea.vmem [#allocation3], 268
        %v9001 = vld [vmem:[%s9000] ss:$2 sm:$0x3]
        %s9002 = scalar_lea.vmem [#allocation3], 253
        %v9003 = vld [vmem:[%s9002] ss:$2 sm:$0xff]
        %s9004 = scalar_lea.vmem [#allocation3], 269
        %v9005 = vld [vmem:[%s9004] ss:$2 sm:$0x3]
        %v9006 = vmax.f32 %v8991, %v8995
        %v9007 = vmax.f32 %v8993, %v8997
        %v9008 = vmax.f32 %v8999, %v9003
        %v9009 = vmax.f32 %v9001, %v9005
        %v9010 = vmax.f32 %v9006, %v9008
        %v9011 = vmax.f32 %v9007, %v9009
        %v9012 = vpack.c.bf16 %v9010, %v9010
        %v9013 = vpack.c.bf16 %v9011, %v9011
        %9014 = vst.msk [vmem:[#allocation4 + $0x14] sm:$0xf] %vm8876, %v9012
        %9015 = vst.msk [vmem:[#allocation4 + $0x18] sm:$0x1] %vm8878, %v9013
        %s9016 = scalar_lea.vmem [#allocation3], 280
        %v9017 = vld [vmem:[%s9016] ss:$2 sm:$0xff]
        %s9018 = scalar_lea.vmem [#allocation3], 296
        %v9019 = vld [vmem:[%s9018] ss:$2 sm:$0x3]
        %s9020 = scalar_lea.vmem [#allocation3], 281
        %v9021 = vld [vmem:[%s9020] ss:$2 sm:$0xff]
        %s9022 = scalar_lea.vmem [#allocation3], 297
        %v9023 = vld [vmem:[%s9022] ss:$2 sm:$0x3]
        %s9024 = scalar_lea.vmem [#allocation3], 308
        %v9025 = vld [vmem:[%s9024] ss:$2 sm:$0xff]
        %s9026 = scalar_lea.vmem [#allocation3], 324
        %v9027 = vld [vmem:[%s9026] ss:$2 sm:$0x3]
        %s9028 = scalar_lea.vmem [#allocation3], 309
        %v9029 = vld [vmem:[%s9028] ss:$2 sm:$0xff]
        %s9030 = scalar_lea.vmem [#allocation3], 325
        %v9031 = vld [vmem:[%s9030] ss:$2 sm:$0x3]
        %v9032 = vmax.f32 %v9017, %v9021
        %v9033 = vmax.f32 %v9019, %v9023
        %v9034 = vmax.f32 %v9025, %v9029
        %v9035 = vmax.f32 %v9027, %v9031
        %v9036 = vmax.f32 %v9032, %v9034
        %v9037 = vmax.f32 %v9033, %v9035
        %v9038 = vpack.c.bf16 %v9036, %v9036
        %v9039 = vpack.c.bf16 %v9037, %v9037
        %v9042 = vrot.slane %v9038, 7
        %v9043 = vrot.slane %v9042, 4
        %v9044 = vrot.slane %v9039, 7
        %v9045 = vsel %vm3158, %v9043, %v9044
        %9048 = vst.msk [vmem:[#allocation4 + $0x18] sm:$0xe] %vm8912, %v9042
        %9049 = vst.msk [vmem:[#allocation4 + $0x1c] sm:$0x3] %vm8914, %v9045
        %s9050 = scalar_lea.vmem [#allocation3], 336
        %v9051 = vld [vmem:[%s9050] ss:$2 sm:$0xff]
        %s9052 = scalar_lea.vmem [#allocation3], 352
        %v9053 = vld [vmem:[%s9052] ss:$2 sm:$0x3]
        %s9054 = scalar_lea.vmem [#allocation3], 337
        %v9055 = vld [vmem:[%s9054] ss:$2 sm:$0xff]
        %s9056 = scalar_lea.vmem [#allocation3], 353
        %v9057 = vld [vmem:[%s9056] ss:$2 sm:$0x3]
        %s9058 = scalar_lea.vmem [#allocation3], 364
        %v9059 = vld [vmem:[%s9058] ss:$2 sm:$0xff]
        %s9060 = scalar_lea.vmem [#allocation3], 380
        %v9061 = vld [vmem:[%s9060] ss:$2 sm:$0x3]
        %s9062 = scalar_lea.vmem [#allocation3], 365
        %v9063 = vld [vmem:[%s9062] ss:$2 sm:$0xff]
        %s9064 = scalar_lea.vmem [#allocation3], 381
        %v9065 = vld [vmem:[%s9064] ss:$2 sm:$0x3]
        %v9066 = vmax.f32 %v9051, %v9055
        %v9067 = vmax.f32 %v9053, %v9057
        %v9068 = vmax.f32 %v9059, %v9063
        %v9069 = vmax.f32 %v9061, %v9065
        %v9070 = vmax.f32 %v9066, %v9068
        %v9071 = vmax.f32 %v9067, %v9069
        %v9072 = vpack.c.bf16 %v9070, %v9070
        %v9073 = vpack.c.bf16 %v9071, %v9071
        %v9076 = vrot.slane %v9072, 6
        %v9077 = vrot.slane %v9076, 4
        %v9078 = vrot.slane %v9073, 6
        %v9079 = vsel %vm1471, %v9077, %v9078
        %9082 = vst.msk [vmem:[#allocation4 + $0x1c] sm:$0xc] %vm8948, %v9076
        %9083 = vst.msk [vmem:[#allocation4 + $0x20] sm:$0x7] %vm8950, %v9079
        %s9084 = scalar_lea.vmem [#allocation3], 392
        %v9085 = vld [vmem:[%s9084] ss:$2 sm:$0xff]
        %s9086 = scalar_lea.vmem [#allocation3], 408
        %v9087 = vld [vmem:[%s9086] ss:$2 sm:$0x3]
        %s9088 = scalar_lea.vmem [#allocation3], 393
        %v9089 = vld [vmem:[%s9088] ss:$2 sm:$0xff]
        %s9090 = scalar_lea.vmem [#allocation3], 409
        %v9091 = vld [vmem:[%s9090] ss:$2 sm:$0x3]
        %s9092 = scalar_lea.vmem [#allocation3], 420
        %v9093 = vld [vmem:[%s9092] ss:$2 sm:$0xff]
        %s9094 = scalar_lea.vmem [#allocation3], 436
        %v9095 = vld [vmem:[%s9094] ss:$2 sm:$0x3]
        %s9096 = scalar_lea.vmem [#allocation3], 421
        %v9097 = vld [vmem:[%s9096] ss:$2 sm:$0xff]
        %s9098 = scalar_lea.vmem [#allocation3], 437
        %v9099 = vld [vmem:[%s9098] ss:$2 sm:$0x3]
        %v9100 = vmax.f32 %v9085, %v9089
        %v9101 = vmax.f32 %v9087, %v9091
        %v9102 = vmax.f32 %v9093, %v9097
        %v9103 = vmax.f32 %v9095, %v9099
        %v9104 = vmax.f32 %v9100, %v9102
        %v9105 = vmax.f32 %v9101, %v9103
        %v9106 = vpack.c.bf16 %v9104, %v9104
        %v9107 = vpack.c.bf16 %v9105, %v9105
        %v9110 = vrot.slane %v9106, 5
        %v9111 = vrot.slane %v9110, 4
        %v9112 = vrot.slane %v9107, 5
        %v9113 = vsel %vm8980, %v9111, %v9112
        %9116 = vst.msk [vmem:[#allocation4 + $0x20] sm:$0x8] %vm8987, %v9110
        %9117 = vst.msk [vmem:[#allocation4 + $0x24] sm:$0xf] %vm8876, %v9113
        %s9118 = scalar_lea.vmem [#allocation3], 448
        %v9119 = vld [vmem:[%s9118] ss:$2 sm:$0xff]
        %s9120 = scalar_lea.vmem [#allocation3], 464
        %v9121 = vld [vmem:[%s9120] ss:$2 sm:$0x3]
        %s9122 = scalar_lea.vmem [#allocation3], 449
        %v9123 = vld [vmem:[%s9122] ss:$2 sm:$0xff]
        %s9124 = scalar_lea.vmem [#allocation3], 465
        %v9125 = vld [vmem:[%s9124] ss:$2 sm:$0x3]
        %s9126 = scalar_lea.vmem [#allocation3], 476
        %v9127 = vld [vmem:[%s9126] ss:$2 sm:$0xff]
        %s9128 = scalar_lea.vmem [#allocation3], 492
        %v9129 = vld [vmem:[%s9128] ss:$2 sm:$0x3]
        %s9130 = scalar_lea.vmem [#allocation3], 477
        %v9131 = vld [vmem:[%s9130] ss:$2 sm:$0xff]
        %s9132 = scalar_lea.vmem [#allocation3], 493
        %v9133 = vld [vmem:[%s9132] ss:$2 sm:$0x3]
        %v9134 = vmax.f32 %v9119, %v9123
        %v9135 = vmax.f32 %v9121, %v9125
        %v9136 = vmax.f32 %v9127, %v9131
        %v9137 = vmax.f32 %v9129, %v9133
        %v9138 = vmax.f32 %v9134, %v9136
        %v9139 = vmax.f32 %v9135, %v9137
        %v9140 = vpack.c.bf16 %v9138, %v9138
        %v9141 = vpack.c.bf16 %v9139, %v9139
        %9142 = vst.msk [vmem:[#allocation4 + $0x28] sm:$0xf] %vm8876, %v9140
        %9143 = vst.msk [vmem:[#allocation4 + $0x2c] sm:$0x1] %vm8878, %v9141
        %s9144 = scalar_lea.vmem [#allocation3], 504
        %v9145 = vld [vmem:[%s9144] ss:$2 sm:$0xff]
        %s9146 = scalar_lea.vmem [#allocation3], 520
        %v9147 = vld [vmem:[%s9146] ss:$2 sm:$0x3]
        %s9148 = scalar_lea.vmem [#allocation3], 505
        %v9149 = vld [vmem:[%s9148] ss:$2 sm:$0xff]
        %s9150 = scalar_lea.vmem [#allocation3], 521
        %v9151 = vld [vmem:[%s9150] ss:$2 sm:$0x3]
        %s9152 = scalar_lea.vmem [#allocation3], 532
        %v9153 = vld [vmem:[%s9152] ss:$2 sm:$0xff]
        %s9154 = scalar_lea.vmem [#allocation3], 548
        %v9155 = vld [vmem:[%s9154] ss:$2 sm:$0x3]
        %s9156 = scalar_lea.vmem [#allocation3], 533
        %v9157 = vld [vmem:[%s9156] ss:$2 sm:$0xff]
        %s9158 = scalar_lea.vmem [#allocation3], 549
        %v9159 = vld [vmem:[%s9158] ss:$2 sm:$0x3]
        %v9160 = vmax.f32 %v9145, %v9149
        %v9161 = vmax.f32 %v9147, %v9151
        %v9162 = vmax.f32 %v9153, %v9157
        %v9163 = vmax.f32 %v9155, %v9159
        %v9164 = vmax.f32 %v9160, %v9162
        %v9165 = vmax.f32 %v9161, %v9163
        %v9166 = vpack.c.bf16 %v9164, %v9164
        %v9167 = vpack.c.bf16 %v9165, %v9165
        %v9170 = vrot.slane %v9166, 7
        %v9171 = vrot.slane %v9170, 4
        %v9172 = vrot.slane %v9167, 7
        %v9173 = vsel %vm3158, %v9171, %v9172
        %9176 = vst.msk [vmem:[#allocation4 + $0x2c] sm:$0xe] %vm8912, %v9170
        %9177 = vst.msk [vmem:[#allocation4 + $0x30] sm:$0x3] %vm8914, %v9173
        %vm9178 = vcmask 261124
        %vm9179 = vmor %vm9178, %vm914
        %9180 = vst.msk [vmem:[#allocation5 + $0x60] sm:$0xff] %vm9179, 0
        %9181 = vst.msk [vmem:[#allocation5 + $0x68] sm:$0xff] %vm9179, 0
        %9182 = vst.msk [vmem:[#allocation5 + $0x70] sm:$0xff] %vm9179, 0
        %9183 = vst.msk [vmem:[#allocation5 + $0x78] sm:$0xff] %vm9179, 0
        %9184 = vst.msk [vmem:[#allocation5 + $0x80] sm:$0xff] %vm9179, 0
        %vm9185 = vcmask 1041408
        %vm9186 = vcmask 259076
        %vm9187 = vmor %vm9186, %vm9185
        %9188 = vst.msk [vmem:[#allocation5 + $0x88] sm:$0x33] %vm9187, 0
        %v9189 = vld [vmem:[#allocation4] sm:$0xf]
        %v9190 = vld [vmem:[#allocation4 + $0x4] sm:$0xf]
        %v9191 = vld [vmem:[#allocation4 + $0x8] sm:$0xf]
        %v9192 = vld [vmem:[#allocation4 + $0xc] sm:$0xf]
        %v9193 = vld [vmem:[#allocation4 + $0x10] sm:$0xf]
        %v9194 = vld [vmem:[#allocation4 + $0x14] sm:$0xf]
        %v9195 = vld [vmem:[#allocation4 + $0x18] sm:$0xf]
        %v9196 = vld [vmem:[#allocation4 + $0x1c] sm:$0xf]
        %v9197 = vld [vmem:[#allocation4 + $0x20] sm:$0xf]
        %v9198 = vld [vmem:[#allocation4 + $0x24] sm:$0xf]
        %v9199 = vld [vmem:[#allocation4 + $0x28] sm:$0xf]
        %v9200 = vld [vmem:[#allocation4 + $0x2c] sm:$0xf]
        %v9201 = vld [vmem:[#allocation4 + $0x30] sm:$0x3]
        %9202 = vst.msk [vmem:[#allocation5] sm:$0xf] %vm8876, %v9189
        %9203 = vst.msk [vmem:[#allocation5 + $0x8] sm:$0xf] %vm8876, %v9190
        %9204 = vst.msk [vmem:[#allocation5 + $0x10] sm:$0xf] %vm8876, %v9191
        %9205 = vst.msk [vmem:[#allocation5 + $0x18] sm:$0xf] %vm8876, %v9192
        %9206 = vst.msk [vmem:[#allocation5 + $0x20] sm:$0xf] %vm8876, %v9193
        %9207 = vst.msk [vmem:[#allocation5 + $0x28] sm:$0xf] %vm8876, %v9194
        %9208 = vst.msk [vmem:[#allocation5 + $0x30] sm:$0xf] %vm8876, %v9195
        %9209 = vst.msk [vmem:[#allocation5 + $0x38] sm:$0xf] %vm8876, %v9196
        %9210 = vst.msk [vmem:[#allocation5 + $0x40] sm:$0xf] %vm8876, %v9197
        %9211 = vst.msk [vmem:[#allocation5 + $0x48] sm:$0xf] %vm8876, %v9198
        %9212 = vst.msk [vmem:[#allocation5 + $0x50] sm:$0xf] %vm8876, %v9199
        %9213 = vst.msk [vmem:[#allocation5 + $0x58] sm:$0xf] %vm8876, %v9200
        %9214 = vst.msk [vmem:[#allocation5 + $0x60] sm:$0x3] %vm8914, %v9201
        %v9215 = vld [vmem:[#allocation4] sm:$0xf]
        %v9216 = vld [vmem:[#allocation4 + $0x4] sm:$0xf]
        %v9217 = vld [vmem:[#allocation4 + $0x8] sm:$0xf]
        %v9218 = vld [vmem:[#allocation4 + $0xc] sm:$0xf]
        %v9219 = vld [vmem:[#allocation4 + $0x10] sm:$0xf]
        %v9220 = vld [vmem:[#allocation4 + $0x14] sm:$0xf]
        %v9221 = vld [vmem:[#allocation4 + $0x18] sm:$0xf]
        %v9222 = vld [vmem:[#allocation4 + $0x1c] sm:$0xf]
        %v9223 = vld [vmem:[#allocation4 + $0x20] sm:$0xf]
        %v9224 = vld [vmem:[#allocation4 + $0x24] sm:$0xf]
        %v9225 = vld [vmem:[#allocation4 + $0x28] sm:$0xf]
        %v9226 = vld [vmem:[#allocation4 + $0x2c] sm:$0xf]
        %v9227 = vld [vmem:[#allocation4 + $0x30] sm:$0x3]
        %vm9228 = vsmask.f32 3328
        %vm9229 = vsmask.f32 7440
        %vm9230 = vmor %vm9228, %vm9229
        %v9232 = vshrl.u32 %v9215, 16
        %v9234 = vrot.slane %v9232, 4
        %v9235 = vshll.u32 %v9215, 16
        %v9237 = vrot.slane %v9235, 5
        %v9238 = vor.u32 %v9234, %v9237
        %v9239 = vrot.slane %v9238, 4
        %v9241 = vshll.u32 %v9216, 16
        %v9243 = vrot.slane %v9241, 5
        %v9244 = vsel %vm9230, %v9239, %v9243
        %v9245 = vshrl.u32 %v9216, 16
        %v9247 = vrot.slane %v9245, 4
        %v9248 = vor.u32 %v9247, %v9243
        %v9249 = vrot.slane %v9248, 4
        %v9251 = vshll.u32 %v9217, 16
        %v9253 = vrot.slane %v9251, 5
        %v9254 = vsel %vm9230, %v9249, %v9253
        %v9255 = vshrl.u32 %v9217, 16
        %v9257 = vrot.slane %v9255, 4
        %v9258 = vor.u32 %v9257, %v9253
        %v9259 = vrot.slane %v9258, 4
        %v9261 = vshll.u32 %v9218, 16
        %v9263 = vrot.slane %v9261, 5
        %v9264 = vsel %vm9230, %v9259, %v9263
        %v9265 = vshrl.u32 %v9218, 16
        %v9267 = vrot.slane %v9265, 4
        %v9268 = vor.u32 %v9267, %v9263
        %v9269 = vrot.slane %v9268, 4
        %v9271 = vshll.u32 %v9219, 16
        %v9273 = vrot.slane %v9271, 5
        %v9274 = vsel %vm9230, %v9269, %v9273
        %v9275 = vshrl.u32 %v9219, 16
        %v9277 = vrot.slane %v9275, 4
        %v9278 = vor.u32 %v9277, %v9273
        %v9279 = vrot.slane %v9278, 4
        %v9281 = vshll.u32 %v9220, 16
        %v9283 = vrot.slane %v9281, 5
        %v9284 = vsel %vm9230, %v9279, %v9283
        %v9285 = vshrl.u32 %v9220, 16
        %v9287 = vrot.slane %v9285, 4
        %v9288 = vor.u32 %v9287, %v9283
        %v9289 = vrot.slane %v9288, 4
        %v9291 = vshll.u32 %v9221, 16
        %v9293 = vrot.slane %v9291, 5
        %v9294 = vsel %vm9230, %v9289, %v9293
        %v9295 = vshrl.u32 %v9221, 16
        %v9297 = vrot.slane %v9295, 4
        %v9298 = vor.u32 %v9297, %v9293
        %v9299 = vrot.slane %v9298, 4
        %v9301 = vshll.u32 %v9222, 16
        %v9303 = vrot.slane %v9301, 5
        %v9304 = vsel %vm9230, %v9299, %v9303
        %v9305 = vshrl.u32 %v9222, 16
        %v9307 = vrot.slane %v9305, 4
        %v9308 = vor.u32 %v9307, %v9303
        %v9309 = vrot.slane %v9308, 4
        %v9311 = vshll.u32 %v9223, 16
        %v9313 = vrot.slane %v9311, 5
        %v9314 = vsel %vm9230, %v9309, %v9313
        %v9315 = vshrl.u32 %v9223, 16
        %v9317 = vrot.slane %v9315, 4
        %v9318 = vor.u32 %v9317, %v9313
        %v9319 = vrot.slane %v9318, 4
        %v9321 = vshll.u32 %v9224, 16
        %v9323 = vrot.slane %v9321, 5
        %v9324 = vsel %vm9230, %v9319, %v9323
        %v9325 = vshrl.u32 %v9224, 16
        %v9327 = vrot.slane %v9325, 4
        %v9328 = vor.u32 %v9327, %v9323
        %v9329 = vrot.slane %v9328, 4
        %v9331 = vshll.u32 %v9225, 16
        %v9333 = vrot.slane %v9331, 5
        %v9334 = vsel %vm9230, %v9329, %v9333
        %v9335 = vshrl.u32 %v9225, 16
        %v9337 = vrot.slane %v9335, 4
        %v9338 = vor.u32 %v9337, %v9333
        %v9339 = vrot.slane %v9338, 4
        %v9341 = vshll.u32 %v9226, 16
        %v9343 = vrot.slane %v9341, 5
        %v9344 = vsel %vm9230, %v9339, %v9343
        %v9345 = vshrl.u32 %v9226, 16
        %v9347 = vrot.slane %v9345, 4
        %v9348 = vor.u32 %v9347, %v9343
        %v9349 = vrot.slane %v9348, 4
        %v9351 = vshll.u32 %v9227, 16
        %v9353 = vrot.slane %v9351, 5
        %v9354 = vsel %vm9230, %v9349, %v9353
        %v9355 = vshrl.u32 %v9227, 16
        %v9357 = vrot.slane %v9355, 4
        %v9358 = vor.u32 %v9357, %v9353
        %v9359 = vrot.slane %v9358, 4
        %9360 = vrot.lane.b32.xlu0 %v9244, 32
        %v9361 = vpop.permute.xlu0 %9360
        %9362 = vrot.lane.b32.xlu0 %v9254, 32
        %v9363 = vpop.permute.xlu0 %9362
        %9364 = vrot.lane.b32.xlu0 %v9264, 32
        %v9365 = vpop.permute.xlu0 %9364
        %9366 = vrot.lane.b32.xlu0 %v9274, 32
        %v9367 = vpop.permute.xlu0 %9366
        %9368 = vrot.lane.b32.xlu0 %v9284, 32
        %v9369 = vpop.permute.xlu0 %9368
        %9370 = vrot.lane.b32.xlu0 %v9294, 32
        %v9371 = vpop.permute.xlu0 %9370
        %9372 = vrot.lane.b32.xlu0 %v9304, 32
        %v9373 = vpop.permute.xlu0 %9372
        %9374 = vrot.lane.b32.xlu0 %v9314, 32
        %v9375 = vpop.permute.xlu0 %9374
        %9376 = vrot.lane.b32.xlu0 %v9324, 32
        %v9377 = vpop.permute.xlu0 %9376
        %9378 = vrot.lane.b32.xlu0 %v9334, 32
        %v9379 = vpop.permute.xlu0 %9378
        %9380 = vrot.lane.b32.xlu0 %v9344, 32
        %v9381 = vpop.permute.xlu0 %9380
        %9382 = vrot.lane.b32.xlu0 %v9354, 32
        %v9383 = vpop.permute.xlu0 %9382
        %9384 = vrot.lane.b32.xlu0 %v9359, 32
        %v9385 = vpop.permute.xlu0 %9384
        %vm9399 = vcmask 519424
        %9400 = vst.msk [vmem:[#allocation5] sm:$0xf] %vm9399, %v9361
        %9401 = vst.msk [vmem:[#allocation5 + $0x8] sm:$0xf] %vm9399, %v9363
        %9402 = vst.msk [vmem:[#allocation5 + $0x10] sm:$0xf] %vm9399, %v9365
        %9403 = vst.msk [vmem:[#allocation5 + $0x18] sm:$0xf] %vm9399, %v9367
        %9404 = vst.msk [vmem:[#allocation5 + $0x20] sm:$0xf] %vm9399, %v9369
        %9405 = vst.msk [vmem:[#allocation5 + $0x28] sm:$0xf] %vm9399, %v9371
        %9406 = vst.msk [vmem:[#allocation5 + $0x30] sm:$0xf] %vm9399, %v9373
        %9407 = vst.msk [vmem:[#allocation5 + $0x38] sm:$0xf] %vm9399, %v9375
        %9408 = vst.msk [vmem:[#allocation5 + $0x40] sm:$0xf] %vm9399, %v9377
        %9409 = vst.msk [vmem:[#allocation5 + $0x48] sm:$0xf] %vm9399, %v9379
        %9410 = vst.msk [vmem:[#allocation5 + $0x50] sm:$0xf] %vm9399, %v9381
        %9411 = vst.msk [vmem:[#allocation5 + $0x58] sm:$0xf] %vm9399, %v9383
        %vm9412 = vcmask 517376
        %vm9413 = vmand %vm9412, %vm1966
        %v9414 = vld [vmem:[#allocation5 + $0x60] sm:$0x3]
        %v9415 = vsel %vm9413, %v9385, %v9414
        %9416 = vst [vmem:[#allocation5 + $0x60] sm:$0x3] %v9415
        %v9417 = vld [vmem:[#allocation4] sm:$0xe]
        %v9418 = vld [vmem:[#allocation4 + $0x4] sm:$0xf]
        %v9419 = vld [vmem:[#allocation4 + $0x8] sm:$0xf]
        %v9420 = vld [vmem:[#allocation4 + $0xc] sm:$0xf]
        %v9421 = vld [vmem:[#allocation4 + $0x10] sm:$0xf]
        %v9422 = vld [vmem:[#allocation4 + $0x14] sm:$0xf]
        %v9423 = vld [vmem:[#allocation4 + $0x18] sm:$0xf]
        %v9424 = vld [vmem:[#allocation4 + $0x1c] sm:$0xf]
        %v9425 = vld [vmem:[#allocation4 + $0x20] sm:$0xf]
        %v9426 = vld [vmem:[#allocation4 + $0x24] sm:$0xf]
        %v9427 = vld [vmem:[#allocation4 + $0x28] sm:$0xf]
        %v9428 = vld [vmem:[#allocation4 + $0x2c] sm:$0xf]
        %v9429 = vld [vmem:[#allocation4 + $0x30] sm:$0x3]
        %v9443 = vrot.slane %v9417, 5
        %v9444 = vrot.slane %v9443, 4
        %v9445 = vrot.slane %v9418, 5
        %v9446 = vsel %vm8980, %v9444, %v9445
        %v9447 = vrot.slane %v9445, 4
        %v9448 = vrot.slane %v9419, 5
        %v9449 = vsel %vm8980, %v9447, %v9448
        %v9450 = vrot.slane %v9448, 4
        %v9451 = vrot.slane %v9420, 5
        %v9452 = vsel %vm8980, %v9450, %v9451
        %v9453 = vrot.slane %v9451, 4
        %v9454 = vrot.slane %v9421, 5
        %v9455 = vsel %vm8980, %v9453, %v9454
        %v9456 = vrot.slane %v9454, 4
        %v9457 = vrot.slane %v9422, 5
        %v9458 = vsel %vm8980, %v9456, %v9457
        %v9459 = vrot.slane %v9457, 4
        %v9460 = vrot.slane %v9423, 5
        %v9461 = vsel %vm8980, %v9459, %v9460
        %v9462 = vrot.slane %v9460, 4
        %v9463 = vrot.slane %v9424, 5
        %v9464 = vsel %vm8980, %v9462, %v9463
        %v9465 = vrot.slane %v9463, 4
        %v9466 = vrot.slane %v9425, 5
        %v9467 = vsel %vm8980, %v9465, %v9466
        %v9468 = vrot.slane %v9466, 4
        %v9469 = vrot.slane %v9426, 5
        %v9470 = vsel %vm8980, %v9468, %v9469
        %v9471 = vrot.slane %v9469, 4
        %v9472 = vrot.slane %v9427, 5
        %v9473 = vsel %vm8980, %v9471, %v9472
        %v9474 = vrot.slane %v9472, 4
        %v9475 = vrot.slane %v9428, 5
        %v9476 = vsel %vm8980, %v9474, %v9475
        %v9477 = vrot.slane %v9475, 4
        %v9478 = vrot.slane %v9429, 5
        %v9479 = vsel %vm8980, %v9477, %v9478
        %v9480 = vrot.slane %v9478, 4
        %9481 = vrot.lane.b32.xlu0 %v9446, 64
        %v9482 = vpop.permute.xlu0 %9481
        %9483 = vrot.lane.b32.xlu0 %v9449, 64
        %v9484 = vpop.permute.xlu0 %9483
        %9485 = vrot.lane.b32.xlu0 %v9452, 64
        %v9486 = vpop.permute.xlu0 %9485
        %9487 = vrot.lane.b32.xlu0 %v9455, 64
        %v9488 = vpop.permute.xlu0 %9487
        %9489 = vrot.lane.b32.xlu0 %v9458, 64
        %v9490 = vpop.permute.xlu0 %9489
        %9491 = vrot.lane.b32.xlu0 %v9461, 64
        %v9492 = vpop.permute.xlu0 %9491
        %9493 = vrot.lane.b32.xlu0 %v9464, 64
        %v9494 = vpop.permute.xlu0 %9493
        %9495 = vrot.lane.b32.xlu0 %v9467, 64
        %v9496 = vpop.permute.xlu0 %9495
        %9497 = vrot.lane.b32.xlu0 %v9470, 64
        %v9498 = vpop.permute.xlu0 %9497
        %9499 = vrot.lane.b32.xlu0 %v9473, 64
        %v9500 = vpop.permute.xlu0 %9499
        %9501 = vrot.lane.b32.xlu0 %v9476, 64
        %v9502 = vpop.permute.xlu0 %9501
        %9503 = vrot.lane.b32.xlu0 %v9479, 64
        %v9504 = vpop.permute.xlu0 %9503
        %9505 = vrot.lane.b32.xlu0 %v9480, 64
        %v9506 = vpop.permute.xlu0 %9505
        %vm9520 = vcmask 781824
        %9521 = vst.msk [vmem:[#allocation5] sm:$0xf] %vm9520, %v9482
        %9522 = vst.msk [vmem:[#allocation5 + $0x8] sm:$0xf] %vm9520, %v9484
        %9523 = vst.msk [vmem:[#allocation5 + $0x10] sm:$0xf] %vm9520, %v9486
        %9524 = vst.msk [vmem:[#allocation5 + $0x18] sm:$0xf] %vm9520, %v9488
        %9525 = vst.msk [vmem:[#allocation5 + $0x20] sm:$0xf] %vm9520, %v9490
        %9526 = vst.msk [vmem:[#allocation5 + $0x28] sm:$0xf] %vm9520, %v9492
        %9527 = vst.msk [vmem:[#allocation5 + $0x30] sm:$0xf] %vm9520, %v9494
        %9528 = vst.msk [vmem:[#allocation5 + $0x38] sm:$0xf] %vm9520, %v9496
        %9529 = vst.msk [vmem:[#allocation5 + $0x40] sm:$0xf] %vm9520, %v9498
        %9530 = vst.msk [vmem:[#allocation5 + $0x48] sm:$0xf] %vm9520, %v9500
        %9531 = vst.msk [vmem:[#allocation5 + $0x50] sm:$0xf] %vm9520, %v9502
        %9532 = vst.msk [vmem:[#allocation5 + $0x58] sm:$0xf] %vm9520, %v9504
        %vm9533 = vcmask 778752
        %9534 = vst.msk [vmem:[#allocation5 + $0x60] sm:$0x1] %vm9533, %v9506
        %v9535 = vld [vmem:[#allocation4] sm:$0xe]
        %v9536 = vld [vmem:[#allocation4 + $0x4] sm:$0xf]
        %v9537 = vld [vmem:[#allocation4 + $0x8] sm:$0xf]
        %v9538 = vld [vmem:[#allocation4 + $0xc] sm:$0xf]
        %v9539 = vld [vmem:[#allocation4 + $0x10] sm:$0xf]
        %v9540 = vld [vmem:[#allocation4 + $0x14] sm:$0xf]
        %v9541 = vld [vmem:[#allocation4 + $0x18] sm:$0xf]
        %v9542 = vld [vmem:[#allocation4 + $0x1c] sm:$0xf]
        %v9543 = vld [vmem:[#allocation4 + $0x20] sm:$0xf]
        %v9544 = vld [vmem:[#allocation4 + $0x24] sm:$0xf]
        %v9545 = vld [vmem:[#allocation4 + $0x28] sm:$0xf]
        %v9546 = vld [vmem:[#allocation4 + $0x2c] sm:$0xf]
        %v9547 = vld [vmem:[#allocation4 + $0x30] sm:$0x3]
        %vm9548 = vsmask.f32 2304
        %vm9549 = vsmask.f32 6416
        %vm9550 = vmor %vm9548, %vm9549
        %v9552 = vshrl.u32 %v9535, 16
        %v9554 = vrot.slane %v9552, 5
        %v9555 = vshll.u32 %v9535, 16
        %v9557 = vrot.slane %v9555, 6
        %v9558 = vor.u32 %v9554, %v9557
        %v9559 = vrot.slane %v9558, 4
        %v9561 = vshrl.u32 %v9536, 16
        %v9563 = vrot.slane %v9561, 5
        %v9564 = vshll.u32 %v9536, 16
        %v9566 = vrot.slane %v9564, 6
        %v9567 = vor.u32 %v9563, %v9566
        %v9568 = vsel %vm9550, %v9559, %v9567
        %v9569 = vrot.slane %v9567, 4
        %v9571 = vshrl.u32 %v9537, 16
        %v9573 = vrot.slane %v9571, 5
        %v9574 = vshll.u32 %v9537, 16
        %v9576 = vrot.slane %v9574, 6
        %v9577 = vor.u32 %v9573, %v9576
        %v9578 = vsel %vm9550, %v9569, %v9577
        %v9579 = vrot.slane %v9577, 4
        %v9581 = vshrl.u32 %v9538, 16
        %v9583 = vrot.slane %v9581, 5
        %v9584 = vshll.u32 %v9538, 16
        %v9586 = vrot.slane %v9584, 6
        %v9587 = vor.u32 %v9583, %v9586
        %v9588 = vsel %vm9550, %v9579, %v9587
        %v9589 = vrot.slane %v9587, 4
        %v9591 = vshrl.u32 %v9539, 16
        %v9593 = vrot.slane %v9591, 5
        %v9594 = vshll.u32 %v9539, 16
        %v9596 = vrot.slane %v9594, 6
        %v9597 = vor.u32 %v9593, %v9596
        %v9598 = vsel %vm9550, %v9589, %v9597
        %v9599 = vrot.slane %v9597, 4
        %v9601 = vshrl.u32 %v9540, 16
        %v9603 = vrot.slane %v9601, 5
        %v9604 = vshll.u32 %v9540, 16
        %v9606 = vrot.slane %v9604, 6
        %v9607 = vor.u32 %v9603, %v9606
        %v9608 = vsel %vm9550, %v9599, %v9607
        %v9609 = vrot.slane %v9607, 4
        %v9611 = vshrl.u32 %v9541, 16
        %v9613 = vrot.slane %v9611, 5
        %v9614 = vshll.u32 %v9541, 16
        %v9616 = vrot.slane %v9614, 6
        %v9617 = vor.u32 %v9613, %v9616
        %v9618 = vsel %vm9550, %v9609, %v9617
        %v9619 = vrot.slane %v9617, 4
        %v9621 = vshrl.u32 %v9542, 16
        %v9623 = vrot.slane %v9621, 5
        %v9624 = vshll.u32 %v9542, 16
        %v9626 = vrot.slane %v9624, 6
        %v9627 = vor.u32 %v9623, %v9626
        %v9628 = vsel %vm9550, %v9619, %v9627
        %v9629 = vrot.slane %v9627, 4
        %v9631 = vshrl.u32 %v9543, 16
        %v9633 = vrot.slane %v9631, 5
        %v9634 = vshll.u32 %v9543, 16
        %v9636 = vrot.slane %v9634, 6
        %v9637 = vor.u32 %v9633, %v9636
        %v9638 = vsel %vm9550, %v9629, %v9637
        %v9639 = vrot.slane %v9637, 4
        %v9641 = vshrl.u32 %v9544, 16
        %v9643 = vrot.slane %v9641, 5
        %v9644 = vshll.u32 %v9544, 16
        %v9646 = vrot.slane %v9644, 6
        %v9647 = vor.u32 %v9643, %v9646
        %v9648 = vsel %vm9550, %v9639, %v9647
        %v9649 = vrot.slane %v9647, 4
        %v9651 = vshrl.u32 %v9545, 16
        %v9653 = vrot.slane %v9651, 5
        %v9654 = vshll.u32 %v9545, 16
        %v9656 = vrot.slane %v9654, 6
        %v9657 = vor.u32 %v9653, %v9656
        %v9658 = vsel %vm9550, %v9649, %v9657
        %v9659 = vrot.slane %v9657, 4
        %v9661 = vshrl.u32 %v9546, 16
        %v9663 = vrot.slane %v9661, 5
        %v9664 = vshll.u32 %v9546, 16
        %v9666 = vrot.slane %v9664, 6
        %v9667 = vor.u32 %v9663, %v9666
        %v9668 = vsel %vm9550, %v9659, %v9667
        %v9669 = vrot.slane %v9667, 4
        %v9671 = vshrl.u32 %v9547, 16
        %v9673 = vrot.slane %v9671, 5
        %v9674 = vshll.u32 %v9547, 16
        %v9676 = vrot.slane %v9674, 6
        %v9677 = vor.u32 %v9673, %v9676
        %v9678 = vsel %vm9550, %v9669, %v9677
        %v9679 = vrot.slane %v9673, 4
        %9680 = vrot.lane.b32.xlu0 %v9568, 96
        %v9681 = vpop.permute.xlu0 %9680
        %9682 = vrot.lane.b32.xlu0 %v9578, 96
        %v9683 = vpop.permute.xlu0 %9682
        %9684 = vrot.lane.b32.xlu0 %v9588, 96
        %v9685 = vpop.permute.xlu0 %9684
        %9686 = vrot.lane.b32.xlu0 %v9598, 96
        %v9687 = vpop.permute.xlu0 %9686
        %9688 = vrot.lane.b32.xlu0 %v9608, 96
        %v9689 = vpop.permute.xlu0 %9688
        %9690 = vrot.lane.b32.xlu0 %v9618, 96
        %v9691 = vpop.permute.xlu0 %9690
        %9692 = vrot.lane.b32.xlu0 %v9628, 96
        %v9693 = vpop.permute.xlu0 %9692
        %9694 = vrot.lane.b32.xlu0 %v9638, 96
        %v9695 = vpop.permute.xlu0 %9694
        %9696 = vrot.lane.b32.xlu0 %v9648, 96
        %v9697 = vpop.permute.xlu0 %9696
        %9698 = vrot.lane.b32.xlu0 %v9658, 96
        %v9699 = vpop.permute.xlu0 %9698
        %9700 = vrot.lane.b32.xlu0 %v9668, 96
        %v9701 = vpop.permute.xlu0 %9700
        %9702 = vrot.lane.b32.xlu0 %v9678, 96
        %v9703 = vpop.permute.xlu0 %9702
        %9704 = vrot.lane.b32.xlu0 %v9679, 96
        %v9705 = vpop.permute.xlu0 %9704
        %vm9719 = vcmask 1044224
        %9720 = vst.msk [vmem:[#allocation5] sm:$0xf] %vm9719, %v9681
        %9721 = vst.msk [vmem:[#allocation5 + $0x8] sm:$0xf] %vm9719, %v9683
        %9722 = vst.msk [vmem:[#allocation5 + $0x10] sm:$0xf] %vm9719, %v9685
        %9723 = vst.msk [vmem:[#allocation5 + $0x18] sm:$0xf] %vm9719, %v9687
        %9724 = vst.msk [vmem:[#allocation5 + $0x20] sm:$0xf] %vm9719, %v9689
        %9725 = vst.msk [vmem:[#allocation5 + $0x28] sm:$0xf] %vm9719, %v9691
        %9726 = vst.msk [vmem:[#allocation5 + $0x30] sm:$0xf] %vm9719, %v9693
        %9727 = vst.msk [vmem:[#allocation5 + $0x38] sm:$0xf] %vm9719, %v9695
        %9728 = vst.msk [vmem:[#allocation5 + $0x40] sm:$0xf] %vm9719, %v9697
        %9729 = vst.msk [vmem:[#allocation5 + $0x48] sm:$0xf] %vm9719, %v9699
        %9730 = vst.msk [vmem:[#allocation5 + $0x50] sm:$0xf] %vm9719, %v9701
        %9731 = vst.msk [vmem:[#allocation5 + $0x58] sm:$0xf] %vm9719, %v9703
        %vm9732 = vcmask 1041152
        %vm9733 = vmand %vm9732, %vm3653
        %v9734 = vld [vmem:[#allocation5 + $0x60] sm:$0x1]
        %v9735 = vsel %vm9733, %v9705, %v9734
        %9736 = vst [vmem:[#allocation5 + $0x60] sm:$0x1] %v9735
        %v9737 = vld [vmem:[#allocation4] sm:$0xc]
        %v9738 = vld [vmem:[#allocation4 + $0x4] sm:$0xf]
        %v9739 = vld [vmem:[#allocation4 + $0x8] sm:$0xf]
        %v9740 = vld [vmem:[#allocation4 + $0xc] sm:$0xf]
        %v9741 = vld [vmem:[#allocation4 + $0x10] sm:$0xf]
        %v9742 = vld [vmem:[#allocation4 + $0x14] sm:$0xf]
        %v9743 = vld [vmem:[#allocation4 + $0x18] sm:$0xf]
        %v9744 = vld [vmem:[#allocation4 + $0x1c] sm:$0xf]
        %v9745 = vld [vmem:[#allocation4 + $0x20] sm:$0xf]
        %v9746 = vld [vmem:[#allocation4 + $0x24] sm:$0xf]
        %v9747 = vld [vmem:[#allocation4 + $0x28] sm:$0xf]
        %v9748 = vld [vmem:[#allocation4 + $0x2c] sm:$0xf]
        %v9749 = vld [vmem:[#allocation4 + $0x30] sm:$0x3]
        %v9763 = vrot.slane %v9737, 6
        %v9764 = vrot.slane %v9763, 4
        %v9765 = vrot.slane %v9738, 6
        %v9766 = vsel %vm1471, %v9764, %v9765
        %v9767 = vrot.slane %v9765, 4
        %v9768 = vrot.slane %v9739, 6
        %v9769 = vsel %vm1471, %v9767, %v9768
        %v9770 = vrot.slane %v9768, 4
        %v9771 = vrot.slane %v9740, 6
        %v9772 = vsel %vm1471, %v9770, %v9771
        %v9773 = vrot.slane %v9771, 4
        %v9774 = vrot.slane %v9741, 6
        %v9775 = vsel %vm1471, %v9773, %v9774
        %v9776 = vrot.slane %v9774, 4
        %v9777 = vrot.slane %v9742, 6
        %v9778 = vsel %vm1471, %v9776, %v9777
        %v9779 = vrot.slane %v9777, 4
        %v9780 = vrot.slane %v9743, 6
        %v9781 = vsel %vm1471, %v9779, %v9780
        %v9782 = vrot.slane %v9780, 4
        %v9783 = vrot.slane %v9744, 6
        %v9784 = vsel %vm1471, %v9782, %v9783
        %v9785 = vrot.slane %v9783, 4
        %v9786 = vrot.slane %v9745, 6
        %v9787 = vsel %vm1471, %v9785, %v9786
        %v9788 = vrot.slane %v9786, 4
        %v9789 = vrot.slane %v9746, 6
        %v9790 = vsel %vm1471, %v9788, %v9789
        %v9791 = vrot.slane %v9789, 4
        %v9792 = vrot.slane %v9747, 6
        %v9793 = vsel %vm1471, %v9791, %v9792
        %v9794 = vrot.slane %v9792, 4
        %v9795 = vrot.slane %v9748, 6
        %v9796 = vsel %vm1471, %v9794, %v9795
        %v9797 = vrot.slane %v9795, 4
        %v9798 = vrot.slane %v9749, 6
        %v9799 = vsel %vm1471, %v9797, %v9798
        %9812 = vst.msk [vmem:[#allocation5 + $0x4] sm:$0xf] %vm8876, %v9766
        %9813 = vst.msk [vmem:[#allocation5 + $0xc] sm:$0xf] %vm8876, %v9769
        %9814 = vst.msk [vmem:[#allocation5 + $0x14] sm:$0xf] %vm8876, %v9772
        %9815 = vst.msk [vmem:[#allocation5 + $0x1c] sm:$0xf] %vm8876, %v9775
        %9816 = vst.msk [vmem:[#allocation5 + $0x24] sm:$0xf] %vm8876, %v9778
        %9817 = vst.msk [vmem:[#allocation5 + $0x2c] sm:$0xf] %vm8876, %v9781
        %9818 = vst.msk [vmem:[#allocation5 + $0x34] sm:$0xf] %vm8876, %v9784
        %9819 = vst.msk [vmem:[#allocation5 + $0x3c] sm:$0xf] %vm8876, %v9787
        %9820 = vst.msk [vmem:[#allocation5 + $0x44] sm:$0xf] %vm8876, %v9790
        %9821 = vst.msk [vmem:[#allocation5 + $0x4c] sm:$0xf] %vm8876, %v9793
        %9822 = vst.msk [vmem:[#allocation5 + $0x54] sm:$0xf] %vm8876, %v9796
        %9823 = vst.msk [vmem:[#allocation5 + $0x5c] sm:$0xf] %vm8876, %v9799
        %v9824 = vld [vmem:[#allocation5] sm:$0xff]
        %v9825 = vld [vmem:[#allocation5 + $0x8] sm:$0xff]
        %v9826 = vld [vmem:[#allocation5 + $0x10] sm:$0xff]
        %v9827 = vld [vmem:[#allocation5 + $0x18] sm:$0xff]
        %v9828 = vld [vmem:[#allocation5 + $0x20] sm:$0xff]
        %v9829 = vld [vmem:[#allocation5 + $0x28] sm:$0xff]
        %v9830 = vld [vmem:[#allocation5 + $0x30] sm:$0xff]
        %v9831 = vld [vmem:[#allocation5 + $0x38] sm:$0xff]
        %v9832 = vld [vmem:[#allocation5 + $0x40] sm:$0xff]
        %v9833 = vld [vmem:[#allocation5 + $0x48] sm:$0xff]
        %v9834 = vld [vmem:[#allocation5 + $0x50] sm:$0xff]
        %v9835 = vld [vmem:[#allocation5 + $0x58] sm:$0xff]
        %v9836 = vld [vmem:[#allocation5 + $0x60] sm:$0x33]
        %v9837 = vld [vmem:[%s5] sm:$0xf]
        %v9838 = vld [vmem:[%s5 + $0x4] sm:$0xf]
        %v9839 = vld [vmem:[%s5 + $0x8] sm:$0xf]
        %v9840 = vld [vmem:[%s5 + $0xc] sm:$0xf]
        %v9841 = vld [vmem:[%s5 + $0x10] sm:$0xf]
        %v9842 = vld [vmem:[%s5 + $0x14] sm:$0xf]
        %v9843 = vld [vmem:[%s5 + $0x18] sm:$0xf]
        %v9844 = vld [vmem:[%s5 + $0x1c] sm:$0xf]
        %v9845 = vld [vmem:[%s5 + $0x20] sm:$0xf]
        %v9846 = vld [vmem:[%s5 + $0x24] sm:$0xf]
        %v9847 = vld [vmem:[%s5 + $0x28] sm:$0xf]
        %v9848 = vld [vmem:[%s5 + $0x2c] sm:$0xf]
        %v9849 = vld [vmem:[%s5 + $0x30] sm:$0xf]
        %v9850 = vld [vmem:[%s5 + $0x34] sm:$0xf]
        %v9851 = vld [vmem:[%s5 + $0x38] sm:$0xf]
        %v9852 = vld [vmem:[%s5 + $0x3c] sm:$0xf]
        %v9853 = vld [vmem:[%s5 + $0x40] sm:$0xf]
        %v9854 = vld [vmem:[%s5 + $0x44] sm:$0xf]
        %v9855 = vld [vmem:[%s5 + $0x48] sm:$0xf]
        %v9856 = vld [vmem:[%s5 + $0x4c] sm:$0xf]
        %v9857 = vld [vmem:[#allocation5 + $0x8] sm:$0xee]
        %v9858 = vld [vmem:[#allocation5 + $0x60] sm:$0xff]
        %v9859 = vld [vmem:[#allocation5 + $0x68] sm:$0x77]
        %s9860 = scalar_lea.vmem %s5, 80
        %v9861 = vld [vmem:[%s9860] sm:$0xf]
        %v9862 = vld [vmem:[%s9860 + $0x4] sm:$0xf]
        %v9863 = vld [vmem:[%s9860 + $0x8] sm:$0xf]
        %v9864 = vld [vmem:[%s9860 + $0xc] sm:$0xf]
        %v9865 = vld [vmem:[%s9860 + $0x10] sm:$0xf]
        %v9866 = vld [vmem:[%s9860 + $0x14] sm:$0xf]
        %v9867 = vld [vmem:[%s9860 + $0x18] sm:$0xf]
        %v9868 = vld [vmem:[%s9860 + $0x1c] sm:$0xf]
        %v9869 = vld [vmem:[%s9860 + $0x20] sm:$0xf]
        %v9870 = vld [vmem:[%s9860 + $0x24] sm:$0xf]
        %v9871 = vld [vmem:[%s9860 + $0x28] sm:$0xf]
        %v9872 = vld [vmem:[%s9860 + $0x2c] sm:$0xf]
        %v9873 = vld [vmem:[%s9860 + $0x30] sm:$0xf]
        %v9874 = vld [vmem:[%s9860 + $0x34] sm:$0xf]
        %v9875 = vld [vmem:[%s9860 + $0x38] sm:$0xf]
        %v9876 = vld [vmem:[%s9860 + $0x3c] sm:$0xf]
        %v9877 = vld [vmem:[%s9860 + $0x40] sm:$0xf]
        %v9878 = vld [vmem:[%s9860 + $0x44] sm:$0xf]
        %v9879 = vld [vmem:[%s9860 + $0x48] sm:$0xf]
        %v9880 = vld [vmem:[%s9860 + $0x4c] sm:$0xf]
        %v9894 = vunpack.c.l.b16 %v9857
        %v9895 = vunpack.c.h.b16 %v9857
        %v9896 = vunpack.c.l.b16 %v9826
        %v9897 = vunpack.c.h.b16 %v9826
        %v9898 = vunpack.c.l.b16 %v9827
        %v9899 = vunpack.c.h.b16 %v9827
        %v9900 = vunpack.c.l.b16 %v9828
        %v9901 = vunpack.c.h.b16 %v9828
        %v9902 = vunpack.c.l.b16 %v9829
        %v9903 = vunpack.c.h.b16 %v9829
        %v9904 = vunpack.c.l.b16 %v9830
        %v9905 = vunpack.c.h.b16 %v9830
        %v9906 = vunpack.c.l.b16 %v9831
        %v9907 = vunpack.c.h.b16 %v9831
        %v9908 = vunpack.c.l.b16 %v9832
        %v9909 = vunpack.c.h.b16 %v9832
        %v9910 = vunpack.c.l.b16 %v9833
        %v9911 = vunpack.c.h.b16 %v9833
        %v9912 = vunpack.c.l.b16 %v9834
        %v9913 = vunpack.c.h.b16 %v9834
        %v9914 = vunpack.c.l.b16 %v9835
        %v9915 = vunpack.c.h.b16 %v9835
        %v9916 = vunpack.c.l.b16 %v9858
        %v9917 = vunpack.c.h.b16 %v9858
        %v9918 = vunpack.c.l.b16 %v9859
        %v9919 = vunpack.c.h.b16 %v9859
        %v9920 = vpack.c.b16 %v9896, %v9894
        %v9921 = vpack.c.b16 %v9897, %v9895
        %v9922 = vpack.c.b16 %v9900, %v9898
        %v9923 = vpack.c.b16 %v9901, %v9899
        %v9924 = vpack.c.b16 %v9904, %v9902
        %v9925 = vpack.c.b16 %v9905, %v9903
        %v9926 = vpack.c.b16 %v9908, %v9906
        %v9927 = vpack.c.b16 %v9909, %v9907
        %v9928 = vpack.c.b16 %v9912, %v9910
        %v9929 = vpack.c.b16 %v9913, %v9911
        %v9930 = vpack.c.b16 %v9916, %v9914
        %v9931 = vpack.c.b16 %v9917, %v9915
        %v9932 = vpack.c.b16 %v9918, %v9918
        %v9933 = vpack.c.b16 %v9919, %v9919
        %vm9934 = vcmask 1046528
        %v9935 = vrot.slane %v9920, 1
        %v9936 = vrot.slane %v9922, 1
        %v9937 = vsel %vm9934, %v9935, %v9936
        %v9938 = vrot.slane %v9921, 1
        %v9939 = vrot.slane %v9923, 1
        %v9940 = vsel %vm9934, %v9938, %v9939
        %v9941 = vrot.slane %v9924, 1
        %v9942 = vsel %vm9934, %v9936, %v9941
        %v9943 = vrot.slane %v9925, 1
        %v9944 = vsel %vm9934, %v9939, %v9943
        %v9945 = vrot.slane %v9926, 1
        %v9946 = vsel %vm9934, %v9941, %v9945
        %v9947 = vrot.slane %v9927, 1
        %v9948 = vsel %vm9934, %v9943, %v9947
        %v9949 = vrot.slane %v9928, 1
        %v9950 = vsel %vm9934, %v9945, %v9949
        %v9951 = vrot.slane %v9929, 1
        %v9952 = vsel %vm9934, %v9947, %v9951
        %v9953 = vrot.slane %v9930, 1
        %v9954 = vsel %vm9934, %v9949, %v9953
        %v9955 = vrot.slane %v9931, 1
        %v9956 = vsel %vm9934, %v9951, %v9955
        %v9957 = vrot.slane %v9932, 1
        %v9958 = vsel %vm9934, %v9953, %v9957
        %v9959 = vrot.slane %v9933, 1
        %v9960 = vsel %vm9934, %v9955, %v9959
        %v9988 = vunpack.c.l.b16 %v9861
        %v9989 = vunpack.c.l.b16 %v9862
        %v9990 = vunpack.c.l.b16 %v9863
        %v9991 = vunpack.c.l.b16 %v9864
        %v9992 = vunpack.c.l.b16 %v9865
        %v9993 = vunpack.c.l.b16 %v9866
        %v9994 = vunpack.c.l.b16 %v9867
        %v9995 = vunpack.c.l.b16 %v9868
        %v9996 = vunpack.c.l.b16 %v9869
        %v9997 = vunpack.c.l.b16 %v9870
        %v9998 = vunpack.c.l.b16 %v9871
        %v9999 = vunpack.c.l.b16 %v9872
        %v10000 = vunpack.c.l.b16 %v9873
        %v10001 = vunpack.c.l.b16 %v9874
        %v10002 = vunpack.c.l.b16 %v9875
        %v10003 = vunpack.c.l.b16 %v9876
        %v10004 = vunpack.c.l.b16 %v9877
        %v10005 = vunpack.c.l.b16 %v9878
        %v10006 = vunpack.c.l.b16 %v9879
        %v10007 = vunpack.c.l.b16 %v9880
        %v10008 = vpack.c.b16 %v9989, %v9988
        %v10009 = vpack.c.b16 %v9991, %v9990
        %v10010 = vpack.c.b16 %v9993, %v9992
        %v10011 = vpack.c.b16 %v9995, %v9994
        %v10012 = vpack.c.b16 %v9997, %v9996
        %v10013 = vpack.c.b16 %v9999, %v9998
        %v10014 = vpack.c.b16 %v10001, %v10000
        %v10015 = vpack.c.b16 %v10003, %v10002
        %v10016 = vpack.c.b16 %v10005, %v10004
        %v10017 = vpack.c.b16 %v10007, %v10006
        %v10029 = vsel %vm8754, %v9940, 0
        %v10032 = vsel %vm8754, %v9944, 0
        %v10035 = vsel %vm8754, %v9948, 0
        %v10038 = vsel %vm8754, %v9952, 0
        %v10041 = vsel %vm8754, %v9956, 0
        %v10044 = vsel %vm8754, %v9960, 0
        %v10047 = vsel %vm8754, %v9959, 0
        %10049 = vmatpush.bf16.msra.mxu0 %v10015
        %10050 = vmatpush.bf16.msra.mxu0 %v10014
        %10051 = vmatpush.bf16.msra.mxu0 %v10013
        %10052 = vmatpush.bf16.msra.mxu0 %v10012
        %10053 = vmatpush.bf16.msra.mxu0 %v10011
        %10054 = vmatpush.bf16.msra.mxu0 %v10010
        %10055 = vmatpush.bf16.msra.mxu0 %v10009
        %10056 = vmatpush.bf16.msra.mxu0 %v10008
        %10057 = vmatmul.bf16.gmra.mxu0 %v9937
        %v10058 = vpop.f32.mrf.mxu0
        %v10059 = vadd.f32 0.0, %v10058
        %v10060 = vpop.f32.mrf.mxu0
        %v10061 = vadd.f32 0.0, %v10060
        %10062 = vmatmul.bf16.gmra.mxu0 %v9942
        %v10063 = vpop.f32.mrf.mxu0
        %v10064 = vadd.f32 0.0, %v10063
        %v10065 = vpop.f32.mrf.mxu0
        %v10066 = vadd.f32 0.0, %v10065
        %10067 = vmatmul.bf16.gmra.mxu0 %v9946
        %v10068 = vpop.f32.mrf.mxu0
        %v10069 = vadd.f32 0.0, %v10068
        %v10070 = vpop.f32.mrf.mxu0
        %v10071 = vadd.f32 0.0, %v10070
        %10072 = vmatmul.bf16.gmra.mxu0 %v9950
        %v10073 = vpop.f32.mrf.mxu0
        %v10074 = vadd.f32 0.0, %v10073
        %v10075 = vpop.f32.mrf.mxu0
        %v10076 = vadd.f32 0.0, %v10075
        %10077 = vmatmul.bf16.gmra.mxu0 %v9954
        %v10078 = vpop.f32.mrf.mxu0
        %v10079 = vadd.f32 0.0, %v10078
        %v10080 = vpop.f32.mrf.mxu0
        %v10081 = vadd.f32 0.0, %v10080
        %10082 = vmatmul.bf16.gmra.mxu0 %v9958
        %v10083 = vpop.f32.mrf.mxu0
        %v10084 = vadd.f32 0.0, %v10083
        %v10085 = vpop.f32.mrf.mxu0
        %v10086 = vadd.f32 0.0, %v10085
        %10087 = vmatmul.bf16.gmra.mxu0 %v9957
        %v10088 = vpop.f32.mrf.mxu0
        %v10089 = vadd.f32 0.0, %v10088
        %v10090 = vpop.f32.mrf.mxu0
        %10091 = vdwg.mxu0
        %10092 = vmatpush.bf16.msra.mxu0 0
        %10093 = vmatpush.bf16.msra.mxu0 0
        %10094 = vmatpush.bf16.msra.mxu0 0
        %10095 = vmatpush.bf16.msra.mxu0 0
        %10096 = vmatpush.bf16.msra.mxu0 0
        %10097 = vmatpush.bf16.msra.mxu0 0
        %10098 = vmatpush.bf16.msra.mxu0 %v10017
        %10099 = vmatpush.bf16.msra.mxu0 %v10016
        %10100 = vmatmul.bf16.gmra.mxu0 %v10029
        %v10101 = vpop.f32.mrf.mxu0
        %v10102 = vadd.f32 %v10059, %v10101
        %v10103 = vpop.f32.mrf.mxu0
        %v10104 = vadd.f32 %v10061, %v10103
        %10105 = vmatmul.bf16.gmra.mxu0 %v10032
        %v10106 = vpop.f32.mrf.mxu0
        %v10107 = vadd.f32 %v10064, %v10106
        %v10108 = vpop.f32.mrf.mxu0
        %v10109 = vadd.f32 %v10066, %v10108
        %10110 = vmatmul.bf16.gmra.mxu0 %v10035
        %v10111 = vpop.f32.mrf.mxu0
        %v10112 = vadd.f32 %v10069, %v10111
        %v10113 = vpop.f32.mrf.mxu0
        %v10114 = vadd.f32 %v10071, %v10113
        %10115 = vmatmul.bf16.gmra.mxu0 %v10038
        %v10116 = vpop.f32.mrf.mxu0
        %v10117 = vadd.f32 %v10074, %v10116
        %v10118 = vpop.f32.mrf.mxu0
        %v10119 = vadd.f32 %v10076, %v10118
        %10120 = vmatmul.bf16.gmra.mxu0 %v10041
        %v10121 = vpop.f32.mrf.mxu0
        %v10122 = vadd.f32 %v10079, %v10121
        %v10123 = vpop.f32.mrf.mxu0
        %v10124 = vadd.f32 %v10081, %v10123
        %10125 = vmatmul.bf16.gmra.mxu0 %v10044
        %v10126 = vpop.f32.mrf.mxu0
        %v10127 = vadd.f32 %v10084, %v10126
        %v10128 = vpop.f32.mrf.mxu0
        %v10129 = vadd.f32 %v10086, %v10128
        %10130 = vmatmul.bf16.gmra.mxu0 %v10047
        %v10131 = vpop.f32.mrf.mxu0
        %v10132 = vadd.f32 %v10089, %v10131
        %v10133 = vpop.f32.mrf.mxu0
        %10134 = vdwg.mxu0
        %v10138 = vunpack.c.l.b16 %v9824
        %v10139 = vunpack.c.h.b16 %v9824
        %v10140 = vunpack.c.l.b16 %v9825
        %v10141 = vunpack.c.h.b16 %v9825
        %v10142 = vunpack.c.l.b16 %v9836
        %v10143 = vunpack.c.h.b16 %v9836
        %v10144 = vpack.c.b16 %v10140, %v10138
        %v10145 = vpack.c.b16 %v10141, %v10139
        %v10146 = vpack.c.b16 %v9898, %v9896
        %v10147 = vpack.c.b16 %v9899, %v9897
        %v10148 = vpack.c.b16 %v9902, %v9900
        %v10149 = vpack.c.b16 %v9903, %v9901
        %v10150 = vpack.c.b16 %v9906, %v9904
        %v10151 = vpack.c.b16 %v9907, %v9905
        %v10152 = vpack.c.b16 %v9910, %v9908
        %v10153 = vpack.c.b16 %v9911, %v9909
        %v10154 = vpack.c.b16 %v9914, %v9912
        %v10155 = vpack.c.b16 %v9915, %v9913
        %v10156 = vpack.c.b16 %v10142, %v10142
        %v10157 = vpack.c.b16 %v10143, %v10143
        %v10185 = vunpack.c.l.b16 %v9837
        %v10186 = vunpack.c.l.b16 %v9838
        %v10187 = vunpack.c.l.b16 %v9839
        %v10188 = vunpack.c.l.b16 %v9840
        %v10189 = vunpack.c.l.b16 %v9841
        %v10190 = vunpack.c.l.b16 %v9842
        %v10191 = vunpack.c.l.b16 %v9843
        %v10192 = vunpack.c.l.b16 %v9844
        %v10193 = vunpack.c.l.b16 %v9845
        %v10194 = vunpack.c.l.b16 %v9846
        %v10195 = vunpack.c.l.b16 %v9847
        %v10196 = vunpack.c.l.b16 %v9848
        %v10197 = vunpack.c.l.b16 %v9849
        %v10198 = vunpack.c.l.b16 %v9850
        %v10199 = vunpack.c.l.b16 %v9851
        %v10200 = vunpack.c.l.b16 %v9852
        %v10201 = vunpack.c.l.b16 %v9853
        %v10202 = vunpack.c.l.b16 %v9854
        %v10203 = vunpack.c.l.b16 %v9855
        %v10204 = vunpack.c.l.b16 %v9856
        %v10205 = vpack.c.b16 %v10186, %v10185
        %v10206 = vpack.c.b16 %v10188, %v10187
        %v10207 = vpack.c.b16 %v10190, %v10189
        %v10208 = vpack.c.b16 %v10192, %v10191
        %v10209 = vpack.c.b16 %v10194, %v10193
        %v10210 = vpack.c.b16 %v10196, %v10195
        %v10211 = vpack.c.b16 %v10198, %v10197
        %v10212 = vpack.c.b16 %v10200, %v10199
        %v10213 = vpack.c.b16 %v10202, %v10201
        %v10214 = vpack.c.b16 %v10204, %v10203
        %v10226 = vsel %vm8754, %v10145, 0
        %v10229 = vsel %vm8754, %v10147, 0
        %v10232 = vsel %vm8754, %v10149, 0
        %v10235 = vsel %vm8754, %v10151, 0
        %v10238 = vsel %vm8754, %v10153, 0
        %v10241 = vsel %vm8754, %v10155, 0
        %v10244 = vsel %vm8754, %v10157, 0
        %10246 = vmatpush.bf16.msra.mxu0 %v10212
        %10247 = vmatpush.bf16.msra.mxu0 %v10211
        %10248 = vmatpush.bf16.msra.mxu0 %v10210
        %10249 = vmatpush.bf16.msra.mxu0 %v10209
        %10250 = vmatpush.bf16.msra.mxu0 %v10208
        %10251 = vmatpush.bf16.msra.mxu0 %v10207
        %10252 = vmatpush.bf16.msra.mxu0 %v10206
        %10253 = vmatpush.bf16.msra.mxu0 %v10205
        %10254 = vmatmul.bf16.gmra.mxu0 %v10144
        %v10255 = vpop.f32.mrf.mxu0
        %v10256 = vadd.f32 %v10102, %v10255
        %v10257 = vpop.f32.mrf.mxu0
        %v10258 = vadd.f32 %v10104, %v10257
        %10259 = vmatmul.bf16.gmra.mxu0 %v10146
        %v10260 = vpop.f32.mrf.mxu0
        %v10261 = vadd.f32 %v10107, %v10260
        %v10262 = vpop.f32.mrf.mxu0
        %v10263 = vadd.f32 %v10109, %v10262
        %10264 = vmatmul.bf16.gmra.mxu0 %v10148
        %v10265 = vpop.f32.mrf.mxu0
        %v10266 = vadd.f32 %v10112, %v10265
        %v10267 = vpop.f32.mrf.mxu0
        %v10268 = vadd.f32 %v10114, %v10267
        %10269 = vmatmul.bf16.gmra.mxu0 %v10150
        %v10270 = vpop.f32.mrf.mxu0
        %v10271 = vadd.f32 %v10117, %v10270
        %v10272 = vpop.f32.mrf.mxu0
        %v10273 = vadd.f32 %v10119, %v10272
        %10274 = vmatmul.bf16.gmra.mxu0 %v10152
        %v10275 = vpop.f32.mrf.mxu0
        %v10276 = vadd.f32 %v10122, %v10275
        %v10277 = vpop.f32.mrf.mxu0
        %v10278 = vadd.f32 %v10124, %v10277
        %10279 = vmatmul.bf16.gmra.mxu0 %v10154
        %v10280 = vpop.f32.mrf.mxu0
        %v10281 = vadd.f32 %v10127, %v10280
        %v10282 = vpop.f32.mrf.mxu0
        %v10283 = vadd.f32 %v10129, %v10282
        %10284 = vmatmul.bf16.gmra.mxu0 %v10156
        %v10285 = vpop.f32.mrf.mxu0
        %v10286 = vadd.f32 %v10132, %v10285
        %v10287 = vpop.f32.mrf.mxu0
        %10288 = vdwg.mxu0
        %10289 = vmatpush.bf16.msra.mxu0 0
        %10290 = vmatpush.bf16.msra.mxu0 0
        %10291 = vmatpush.bf16.msra.mxu0 0
        %10292 = vmatpush.bf16.msra.mxu0 0
        %10293 = vmatpush.bf16.msra.mxu0 0
        %10294 = vmatpush.bf16.msra.mxu0 0
        %10295 = vmatpush.bf16.msra.mxu0 %v10214
        %10296 = vmatpush.bf16.msra.mxu0 %v10213
        %10297 = vmatmul.bf16.gmra.mxu0 %v10226
        %v10298 = vpop.f32.mrf.mxu0
        %v10299 = vadd.f32 %v10256, %v10298
        %v10300 = vpop.f32.mrf.mxu0
        %v10301 = vadd.f32 %v10258, %v10300
        %10302 = vmatmul.bf16.gmra.mxu0 %v10229
        %v10303 = vpop.f32.mrf.mxu0
        %v10304 = vadd.f32 %v10261, %v10303
        %v10305 = vpop.f32.mrf.mxu0
        %v10306 = vadd.f32 %v10263, %v10305
        %10307 = vmatmul.bf16.gmra.mxu0 %v10232
        %v10308 = vpop.f32.mrf.mxu0
        %v10309 = vadd.f32 %v10266, %v10308
        %v10310 = vpop.f32.mrf.mxu0
        %v10311 = vadd.f32 %v10268, %v10310
        %10312 = vmatmul.bf16.gmra.mxu0 %v10235
        %v10313 = vpop.f32.mrf.mxu0
        %v10314 = vadd.f32 %v10271, %v10313
        %v10315 = vpop.f32.mrf.mxu0
        %v10316 = vadd.f32 %v10273, %v10315
        %10317 = vmatmul.bf16.gmra.mxu0 %v10238
        %v10318 = vpop.f32.mrf.mxu0
        %v10319 = vadd.f32 %v10276, %v10318
        %v10320 = vpop.f32.mrf.mxu0
        %v10321 = vadd.f32 %v10278, %v10320
        %10322 = vmatmul.bf16.gmra.mxu0 %v10241
        %v10323 = vpop.f32.mrf.mxu0
        %v10324 = vadd.f32 %v10281, %v10323
        %v10325 = vpop.f32.mrf.mxu0
        %v10326 = vadd.f32 %v10283, %v10325
        %10327 = vmatmul.bf16.gmra.mxu0 %v10244
        %v10328 = vpop.f32.mrf.mxu0
        %v10329 = vadd.f32 %v10286, %v10328
        %v10330 = vpop.f32.mrf.mxu0
        %10331 = vdwg.mxu0
        %v10332 = vld [vmem:[#allocation5 + $0x10] sm:$0xcc]
        %v10333 = vld [vmem:[#allocation5 + $0x18] sm:$0xff]
        %v10334 = vld [vmem:[#allocation5 + $0x20] sm:$0xff]
        %v10335 = vld [vmem:[#allocation5 + $0x28] sm:$0xff]
        %v10336 = vld [vmem:[#allocation5 + $0x30] sm:$0xff]
        %v10337 = vld [vmem:[#allocation5 + $0x38] sm:$0xff]
        %v10338 = vld [vmem:[#allocation5 + $0x40] sm:$0xff]
        %v10339 = vld [vmem:[#allocation5 + $0x48] sm:$0xff]
        %v10340 = vld [vmem:[#allocation5 + $0x50] sm:$0xff]
        %v10341 = vld [vmem:[#allocation5 + $0x58] sm:$0xff]
        %v10342 = vld [vmem:[#allocation5 + $0x60] sm:$0xff]
        %v10343 = vld [vmem:[#allocation5 + $0x68] sm:$0xff]
        %v10344 = vld [vmem:[#allocation5 + $0x70] sm:$0xff]
        %s10345 = scalar_lea.vmem %s5, 160
        %v10346 = vld [vmem:[%s10345] sm:$0xf]
        %v10347 = vld [vmem:[%s10345 + $0x4] sm:$0xf]
        %v10348 = vld [vmem:[%s10345 + $0x8] sm:$0xf]
        %v10349 = vld [vmem:[%s10345 + $0xc] sm:$0xf]
        %v10350 = vld [vmem:[%s10345 + $0x10] sm:$0xf]
        %v10351 = vld [vmem:[%s10345 + $0x14] sm:$0xf]
        %v10352 = vld [vmem:[%s10345 + $0x18] sm:$0xf]
        %v10353 = vld [vmem:[%s10345 + $0x1c] sm:$0xf]
        %v10354 = vld [vmem:[%s10345 + $0x20] sm:$0xf]
        %v10355 = vld [vmem:[%s10345 + $0x24] sm:$0xf]
        %v10356 = vld [vmem:[%s10345 + $0x28] sm:$0xf]
        %v10357 = vld [vmem:[%s10345 + $0x2c] sm:$0xf]
        %v10358 = vld [vmem:[%s10345 + $0x30] sm:$0xf]
        %v10359 = vld [vmem:[%s10345 + $0x34] sm:$0xf]
        %v10360 = vld [vmem:[%s10345 + $0x38] sm:$0xf]
        %v10361 = vld [vmem:[%s10345 + $0x3c] sm:$0xf]
        %v10362 = vld [vmem:[%s10345 + $0x40] sm:$0xf]
        %v10363 = vld [vmem:[%s10345 + $0x44] sm:$0xf]
        %v10364 = vld [vmem:[%s10345 + $0x48] sm:$0xf]
        %v10365 = vld [vmem:[%s10345 + $0x4c] sm:$0xf]
        %v10379 = vunpack.c.l.b16 %v10332
        %v10380 = vunpack.c.h.b16 %v10332
        %v10381 = vunpack.c.l.b16 %v10333
        %v10382 = vunpack.c.h.b16 %v10333
        %v10383 = vunpack.c.l.b16 %v10334
        %v10384 = vunpack.c.h.b16 %v10334
        %v10385 = vunpack.c.l.b16 %v10335
        %v10386 = vunpack.c.h.b16 %v10335
        %v10387 = vunpack.c.l.b16 %v10336
        %v10388 = vunpack.c.h.b16 %v10336
        %v10389 = vunpack.c.l.b16 %v10337
        %v10390 = vunpack.c.h.b16 %v10337
        %v10391 = vunpack.c.l.b16 %v10338
        %v10392 = vunpack.c.h.b16 %v10338
        %v10393 = vunpack.c.l.b16 %v10339
        %v10394 = vunpack.c.h.b16 %v10339
        %v10395 = vunpack.c.l.b16 %v10340
        %v10396 = vunpack.c.h.b16 %v10340
        %v10397 = vunpack.c.l.b16 %v10341
        %v10398 = vunpack.c.h.b16 %v10341
        %v10399 = vunpack.c.l.b16 %v10342
        %v10400 = vunpack.c.h.b16 %v10342
        %v10401 = vunpack.c.l.b16 %v10343
        %v10402 = vunpack.c.h.b16 %v10343
        %v10403 = vunpack.c.l.b16 %v10344
        %v10404 = vunpack.c.h.b16 %v10344
        %v10405 = vpack.c.b16 %v10381, %v10379
        %v10406 = vpack.c.b16 %v10382, %v10380
        %v10407 = vpack.c.b16 %v10385, %v10383
        %v10408 = vpack.c.b16 %v10386, %v10384
        %v10409 = vpack.c.b16 %v10389, %v10387
        %v10410 = vpack.c.b16 %v10390, %v10388
        %v10411 = vpack.c.b16 %v10393, %v10391
        %v10412 = vpack.c.b16 %v10394, %v10392
        %v10413 = vpack.c.b16 %v10397, %v10395
        %v10414 = vpack.c.b16 %v10398, %v10396
        %v10415 = vpack.c.b16 %v10401, %v10399
        %v10416 = vpack.c.b16 %v10402, %v10400
        %v10417 = vpack.c.b16 %v10403, %v10403
        %v10418 = vpack.c.b16 %v10404, %v10404
        %v10419 = vrot.slane %v10405, 2
        %v10420 = vrot.slane %v10407, 2
        %v10421 = vsel %vm5168, %v10419, %v10420
        %v10422 = vrot.slane %v10406, 2
        %v10423 = vrot.slane %v10408, 2
        %v10424 = vsel %vm5168, %v10422, %v10423
        %v10425 = vrot.slane %v10409, 2
        %v10426 = vsel %vm5168, %v10420, %v10425
        %v10427 = vrot.slane %v10410, 2
        %v10428 = vsel %vm5168, %v10423, %v10427
        %v10429 = vrot.slane %v10411, 2
        %v10430 = vsel %vm5168, %v10425, %v10429
        %v10431 = vrot.slane %v10412, 2
        %v10432 = vsel %vm5168, %v10427, %v10431
        %v10433 = vrot.slane %v10413, 2
        %v10434 = vsel %vm5168, %v10429, %v10433
        %v10435 = vrot.slane %v10414, 2
        %v10436 = vsel %vm5168, %v10431, %v10435
        %v10437 = vrot.slane %v10415, 2
        %v10438 = vsel %vm5168, %v10433, %v10437
        %v10439 = vrot.slane %v10416, 2
        %v10440 = vsel %vm5168, %v10435, %v10439
        %v10441 = vrot.slane %v10417, 2
        %v10442 = vsel %vm5168, %v10437, %v10441
        %v10443 = vrot.slane %v10418, 2
        %v10444 = vsel %vm5168, %v10439, %v10443
        %v10472 = vunpack.c.l.b16 %v10346
        %v10473 = vunpack.c.l.b16 %v10347
        %v10474 = vunpack.c.l.b16 %v10348
        %v10475 = vunpack.c.l.b16 %v10349
        %v10476 = vunpack.c.l.b16 %v10350
        %v10477 = vunpack.c.l.b16 %v10351
        %v10478 = vunpack.c.l.b16 %v10352
        %v10479 = vunpack.c.l.b16 %v10353
        %v10480 = vunpack.c.l.b16 %v10354
        %v10481 = vunpack.c.l.b16 %v10355
        %v10482 = vunpack.c.l.b16 %v10356
        %v10483 = vunpack.c.l.b16 %v10357
        %v10484 = vunpack.c.l.b16 %v10358
        %v10485 = vunpack.c.l.b16 %v10359
        %v10486 = vunpack.c.l.b16 %v10360
        %v10487 = vunpack.c.l.b16 %v10361
        %v10488 = vunpack.c.l.b16 %v10362
        %v10489 = vunpack.c.l.b16 %v10363
        %v10490 = vunpack.c.l.b16 %v10364
        %v10491 = vunpack.c.l.b16 %v10365
        %v10492 = vpack.c.b16 %v10473, %v10472
        %v10493 = vpack.c.b16 %v10475, %v10474
        %v10494 = vpack.c.b16 %v10477, %v10476
        %v10495 = vpack.c.b16 %v10479, %v10478
        %v10496 = vpack.c.b16 %v10481, %v10480
        %v10497 = vpack.c.b16 %v10483, %v10482
        %v10498 = vpack.c.b16 %v10485, %v10484
        %v10499 = vpack.c.b16 %v10487, %v10486
        %v10500 = vpack.c.b16 %v10489, %v10488
        %v10501 = vpack.c.b16 %v10491, %v10490
        %v10513 = vsel %vm8754, %v10424, 0
        %v10516 = vsel %vm8754, %v10428, 0
        %v10519 = vsel %vm8754, %v10432, 0
        %v10522 = vsel %vm8754, %v10436, 0
        %v10525 = vsel %vm8754, %v10440, 0
        %v10528 = vsel %vm8754, %v10444, 0
        %v10531 = vsel %vm8754, %v10443, 0
        %10533 = vmatpush.bf16.msra.mxu0 %v10499
        %10534 = vmatpush.bf16.msra.mxu0 %v10498
        %10535 = vmatpush.bf16.msra.mxu0 %v10497
        %10536 = vmatpush.bf16.msra.mxu0 %v10496
        %10537 = vmatpush.bf16.msra.mxu0 %v10495
        %10538 = vmatpush.bf16.msra.mxu0 %v10494
        %10539 = vmatpush.bf16.msra.mxu0 %v10493
        %10540 = vmatpush.bf16.msra.mxu0 %v10492
        %10541 = vmatmul.bf16.gmra.mxu0 %v10421
        %v10542 = vpop.f32.mrf.mxu0
        %v10543 = vadd.f32 0.0, %v10542
        %v10544 = vpop.f32.mrf.mxu0
        %v10545 = vadd.f32 0.0, %v10544
        %10546 = vmatmul.bf16.gmra.mxu0 %v10426
        %v10547 = vpop.f32.mrf.mxu0
        %v10548 = vadd.f32 0.0, %v10547
        %v10549 = vpop.f32.mrf.mxu0
        %v10550 = vadd.f32 0.0, %v10549
        %10551 = vmatmul.bf16.gmra.mxu0 %v10430
        %v10552 = vpop.f32.mrf.mxu0
        %v10553 = vadd.f32 0.0, %v10552
        %v10554 = vpop.f32.mrf.mxu0
        %v10555 = vadd.f32 0.0, %v10554
        %10556 = vmatmul.bf16.gmra.mxu0 %v10434
        %v10557 = vpop.f32.mrf.mxu0
        %v10558 = vadd.f32 0.0, %v10557
        %v10559 = vpop.f32.mrf.mxu0
        %v10560 = vadd.f32 0.0, %v10559
        %10561 = vmatmul.bf16.gmra.mxu0 %v10438
        %v10562 = vpop.f32.mrf.mxu0
        %v10563 = vadd.f32 0.0, %v10562
        %v10564 = vpop.f32.mrf.mxu0
        %v10565 = vadd.f32 0.0, %v10564
        %10566 = vmatmul.bf16.gmra.mxu0 %v10442
        %v10567 = vpop.f32.mrf.mxu0
        %v10568 = vadd.f32 0.0, %v10567
        %v10569 = vpop.f32.mrf.mxu0
        %v10570 = vadd.f32 0.0, %v10569
        %10571 = vmatmul.bf16.gmra.mxu0 %v10441
        %v10572 = vpop.f32.mrf.mxu0
        %v10573 = vadd.f32 0.0, %v10572
        %v10574 = vpop.f32.mrf.mxu0
        %10575 = vdwg.mxu0
        %10576 = vmatpush.bf16.msra.mxu0 0
        %10577 = vmatpush.bf16.msra.mxu0 0
        %10578 = vmatpush.bf16.msra.mxu0 0
        %10579 = vmatpush.bf16.msra.mxu0 0
        %10580 = vmatpush.bf16.msra.mxu0 0
        %10581 = vmatpush.bf16.msra.mxu0 0
        %10582 = vmatpush.bf16.msra.mxu0 %v10501
        %10583 = vmatpush.bf16.msra.mxu0 %v10500
        %10584 = vmatmul.bf16.gmra.mxu0 %v10513
        %v10585 = vpop.f32.mrf.mxu0
        %v10586 = vadd.f32 %v10543, %v10585
        %v10587 = vpop.f32.mrf.mxu0
        %v10588 = vadd.f32 %v10545, %v10587
        %10589 = vmatmul.bf16.gmra.mxu0 %v10516
        %v10590 = vpop.f32.mrf.mxu0
        %v10591 = vadd.f32 %v10548, %v10590
        %v10592 = vpop.f32.mrf.mxu0
        %v10593 = vadd.f32 %v10550, %v10592
        %10594 = vmatmul.bf16.gmra.mxu0 %v10519
        %v10595 = vpop.f32.mrf.mxu0
        %v10596 = vadd.f32 %v10553, %v10595
        %v10597 = vpop.f32.mrf.mxu0
        %v10598 = vadd.f32 %v10555, %v10597
        %10599 = vmatmul.bf16.gmra.mxu0 %v10522
        %v10600 = vpop.f32.mrf.mxu0
        %v10601 = vadd.f32 %v10558, %v10600
        %v10602 = vpop.f32.mrf.mxu0
        %v10603 = vadd.f32 %v10560, %v10602
        %10604 = vmatmul.bf16.gmra.mxu0 %v10525
        %v10605 = vpop.f32.mrf.mxu0
        %v10606 = vadd.f32 %v10563, %v10605
        %v10607 = vpop.f32.mrf.mxu0
        %v10608 = vadd.f32 %v10565, %v10607
        %10609 = vmatmul.bf16.gmra.mxu0 %v10528
        %v10610 = vpop.f32.mrf.mxu0
        %v10611 = vadd.f32 %v10568, %v10610
        %v10612 = vpop.f32.mrf.mxu0
        %v10613 = vadd.f32 %v10570, %v10612
        %10614 = vmatmul.bf16.gmra.mxu0 %v10531
        %v10615 = vpop.f32.mrf.mxu0
        %v10616 = vadd.f32 %v10573, %v10615
        %v10617 = vpop.f32.mrf.mxu0
        %10618 = vdwg.mxu0
        %v10619 = vadd.f32 %v10299, %v10586
        %v10620 = vadd.f32 %v10301, %v10588
        %v10621 = vadd.f32 %v10304, %v10591
        %v10622 = vadd.f32 %v10306, %v10593
        %v10623 = vadd.f32 %v10309, %v10596
        %v10624 = vadd.f32 %v10311, %v10598
        %v10625 = vadd.f32 %v10314, %v10601
        %v10626 = vadd.f32 %v10316, %v10603
        %v10627 = vadd.f32 %v10319, %v10606
        %v10628 = vadd.f32 %v10321, %v10608
        %v10629 = vadd.f32 %v10324, %v10611
        %v10630 = vadd.f32 %v10326, %v10613
        %v10631 = vadd.f32 %v10329, %v10616
        %v10632 = vld [vmem:[#allocation5 + $0x18] sm:$0x88]
        %v10633 = vld [vmem:[#allocation5 + $0x20] sm:$0xff]
        %v10634 = vld [vmem:[#allocation5 + $0x28] sm:$0xff]
        %v10635 = vld [vmem:[#allocation5 + $0x30] sm:$0xff]
        %v10636 = vld [vmem:[#allocation5 + $0x38] sm:$0xff]
        %v10637 = vld [vmem:[#allocation5 + $0x40] sm:$0xff]
        %v10638 = vld [vmem:[#allocation5 + $0x48] sm:$0xff]
        %v10639 = vld [vmem:[#allocation5 + $0x50] sm:$0xff]
        %v10640 = vld [vmem:[#allocation5 + $0x58] sm:$0xff]
        %v10641 = vld [vmem:[#allocation5 + $0x60] sm:$0xff]
        %v10642 = vld [vmem:[#allocation5 + $0x68] sm:$0xff]
        %v10643 = vld [vmem:[#allocation5 + $0x70] sm:$0xff]
        %v10644 = vld [vmem:[#allocation5 + $0x78] sm:$0xff]
        %v10645 = vld [vmem:[#allocation5 + $0x80] sm:$0x11]
        %s10646 = scalar_lea.vmem %s5, 240
        %v10647 = vld [vmem:[%s10646] sm:$0xf]
        %v10648 = vld [vmem:[%s10646 + $0x4] sm:$0xf]
        %v10649 = vld [vmem:[%s10646 + $0x8] sm:$0xf]
        %v10650 = vld [vmem:[%s10646 + $0xc] sm:$0xf]
        %v10651 = vld [vmem:[%s10646 + $0x10] sm:$0xf]
        %v10652 = vld [vmem:[%s10646 + $0x14] sm:$0xf]
        %v10653 = vld [vmem:[%s10646 + $0x18] sm:$0xf]
        %v10654 = vld [vmem:[%s10646 + $0x1c] sm:$0xf]
        %v10655 = vld [vmem:[%s10646 + $0x20] sm:$0xf]
        %v10656 = vld [vmem:[%s10646 + $0x24] sm:$0xf]
        %v10657 = vld [vmem:[%s10646 + $0x28] sm:$0xf]
        %v10658 = vld [vmem:[%s10646 + $0x2c] sm:$0xf]
        %v10659 = vld [vmem:[%s10646 + $0x30] sm:$0xf]
        %v10660 = vld [vmem:[%s10646 + $0x34] sm:$0xf]
        %v10661 = vld [vmem:[%s10646 + $0x38] sm:$0xf]
        %v10662 = vld [vmem:[%s10646 + $0x3c] sm:$0xf]
        %v10663 = vld [vmem:[%s10646 + $0x40] sm:$0xf]
        %v10664 = vld [vmem:[%s10646 + $0x44] sm:$0xf]
        %v10665 = vld [vmem:[%s10646 + $0x48] sm:$0xf]
        %v10666 = vld [vmem:[%s10646 + $0x4c] sm:$0xf]
        %v10681 = vunpack.c.l.b16 %v10632
        %v10682 = vunpack.c.h.b16 %v10632
        %v10683 = vunpack.c.l.b16 %v10633
        %v10684 = vunpack.c.h.b16 %v10633
        %v10685 = vunpack.c.l.b16 %v10634
        %v10686 = vunpack.c.h.b16 %v10634
        %v10687 = vunpack.c.l.b16 %v10635
        %v10688 = vunpack.c.h.b16 %v10635
        %v10689 = vunpack.c.l.b16 %v10636
        %v10690 = vunpack.c.h.b16 %v10636
        %v10691 = vunpack.c.l.b16 %v10637
        %v10692 = vunpack.c.h.b16 %v10637
        %v10693 = vunpack.c.l.b16 %v10638
        %v10694 = vunpack.c.h.b16 %v10638
        %v10695 = vunpack.c.l.b16 %v10639
        %v10696 = vunpack.c.h.b16 %v10639
        %v10697 = vunpack.c.l.b16 %v10640
        %v10698 = vunpack.c.h.b16 %v10640
        %v10699 = vunpack.c.l.b16 %v10641
        %v10700 = vunpack.c.h.b16 %v10641
        %v10701 = vunpack.c.l.b16 %v10642
        %v10702 = vunpack.c.h.b16 %v10642
        %v10703 = vunpack.c.l.b16 %v10643
        %v10704 = vunpack.c.h.b16 %v10643
        %v10705 = vunpack.c.l.b16 %v10644
        %v10706 = vunpack.c.h.b16 %v10644
        %v10707 = vunpack.c.l.b16 %v10645
        %v10708 = vunpack.c.h.b16 %v10645
        %v10709 = vpack.c.b16 %v10683, %v10681
        %v10710 = vpack.c.b16 %v10684, %v10682
        %v10711 = vpack.c.b16 %v10687, %v10685
        %v10712 = vpack.c.b16 %v10688, %v10686
        %v10713 = vpack.c.b16 %v10691, %v10689
        %v10714 = vpack.c.b16 %v10692, %v10690
        %v10715 = vpack.c.b16 %v10695, %v10693
        %v10716 = vpack.c.b16 %v10696, %v10694
        %v10717 = vpack.c.b16 %v10699, %v10697
        %v10718 = vpack.c.b16 %v10700, %v10698
        %v10719 = vpack.c.b16 %v10703, %v10701
        %v10720 = vpack.c.b16 %v10704, %v10702
        %v10721 = vpack.c.b16 %v10707, %v10705
        %v10722 = vpack.c.b16 %v10708, %v10706
        %vm10723 = vcmask 1044480
        %v10724 = vrot.slane %v10709, 3
        %v10725 = vrot.slane %v10711, 3
        %v10726 = vsel %vm10723, %v10724, %v10725
        %v10727 = vrot.slane %v10710, 3
        %v10728 = vrot.slane %v10712, 3
        %v10729 = vsel %vm10723, %v10727, %v10728
        %v10730 = vrot.slane %v10713, 3
        %v10731 = vsel %vm10723, %v10725, %v10730
        %v10732 = vrot.slane %v10714, 3
        %v10733 = vsel %vm10723, %v10728, %v10732
        %v10734 = vrot.slane %v10715, 3
        %v10735 = vsel %vm10723, %v10730, %v10734
        %v10736 = vrot.slane %v10716, 3
        %v10737 = vsel %vm10723, %v10732, %v10736
        %v10738 = vrot.slane %v10717, 3
        %v10739 = vsel %vm10723, %v10734, %v10738
        %v10740 = vrot.slane %v10718, 3
        %v10741 = vsel %vm10723, %v10736, %v10740
        %v10742 = vrot.slane %v10719, 3
        %v10743 = vsel %vm10723, %v10738, %v10742
        %v10744 = vrot.slane %v10720, 3
        %v10745 = vsel %vm10723, %v10740, %v10744
        %v10746 = vrot.slane %v10721, 3
        %v10747 = vsel %vm10723, %v10742, %v10746
        %v10748 = vrot.slane %v10722, 3
        %v10749 = vsel %vm10723, %v10744, %v10748
        %v10777 = vunpack.c.l.b16 %v10647
        %v10778 = vunpack.c.l.b16 %v10648
        %v10779 = vunpack.c.l.b16 %v10649
        %v10780 = vunpack.c.l.b16 %v10650
        %v10781 = vunpack.c.l.b16 %v10651
        %v10782 = vunpack.c.l.b16 %v10652
        %v10783 = vunpack.c.l.b16 %v10653
        %v10784 = vunpack.c.l.b16 %v10654
        %v10785 = vunpack.c.l.b16 %v10655
        %v10786 = vunpack.c.l.b16 %v10656
        %v10787 = vunpack.c.l.b16 %v10657
        %v10788 = vunpack.c.l.b16 %v10658
        %v10789 = vunpack.c.l.b16 %v10659
        %v10790 = vunpack.c.l.b16 %v10660
        %v10791 = vunpack.c.l.b16 %v10661
        %v10792 = vunpack.c.l.b16 %v10662
        %v10793 = vunpack.c.l.b16 %v10663
        %v10794 = vunpack.c.l.b16 %v10664
        %v10795 = vunpack.c.l.b16 %v10665
        %v10796 = vunpack.c.l.b16 %v10666
        %v10797 = vpack.c.b16 %v10778, %v10777
        %v10798 = vpack.c.b16 %v10780, %v10779
        %v10799 = vpack.c.b16 %v10782, %v10781
        %v10800 = vpack.c.b16 %v10784, %v10783
        %v10801 = vpack.c.b16 %v10786, %v10785
        %v10802 = vpack.c.b16 %v10788, %v10787
        %v10803 = vpack.c.b16 %v10790, %v10789
        %v10804 = vpack.c.b16 %v10792, %v10791
        %v10805 = vpack.c.b16 %v10794, %v10793
        %v10806 = vpack.c.b16 %v10796, %v10795
        %v10818 = vsel %vm8754, %v10729, 0
        %v10821 = vsel %vm8754, %v10733, 0
        %v10824 = vsel %vm8754, %v10737, 0
        %v10827 = vsel %vm8754, %v10741, 0
        %v10830 = vsel %vm8754, %v10745, 0
        %v10833 = vsel %vm8754, %v10749, 0
        %v10836 = vsel %vm8754, %v10748, 0
        %10838 = vmatpush.bf16.msra.mxu0 %v10804
        %10839 = vmatpush.bf16.msra.mxu0 %v10803
        %10840 = vmatpush.bf16.msra.mxu0 %v10802
        %10841 = vmatpush.bf16.msra.mxu0 %v10801
        %10842 = vmatpush.bf16.msra.mxu0 %v10800
        %10843 = vmatpush.bf16.msra.mxu0 %v10799
        %10844 = vmatpush.bf16.msra.mxu0 %v10798
        %10845 = vmatpush.bf16.msra.mxu0 %v10797
        %10846 = vmatmul.bf16.gmra.mxu0 %v10726
        %v10847 = vpop.f32.mrf.mxu0
        %v10848 = vadd.f32 0.0, %v10847
        %v10849 = vpop.f32.mrf.mxu0
        %v10850 = vadd.f32 0.0, %v10849
        %10851 = vmatmul.bf16.gmra.mxu0 %v10731
        %v10852 = vpop.f32.mrf.mxu0
        %v10853 = vadd.f32 0.0, %v10852
        %v10854 = vpop.f32.mrf.mxu0
        %v10855 = vadd.f32 0.0, %v10854
        %10856 = vmatmul.bf16.gmra.mxu0 %v10735
        %v10857 = vpop.f32.mrf.mxu0
        %v10858 = vadd.f32 0.0, %v10857
        %v10859 = vpop.f32.mrf.mxu0
        %v10860 = vadd.f32 0.0, %v10859
        %10861 = vmatmul.bf16.gmra.mxu0 %v10739
        %v10862 = vpop.f32.mrf.mxu0
        %v10863 = vadd.f32 0.0, %v10862
        %v10864 = vpop.f32.mrf.mxu0
        %v10865 = vadd.f32 0.0, %v10864
        %10866 = vmatmul.bf16.gmra.mxu0 %v10743
        %v10867 = vpop.f32.mrf.mxu0
        %v10868 = vadd.f32 0.0, %v10867
        %v10869 = vpop.f32.mrf.mxu0
        %v10870 = vadd.f32 0.0, %v10869
        %10871 = vmatmul.bf16.gmra.mxu0 %v10747
        %v10872 = vpop.f32.mrf.mxu0
        %v10873 = vadd.f32 0.0, %v10872
        %v10874 = vpop.f32.mrf.mxu0
        %v10875 = vadd.f32 0.0, %v10874
        %10876 = vmatmul.bf16.gmra.mxu0 %v10746
        %v10877 = vpop.f32.mrf.mxu0
        %v10878 = vadd.f32 0.0, %v10877
        %v10879 = vpop.f32.mrf.mxu0
        %10880 = vdwg.mxu0
        %10881 = vmatpush.bf16.msra.mxu0 0
        %10882 = vmatpush.bf16.msra.mxu0 0
        %10883 = vmatpush.bf16.msra.mxu0 0
        %10884 = vmatpush.bf16.msra.mxu0 0
        %10885 = vmatpush.bf16.msra.mxu0 0
        %10886 = vmatpush.bf16.msra.mxu0 0
        %10887 = vmatpush.bf16.msra.mxu0 %v10806
        %10888 = vmatpush.bf16.msra.mxu0 %v10805
        %10889 = vmatmul.bf16.gmra.mxu0 %v10818
        %v10890 = vpop.f32.mrf.mxu0
        %v10891 = vadd.f32 %v10848, %v10890
        %v10892 = vpop.f32.mrf.mxu0
        %v10893 = vadd.f32 %v10850, %v10892
        %10894 = vmatmul.bf16.gmra.mxu0 %v10821
        %v10895 = vpop.f32.mrf.mxu0
        %v10896 = vadd.f32 %v10853, %v10895
        %v10897 = vpop.f32.mrf.mxu0
        %v10898 = vadd.f32 %v10855, %v10897
        %10899 = vmatmul.bf16.gmra.mxu0 %v10824
        %v10900 = vpop.f32.mrf.mxu0
        %v10901 = vadd.f32 %v10858, %v10900
        %v10902 = vpop.f32.mrf.mxu0
        %v10903 = vadd.f32 %v10860, %v10902
        %10904 = vmatmul.bf16.gmra.mxu0 %v10827
        %v10905 = vpop.f32.mrf.mxu0
        %v10906 = vadd.f32 %v10863, %v10905
        %v10907 = vpop.f32.mrf.mxu0
        %v10908 = vadd.f32 %v10865, %v10907
        %10909 = vmatmul.bf16.gmra.mxu0 %v10830
        %v10910 = vpop.f32.mrf.mxu0
        %v10911 = vadd.f32 %v10868, %v10910
        %v10912 = vpop.f32.mrf.mxu0
        %v10913 = vadd.f32 %v10870, %v10912
        %10914 = vmatmul.bf16.gmra.mxu0 %v10833
        %v10915 = vpop.f32.mrf.mxu0
        %v10916 = vadd.f32 %v10873, %v10915
        %v10917 = vpop.f32.mrf.mxu0
        %v10918 = vadd.f32 %v10875, %v10917
        %10919 = vmatmul.bf16.gmra.mxu0 %v10836
        %v10920 = vpop.f32.mrf.mxu0
        %v10921 = vadd.f32 %v10878, %v10920
        %v10922 = vpop.f32.mrf.mxu0
        %10923 = vdwg.mxu0
        %v10924 = vadd.f32 %v10619, %v10891
        %v10925 = vadd.f32 %v10620, %v10893
        %v10926 = vadd.f32 %v10621, %v10896
        %v10927 = vadd.f32 %v10622, %v10898
        %v10928 = vadd.f32 %v10623, %v10901
        %v10929 = vadd.f32 %v10624, %v10903
        %v10930 = vadd.f32 %v10625, %v10906
        %v10931 = vadd.f32 %v10626, %v10908
        %v10932 = vadd.f32 %v10627, %v10911
        %v10933 = vadd.f32 %v10628, %v10913
        %v10934 = vadd.f32 %v10629, %v10916
        %v10935 = vadd.f32 %v10630, %v10918
        %v10936 = vadd.f32 %v10631, %v10921
        %v10937 = vld [vmem:[#allocation5 + $0x28] sm:$0xff]
        %v10938 = vld [vmem:[#allocation5 + $0x30] sm:$0xff]
        %v10939 = vld [vmem:[#allocation5 + $0x38] sm:$0xff]
        %v10940 = vld [vmem:[#allocation5 + $0x40] sm:$0xff]
        %v10941 = vld [vmem:[#allocation5 + $0x48] sm:$0xff]
        %v10942 = vld [vmem:[#allocation5 + $0x50] sm:$0xff]
        %v10943 = vld [vmem:[#allocation5 + $0x58] sm:$0xff]
        %v10944 = vld [vmem:[#allocation5 + $0x60] sm:$0xff]
        %v10945 = vld [vmem:[#allocation5 + $0x68] sm:$0xff]
        %v10946 = vld [vmem:[#allocation5 + $0x70] sm:$0xff]
        %v10947 = vld [vmem:[#allocation5 + $0x78] sm:$0xff]
        %v10948 = vld [vmem:[#allocation5 + $0x80] sm:$0xff]
        %v10949 = vld [vmem:[#allocation5 + $0x88] sm:$0x33]
        %s10950 = scalar_lea.vmem %s5, 320
        %v10951 = vld [vmem:[%s10950] sm:$0xf]
        %v10952 = vld [vmem:[%s10950 + $0x4] sm:$0xf]
        %v10953 = vld [vmem:[%s10950 + $0x8] sm:$0xf]
        %v10954 = vld [vmem:[%s10950 + $0xc] sm:$0xf]
        %v10955 = vld [vmem:[%s10950 + $0x10] sm:$0xf]
        %v10956 = vld [vmem:[%s10950 + $0x14] sm:$0xf]
        %v10957 = vld [vmem:[%s10950 + $0x18] sm:$0xf]
        %v10958 = vld [vmem:[%s10950 + $0x1c] sm:$0xf]
        %v10959 = vld [vmem:[%s10950 + $0x20] sm:$0xf]
        %v10960 = vld [vmem:[%s10950 + $0x24] sm:$0xf]
        %v10961 = vld [vmem:[%s10950 + $0x28] sm:$0xf]
        %v10962 = vld [vmem:[%s10950 + $0x2c] sm:$0xf]
        %v10963 = vld [vmem:[%s10950 + $0x30] sm:$0xf]
        %v10964 = vld [vmem:[%s10950 + $0x34] sm:$0xf]
        %v10965 = vld [vmem:[%s10950 + $0x38] sm:$0xf]
        %v10966 = vld [vmem:[%s10950 + $0x3c] sm:$0xf]
        %v10967 = vld [vmem:[%s10950 + $0x40] sm:$0xf]
        %v10968 = vld [vmem:[%s10950 + $0x44] sm:$0xf]
        %v10969 = vld [vmem:[%s10950 + $0x48] sm:$0xf]
        %v10970 = vld [vmem:[%s10950 + $0x4c] sm:$0xf]
        %v10984 = vunpack.c.l.b16 %v10937
        %v10985 = vunpack.c.h.b16 %v10937
        %v10986 = vunpack.c.l.b16 %v10938
        %v10987 = vunpack.c.h.b16 %v10938
        %v10988 = vunpack.c.l.b16 %v10939
        %v10989 = vunpack.c.h.b16 %v10939
        %v10990 = vunpack.c.l.b16 %v10940
        %v10991 = vunpack.c.h.b16 %v10940
        %v10992 = vunpack.c.l.b16 %v10941
        %v10993 = vunpack.c.h.b16 %v10941
        %v10994 = vunpack.c.l.b16 %v10942
        %v10995 = vunpack.c.h.b16 %v10942
        %v10996 = vunpack.c.l.b16 %v10943
        %v10997 = vunpack.c.h.b16 %v10943
        %v10998 = vunpack.c.l.b16 %v10944
        %v10999 = vunpack.c.h.b16 %v10944
        %v11000 = vunpack.c.l.b16 %v10945
        %v11001 = vunpack.c.h.b16 %v10945
        %v11002 = vunpack.c.l.b16 %v10946
        %v11003 = vunpack.c.h.b16 %v10946
        %v11004 = vunpack.c.l.b16 %v10947
        %v11005 = vunpack.c.h.b16 %v10947
        %v11006 = vunpack.c.l.b16 %v10948
        %v11007 = vunpack.c.h.b16 %v10948
        %v11008 = vunpack.c.l.b16 %v10949
        %v11009 = vunpack.c.h.b16 %v10949
        %v11010 = vpack.c.b16 %v10986, %v10984
        %v11011 = vpack.c.b16 %v10987, %v10985
        %v11012 = vpack.c.b16 %v10990, %v10988
        %v11013 = vpack.c.b16 %v10991, %v10989
        %v11014 = vpack.c.b16 %v10994, %v10992
        %v11015 = vpack.c.b16 %v10995, %v10993
        %v11016 = vpack.c.b16 %v10998, %v10996
        %v11017 = vpack.c.b16 %v10999, %v10997
        %v11018 = vpack.c.b16 %v11002, %v11000
        %v11019 = vpack.c.b16 %v11003, %v11001
        %v11020 = vpack.c.b16 %v11006, %v11004
        %v11021 = vpack.c.b16 %v11007, %v11005
        %v11022 = vpack.c.b16 %v11008, %v11008
        %v11023 = vpack.c.b16 %v11009, %v11009
        %v11051 = vunpack.c.l.b16 %v10951
        %v11052 = vunpack.c.l.b16 %v10952
        %v11053 = vunpack.c.l.b16 %v10953
        %v11054 = vunpack.c.l.b16 %v10954
        %v11055 = vunpack.c.l.b16 %v10955
        %v11056 = vunpack.c.l.b16 %v10956
        %v11057 = vunpack.c.l.b16 %v10957
        %v11058 = vunpack.c.l.b16 %v10958
        %v11059 = vunpack.c.l.b16 %v10959
        %v11060 = vunpack.c.l.b16 %v10960
        %v11061 = vunpack.c.l.b16 %v10961
        %v11062 = vunpack.c.l.b16 %v10962
        %v11063 = vunpack.c.l.b16 %v10963
        %v11064 = vunpack.c.l.b16 %v10964
        %v11065 = vunpack.c.l.b16 %v10965
        %v11066 = vunpack.c.l.b16 %v10966
        %v11067 = vunpack.c.l.b16 %v10967
        %v11068 = vunpack.c.l.b16 %v10968
        %v11069 = vunpack.c.l.b16 %v10969
        %v11070 = vunpack.c.l.b16 %v10970
        %v11071 = vpack.c.b16 %v11052, %v11051
        %v11072 = vpack.c.b16 %v11054, %v11053
        %v11073 = vpack.c.b16 %v11056, %v11055
        %v11074 = vpack.c.b16 %v11058, %v11057
        %v11075 = vpack.c.b16 %v11060, %v11059
        %v11076 = vpack.c.b16 %v11062, %v11061
        %v11077 = vpack.c.b16 %v11064, %v11063
        %v11078 = vpack.c.b16 %v11066, %v11065
        %v11079 = vpack.c.b16 %v11068, %v11067
        %v11080 = vpack.c.b16 %v11070, %v11069
        %v11092 = vsel %vm8754, %v11011, 0
        %v11095 = vsel %vm8754, %v11013, 0
        %v11098 = vsel %vm8754, %v11015, 0
        %v11101 = vsel %vm8754, %v11017, 0
        %v11104 = vsel %vm8754, %v11019, 0
        %v11107 = vsel %vm8754, %v11021, 0
        %v11110 = vsel %vm8754, %v11023, 0
        %11112 = vmatpush.bf16.msra.mxu0 %v11078
        %11113 = vmatpush.bf16.msra.mxu0 %v11077
        %11114 = vmatpush.bf16.msra.mxu0 %v11076
        %11115 = vmatpush.bf16.msra.mxu0 %v11075
        %11116 = vmatpush.bf16.msra.mxu0 %v11074
        %11117 = vmatpush.bf16.msra.mxu0 %v11073
        %11118 = vmatpush.bf16.msra.mxu0 %v11072
        %11119 = vmatpush.bf16.msra.mxu0 %v11071
        %11120 = vmatmul.bf16.gmra.mxu0 %v11010
        %v11121 = vpop.f32.mrf.mxu0
        %v11122 = vadd.f32 0.0, %v11121
        %v11123 = vpop.f32.mrf.mxu0
        %v11124 = vadd.f32 0.0, %v11123
        %11125 = vmatmul.bf16.gmra.mxu0 %v11012
        %v11126 = vpop.f32.mrf.mxu0
        %v11127 = vadd.f32 0.0, %v11126
        %v11128 = vpop.f32.mrf.mxu0
        %v11129 = vadd.f32 0.0, %v11128
        %11130 = vmatmul.bf16.gmra.mxu0 %v11014
        %v11131 = vpop.f32.mrf.mxu0
        %v11132 = vadd.f32 0.0, %v11131
        %v11133 = vpop.f32.mrf.mxu0
        %v11134 = vadd.f32 0.0, %v11133
        %11135 = vmatmul.bf16.gmra.mxu0 %v11016
        %v11136 = vpop.f32.mrf.mxu0
        %v11137 = vadd.f32 0.0, %v11136
        %v11138 = vpop.f32.mrf.mxu0
        %v11139 = vadd.f32 0.0, %v11138
        %11140 = vmatmul.bf16.gmra.mxu0 %v11018
        %v11141 = vpop.f32.mrf.mxu0
        %v11142 = vadd.f32 0.0, %v11141
        %v11143 = vpop.f32.mrf.mxu0
        %v11144 = vadd.f32 0.0, %v11143
        %11145 = vmatmul.bf16.gmra.mxu0 %v11020
        %v11146 = vpop.f32.mrf.mxu0
        %v11147 = vadd.f32 0.0, %v11146
        %v11148 = vpop.f32.mrf.mxu0
        %v11149 = vadd.f32 0.0, %v11148
        %11150 = vmatmul.bf16.gmra.mxu0 %v11022
        %v11151 = vpop.f32.mrf.mxu0
        %v11152 = vadd.f32 0.0, %v11151
        %v11153 = vpop.f32.mrf.mxu0
        %11154 = vdwg.mxu0
        %11155 = vmatpush.bf16.msra.mxu0 0
        %11156 = vmatpush.bf16.msra.mxu0 0
        %11157 = vmatpush.bf16.msra.mxu0 0
        %11158 = vmatpush.bf16.msra.mxu0 0
        %11159 = vmatpush.bf16.msra.mxu0 0
        %11160 = vmatpush.bf16.msra.mxu0 0
        %11161 = vmatpush.bf16.msra.mxu0 %v11080
        %11162 = vmatpush.bf16.msra.mxu0 %v11079
        %11163 = vmatmul.bf16.gmra.mxu0 %v11092
        %v11164 = vpop.f32.mrf.mxu0
        %v11165 = vadd.f32 %v11122, %v11164
        %v11166 = vpop.f32.mrf.mxu0
        %v11167 = vadd.f32 %v11124, %v11166
        %11168 = vmatmul.bf16.gmra.mxu0 %v11095
        %v11169 = vpop.f32.mrf.mxu0
        %v11170 = vadd.f32 %v11127, %v11169
        %v11171 = vpop.f32.mrf.mxu0
        %v11172 = vadd.f32 %v11129, %v11171
        %11173 = vmatmul.bf16.gmra.mxu0 %v11098
        %v11174 = vpop.f32.mrf.mxu0
        %v11175 = vadd.f32 %v11132, %v11174
        %v11176 = vpop.f32.mrf.mxu0
        %v11177 = vadd.f32 %v11134, %v11176
        %11178 = vmatmul.bf16.gmra.mxu0 %v11101
        %v11179 = vpop.f32.mrf.mxu0
        %v11180 = vadd.f32 %v11137, %v11179
        %v11181 = vpop.f32.mrf.mxu0
        %v11182 = vadd.f32 %v11139, %v11181
        %11183 = vmatmul.bf16.gmra.mxu0 %v11104
        %v11184 = vpop.f32.mrf.mxu0
        %v11185 = vadd.f32 %v11142, %v11184
        %v11186 = vpop.f32.mrf.mxu0
        %v11187 = vadd.f32 %v11144, %v11186
        %11188 = vmatmul.bf16.gmra.mxu0 %v11107
        %v11189 = vpop.f32.mrf.mxu0
        %v11190 = vadd.f32 %v11147, %v11189
        %v11191 = vpop.f32.mrf.mxu0
        %v11192 = vadd.f32 %v11149, %v11191
        %11193 = vmatmul.bf16.gmra.mxu0 %v11110
        %v11194 = vpop.f32.mrf.mxu0
        %v11195 = vadd.f32 %v11152, %v11194
        %v11196 = vpop.f32.mrf.mxu0
        %11197 = vdwg.mxu0
        %v11198 = vadd.f32 %v10924, %v11165
        %v11199 = vadd.f32 %v10925, %v11167
        %v11200 = vadd.f32 %v10926, %v11170
        %v11201 = vadd.f32 %v10927, %v11172
        %v11202 = vadd.f32 %v10928, %v11175
        %v11203 = vadd.f32 %v10929, %v11177
        %v11204 = vadd.f32 %v10930, %v11180
        %v11205 = vadd.f32 %v10931, %v11182
        %v11206 = vadd.f32 %v10932, %v11185
        %v11207 = vadd.f32 %v10933, %v11187
        %v11208 = vadd.f32 %v10934, %v11190
        %v11209 = vadd.f32 %v10935, %v11192
        %v11210 = vadd.f32 %v10936, %v11195
        %v11211 = vld [vmem:[%s6] sm:$0x1]
        %v11213 = vperm.slane %v11211, 0
        %v11215 = vadd.f32 %v11198, %v11213
        %v11216 = vadd.f32 %v11199, %v11213
        %v11217 = vadd.f32 %v11200, %v11213
        %v11218 = vadd.f32 %v11201, %v11213
        %v11219 = vadd.f32 %v11202, %v11213
        %v11220 = vadd.f32 %v11203, %v11213
        %v11221 = vadd.f32 %v11204, %v11213
        %v11222 = vadd.f32 %v11205, %v11213
        %v11223 = vadd.f32 %v11206, %v11213
        %v11224 = vadd.f32 %v11207, %v11213
        %v11225 = vadd.f32 %v11208, %v11213
        %v11226 = vadd.f32 %v11209, %v11213
        %v11227 = vadd.f32 %v11210, %v11213
        %v11228 = vmax.f32 %v11215, 0.0
        %v11229 = vmax.f32 %v11216, 0.0
        %v11230 = vmax.f32 %v11217, 0.0
        %v11231 = vmax.f32 %v11218, 0.0
        %v11232 = vmax.f32 %v11219, 0.0
        %v11233 = vmax.f32 %v11220, 0.0
        %v11234 = vmax.f32 %v11221, 0.0
        %v11235 = vmax.f32 %v11222, 0.0
        %v11236 = vmax.f32 %v11223, 0.0
        %v11237 = vmax.f32 %v11224, 0.0
        %v11238 = vmax.f32 %v11225, 0.0
        %v11239 = vmax.f32 %v11226, 0.0
        %v11240 = vmax.f32 %v11227, 0.0
        %vm11241 = vcmask 523264
        %11242 = vst.msk [vmem:[#allocation6] sm:$0xff] %vm11241, %v11228
        %11243 = vst.msk [vmem:[#allocation6 + $0x8] sm:$0xff] %vm11241, %v11229
        %11244 = vst.msk [vmem:[#allocation6 + $0x10] sm:$0xff] %vm11241, %v11230
        %11245 = vst.msk [vmem:[#allocation6 + $0x18] sm:$0xff] %vm11241, %v11231
        %11246 = vst.msk [vmem:[#allocation6 + $0x20] sm:$0xff] %vm11241, %v11232
        %11247 = vst.msk [vmem:[#allocation6 + $0x28] sm:$0xff] %vm11241, %v11233
        %11248 = vst.msk [vmem:[#allocation6 + $0x30] sm:$0xff] %vm11241, %v11234
        %11249 = vst.msk [vmem:[#allocation6 + $0x38] sm:$0xff] %vm11241, %v11235
        %11250 = vst.msk [vmem:[#allocation6 + $0x40] sm:$0xff] %vm11241, %v11236
        %11251 = vst.msk [vmem:[#allocation6 + $0x48] sm:$0xff] %vm11241, %v11237
        %11252 = vst.msk [vmem:[#allocation6 + $0x50] sm:$0xff] %vm11241, %v11238
        %11253 = vst.msk [vmem:[#allocation6 + $0x58] sm:$0xff] %vm11241, %v11239
        %vm11254 = vcmask 519168
        %11255 = vst.msk [vmem:[#allocation6 + $0x60] sm:$0xf] %vm11254, %v11240
        %v11256 = vld [vmem:[#allocation6] ss:$100 sm:$0x1]
        %s11257 = scalar_lea.vmem [#allocation6], 1
        %v11258 = vld [vmem:[%s11257] ss:$100 sm:$0x1]
        %s11259 = scalar_lea.vmem [#allocation6], 10
        %v11260 = vld [vmem:[%s11259] ss:$100 sm:$0x1]
        %s11261 = scalar_lea.vmem [#allocation6], 11
        %v11262 = vld [vmem:[%s11261] ss:$100 sm:$0x1]
        %v11263 = vmax.f32 %v11256, %v11258
        %v11264 = vmax.f32 %v11260, %v11262
        %v11265 = vmax.f32 %v11263, %v11264
        %v11266 = vpack.c.bf16 %v11265, %v11265
        %v11267 = vld [vmem:[%s7] sm:$0xf]
        %v11268 = vld [vmem:[%s7 + $0x4] sm:$0xf]
        %v11269 = vld [vmem:[%s7 + $0x8] sm:$0xf]
        %v11270 = vld [vmem:[%s7 + $0xc] sm:$0xf]
        %v11271 = vld [vmem:[%s7 + $0x10] sm:$0xf]
        %v11272 = vld [vmem:[%s7 + $0x14] sm:$0xf]
        %v11273 = vld [vmem:[%s7 + $0x18] sm:$0xf]
        %v11274 = vld [vmem:[%s7 + $0x1c] sm:$0xf]
        %s11275 = scalar_lea.vmem [#allocation6], 2
        %v11276 = vld [vmem:[%s11275] ss:$100 sm:$0x1]
        %s11277 = scalar_lea.vmem [#allocation6], 3
        %v11278 = vld [vmem:[%s11277] ss:$100 sm:$0x1]
        %s11279 = scalar_lea.vmem [#allocation6], 12
        %v11280 = vld [vmem:[%s11279] ss:$100 sm:$0x1]
        %s11281 = scalar_lea.vmem [#allocation6], 13
        %v11282 = vld [vmem:[%s11281] ss:$100 sm:$0x1]
        %v11283 = vmax.f32 %v11276, %v11278
        %v11284 = vmax.f32 %v11280, %v11282
        %v11285 = vmax.f32 %v11283, %v11284
        %v11286 = vpack.c.bf16 %v11285, %v11285
        %s11287 = scalar_lea.vmem %s7, 32
        %v11288 = vld [vmem:[%s11287] sm:$0xf]
        %v11289 = vld [vmem:[%s11287 + $0x4] sm:$0xf]
        %v11290 = vld [vmem:[%s11287 + $0x8] sm:$0xf]
        %v11291 = vld [vmem:[%s11287 + $0xc] sm:$0xf]
        %v11292 = vld [vmem:[%s11287 + $0x10] sm:$0xf]
        %v11293 = vld [vmem:[%s11287 + $0x14] sm:$0xf]
        %v11294 = vld [vmem:[%s11287 + $0x18] sm:$0xf]
        %v11295 = vld [vmem:[%s11287 + $0x1c] sm:$0xf]
        %v11304 = vunpack.c.l.b16 %v11288
        %v11305 = vunpack.c.l.b16 %v11289
        %v11306 = vunpack.c.l.b16 %v11290
        %v11307 = vunpack.c.l.b16 %v11291
        %v11308 = vunpack.c.l.b16 %v11292
        %v11309 = vunpack.c.l.b16 %v11293
        %v11310 = vunpack.c.l.b16 %v11294
        %v11311 = vunpack.c.l.b16 %v11295
        %v11312 = vpack.c.b16 %v11305, %v11304
        %v11313 = vpack.c.b16 %v11307, %v11306
        %v11314 = vpack.c.b16 %v11309, %v11308
        %v11315 = vpack.c.b16 %v11311, %v11310
        %v11321 = vsel %vm11241, %v11286, 0
        %11323 = vmatpush.bf16.msra.mxu0 0
        %11324 = vmatpush.bf16.msra.mxu0 0
        %11325 = vmatpush.bf16.msra.mxu0 0
        %11326 = vmatpush.bf16.msra.mxu0 0
        %11327 = vmatpush.bf16.msra.mxu0 %v11315
        %11328 = vmatpush.bf16.msra.mxu0 %v11314
        %11329 = vmatpush.bf16.msra.mxu0 %v11313
        %11330 = vmatpush.bf16.msra.mxu0 %v11312
        %11331 = vmatmul.bf16.gmra.mxu0 %v11321
        %v11332 = vpop.f32.mrf.mxu0
        %v11333 = vadd.f32 0.0, %v11332
        %v11334 = vpop.f32.mrf.mxu0
        %11335 = vdwg.mxu0
        %v11344 = vunpack.c.l.b16 %v11267
        %v11345 = vunpack.c.l.b16 %v11268
        %v11346 = vunpack.c.l.b16 %v11269
        %v11347 = vunpack.c.l.b16 %v11270
        %v11348 = vunpack.c.l.b16 %v11271
        %v11349 = vunpack.c.l.b16 %v11272
        %v11350 = vunpack.c.l.b16 %v11273
        %v11351 = vunpack.c.l.b16 %v11274
        %v11352 = vpack.c.b16 %v11345, %v11344
        %v11353 = vpack.c.b16 %v11347, %v11346
        %v11354 = vpack.c.b16 %v11349, %v11348
        %v11355 = vpack.c.b16 %v11351, %v11350
        %v11361 = vsel %vm11241, %v11266, 0
        %11363 = vmatpush.bf16.msra.mxu0 0
        %11364 = vmatpush.bf16.msra.mxu0 0
        %11365 = vmatpush.bf16.msra.mxu0 0
        %11366 = vmatpush.bf16.msra.mxu0 0
        %11367 = vmatpush.bf16.msra.mxu0 %v11355
        %11368 = vmatpush.bf16.msra.mxu0 %v11354
        %11369 = vmatpush.bf16.msra.mxu0 %v11353
        %11370 = vmatpush.bf16.msra.mxu0 %v11352
        %11371 = vmatmul.bf16.gmra.mxu0 %v11361
        %v11372 = vpop.f32.mrf.mxu0
        %v11373 = vadd.f32 %v11333, %v11372
        %v11374 = vpop.f32.mrf.mxu0
        %11375 = vdwg.mxu0
        %s11376 = scalar_lea.vmem [#allocation6], 4
        %v11377 = vld [vmem:[%s11376] ss:$100 sm:$0x1]
        %s11378 = scalar_lea.vmem [#allocation6], 5
        %v11379 = vld [vmem:[%s11378] ss:$100 sm:$0x1]
        %s11380 = scalar_lea.vmem [#allocation6], 14
        %v11381 = vld [vmem:[%s11380] ss:$100 sm:$0x1]
        %s11382 = scalar_lea.vmem [#allocation6], 15
        %v11383 = vld [vmem:[%s11382] ss:$100 sm:$0x1]
        %v11384 = vmax.f32 %v11377, %v11379
        %v11385 = vmax.f32 %v11381, %v11383
        %v11386 = vmax.f32 %v11384, %v11385
        %v11387 = vpack.c.bf16 %v11386, %v11386
        %s11388 = scalar_lea.vmem %s7, 64
        %v11389 = vld [vmem:[%s11388] sm:$0xf]
        %v11390 = vld [vmem:[%s11388 + $0x4] sm:$0xf]
        %v11391 = vld [vmem:[%s11388 + $0x8] sm:$0xf]
        %v11392 = vld [vmem:[%s11388 + $0xc] sm:$0xf]
        %v11393 = vld [vmem:[%s11388 + $0x10] sm:$0xf]
        %v11394 = vld [vmem:[%s11388 + $0x14] sm:$0xf]
        %v11395 = vld [vmem:[%s11388 + $0x18] sm:$0xf]
        %v11396 = vld [vmem:[%s11388 + $0x1c] sm:$0xf]
        %v11405 = vunpack.c.l.b16 %v11389
        %v11406 = vunpack.c.l.b16 %v11390
        %v11407 = vunpack.c.l.b16 %v11391
        %v11408 = vunpack.c.l.b16 %v11392
        %v11409 = vunpack.c.l.b16 %v11393
        %v11410 = vunpack.c.l.b16 %v11394
        %v11411 = vunpack.c.l.b16 %v11395
        %v11412 = vunpack.c.l.b16 %v11396
        %v11413 = vpack.c.b16 %v11406, %v11405
        %v11414 = vpack.c.b16 %v11408, %v11407
        %v11415 = vpack.c.b16 %v11410, %v11409
        %v11416 = vpack.c.b16 %v11412, %v11411
        %v11422 = vsel %vm11241, %v11387, 0
        %11424 = vmatpush.bf16.msra.mxu0 0
        %11425 = vmatpush.bf16.msra.mxu0 0
        %11426 = vmatpush.bf16.msra.mxu0 0
        %11427 = vmatpush.bf16.msra.mxu0 0
        %11428 = vmatpush.bf16.msra.mxu0 %v11416
        %11429 = vmatpush.bf16.msra.mxu0 %v11415
        %11430 = vmatpush.bf16.msra.mxu0 %v11414
        %11431 = vmatpush.bf16.msra.mxu0 %v11413
        %11432 = vmatmul.bf16.gmra.mxu0 %v11422
        %v11433 = vpop.f32.mrf.mxu0
        %v11434 = vadd.f32 0.0, %v11433
        %v11435 = vpop.f32.mrf.mxu0
        %11436 = vdwg.mxu0
        %v11437 = vadd.f32 %v11373, %v11434
        %s11438 = scalar_lea.vmem [#allocation6], 20
        %v11439 = vld [vmem:[%s11438] ss:$100 sm:$0x1]
        %s11440 = scalar_lea.vmem [#allocation6], 21
        %v11441 = vld [vmem:[%s11440] ss:$100 sm:$0x1]
        %s11442 = scalar_lea.vmem [#allocation6], 30
        %v11443 = vld [vmem:[%s11442] ss:$100 sm:$0x1]
        %s11444 = scalar_lea.vmem [#allocation6], 31
        %v11445 = vld [vmem:[%s11444] ss:$100 sm:$0x1]
        %v11446 = vmax.f32 %v11439, %v11441
        %v11447 = vmax.f32 %v11443, %v11445
        %v11448 = vmax.f32 %v11446, %v11447
        %v11449 = vpack.c.bf16 %v11448, %v11448
        %s11450 = scalar_lea.vmem %s7, 96
        %v11451 = vld [vmem:[%s11450] sm:$0xf]
        %v11452 = vld [vmem:[%s11450 + $0x4] sm:$0xf]
        %v11453 = vld [vmem:[%s11450 + $0x8] sm:$0xf]
        %v11454 = vld [vmem:[%s11450 + $0xc] sm:$0xf]
        %v11455 = vld [vmem:[%s11450 + $0x10] sm:$0xf]
        %v11456 = vld [vmem:[%s11450 + $0x14] sm:$0xf]
        %v11457 = vld [vmem:[%s11450 + $0x18] sm:$0xf]
        %v11458 = vld [vmem:[%s11450 + $0x1c] sm:$0xf]
        %v11467 = vunpack.c.l.b16 %v11451
        %v11468 = vunpack.c.l.b16 %v11452
        %v11469 = vunpack.c.l.b16 %v11453
        %v11470 = vunpack.c.l.b16 %v11454
        %v11471 = vunpack.c.l.b16 %v11455
        %v11472 = vunpack.c.l.b16 %v11456
        %v11473 = vunpack.c.l.b16 %v11457
        %v11474 = vunpack.c.l.b16 %v11458
        %v11475 = vpack.c.b16 %v11468, %v11467
        %v11476 = vpack.c.b16 %v11470, %v11469
        %v11477 = vpack.c.b16 %v11472, %v11471
        %v11478 = vpack.c.b16 %v11474, %v11473
        %v11484 = vsel %vm11241, %v11449, 0
        %11486 = vmatpush.bf16.msra.mxu0 0
        %11487 = vmatpush.bf16.msra.mxu0 0
        %11488 = vmatpush.bf16.msra.mxu0 0
        %11489 = vmatpush.bf16.msra.mxu0 0
        %11490 = vmatpush.bf16.msra.mxu0 %v11478
        %11491 = vmatpush.bf16.msra.mxu0 %v11477
        %11492 = vmatpush.bf16.msra.mxu0 %v11476
        %11493 = vmatpush.bf16.msra.mxu0 %v11475
        %11494 = vmatmul.bf16.gmra.mxu0 %v11484
        %v11495 = vpop.f32.mrf.mxu0
        %v11496 = vadd.f32 0.0, %v11495
        %v11497 = vpop.f32.mrf.mxu0
        %11498 = vdwg.mxu0
        %v11499 = vadd.f32 %v11437, %v11496
        %s11500 = scalar_lea.vmem [#allocation6], 22
        %v11501 = vld [vmem:[%s11500] ss:$100 sm:$0x1]
        %s11502 = scalar_lea.vmem [#allocation6], 23
        %v11503 = vld [vmem:[%s11502] ss:$100 sm:$0x1]
        %s11504 = scalar_lea.vmem [#allocation6], 32
        %v11505 = vld [vmem:[%s11504] ss:$100 sm:$0x1]
        %s11506 = scalar_lea.vmem [#allocation6], 33
        %v11507 = vld [vmem:[%s11506] ss:$100 sm:$0x1]
        %v11508 = vmax.f32 %v11501, %v11503
        %v11509 = vmax.f32 %v11505, %v11507
        %v11510 = vmax.f32 %v11508, %v11509
        %v11511 = vpack.c.bf16 %v11510, %v11510
        %s11512 = scalar_lea.vmem %s7, 128
        %v11513 = vld [vmem:[%s11512] sm:$0xf]
        %v11514 = vld [vmem:[%s11512 + $0x4] sm:$0xf]
        %v11515 = vld [vmem:[%s11512 + $0x8] sm:$0xf]
        %v11516 = vld [vmem:[%s11512 + $0xc] sm:$0xf]
        %v11517 = vld [vmem:[%s11512 + $0x10] sm:$0xf]
        %v11518 = vld [vmem:[%s11512 + $0x14] sm:$0xf]
        %v11519 = vld [vmem:[%s11512 + $0x18] sm:$0xf]
        %v11520 = vld [vmem:[%s11512 + $0x1c] sm:$0xf]
        %v11529 = vunpack.c.l.b16 %v11513
        %v11530 = vunpack.c.l.b16 %v11514
        %v11531 = vunpack.c.l.b16 %v11515
        %v11532 = vunpack.c.l.b16 %v11516
        %v11533 = vunpack.c.l.b16 %v11517
        %v11534 = vunpack.c.l.b16 %v11518
        %v11535 = vunpack.c.l.b16 %v11519
        %v11536 = vunpack.c.l.b16 %v11520
        %v11537 = vpack.c.b16 %v11530, %v11529
        %v11538 = vpack.c.b16 %v11532, %v11531
        %v11539 = vpack.c.b16 %v11534, %v11533
        %v11540 = vpack.c.b16 %v11536, %v11535
        %v11546 = vsel %vm11241, %v11511, 0
        %11548 = vmatpush.bf16.msra.mxu0 0
        %11549 = vmatpush.bf16.msra.mxu0 0
        %11550 = vmatpush.bf16.msra.mxu0 0
        %11551 = vmatpush.bf16.msra.mxu0 0
        %11552 = vmatpush.bf16.msra.mxu0 %v11540
        %11553 = vmatpush.bf16.msra.mxu0 %v11539
        %11554 = vmatpush.bf16.msra.mxu0 %v11538
        %11555 = vmatpush.bf16.msra.mxu0 %v11537
        %11556 = vmatmul.bf16.gmra.mxu0 %v11546
        %v11557 = vpop.f32.mrf.mxu0
        %v11558 = vadd.f32 0.0, %v11557
        %v11559 = vpop.f32.mrf.mxu0
        %11560 = vdwg.mxu0
        %v11561 = vadd.f32 %v11499, %v11558
        %s11562 = scalar_lea.vmem [#allocation6], 24
        %v11563 = vld [vmem:[%s11562] ss:$100 sm:$0x1]
        %s11564 = scalar_lea.vmem [#allocation6], 25
        %v11565 = vld [vmem:[%s11564] ss:$100 sm:$0x1]
        %s11566 = scalar_lea.vmem [#allocation6], 34
        %v11567 = vld [vmem:[%s11566] ss:$100 sm:$0x1]
        %s11568 = scalar_lea.vmem [#allocation6], 35
        %v11569 = vld [vmem:[%s11568] ss:$100 sm:$0x1]
        %v11570 = vmax.f32 %v11563, %v11565
        %v11571 = vmax.f32 %v11567, %v11569
        %v11572 = vmax.f32 %v11570, %v11571
        %v11573 = vpack.c.bf16 %v11572, %v11572
        %s11574 = scalar_lea.vmem %s7, 160
        %v11575 = vld [vmem:[%s11574] sm:$0xf]
        %v11576 = vld [vmem:[%s11574 + $0x4] sm:$0xf]
        %v11577 = vld [vmem:[%s11574 + $0x8] sm:$0xf]
        %v11578 = vld [vmem:[%s11574 + $0xc] sm:$0xf]
        %v11579 = vld [vmem:[%s11574 + $0x10] sm:$0xf]
        %v11580 = vld [vmem:[%s11574 + $0x14] sm:$0xf]
        %v11581 = vld [vmem:[%s11574 + $0x18] sm:$0xf]
        %v11582 = vld [vmem:[%s11574 + $0x1c] sm:$0xf]
        %v11591 = vunpack.c.l.b16 %v11575
        %v11592 = vunpack.c.l.b16 %v11576
        %v11593 = vunpack.c.l.b16 %v11577
        %v11594 = vunpack.c.l.b16 %v11578
        %v11595 = vunpack.c.l.b16 %v11579
        %v11596 = vunpack.c.l.b16 %v11580
        %v11597 = vunpack.c.l.b16 %v11581
        %v11598 = vunpack.c.l.b16 %v11582
        %v11599 = vpack.c.b16 %v11592, %v11591
        %v11600 = vpack.c.b16 %v11594, %v11593
        %v11601 = vpack.c.b16 %v11596, %v11595
        %v11602 = vpack.c.b16 %v11598, %v11597
        %v11608 = vsel %vm11241, %v11573, 0
        %11610 = vmatpush.bf16.msra.mxu0 0
        %11611 = vmatpush.bf16.msra.mxu0 0
        %11612 = vmatpush.bf16.msra.mxu0 0
        %11613 = vmatpush.bf16.msra.mxu0 0
        %11614 = vmatpush.bf16.msra.mxu0 %v11602
        %11615 = vmatpush.bf16.msra.mxu0 %v11601
        %11616 = vmatpush.bf16.msra.mxu0 %v11600
        %11617 = vmatpush.bf16.msra.mxu0 %v11599
        %11618 = vmatmul.bf16.gmra.mxu0 %v11608
        %v11619 = vpop.f32.mrf.mxu0
        %v11620 = vadd.f32 0.0, %v11619
        %v11621 = vpop.f32.mrf.mxu0
        %11622 = vdwg.mxu0
        %v11623 = vadd.f32 %v11561, %v11620
        %s11624 = scalar_lea.vmem [#allocation6], 40
        %v11625 = vld [vmem:[%s11624] ss:$100 sm:$0x1]
        %s11626 = scalar_lea.vmem [#allocation6], 41
        %v11627 = vld [vmem:[%s11626] ss:$100 sm:$0x1]
        %s11628 = scalar_lea.vmem [#allocation6], 50
        %v11629 = vld [vmem:[%s11628] ss:$100 sm:$0x1]
        %s11630 = scalar_lea.vmem [#allocation6], 51
        %v11631 = vld [vmem:[%s11630] ss:$100 sm:$0x1]
        %v11632 = vmax.f32 %v11625, %v11627
        %v11633 = vmax.f32 %v11629, %v11631
        %v11634 = vmax.f32 %v11632, %v11633
        %v11635 = vpack.c.bf16 %v11634, %v11634
        %s11636 = scalar_lea.vmem %s7, 192
        %v11637 = vld [vmem:[%s11636] sm:$0xf]
        %v11638 = vld [vmem:[%s11636 + $0x4] sm:$0xf]
        %v11639 = vld [vmem:[%s11636 + $0x8] sm:$0xf]
        %v11640 = vld [vmem:[%s11636 + $0xc] sm:$0xf]
        %v11641 = vld [vmem:[%s11636 + $0x10] sm:$0xf]
        %v11642 = vld [vmem:[%s11636 + $0x14] sm:$0xf]
        %v11643 = vld [vmem:[%s11636 + $0x18] sm:$0xf]
        %v11644 = vld [vmem:[%s11636 + $0x1c] sm:$0xf]
        %v11653 = vunpack.c.l.b16 %v11637
        %v11654 = vunpack.c.l.b16 %v11638
        %v11655 = vunpack.c.l.b16 %v11639
        %v11656 = vunpack.c.l.b16 %v11640
        %v11657 = vunpack.c.l.b16 %v11641
        %v11658 = vunpack.c.l.b16 %v11642
        %v11659 = vunpack.c.l.b16 %v11643
        %v11660 = vunpack.c.l.b16 %v11644
        %v11661 = vpack.c.b16 %v11654, %v11653
        %v11662 = vpack.c.b16 %v11656, %v11655
        %v11663 = vpack.c.b16 %v11658, %v11657
        %v11664 = vpack.c.b16 %v11660, %v11659
        %v11670 = vsel %vm11241, %v11635, 0
        %11672 = vmatpush.bf16.msra.mxu0 0
        %11673 = vmatpush.bf16.msra.mxu0 0
        %11674 = vmatpush.bf16.msra.mxu0 0
        %11675 = vmatpush.bf16.msra.mxu0 0
        %11676 = vmatpush.bf16.msra.mxu0 %v11664
        %11677 = vmatpush.bf16.msra.mxu0 %v11663
        %11678 = vmatpush.bf16.msra.mxu0 %v11662
        %11679 = vmatpush.bf16.msra.mxu0 %v11661
        %11680 = vmatmul.bf16.gmra.mxu0 %v11670
        %v11681 = vpop.f32.mrf.mxu0
        %v11682 = vadd.f32 0.0, %v11681
        %v11683 = vpop.f32.mrf.mxu0
        %11684 = vdwg.mxu0
        %v11685 = vadd.f32 %v11623, %v11682
        %s11686 = scalar_lea.vmem [#allocation6], 42
        %v11687 = vld [vmem:[%s11686] ss:$100 sm:$0x1]
        %s11688 = scalar_lea.vmem [#allocation6], 43
        %v11689 = vld [vmem:[%s11688] ss:$100 sm:$0x1]
        %s11690 = scalar_lea.vmem [#allocation6], 52
        %v11691 = vld [vmem:[%s11690] ss:$100 sm:$0x1]
        %s11692 = scalar_lea.vmem [#allocation6], 53
        %v11693 = vld [vmem:[%s11692] ss:$100 sm:$0x1]
        %v11694 = vmax.f32 %v11687, %v11689
        %v11695 = vmax.f32 %v11691, %v11693
        %v11696 = vmax.f32 %v11694, %v11695
        %v11697 = vpack.c.bf16 %v11696, %v11696
        %s11698 = scalar_lea.vmem %s7, 224
        %v11699 = vld [vmem:[%s11698] sm:$0xf]
        %v11700 = vld [vmem:[%s11698 + $0x4] sm:$0xf]
        %v11701 = vld [vmem:[%s11698 + $0x8] sm:$0xf]
        %v11702 = vld [vmem:[%s11698 + $0xc] sm:$0xf]
        %v11703 = vld [vmem:[%s11698 + $0x10] sm:$0xf]
        %v11704 = vld [vmem:[%s11698 + $0x14] sm:$0xf]
        %v11705 = vld [vmem:[%s11698 + $0x18] sm:$0xf]
        %v11706 = vld [vmem:[%s11698 + $0x1c] sm:$0xf]
        %v11715 = vunpack.c.l.b16 %v11699
        %v11716 = vunpack.c.l.b16 %v11700
        %v11717 = vunpack.c.l.b16 %v11701
        %v11718 = vunpack.c.l.b16 %v11702
        %v11719 = vunpack.c.l.b16 %v11703
        %v11720 = vunpack.c.l.b16 %v11704
        %v11721 = vunpack.c.l.b16 %v11705
        %v11722 = vunpack.c.l.b16 %v11706
        %v11723 = vpack.c.b16 %v11716, %v11715
        %v11724 = vpack.c.b16 %v11718, %v11717
        %v11725 = vpack.c.b16 %v11720, %v11719
        %v11726 = vpack.c.b16 %v11722, %v11721
        %v11732 = vsel %vm11241, %v11697, 0
        %11734 = vmatpush.bf16.msra.mxu0 0
        %11735 = vmatpush.bf16.msra.mxu0 0
        %11736 = vmatpush.bf16.msra.mxu0 0
        %11737 = vmatpush.bf16.msra.mxu0 0
        %11738 = vmatpush.bf16.msra.mxu0 %v11726
        %11739 = vmatpush.bf16.msra.mxu0 %v11725
        %11740 = vmatpush.bf16.msra.mxu0 %v11724
        %11741 = vmatpush.bf16.msra.mxu0 %v11723
        %11742 = vmatmul.bf16.gmra.mxu0 %v11732
        %v11743 = vpop.f32.mrf.mxu0
        %v11744 = vadd.f32 0.0, %v11743
        %v11745 = vpop.f32.mrf.mxu0
        %11746 = vdwg.mxu0
        %v11747 = vadd.f32 %v11685, %v11744
        %s11748 = scalar_lea.vmem [#allocation6], 44
        %v11749 = vld [vmem:[%s11748] ss:$100 sm:$0x1]
        %s11750 = scalar_lea.vmem [#allocation6], 45
        %v11751 = vld [vmem:[%s11750] ss:$100 sm:$0x1]
        %s11752 = scalar_lea.vmem [#allocation6], 54
        %v11753 = vld [vmem:[%s11752] ss:$100 sm:$0x1]
        %s11754 = scalar_lea.vmem [#allocation6], 55
        %v11755 = vld [vmem:[%s11754] ss:$100 sm:$0x1]
        %v11756 = vmax.f32 %v11749, %v11751
        %v11757 = vmax.f32 %v11753, %v11755
        %v11758 = vmax.f32 %v11756, %v11757
        %v11759 = vpack.c.bf16 %v11758, %v11758
        %s11760 = scalar_lea.vmem %s7, 256
        %v11761 = vld [vmem:[%s11760] sm:$0xf]
        %v11762 = vld [vmem:[%s11760 + $0x4] sm:$0xf]
        %v11763 = vld [vmem:[%s11760 + $0x8] sm:$0xf]
        %v11764 = vld [vmem:[%s11760 + $0xc] sm:$0xf]
        %v11765 = vld [vmem:[%s11760 + $0x10] sm:$0xf]
        %v11766 = vld [vmem:[%s11760 + $0x14] sm:$0xf]
        %v11767 = vld [vmem:[%s11760 + $0x18] sm:$0xf]
        %v11768 = vld [vmem:[%s11760 + $0x1c] sm:$0xf]
        %v11777 = vunpack.c.l.b16 %v11761
        %v11778 = vunpack.c.l.b16 %v11762
        %v11779 = vunpack.c.l.b16 %v11763
        %v11780 = vunpack.c.l.b16 %v11764
        %v11781 = vunpack.c.l.b16 %v11765
        %v11782 = vunpack.c.l.b16 %v11766
        %v11783 = vunpack.c.l.b16 %v11767
        %v11784 = vunpack.c.l.b16 %v11768
        %v11785 = vpack.c.b16 %v11778, %v11777
        %v11786 = vpack.c.b16 %v11780, %v11779
        %v11787 = vpack.c.b16 %v11782, %v11781
        %v11788 = vpack.c.b16 %v11784, %v11783
        %v11794 = vsel %vm11241, %v11759, 0
        %11796 = vmatpush.bf16.msra.mxu0 0
        %11797 = vmatpush.bf16.msra.mxu0 0
        %11798 = vmatpush.bf16.msra.mxu0 0
        %11799 = vmatpush.bf16.msra.mxu0 0
        %11800 = vmatpush.bf16.msra.mxu0 %v11788
        %11801 = vmatpush.bf16.msra.mxu0 %v11787
        %11802 = vmatpush.bf16.msra.mxu0 %v11786
        %11803 = vmatpush.bf16.msra.mxu0 %v11785
        %11804 = vmatmul.bf16.gmra.mxu0 %v11794
        %v11805 = vpop.f32.mrf.mxu0
        %v11806 = vadd.f32 0.0, %v11805
        %v11807 = vpop.f32.mrf.mxu0
        %11808 = vdwg.mxu0
        %v11809 = vadd.f32 %v11747, %v11806
        %v11810 = vld [vmem:[%s8] sm:$0x1]
        %v11811 = vadd.f32 %v11809, %v11810
        %v11812 = vmax.f32 %v11811, 0.0
        %v11813 = vpack.c.bf16 %v11812, %v11812
        %v11814 = vld [vmem:[%s9] sm:$0xf]
        %v11815 = vld [vmem:[%s9 + $0x4] sm:$0xf]
        %v11816 = vld [vmem:[%s9 + $0x8] sm:$0xf]
        %v11817 = vld [vmem:[%s9 + $0xc] sm:$0xf]
        %v11818 = vld [vmem:[%s9 + $0x10] sm:$0xf]
        %v11819 = vld [vmem:[%s9 + $0x14] sm:$0xf]
        %v11820 = vld [vmem:[%s9 + $0x18] sm:$0xf]
        %v11821 = vld [vmem:[%s9 + $0x1c] sm:$0xf]
        %v11822 = vld [vmem:[%s9 + $0x20] sm:$0xf]
        %v11823 = vld [vmem:[%s9 + $0x24] sm:$0xf]
        %v11824 = vld [vmem:[%s9 + $0x28] sm:$0xf]
        %v11825 = vld [vmem:[%s9 + $0x2c] sm:$0xf]
        %v11826 = vld [vmem:[%s9 + $0x30] sm:$0xf]
        %v11827 = vld [vmem:[%s9 + $0x34] sm:$0xf]
        %v11828 = vld [vmem:[%s9 + $0x38] sm:$0xf]
        %v11829 = vld [vmem:[%s9 + $0x3c] sm:$0xf]
        %v11830 = vld [vmem:[%s10] sm:$0x1]
        %v11847 = vunpack.c.l.b16 %v11814
        %v11848 = vunpack.c.l.b16 %v11815
        %v11849 = vunpack.c.l.b16 %v11816
        %v11850 = vunpack.c.l.b16 %v11817
        %v11851 = vunpack.c.l.b16 %v11818
        %v11852 = vunpack.c.l.b16 %v11819
        %v11853 = vunpack.c.l.b16 %v11820
        %v11854 = vunpack.c.l.b16 %v11821
        %v11855 = vunpack.c.l.b16 %v11822
        %v11856 = vunpack.c.l.b16 %v11823
        %v11857 = vunpack.c.l.b16 %v11824
        %v11858 = vunpack.c.l.b16 %v11825
        %v11859 = vunpack.c.l.b16 %v11826
        %v11860 = vunpack.c.l.b16 %v11827
        %v11861 = vunpack.c.l.b16 %v11828
        %v11862 = vunpack.c.l.b16 %v11829
        %v11863 = vpack.c.b16 %v11848, %v11847
        %v11864 = vpack.c.b16 %v11850, %v11849
        %v11865 = vpack.c.b16 %v11852, %v11851
        %v11866 = vpack.c.b16 %v11854, %v11853
        %v11867 = vpack.c.b16 %v11856, %v11855
        %v11868 = vpack.c.b16 %v11858, %v11857
        %v11869 = vpack.c.b16 %v11860, %v11859
        %v11870 = vpack.c.b16 %v11862, %v11861
        %11879 = vmatpush.bf16.msra.mxu0 %v11870
        %11880 = vmatpush.bf16.msra.mxu0 %v11869
        %11881 = vmatpush.bf16.msra.mxu0 %v11868
        %11882 = vmatpush.bf16.msra.mxu0 %v11867
        %11883 = vmatpush.bf16.msra.mxu0 %v11866
        %11884 = vmatpush.bf16.msra.mxu0 %v11865
        %11885 = vmatpush.bf16.msra.mxu0 %v11864
        %11886 = vmatpush.bf16.msra.mxu0 %v11863
        %11887 = vmatmul.bf16.gmra.mxu0 %v11813
        %v11888 = vpop.f32.mrf.mxu0
        %v11889 = vadd.f32 %v11830, %v11888
        %v11890 = vpop.f32.mrf.mxu0
        %11891 = vdwg.mxu0
        %11892 = vst [vmem:[%s379] sm:$0x1] %v11889
        %s11893 = sand.u32 %s269, 1
        %s11894 = scalar_lea.sflag [#allocation8], %s11893
        %s11895 = sand.u32 %s269, 1
        %s11896 = scalar_lea.vmem [#allocation7], %s11895
        // Predicated region
        $region65: #{cnn_forward.1} parent=63 // pred_check
          %p11897 = pneg %p279
        $region66: #{cnn_forward.1} parent=63 // pred_check_branch
          %11899 = sbr.rel (%p11897) target = $region68
        $region67: #{cnn_forward.1} parent=63 // pred_region
          %11901 = vsyncadd %s11894, 0
          %s11902 = scalar_lea.hbm %s11, %s25
          %s11904 = sshll.u32 %s11896, 4
          %s11905 = int_to_ptr.vmem [resolvable:$true] %s11904
          %s11906 = sshll.u32 %s11902, 4
          %s11907 = int_to_ptr.hbm [resolvable:$true] %s11906
          %11909 = dma.vmem_to_hbm [thread:$0]  %s11905, 16, %s11907, %s11894
        $region68: #{cnn_forward.1} parent=63 // pred_fallthru
          _
      $region64: #{cnn_forward.1} parent=5 // pred_fallthru
        _
      %p11910 = scmp.le.s32.totalorder 2, %s20
      // Predicated region
      $region69: #{cnn_forward.1} parent=5 // pred_check
        %p11911 = pneg %p11910
      $region70: #{cnn_forward.1} parent=5 // pred_check_branch
        %11913 = sbr.rel (%p11911) target = $region72
      $region71: #{cnn_forward.1} parent=5 // pred_region
        %s11914 = ssub.s32 %s20, 2
        // Predicated region
        $region73: #{cnn_forward.1} parent=71 // pred_check
          %p11915 = pneg %p285
        $region74: #{cnn_forward.1} parent=71 // pred_check_branch
          %11917 = sbr.rel (%p11915) target = $region76
        $region75: #{cnn_forward.1} parent=71 // pred_region
          %s11918 = sand.u32 %s270, 1
          %s11919 = scalar_lea.sflag [#allocation8], %s11918
          %s11920 = sand.u32 %s270, 1
          %s11921 = scalar_lea.vmem [#allocation7], %s11920
          %11923 = dma.done %s11919, 16
        $region76: #{cnn_forward.1} parent=71 // pred_fallthru
          _
      $region72: #{cnn_forward.1} parent=5 // pred_fallthru
        _
    $region6: #{cnn_forward.1} parent=1 // loop_footer
      %s24 = sadd.s32 1, %s20
    $region7: #{cnn_forward.1} parent=1 // loop_footer_branch
      %19 = sbr.rel target = $region3
    $region8: #{cnn_forward.1} parent=1 // loop_exit
      _
    %11924 = vsyncpa [#allocation8], 1
    %s11925 = scalar_lea.sflag [#allocation8], 1
    %11926 = vsyncpa %s11925, 1

</llo_original>
